<compile_context>
chip_gen: v6e
topology: v6e:2x2x1
jax: 0.10.0
libtpu: 0.0.40
codegen_flags: <defaults>
</compile_context>

<pallas_src>
import jax
import jax.numpy as jnp
from jax import lax
from jax.experimental import pallas as pl
from jax.experimental.pallas import tpu as pltpu

_INV_SQRT2 = 0.7071067811865476


def _round_up(x, m):
    return ((x + m - 1) // m) * m


# ---------------------------------------------------------------------------
# Kernel 1: ConvTranspose2d(kernel=2, stride=2) hot path.
#   Per image: y4(4*Cout, H*W) = Wx(4*Cout,Cx) @ x + Ws(4*Cout,Cs) @ skip + b
#   (rows ordered (dy, dx, cout)).  Lane-dense output; casts to bf16 in VMEM.
# ---------------------------------------------------------------------------
def _upconv_kernel(x_ref, s_ref, wx_ref, ws_ref, b_ref, o_ref):
    x = x_ref[...].astype(jnp.bfloat16)          # f32 -> bf16 inside the kernel
    s = s_ref[...].astype(jnp.bfloat16)
    acc = jnp.dot(wx_ref[...], x, preferred_element_type=jnp.float32)
    acc = acc + jnp.dot(ws_ref[...], s, preferred_element_type=jnp.float32)
    o_ref[...] = (acc + b_ref[...]).astype(o_ref.dtype)


def conv_transpose_2x2(x_flat, skip_flat, w, b):
    """x_flat: (N, Cx, H*W) f32; skip_flat: (N, Cs, H*W) f32;
    w: (Cin, Cout, 2, 2) PyTorch ConvTranspose layout (Cin = Cx + Cs); b: (Cout,).
    Returns (N, 4*Cout, H*W) bf16, rows ordered (dy, dx, cout)."""
    N, Cx, HW = x_flat.shape
    Cs = skip_flat.shape[1]
    Cout = w.shape[1]
    R = 4 * Cout
    w4 = jnp.transpose(w, (2, 3, 1, 0)).reshape(R, Cx + Cs).astype(jnp.bfloat16)
    wx4, ws4 = w4[:, :Cx], w4[:, Cx:]
    b4 = jnp.tile(b.astype(jnp.float32), 4).reshape(R, 1)
    return pl.pallas_call(
        _upconv_kernel,
        out_shape=jax.ShapeDtypeStruct((N, R, HW), jnp.bfloat16),
        grid_spec=pltpu.PrefetchScalarGridSpec(
            num_scalar_prefetch=0,
            grid=(N,),
            in_specs=[
                pl.BlockSpec((None, Cx, HW), lambda n: (n, 0, 0)),
                pl.BlockSpec((None, Cs, HW), lambda n: (n, 0, 0)),
                pl.BlockSpec((R, Cx), lambda n: (0, 0)),     # weights stay resident
                pl.BlockSpec((R, Cs), lambda n: (0, 0)),
                pl.BlockSpec((R, 1), lambda n: (0, 0)),
            ],
            out_specs=pl.BlockSpec((None, R, HW), lambda n: (n, 0, 0)),
        ),
        compiler_params=pltpu.CompilerParams(dimension_semantics=("parallel",)),
    )(x_flat, skip_flat, wx4, ws4, b4)


# ---------------------------------------------------------------------------
# Kernel 2: fused conv layer step (one per Conv2d(3x3)+BN+GELU in the blocks).
#   - optionally applies the PREVIOUS layer's BN affine + exact GELU on load,
#   - re-establishes the zero padding via the resident interior mask,
#   - builds a zero-guarded halo window in a VMEM scratch (no HBM windowing),
#   - 9 shifted (Cout,Cin)@(Cin,Mp) MXU dots with f32 accumulation,
#   - writes the pre-BN activation once (bf16) + per-image BN partial stats
#     [sum, mean-centered M2] for a numerically safe Chan merge outside.
# Conv bias is omitted: it is exactly cancelled by the following batch-stat BN.
# ---------------------------------------------------------------------------
def _make_conv3_kernel(Hp, Wp, Cin, Cout, GOFF, Lh, apply_act):
    Mp = Hp * Wp
    inv_cnt = 1.0 / float((Hp - 2) * (Wp - 2))   # real pixels per image

    def _body(z_ref, sc_ref, sh_ref, w_ref, mask_ref, zo_ref, st_ref, hbuf):
        mask = mask_ref[...]                                   # (1, Mp) 0/1 f32
        a = z_ref[...].astype(jnp.float32)                     # (Cin, Mp)
        if apply_act:
            a = a * sc_ref[...] + sh_ref[...]                  # prev-layer BN
            a = 0.5 * a * (1.0 + lax.erf(a * _INV_SQRT2))      # prev-layer GELU
        a = a * mask                                           # zero the halo ring

        # Zero-guarded halo window in VMEM (aligned stores, then value slices).
        hbuf[...] = jnp.zeros((Cin, Lh), jnp.bfloat16)
        hbuf[:, GOFF:GOFF + Mp] = a.astype(jnp.bfloat16)
        win = hbuf[...]

        acc = jnp.zeros((Cout, Mp), jnp.float32)
        for dy in (-1, 0, 1):
            for dx in (-1, 0, 1):
                off = dy * Wp + dx
                sl = win[:, GOFF + off:GOFF + off + Mp]        # (Cin, Mp) bf16
                wt = w_ref[(dy + 1) * 3 + (dx + 1)]            # (Cout, Cin) bf16
                acc = acc + jnp.dot(wt, sl, preferred_element_type=jnp.float32)

        zo_ref[...] = acc.astype(zo_ref.dtype)                 # pre-BN activation

        am = acc * mask
        s = jnp.sum(am, axis=1, keepdims=True)                 # per-image sum
        d = (acc - s * inv_cnt) * mask                         # centered, masked
        m2 = jnp.sum(d * d, axis=1, keepdims=True)             # per-image M2
        st_ref[:, 0:1] = s
        st_ref[:, 1:2] = m2

    if apply_act:
        def kernel(z_ref, sc_ref, sh_ref, w_ref, mask_ref, zo_ref, st_ref, hbuf):
            _body(z_ref, sc_ref, sh_ref, w_ref, mask_ref, zo_ref, st_ref, hbuf)
    else:
        def kernel(z_ref, w_ref, mask_ref, zo_ref, st_ref, hbuf):
            _body(z_ref, None, None, w_ref, mask_ref, zo_ref, st_ref, hbuf)
    return kernel


def conv3x3_stats(z, w, mask, *, Hp, Wp, act_scale=None, act_shift=None):
    """z: (N, Cin, Hp*Wp) bf16 padded layout (halo content irrelevant);
    w: (Cout, Cin, 3, 3) PyTorch layout.  Returns (pre-BN activation, stats)."""
    N, Cin, Mp = z.shape
    Cout = w.shape[0]
    assert Mp == Hp * Wp
    w9 = jnp.transpose(w, (2, 3, 0, 1)).reshape(9, Cout, Cin).astype(jnp.bfloat16)
    GOFF = _round_up(Wp + 1, 128)                 # aligned halo-scratch offset
    Lh = _round_up(GOFF + Mp + Wp + 1, 128)
    apply_act = act_scale is not None

    in_specs = [pl.BlockSpec((None, Cin, Mp), lambda n: (n, 0, 0))]
    args = [z]
    if apply_act:
        in_specs += [pl.BlockSpec((Cin, 1), lambda n: (0, 0)),
                     pl.BlockSpec((Cin, 1), lambda n: (0, 0))]
        args += [act_scale.reshape(Cin, 1).astype(jnp.float32),
                 act_shift.reshape(Cin, 1).astype(jnp.float32)]
    in_specs += [pl.BlockSpec((9, Cout, Cin), lambda n: (0, 0, 0)),
                 pl.BlockSpec((1, Mp), lambda n: (0, 0))]      # resident mask
    args += [w9, mask]

    z_out, stats = pl.pallas_call(
        _make_conv3_kernel(Hp, Wp, Cin, Cout, GOFF, Lh, apply_act),
        out_shape=(jax.ShapeDtypeStruct((N, Cout, Mp), jnp.bfloat16),
                   jax.ShapeDtypeStruct((N, Cout, 2), jnp.float32)),
        grid_spec=pltpu.PrefetchScalarGridSpec(
            num_scalar_prefetch=0,
            grid=(N,),
            in_specs=in_specs,
            out_specs=[pl.BlockSpec((None, Cout, Mp), lambda n: (n, 0, 0)),
                       pl.BlockSpec((None, Cout, 2), lambda n: (n, 0, 0))],
            scratch_shapes=[pltpu.VMEM((Cin, Lh), jnp.bfloat16)],
        ),
        compiler_params=pltpu.CompilerParams(dimension_semantics=("parallel",)),
    )(*args)
    return z_out, stats


def _bn_affine(stats, gamma, beta, *, cnt, eps=1e-5):
    """Chan-merge per-image [sum, centered M2] into the batch mean / biased
    variance used by PyTorch BatchNorm2d in training mode; return (scale, shift)."""
    s, m2 = stats[:, :, 0], stats[:, :, 1]
    total = float(s.shape[0] * cnt)
    mean_i = s / float(cnt)
    mean = jnp.sum(s, axis=0) / total
    m2_tot = jnp.sum(m2, axis=0) + float(cnt) * jnp.sum(
        (mean_i - mean[None, :]) ** 2, axis=0)
    var = m2_tot / total
    scale = gamma / jnp.sqrt(var + eps)
    shift = beta - mean * scale
    return scale.astype(jnp.float32), shift.astype(jnp.float32)


# ---------------------------------------------------------------------------
# UnetUp forward
# ---------------------------------------------------------------------------
def unet_up(x, skip, params):
    N, Cx, H, W = x.shape
    Cs = skip.shape[1]
    Co = params["up_w"].shape[1]
    H2, W2 = 2 * H, 2 * W
    Hp, Wp = H2 + 2, W2 + 2
    Mp = Hp * Wp

    # ConvTranspose2d(2,2): x and skip consumed separately (no cat copy).
    y4 = conv_transpose_2x2(x.reshape(N, Cx, H * W), skip.reshape(N, Cs, H * W),
                            params["up_w"], params["up_b"])
    # TODO(synk): the 2x2 parity de-interleave + halo pad stays one fused XLA
    # relayout of the smallest activation; the stride-2 row-interleaved store
    # cannot be expressed as a Pallas BlockSpec tile.
    y4 = y4.reshape(N, 2, 2, Co, H, W)
    h = jnp.transpose(y4, (0, 3, 4, 1, 5, 2)).reshape(N, Co, H2, W2)
    z = jnp.pad(h, ((0, 0), (0, 0), (1, 1), (1, 1))).reshape(N, Co, Mp)

    # Interior (non-halo) mask in the padded flattened layout: a compile-time
    # constant, DMA'd once per conv call (constant index_map -> resident).
    lanes = jnp.arange(Mp, dtype=jnp.int32)
    yy, xx = lanes // Wp, lanes % Wp
    mask = (((yy >= 1) & (yy < Hp - 1) & (xx >= 1) & (xx < Wp - 1))
            .astype(jnp.float32).reshape(1, Mp))

    # 2 x ResidualConvBlock (is_res=False) = 4 fused conv+BN-stat layers; each
    # layer applies the previous layer's BN+GELU on load.
    layers = []
    for bp in (params["block1"], params["block2"]):
        layers += [(bp["w1"], bp["g1"], bp["be1"]), (bp["w2"], bp["g2"], bp["be2"])]

    scale = shift = None
    for w, gamma, beta in layers:
        z, stats = conv3x3_stats(z, w, mask, Hp=Hp, Wp=Wp,
                                 act_scale=scale, act_shift=shift)
        scale, shift = _bn_affine(stats, gamma, beta, cnt=H2 * W2)

    # Final BN + exact GELU + interior extraction (one fused XLA elementwise+slice).
    zf = z.reshape(N, Co, Hp, Wp).astype(jnp.float32)
    y = zf * scale[None, :, None, None] + shift[None, :, None, None]
    y = 0.5 * y * (1.0 + lax.erf(y * _INV_SQRT2))
    return y[:, :, 1:-1, 1:-1]


# ---------------------------------------------------------------------------
# Deterministic synthetic parameters (shapes follow UnetUp.__init__)
# ---------------------------------------------------------------------------
def init_params(key, in_channels, out_channels):
    ks = jax.random.split(key, 4)

    def block_params(k, c):
        k1, k2, k3, k4 = jax.random.split(k, 4)
        return {
            "w1": jax.random.normal(k1, (c, c, 3, 3), jnp.float32) * 0.1,
            "b1": jnp.zeros((c,), jnp.float32),   # cancelled by batch-stat BN
            "g1": 1.0 + 0.1 * jax.random.normal(k3, (c,), jnp.float32),
            "be1": 0.1 * jax.random.normal(k4, (c,), jnp.float32),
            "w2": jax.random.normal(k2, (c, c, 3, 3), jnp.float32) * 0.1,
            "b2": jnp.zeros((c,), jnp.float32),   # cancelled by batch-stat BN
            "g2": 1.0 + 0.1 * jax.random.normal(k4, (c,), jnp.float32),
            "be2": 0.1 * jax.random.normal(k3, (c,), jnp.float32),
        }

    return {
        # ConvTranspose2d(in_channels, out_channels, 2, 2): weight (Cin, Cout, 2, 2)
        "up_w": jax.random.normal(ks[0], (in_channels, out_channels, 2, 2),
                                  jnp.float32) * 0.1,
        "up_b": 0.1 * jax.random.normal(ks[1], (out_channels,), jnp.float32),
        "block1": block_params(ks[2], out_channels),
        "block2": block_params(ks[3], out_channels),
    }


# ---------------------------------------------------------------------------
if __name__ == "__main__":
    key = jax.random.PRNGKey(0)
    N, Cx, Cskip, H, W = 2, 4, 4, 16, 16
    out_channels = 4
    in_channels = Cx + Cskip  # after torch.cat((x, skip), 1)

    kx, ksk, kp = jax.random.split(key, 3)
    x = jax.random.normal(kx, (N, Cx, H, W), jnp.float32)
    skip = jax.random.normal(ksk, (N, Cskip, H, W), jnp.float32)
    params = init_params(kp, in_channels, out_channels)

    out = jax.jit(unet_up)(x, skip, params)
    out = jax.block_until_ready(out)
    assert out.shape == (N, out_channels, 2 * H, 2 * W), out.shape
    assert bool(jnp.all(jnp.isfinite(out)))
    print("KERNEL_OK")
</pallas_src>

<mosaic_0001>
module attributes {stable_mosaic.version = 11 : i64} {
  func.func @_upconv_kernel(%arg0: i32, %arg1: memref<1x4x256xf32, #tpu.memory_space<vmem>>, %arg2: memref<1x4x256xf32, #tpu.memory_space<vmem>>, %arg3: memref<16x4xbf16, #tpu.memory_space<vmem>>, %arg4: memref<16x4xbf16, #tpu.memory_space<vmem>>, %arg5: memref<16x1xf32, #tpu.memory_space<vmem>>, %arg6: memref<1x16x256xbf16, #tpu.memory_space<vmem>>) attributes {dimension_semantics = [#tpu.dimension_semantics<parallel>], iteration_bounds = array<i64: 2>, scalar_prefetch = 0 : i64, scratch_operands = 0 : i64, tpu.core_type = #tpu.core_type<tc>, window_params = [{transform_indices = @transform_0, window_bounds = array<i64: 1, 4, 256>}, {transform_indices = @transform_1, window_bounds = array<i64: 1, 4, 256>}, {pipeline_mode = #tpu.pipeline_mode<synchronous>, transform_indices = @transform_2, window_bounds = array<i64: 16, 4>}, {pipeline_mode = #tpu.pipeline_mode<synchronous>, transform_indices = @transform_3, window_bounds = array<i64: 16, 4>}, {pipeline_mode = #tpu.pipeline_mode<synchronous>, transform_indices = @transform_4, window_bounds = array<i64: 16, 1>}, {transform_indices = @transform_5, window_bounds = array<i64: 1, 16, 256>}]} {
    %c0 = arith.constant 0 : index
    %c0_0 = arith.constant 0 : index
    %c0_1 = arith.constant 0 : index
    %0 = vector.load %arg1[%c0, %c0_0, %c0_1] : memref<1x4x256xf32, #tpu.memory_space<vmem>>, vector<1x4x256xf32>
    %1 = vector.shape_cast %0 : vector<1x4x256xf32> to vector<4x256xf32>
    %2 = arith.truncf %1 : vector<4x256xf32> to vector<4x256xbf16>
    %c0_2 = arith.constant 0 : index
    %c0_3 = arith.constant 0 : index
    %c0_4 = arith.constant 0 : index
    %3 = vector.load %arg2[%c0_2, %c0_3, %c0_4] : memref<1x4x256xf32, #tpu.memory_space<vmem>>, vector<1x4x256xf32>
    %4 = vector.shape_cast %3 : vector<1x4x256xf32> to vector<4x256xf32>
    %5 = arith.truncf %4 : vector<4x256xf32> to vector<4x256xbf16>
    %c0_5 = arith.constant 0 : index
    %c0_6 = arith.constant 0 : index
    %6 = vector.load %arg3[%c0_5, %c0_6] : memref<16x4xbf16, #tpu.memory_space<vmem>>, vector<16x4xbf16>
    %cst = arith.constant dense<0.000000e+00> : vector<16x256xf32>
    %7 = tpu.matmul %6, %2, %cst {dimension_numbers = #tpu.dot_dimension_numbers<[1], [0], [0], [1], [0, 0, 1, 1], [], []>} : vector<16x4xbf16>, vector<4x256xbf16>, vector<16x256xf32> -> vector<16x256xf32>
    %c0_7 = arith.constant 0 : index
    %c0_8 = arith.constant 0 : index
    %8 = vector.load %arg4[%c0_7, %c0_8] : memref<16x4xbf16, #tpu.memory_space<vmem>>, vector<16x4xbf16>
    %cst_9 = arith.constant dense<0.000000e+00> : vector<16x256xf32>
    %9 = tpu.matmul %8, %5, %cst_9 {dimension_numbers = #tpu.dot_dimension_numbers<[1], [0], [0], [1], [0, 0, 1, 1], [], []>} : vector<16x4xbf16>, vector<4x256xbf16>, vector<16x256xf32> -> vector<16x256xf32>
    %10 = arith.addf %7, %9 : vector<16x256xf32>
    %c0_10 = arith.constant 0 : index
    %c0_11 = arith.constant 0 : index
    %11 = vector.load %arg5[%c0_10, %c0_11] : memref<16x1xf32, #tpu.memory_space<vmem>>, vector<16x1xf32>
    %12 = vector.broadcast %11 : vector<16x1xf32> to vector<16x256xf32>
    %13 = arith.addf %10, %12 : vector<16x256xf32>
    %14 = arith.truncf %13 : vector<16x256xf32> to vector<16x256xbf16>
    %c0_12 = arith.constant 0 : index
    %c0_13 = arith.constant 0 : index
    %c0_14 = arith.constant 0 : index
    %15 = vector.load %arg6[%c0_12, %c0_13, %c0_14] : memref<1x16x256xbf16, #tpu.memory_space<vmem>>, vector<1x16x256xbf16>
    %16 = vector.shape_cast %15 : vector<1x16x256xbf16> to vector<16x256xbf16>
    %17 = vector.shape_cast %14 : vector<16x256xbf16> to vector<1x16x256xbf16>
    tpu.vector_store %arg6[%c0_12, %c0_13, %c0_14], %17 {strides = array<i32>} : memref<1x16x256xbf16, #tpu.memory_space<vmem>>, vector<1x16x256xbf16>,
    return
  }
  func.func @transform_0(%arg0: i32) -> (i32, i32, i32) {
    %c0_i32 = arith.constant 0 : i32
    %c0_i32_0 = arith.constant 0 : i32
    %c0_i32_1 = arith.constant 0 : i32
    return %arg0, %c0_i32, %c0_i32_0 : i32, i32, i32
  }
  func.func @transform_1(%arg0: i32) -> (i32, i32, i32) {
    %c0_i32 = arith.constant 0 : i32
    %c0_i32_0 = arith.constant 0 : i32
    %c0_i32_1 = arith.constant 0 : i32
    return %arg0, %c0_i32, %c0_i32_0 : i32, i32, i32
  }
  func.func @transform_2(%arg0: i32) -> (i32, i32) {
    %c0_i32 = arith.constant 0 : i32
    %c0_i32_0 = arith.constant 0 : i32
    %c0_i32_1 = arith.constant 0 : i32
    return %c0_i32, %c0_i32_0 : i32, i32
  }
  func.func @transform_3(%arg0: i32) -> (i32, i32) {
    %c0_i32 = arith.constant 0 : i32
    %c0_i32_0 = arith.constant 0 : i32
    %c0_i32_1 = arith.constant 0 : i32
    return %c0_i32, %c0_i32_0 : i32, i32
  }
  func.func @transform_4(%arg0: i32) -> (i32, i32) {
    %c0_i32 = arith.constant 0 : i32
    %c0_i32_0 = arith.constant 0 : i32
    %c0_i32_1 = arith.constant 0 : i32
    return %c0_i32, %c0_i32_0 : i32, i32
  }
  func.func @transform_5(%arg0: i32) -> (i32, i32, i32) {
    %c0_i32 = arith.constant 0 : i32
    %c0_i32_0 = arith.constant 0 : i32
    %c0_i32_1 = arith.constant 0 : i32
    return %arg0, %c0_i32, %c0_i32_0 : i32, i32, i32
  }
}

module attributes {stable_mosaic.version = 11 : i64} {
  func.func @kernel(%arg0: i32, %arg1: memref<1x4x1156xbf16, #tpu.memory_space<vmem>>, %arg2: memref<9x4x4xbf16, #tpu.memory_space<vmem>>, %arg3: memref<1x1156xf32, #tpu.memory_space<vmem>>, %arg4: memref<1x4x1156xbf16, #tpu.memory_space<vmem>>, %arg5: memref<1x4x2xf32, #tpu.memory_space<vmem>>, %arg6: memref<4x1408xbf16, #tpu.memory_space<vmem>>) attributes {dimension_semantics = [#tpu.dimension_semantics<parallel>], iteration_bounds = array<i64: 2>, scalar_prefetch = 0 : i64, scratch_operands = 1 : i64, tpu.core_type = #tpu.core_type<tc>, window_params = [{transform_indices = @transform_0, window_bounds = array<i64: 1, 4, 1156>}, {pipeline_mode = #tpu.pipeline_mode<synchronous>, transform_indices = @transform_1, window_bounds = array<i64: 9, 4, 4>}, {pipeline_mode = #tpu.pipeline_mode<synchronous>, transform_indices = @transform_2, window_bounds = array<i64: 1, 1156>}, {transform_indices = @transform_3, window_bounds = array<i64: 1, 4, 1156>}, {transform_indices = @transform_4, window_bounds = array<i64: 1, 4, 2>}]} {
    %c0 = arith.constant 0 : index
    %c0_0 = arith.constant 0 : index
    %0 = vector.load %arg3[%c0, %c0_0] : memref<1x1156xf32, #tpu.memory_space<vmem>>, vector<1x1156xf32>
    %c0_1 = arith.constant 0 : index
    %c0_2 = arith.constant 0 : index
    %c0_3 = arith.constant 0 : index
    %1 = vector.load %arg1[%c0_1, %c0_2, %c0_3] : memref<1x4x1156xbf16, #tpu.memory_space<vmem>>, vector<1x4x1156xbf16>
    %2 = vector.shape_cast %1 : vector<1x4x1156xbf16> to vector<4x1156xbf16>
    %3 = arith.extf %2 : vector<4x1156xbf16> to vector<4x1156xf32>
    %4 = vector.broadcast %0 : vector<1x1156xf32> to vector<4x1156xf32>
    %5 = arith.mulf %3, %4 : vector<4x1156xf32>
    %cst = arith.constant 0.000000e+00 : bf16
    %6 = vector.broadcast %cst : bf16 to vector<4x1408xbf16>
    %c0_4 = arith.constant 0 : index
    %c0_5 = arith.constant 0 : index
    %7 = vector.load %arg6[%c0_4, %c0_5] : memref<4x1408xbf16, #tpu.memory_space<vmem>>, vector<4x1408xbf16>
    tpu.vector_store %arg6[%c0_4, %c0_5], %6 {strides = array<i32>} : memref<4x1408xbf16, #tpu.memory_space<vmem>>, vector<4x1408xbf16>,
    %8 = arith.truncf %5 : vector<4x1156xf32> to vector<4x1156xbf16>
    %c0_6 = arith.constant 0 : index
    %c128 = arith.constant 128 : index
    %9 = vector.load %arg6[%c0_6, %c128] : memref<4x1408xbf16, #tpu.memory_space<vmem>>, vector<4x1156xbf16>
    tpu.vector_store %arg6[%c0_6, %c128], %8 {strides = array<i32>} : memref<4x1408xbf16, #tpu.memory_space<vmem>>, vector<4x1156xbf16>,
    %c0_7 = arith.constant 0 : index
    %c0_8 = arith.constant 0 : index
    %10 = vector.load %arg6[%c0_7, %c0_8] : memref<4x1408xbf16, #tpu.memory_space<vmem>>, vector<4x1408xbf16>
    %cst_9 = arith.constant 0.000000e+00 : f32
    %11 = vector.broadcast %cst_9 : f32 to vector<4x1156xf32>
    %12 = vector.extract_strided_slice %10 {offsets = [0, 93], sizes = [4, 1156], strides = [1, 1]} : vector<4x1408xbf16> to vector<4x1156xbf16>
    %c0_10 = arith.constant 0 : index
    %c0_11 = arith.constant 0 : index
    %c0_12 = arith.constant 0 : index
    %13 = vector.load %arg2[%c0_10, %c0_11, %c0_12] : memref<9x4x4xbf16, #tpu.memory_space<vmem>>, vector<1x4x4xbf16>
    %14 = vector.shape_cast %13 : vector<1x4x4xbf16> to vector<4x4xbf16>
    %cst_13 = arith.constant dense<0.000000e+00> : vector<4x1156xf32>
    %15 = tpu.matmul %14, %12, %cst_13 {dimension_numbers = #tpu.dot_dimension_numbers<[1], [0], [0], [1], [0, 0, 1, 1], [], []>} : vector<4x4xbf16>, vector<4x1156xbf16>, vector<4x1156xf32> -> vector<4x1156xf32>
    %16 = arith.addf %11, %15 : vector<4x1156xf32>
    %17 = vector.extract_strided_slice %10 {offsets = [0, 94], sizes = [4, 1156], strides = [1, 1]} : vector<4x1408xbf16> to vector<4x1156xbf16>
    %c1 = arith.constant 1 : index
    %c0_14 = arith.constant 0 : index
    %c0_15 = arith.constant 0 : index
    %18 = vector.load %arg2[%c1, %c0_14, %c0_15] : memref<9x4x4xbf16, #tpu.memory_space<vmem>>, vector<1x4x4xbf16>
    %19 = vector.shape_cast %18 : vector<1x4x4xbf16> to vector<4x4xbf16>
    %cst_16 = arith.constant dense<0.000000e+00> : vector<4x1156xf32>
    %20 = tpu.matmul %19, %17, %cst_16 {dimension_numbers = #tpu.dot_dimension_numbers<[1], [0], [0], [1], [0, 0, 1, 1], [], []>} : vector<4x4xbf16>, vector<4x1156xbf16>, vector<4x1156xf32> -> vector<4x1156xf32>
    %21 = arith.addf %16, %20 : vector<4x1156xf32>
    %22 = vector.extract_strided_slice %10 {offsets = [0, 95], sizes = [4, 1156], strides = [1, 1]} : vector<4x1408xbf16> to vector<4x1156xbf16>
    %c2 = arith.constant 2 : index
    %c0_17 = arith.constant 0 : index
    %c0_18 = arith.constant 0 : index
    %23 = vector.load %arg2[%c2, %c0_17, %c0_18] : memref<9x4x4xbf16, #tpu.memory_space<vmem>>, vector<1x4x4xbf16>
    %24 = vector.shape_cast %23 : vector<1x4x4xbf16> to vector<4x4xbf16>
    %cst_19 = arith.constant dense<0.000000e+00> : vector<4x1156xf32>
    %25 = tpu.matmul %24, %22, %cst_19 {dimension_numbers = #tpu.dot_dimension_numbers<[1], [0], [0], [1], [0, 0, 1, 1], [], []>} : vector<4x4xbf16>, vector<4x1156xbf16>, vector<4x1156xf32> -> vector<4x1156xf32>
    %26 = arith.addf %21, %25 : vector<4x1156xf32>
    %27 = vector.extract_strided_slice %10 {offsets = [0, 127], sizes = [4, 1156], strides = [1, 1]} : vector<4x1408xbf16> to vector<4x1156xbf16>
    %c3 = arith.constant 3 : index
    %c0_20 = arith.constant 0 : index
    %c0_21 = arith.constant 0 : index
    %28 = vector.load %arg2[%c3, %c0_20, %c0_21] : memref<9x4x4xbf16, #tpu.memory_space<vmem>>, vector<1x4x4xbf16>
    %29 = vector.shape_cast %28 : vector<1x4x4xbf16> to vector<4x4xbf16>
    %cst_22 = arith.constant dense<0.000000e+00> : vector<4x1156xf32>
    %30 = tpu.matmul %29, %27, %cst_22 {dimension_numbers = #tpu.dot_dimension_numbers<[1], [0], [0], [1], [0, 0, 1, 1], [], []>} : vector<4x4xbf16>, vector<4x1156xbf16>, vector<4x1156xf32> -> vector<4x1156xf32>
    %31 = arith.addf %26, %30 : vector<4x1156xf32>
    %32 = vector.extract_strided_slice %10 {offsets = [0, 128], sizes = [4, 1156], strides = [1, 1]} : vector<4x1408xbf16> to vector<4x1156xbf16>
    %c4 = arith.constant 4 : index
    %c0_23 = arith.constant 0 : index
    %c0_24 = arith.constant 0 : index
    %33 = vector.load %arg2[%c4, %c0_23, %c0_24] : memref<9x4x4xbf16, #tpu.memory_space<vmem>>, vector<1x4x4xbf16>
    %34 = vector.shape_cast %33 : vector<1x4x4xbf16> to vector<4x4xbf16>
    %cst_25 = arith.constant dense<0.000000e+00> : vector<4x1156xf32>
    %35 = tpu.matmul %34, %32, %cst_25 {dimension_numbers = #tpu.dot_dimension_numbers<[1], [0], [0], [1], [0, 0, 1, 1], [], []>} : vector<4x4xbf16>, vector<4x1156xbf16>, vector<4x1156xf32> -> vector<4x1156xf32>
    %36 = arith.addf %31, %35 : vector<4x1156xf32>
    %37 = vector.extract_strided_slice %10 {offsets = [0, 129], sizes = [4, 1156], strides = [1, 1]} : vector<4x1408xbf16> to vector<4x1156xbf16>
    %c5 = arith.constant 5 : index
    %c0_26 = arith.constant 0 : index
    %c0_27 = arith.constant 0 : index
    %38 = vector.load %arg2[%c5, %c0_26, %c0_27] : memref<9x4x4xbf16, #tpu.memory_space<vmem>>, vector<1x4x4xbf16>
    %39 = vector.shape_cast %38 : vector<1x4x4xbf16> to vector<4x4xbf16>
    %cst_28 = arith.constant dense<0.000000e+00> : vector<4x1156xf32>
    %40 = tpu.matmul %39, %37, %cst_28 {dimension_numbers = #tpu.dot_dimension_numbers<[1], [0], [0], [1], [0, 0, 1, 1], [], []>} : vector<4x4xbf16>, vector<4x1156xbf16>, vector<4x1156xf32> -> vector<4x1156xf32>
    %41 = arith.addf %36, %40 : vector<4x1156xf32>
    %42 = vector.extract_strided_slice %10 {offsets = [0, 161], sizes = [4, 1156], strides = [1, 1]} : vector<4x1408xbf16> to vector<4x1156xbf16>
    %c6 = arith.constant 6 : index
    %c0_29 = arith.constant 0 : index
    %c0_30 = arith.constant 0 : index
    %43 = vector.load %arg2[%c6, %c0_29, %c0_30] : memref<9x4x4xbf16, #tpu.memory_space<vmem>>, vector<1x4x4xbf16>
    %44 = vector.shape_cast %43 : vector<1x4x4xbf16> to vector<4x4xbf16>
    %cst_31 = arith.constant dense<0.000000e+00> : vector<4x1156xf32>
    %45 = tpu.matmul %44, %42, %cst_31 {dimension_numbers = #tpu.dot_dimension_numbers<[1], [0], [0], [1], [0, 0, 1, 1], [], []>} : vector<4x4xbf16>, vector<4x1156xbf16>, vector<4x1156xf32> -> vector<4x1156xf32>
    %46 = arith.addf %41, %45 : vector<4x1156xf32>
    %47 = vector.extract_strided_slice %10 {offsets = [0, 162], sizes = [4, 1156], strides = [1, 1]} : vector<4x1408xbf16> to vector<4x1156xbf16>
    %c7 = arith.constant 7 : index
    %c0_32 = arith.constant 0 : index
    %c0_33 = arith.constant 0 : index
    %48 = vector.load %arg2[%c7, %c0_32, %c0_33] : memref<9x4x4xbf16, #tpu.memory_space<vmem>>, vector<1x4x4xbf16>
    %49 = vector.shape_cast %48 : vector<1x4x4xbf16> to vector<4x4xbf16>
    %cst_34 = arith.constant dense<0.000000e+00> : vector<4x1156xf32>
    %50 = tpu.matmul %49, %47, %cst_34 {dimension_numbers = #tpu.dot_dimension_numbers<[1], [0], [0], [1], [0, 0, 1, 1], [], []>} : vector<4x4xbf16>, vector<4x1156xbf16>, vector<4x1156xf32> -> vector<4x1156xf32>
    %51 = arith.addf %46, %50 : vector<4x1156xf32>
    %52 = vector.extract_strided_slice %10 {offsets = [0, 163], sizes = [4, 1156], strides = [1, 1]} : vector<4x1408xbf16> to vector<4x1156xbf16>
    %c8 = arith.constant 8 : index
    %c0_35 = arith.constant 0 : index
    %c0_36 = arith.constant 0 : index
    %53 = vector.load %arg2[%c8, %c0_35, %c0_36] : memref<9x4x4xbf16, #tpu.memory_space<vmem>>, vector<1x4x4xbf16>
    %54 = vector.shape_cast %53 : vector<1x4x4xbf16> to vector<4x4xbf16>
    %cst_37 = arith.constant dense<0.000000e+00> : vector<4x1156xf32>
    %55 = tpu.matmul %54, %52, %cst_37 {dimension_numbers = #tpu.dot_dimension_numbers<[1], [0], [0], [1], [0, 0, 1, 1], [], []>} : vector<4x4xbf16>, vector<4x1156xbf16>, vector<4x1156xf32> -> vector<4x1156xf32>
    %56 = arith.addf %51, %55 : vector<4x1156xf32>
    %57 = arith.truncf %56 : vector<4x1156xf32> to vector<4x1156xbf16>
    %c0_38 = arith.constant 0 : index
    %c0_39 = arith.constant 0 : index
    %c0_40 = arith.constant 0 : index
    %58 = vector.load %arg4[%c0_38, %c0_39, %c0_40] : memref<1x4x1156xbf16, #tpu.memory_space<vmem>>, vector<1x4x1156xbf16>
    %59 = vector.shape_cast %58 : vector<1x4x1156xbf16> to vector<4x1156xbf16>
    %60 = vector.shape_cast %57 : vector<4x1156xbf16> to vector<1x4x1156xbf16>
    tpu.vector_store %arg4[%c0_38, %c0_39, %c0_40], %60 {strides = array<i32>} : memref<1x4x1156xbf16, #tpu.memory_space<vmem>>, vector<1x4x1156xbf16>,
    %61 = vector.broadcast %0 : vector<1x1156xf32> to vector<4x1156xf32>
    %62 = arith.mulf %56, %61 : vector<4x1156xf32>
    %cst_41 = arith.constant dense<0.000000e+00> : vector<4xf32>
    %63 = vector.multi_reduction <add>, %62, %cst_41 [1] : vector<4x1156xf32> to vector<4xf32>
    %64 = vector.shape_cast %63 : vector<4xf32> to vector<4x1xf32>
    %cst_42 = arith.constant 9.765625E-4 : f32
    %65 = vector.broadcast %cst_42 : f32 to vector<4x1xf32>
    %66 = arith.mulf %64, %65 : vector<4x1xf32>
    %67 = vector.broadcast %66 : vector<4x1xf32> to vector<4x1156xf32>
    %68 = arith.subf %56, %67 : vector<4x1156xf32>
    %69 = vector.broadcast %0 : vector<1x1156xf32> to vector<4x1156xf32>
    %70 = arith.mulf %68, %69 : vector<4x1156xf32>
    %71 = arith.mulf %70, %70 : vector<4x1156xf32>
    %cst_43 = arith.constant dense<0.000000e+00> : vector<4xf32>
    %72 = vector.multi_reduction <add>, %71, %cst_43 [1] : vector<4x1156xf32> to vector<4xf32>
    %73 = vector.shape_cast %72 : vector<4xf32> to vector<4x1xf32>
    %c0_44 = arith.constant 0 : index
    %c0_45 = arith.constant 0 : index
    %c0_46 = arith.constant 0 : index
    %74 = vector.load %arg5[%c0_44, %c0_45, %c0_46] : memref<1x4x2xf32, #tpu.memory_space<vmem>>, vector<1x4x1xf32>
    %75 = vector.shape_cast %74 : vector<1x4x1xf32> to vector<4x1xf32>
    %76 = vector.shape_cast %64 : vector<4x1xf32> to vector<1x4x1xf32>
    tpu.vector_store %arg5[%c0_44, %c0_45, %c0_46], %76 {strides = array<i32>} : memref<1x4x2xf32, #tpu.memory_space<vmem>>, vector<1x4x1xf32>,
    %c0_47 = arith.constant 0 : index
    %c0_48 = arith.constant 0 : index
    %c1_49 = arith.constant 1 : index
    %77 = vector.load %arg5[%c0_47, %c0_48, %c1_49] : memref<1x4x2xf32, #tpu.memory_space<vmem>>, vector<1x4x1xf32>
    %78 = vector.shape_cast %77 : vector<1x4x1xf32> to vector<4x1xf32>
    %79 = vector.shape_cast %73 : vector<4x1xf32> to vector<1x4x1xf32>
    tpu.vector_store %arg5[%c0_47, %c0_48, %c1_49], %79 {strides = array<i32>} : memref<1x4x2xf32, #tpu.memory_space<vmem>>, vector<1x4x1xf32>,
    return
  }
  func.func @transform_0(%arg0: i32) -> (i32, i32, i32) {
    %c0_i32 = arith.constant 0 : i32
    %c0_i32_0 = arith.constant 0 : i32
    %c0_i32_1 = arith.constant 0 : i32
    return %arg0, %c0_i32, %c0_i32_0 : i32, i32, i32
  }
  func.func @transform_1(%arg0: i32) -> (i32, i32, i32) {
    %c0_i32 = arith.constant 0 : i32
    %c0_i32_0 = arith.constant 0 : i32
    %c0_i32_1 = arith.constant 0 : i32
    %c0_i32_2 = arith.constant 0 : i32
    return %c0_i32, %c0_i32_0, %c0_i32_1 : i32, i32, i32
  }
  func.func @transform_2(%arg0: i32) -> (i32, i32) {
    %c0_i32 = arith.constant 0 : i32
    %c0_i32_0 = arith.constant 0 : i32
    %c0_i32_1 = arith.constant 0 : i32
    return %c0_i32, %c0_i32_0 : i32, i32
  }
  func.func @transform_3(%arg0: i32) -> (i32, i32, i32) {
    %c0_i32 = arith.constant 0 : i32
    %c0_i32_0 = arith.constant 0 : i32
    %c0_i32_1 = arith.constant 0 : i32
    return %arg0, %c0_i32, %c0_i32_0 : i32, i32, i32
  }
  func.func @transform_4(%arg0: i32) -> (i32, i32, i32) {
    %c0_i32 = arith.constant 0 : i32
    %c0_i32_0 = arith.constant 0 : i32
    %c0_i32_1 = arith.constant 0 : i32
    return %arg0, %c0_i32, %c0_i32_0 : i32, i32, i32
  }
}

module attributes {stable_mosaic.version = 11 : i64} {
  func.func @kernel(%arg0: i32, %arg1: memref<1x4x1156xbf16, #tpu.memory_space<vmem>>, %arg2: memref<4x1xf32, #tpu.memory_space<vmem>>, %arg3: memref<4x1xf32, #tpu.memory_space<vmem>>, %arg4: memref<9x4x4xbf16, #tpu.memory_space<vmem>>, %arg5: memref<1x1156xf32, #tpu.memory_space<vmem>>, %arg6: memref<1x4x1156xbf16, #tpu.memory_space<vmem>>, %arg7: memref<1x4x2xf32, #tpu.memory_space<vmem>>, %arg8: memref<4x1408xbf16, #tpu.memory_space<vmem>>) attributes {dimension_semantics = [#tpu.dimension_semantics<parallel>], iteration_bounds = array<i64: 2>, scalar_prefetch = 0 : i64, scratch_operands = 1 : i64, tpu.core_type = #tpu.core_type<tc>, window_params = [{transform_indices = @transform_0, window_bounds = array<i64: 1, 4, 1156>}, {pipeline_mode = #tpu.pipeline_mode<synchronous>, transform_indices = @transform_1, window_bounds = array<i64: 4, 1>}, {pipeline_mode = #tpu.pipeline_mode<synchronous>, transform_indices = @transform_2, window_bounds = array<i64: 4, 1>}, {pipeline_mode = #tpu.pipeline_mode<synchronous>, transform_indices = @transform_3, window_bounds = array<i64: 9, 4, 4>}, {pipeline_mode = #tpu.pipeline_mode<synchronous>, transform_indices = @transform_4, window_bounds = array<i64: 1, 1156>}, {transform_indices = @transform_5, window_bounds = array<i64: 1, 4, 1156>}, {transform_indices = @transform_6, window_bounds = array<i64: 1, 4, 2>}]} {
    %c0 = arith.constant 0 : index
    %c0_0 = arith.constant 0 : index
    %0 = vector.load %arg5[%c0, %c0_0] : memref<1x1156xf32, #tpu.memory_space<vmem>>, vector<1x1156xf32>
    %c0_1 = arith.constant 0 : index
    %c0_2 = arith.constant 0 : index
    %c0_3 = arith.constant 0 : index
    %1 = vector.load %arg1[%c0_1, %c0_2, %c0_3] : memref<1x4x1156xbf16, #tpu.memory_space<vmem>>, vector<1x4x1156xbf16>
    %2 = vector.shape_cast %1 : vector<1x4x1156xbf16> to vector<4x1156xbf16>
    %3 = arith.extf %2 : vector<4x1156xbf16> to vector<4x1156xf32>
    %c0_4 = arith.constant 0 : index
    %c0_5 = arith.constant 0 : index
    %4 = vector.load %arg2[%c0_4, %c0_5] : memref<4x1xf32, #tpu.memory_space<vmem>>, vector<4x1xf32>
    %5 = vector.broadcast %4 : vector<4x1xf32> to vector<4x1156xf32>
    %6 = arith.mulf %3, %5 : vector<4x1156xf32>
    %c0_6 = arith.constant 0 : index
    %c0_7 = arith.constant 0 : index
    %7 = vector.load %arg3[%c0_6, %c0_7] : memref<4x1xf32, #tpu.memory_space<vmem>>, vector<4x1xf32>
    %8 = vector.broadcast %7 : vector<4x1xf32> to vector<4x1156xf32>
    %9 = arith.addf %6, %8 : vector<4x1156xf32>
    %cst = arith.constant 5.000000e-01 : f32
    %10 = vector.broadcast %cst : f32 to vector<4x1156xf32>
    %11 = arith.mulf %10, %9 : vector<4x1156xf32>
    %cst_8 = arith.constant 0.707106769 : f32
    %12 = vector.broadcast %cst_8 : f32 to vector<4x1156xf32>
    %13 = arith.mulf %9, %12 : vector<4x1156xf32>
    %14 = math.erf %13 : vector<4x1156xf32>
    %cst_9 = arith.constant 1.000000e+00 : f32
    %15 = vector.broadcast %cst_9 : f32 to vector<4x1156xf32>
    %16 = arith.addf %15, %14 : vector<4x1156xf32>
    %17 = arith.mulf %11, %16 : vector<4x1156xf32>
    %18 = vector.broadcast %0 : vector<1x1156xf32> to vector<4x1156xf32>
    %19 = arith.mulf %17, %18 : vector<4x1156xf32>
    %cst_10 = arith.constant 0.000000e+00 : bf16
    %20 = vector.broadcast %cst_10 : bf16 to vector<4x1408xbf16>
    %c0_11 = arith.constant 0 : index
    %c0_12 = arith.constant 0 : index
    %21 = vector.load %arg8[%c0_11, %c0_12] : memref<4x1408xbf16, #tpu.memory_space<vmem>>, vector<4x1408xbf16>
    tpu.vector_store %arg8[%c0_11, %c0_12], %20 {strides = array<i32>} : memref<4x1408xbf16, #tpu.memory_space<vmem>>, vector<4x1408xbf16>,
    %22 = arith.truncf %19 : vector<4x1156xf32> to vector<4x1156xbf16>
    %c0_13 = arith.constant 0 : index
    %c128 = arith.constant 128 : index
    %23 = vector.load %arg8[%c0_13, %c128] : memref<4x1408xbf16, #tpu.memory_space<vmem>>, vector<4x1156xbf16>
    tpu.vector_store %arg8[%c0_13, %c128], %22 {strides = array<i32>} : memref<4x1408xbf16, #tpu.memory_space<vmem>>, vector<4x1156xbf16>,
    %c0_14 = arith.constant 0 : index
    %c0_15 = arith.constant 0 : index
    %24 = vector.load %arg8[%c0_14, %c0_15] : memref<4x1408xbf16, #tpu.memory_space<vmem>>, vector<4x1408xbf16>
    %cst_16 = arith.constant 0.000000e+00 : f32
    %25 = vector.broadcast %cst_16 : f32 to vector<4x1156xf32>
    %26 = vector.extract_strided_slice %24 {offsets = [0, 93], sizes = [4, 1156], strides = [1, 1]} : vector<4x1408xbf16> to vector<4x1156xbf16>
    %c0_17 = arith.constant 0 : index
    %c0_18 = arith.constant 0 : index
    %c0_19 = arith.constant 0 : index
    %27 = vector.load %arg4[%c0_17, %c0_18, %c0_19] : memref<9x4x4xbf16, #tpu.memory_space<vmem>>, vector<1x4x4xbf16>
    %28 = vector.shape_cast %27 : vector<1x4x4xbf16> to vector<4x4xbf16>
    %cst_20 = arith.constant dense<0.000000e+00> : vector<4x1156xf32>
    %29 = tpu.matmul %28, %26, %cst_20 {dimension_numbers = #tpu.dot_dimension_numbers<[1], [0], [0], [1], [0, 0, 1, 1], [], []>} : vector<4x4xbf16>, vector<4x1156xbf16>, vector<4x1156xf32> -> vector<4x1156xf32>
    %30 = arith.addf %25, %29 : vector<4x1156xf32>
    %31 = vector.extract_strided_slice %24 {offsets = [0, 94], sizes = [4, 1156], strides = [1, 1]} : vector<4x1408xbf16> to vector<4x1156xbf16>
    %c1 = arith.constant 1 : index
    %c0_21 = arith.constant 0 : index
    %c0_22 = arith.constant 0 : index
    %32 = vector.load %arg4[%c1, %c0_21, %c0_22] : memref<9x4x4xbf16, #tpu.memory_space<vmem>>, vector<1x4x4xbf16>
    %33 = vector.shape_cast %32 : vector<1x4x4xbf16> to vector<4x4xbf16>
    %cst_23 = arith.constant dense<0.000000e+00> : vector<4x1156xf32>
    %34 = tpu.matmul %33, %31, %cst_23 {dimension_numbers = #tpu.dot_dimension_numbers<[1], [0], [0], [1], [0, 0, 1, 1], [], []>} : vector<4x4xbf16>, vector<4x1156xbf16>, vector<4x1156xf32> -> vector<4x1156xf32>
    %35 = arith.addf %30, %34 : vector<4x1156xf32>
    %36 = vector.extract_strided_slice %24 {offsets = [0, 95], sizes = [4, 1156], strides = [1, 1]} : vector<4x1408xbf16> to vector<4x1156xbf16>
    %c2 = arith.constant 2 : index
    %c0_24 = arith.constant 0 : index
    %c0_25 = arith.constant 0 : index
    %37 = vector.load %arg4[%c2, %c0_24, %c0_25] : memref<9x4x4xbf16, #tpu.memory_space<vmem>>, vector<1x4x4xbf16>
    %38 = vector.shape_cast %37 : vector<1x4x4xbf16> to vector<4x4xbf16>
    %cst_26 = arith.constant dense<0.000000e+00> : vector<4x1156xf32>
    %39 = tpu.matmul %38, %36, %cst_26 {dimension_numbers = #tpu.dot_dimension_numbers<[1], [0], [0], [1], [0, 0, 1, 1], [], []>} : vector<4x4xbf16>, vector<4x1156xbf16>, vector<4x1156xf32> -> vector<4x1156xf32>
    %40 = arith.addf %35, %39 : vector<4x1156xf32>
    %41 = vector.extract_strided_slice %24 {offsets = [0, 127], sizes = [4, 1156], strides = [1, 1]} : vector<4x1408xbf16> to vector<4x1156xbf16>
    %c3 = arith.constant 3 : index
    %c0_27 = arith.constant 0 : index
    %c0_28 = arith.constant 0 : index
    %42 = vector.load %arg4[%c3, %c0_27, %c0_28] : memref<9x4x4xbf16, #tpu.memory_space<vmem>>, vector<1x4x4xbf16>
    %43 = vector.shape_cast %42 : vector<1x4x4xbf16> to vector<4x4xbf16>
    %cst_29 = arith.constant dense<0.000000e+00> : vector<4x1156xf32>
    %44 = tpu.matmul %43, %41, %cst_29 {dimension_numbers = #tpu.dot_dimension_numbers<[1], [0], [0], [1], [0, 0, 1, 1], [], []>} : vector<4x4xbf16>, vector<4x1156xbf16>, vector<4x1156xf32> -> vector<4x1156xf32>
    %45 = arith.addf %40, %44 : vector<4x1156xf32>
    %46 = vector.extract_strided_slice %24 {offsets = [0, 128], sizes = [4, 1156], strides = [1, 1]} : vector<4x1408xbf16> to vector<4x1156xbf16>
    %c4 = arith.constant 4 : index
    %c0_30 = arith.constant 0 : index
    %c0_31 = arith.constant 0 : index
    %47 = vector.load %arg4[%c4, %c0_30, %c0_31] : memref<9x4x4xbf16, #tpu.memory_space<vmem>>, vector<1x4x4xbf16>
    %48 = vector.shape_cast %47 : vector<1x4x4xbf16> to vector<4x4xbf16>
    %cst_32 = arith.constant dense<0.000000e+00> : vector<4x1156xf32>
    %49 = tpu.matmul %48, %46, %cst_32 {dimension_numbers = #tpu.dot_dimension_numbers<[1], [0], [0], [1], [0, 0, 1, 1], [], []>} : vector<4x4xbf16>, vector<4x1156xbf16>, vector<4x1156xf32> -> vector<4x1156xf32>
    %50 = arith.addf %45, %49 : vector<4x1156xf32>
    %51 = vector.extract_strided_slice %24 {offsets = [0, 129], sizes = [4, 1156], strides = [1, 1]} : vector<4x1408xbf16> to vector<4x1156xbf16>
    %c5 = arith.constant 5 : index
    %c0_33 = arith.constant 0 : index
    %c0_34 = arith.constant 0 : index
    %52 = vector.load %arg4[%c5, %c0_33, %c0_34] : memref<9x4x4xbf16, #tpu.memory_space<vmem>>, vector<1x4x4xbf16>
    %53 = vector.shape_cast %52 : vector<1x4x4xbf16> to vector<4x4xbf16>
    %cst_35 = arith.constant dense<0.000000e+00> : vector<4x1156xf32>
    %54 = tpu.matmul %53, %51, %cst_35 {dimension_numbers = #tpu.dot_dimension_numbers<[1], [0], [0], [1], [0, 0, 1, 1], [], []>} : vector<4x4xbf16>, vector<4x1156xbf16>, vector<4x1156xf32> -> vector<4x1156xf32>
    %55 = arith.addf %50, %54 : vector<4x1156xf32>
    %56 = vector.extract_strided_slice %24 {offsets = [0, 161], sizes = [4, 1156], strides = [1, 1]} : vector<4x1408xbf16> to vector<4x1156xbf16>
    %c6 = arith.constant 6 : index
    %c0_36 = arith.constant 0 : index
    %c0_37 = arith.constant 0 : index
    %57 = vector.load %arg4[%c6, %c0_36, %c0_37] : memref<9x4x4xbf16, #tpu.memory_space<vmem>>, vector<1x4x4xbf16>
    %58 = vector.shape_cast %57 : vector<1x4x4xbf16> to vector<4x4xbf16>
    %cst_38 = arith.constant dense<0.000000e+00> : vector<4x1156xf32>
    %59 = tpu.matmul %58, %56, %cst_38 {dimension_numbers = #tpu.dot_dimension_numbers<[1], [0], [0], [1], [0, 0, 1, 1], [], []>} : vector<4x4xbf16>, vector<4x1156xbf16>, vector<4x1156xf32> -> vector<4x1156xf32>
    %60 = arith.addf %55, %59 : vector<4x1156xf32>
    %61 = vector.extract_strided_slice %24 {offsets = [0, 162], sizes = [4, 1156], strides = [1, 1]} : vector<4x1408xbf16> to vector<4x1156xbf16>
    %c7 = arith.constant 7 : index
    %c0_39 = arith.constant 0 : index
    %c0_40 = arith.constant 0 : index
    %62 = vector.load %arg4[%c7, %c0_39, %c0_40] : memref<9x4x4xbf16, #tpu.memory_space<vmem>>, vector<1x4x4xbf16>
    %63 = vector.shape_cast %62 : vector<1x4x4xbf16> to vector<4x4xbf16>
    %cst_41 = arith.constant dense<0.000000e+00> : vector<4x1156xf32>
    %64 = tpu.matmul %63, %61, %cst_41 {dimension_numbers = #tpu.dot_dimension_numbers<[1], [0], [0], [1], [0, 0, 1, 1], [], []>} : vector<4x4xbf16>, vector<4x1156xbf16>, vector<4x1156xf32> -> vector<4x1156xf32>
    %65 = arith.addf %60, %64 : vector<4x1156xf32>
    %66 = vector.extract_strided_slice %24 {offsets = [0, 163], sizes = [4, 1156], strides = [1, 1]} : vector<4x1408xbf16> to vector<4x1156xbf16>
    %c8 = arith.constant 8 : index
    %c0_42 = arith.constant 0 : index
    %c0_43 = arith.constant 0 : index
    %67 = vector.load %arg4[%c8, %c0_42, %c0_43] : memref<9x4x4xbf16, #tpu.memory_space<vmem>>, vector<1x4x4xbf16>
    %68 = vector.shape_cast %67 : vector<1x4x4xbf16> to vector<4x4xbf16>
    %cst_44 = arith.constant dense<0.000000e+00> : vector<4x1156xf32>
    %69 = tpu.matmul %68, %66, %cst_44 {dimension_numbers = #tpu.dot_dimension_numbers<[1], [0], [0], [1], [0, 0, 1, 1], [], []>} : vector<4x4xbf16>, vector<4x1156xbf16>, vector<4x1156xf32> -> vector<4x1156xf32>
    %70 = arith.addf %65, %69 : vector<4x1156xf32>
    %71 = arith.truncf %70 : vector<4x1156xf32> to vector<4x1156xbf16>
    %c0_45 = arith.constant 0 : index
    %c0_46 = arith.constant 0 : index
    %c0_47 = arith.constant 0 : index
    %72 = vector.load %arg6[%c0_45, %c0_46, %c0_47] : memref<1x4x1156xbf16, #tpu.memory_space<vmem>>, vector<1x4x1156xbf16>
    %73 = vector.shape_cast %72 : vector<1x4x1156xbf16> to vector<4x1156xbf16>
    %74 = vector.shape_cast %71 : vector<4x1156xbf16> to vector<1x4x1156xbf16>
    tpu.vector_store %arg6[%c0_45, %c0_46, %c0_47], %74 {strides = array<i32>} : memref<1x4x1156xbf16, #tpu.memory_space<vmem>>, vector<1x4x1156xbf16>,
    %75 = vector.broadcast %0 : vector<1x1156xf32> to vector<4x1156xf32>
    %76 = arith.mulf %70, %75 : vector<4x1156xf32>
    %cst_48 = arith.constant dense<0.000000e+00> : vector<4xf32>
    %77 = vector.multi_reduction <add>, %76, %cst_48 [1] : vector<4x1156xf32> to vector<4xf32>
    %78 = vector.shape_cast %77 : vector<4xf32> to vector<4x1xf32>
    %cst_49 = arith.constant 9.765625E-4 : f32
    %79 = vector.broadcast %cst_49 : f32 to vector<4x1xf32>
    %80 = arith.mulf %78, %79 : vector<4x1xf32>
    %81 = vector.broadcast %80 : vector<4x1xf32> to vector<4x1156xf32>
    %82 = arith.subf %70, %81 : vector<4x1156xf32>
    %83 = vector.broadcast %0 : vector<1x1156xf32> to vector<4x1156xf32>
    %84 = arith.mulf %82, %83 : vector<4x1156xf32>
    %85 = arith.mulf %84, %84 : vector<4x1156xf32>
    %cst_50 = arith.constant dense<0.000000e+00> : vector<4xf32>
    %86 = vector.multi_reduction <add>, %85, %cst_50 [1] : vector<4x1156xf32> to vector<4xf32>
    %87 = vector.shape_cast %86 : vector<4xf32> to vector<4x1xf32>
    %c0_51 = arith.constant 0 : index
    %c0_52 = arith.constant 0 : index
    %c0_53 = arith.constant 0 : index
    %88 = vector.load %arg7[%c0_51, %c0_52, %c0_53] : memref<1x4x2xf32, #tpu.memory_space<vmem>>, vector<1x4x1xf32>
    %89 = vector.shape_cast %88 : vector<1x4x1xf32> to vector<4x1xf32>
    %90 = vector.shape_cast %78 : vector<4x1xf32> to vector<1x4x1xf32>
    tpu.vector_store %arg7[%c0_51, %c0_52, %c0_53], %90 {strides = array<i32>} : memref<1x4x2xf32, #tpu.memory_space<vmem>>, vector<1x4x1xf32>,
    %c0_54 = arith.constant 0 : index
    %c0_55 = arith.constant 0 : index
    %c1_56 = arith.constant 1 : index
    %91 = vector.load %arg7[%c0_54, %c0_55, %c1_56] : memref<1x4x2xf32, #tpu.memory_space<vmem>>, vector<1x4x1xf32>
    %92 = vector.shape_cast %91 : vector<1x4x1xf32> to vector<4x1xf32>
    %93 = vector.shape_cast %87 : vector<4x1xf32> to vector<1x4x1xf32>
    tpu.vector_store %arg7[%c0_54, %c0_55, %c1_56], %93 {strides = array<i32>} : memref<1x4x2xf32, #tpu.memory_space<vmem>>, vector<1x4x1xf32>,
    return
  }
  func.func @transform_0(%arg0: i32) -> (i32, i32, i32) {
    %c0_i32 = arith.constant 0 : i32
    %c0_i32_0 = arith.constant 0 : i32
    %c0_i32_1 = arith.constant 0 : i32
    return %arg0, %c0_i32, %c0_i32_0 : i32, i32, i32
  }
  func.func @transform_1(%arg0: i32) -> (i32, i32) {
    %c0_i32 = arith.constant 0 : i32
    %c0_i32_0 = arith.constant 0 : i32
    %c0_i32_1 = arith.constant 0 : i32
    return %c0_i32, %c0_i32_0 : i32, i32
  }
  func.func @transform_2(%arg0: i32) -> (i32, i32) {
    %c0_i32 = arith.constant 0 : i32
    %c0_i32_0 = arith.constant 0 : i32
    %c0_i32_1 = arith.constant 0 : i32
    return %c0_i32, %c0_i32_0 : i32, i32
  }
  func.func @transform_3(%arg0: i32) -> (i32, i32, i32) {
    %c0_i32 = arith.constant 0 : i32
    %c0_i32_0 = arith.constant 0 : i32
    %c0_i32_1 = arith.constant 0 : i32
    %c0_i32_2 = arith.constant 0 : i32
    return %c0_i32, %c0_i32_0, %c0_i32_1 : i32, i32, i32
  }
  func.func @transform_4(%arg0: i32) -> (i32, i32) {
    %c0_i32 = arith.constant 0 : i32
    %c0_i32_0 = arith.constant 0 : i32
    %c0_i32_1 = arith.constant 0 : i32
    return %c0_i32, %c0_i32_0 : i32, i32
  }
  func.func @transform_5(%arg0: i32) -> (i32, i32, i32) {
    %c0_i32 = arith.constant 0 : i32
    %c0_i32_0 = arith.constant 0 : i32
    %c0_i32_1 = arith.constant 0 : i32
    return %arg0, %c0_i32, %c0_i32_0 : i32, i32, i32
  }
  func.func @transform_6(%arg0: i32) -> (i32, i32, i32) {
    %c0_i32 = arith.constant 0 : i32
    %c0_i32_0 = arith.constant 0 : i32
    %c0_i32_1 = arith.constant 0 : i32
    return %arg0, %c0_i32, %c0_i32_0 : i32, i32, i32
  }
}

</mosaic_0001>

<llo_original>
// kernel: tile.8
$region0: #{tile.8}
  #allocation0 [shape = 's32[1]{0}', space=sflag, size = 0x4, scoped, tag = 'scoped memory for tile.8']
  %s0 = inlined_call_operand.vmem [shape: f32[4], index: 0, kind: input, shape index: {}]
  %s1 = inlined_call_operand.vmem [shape: f32[4,4], index: 1, kind: output, shape index: {}]
  // Predicated region
  $region2: #{tile.8} parent=0 // pred_check
    _
  $region3: #{tile.8} parent=0 // pred_check_branch
    %3 = sbr.rel (0) target = $region5
  $region4: #{tile.8} parent=0 // pred_region
    _
  $region5: #{tile.8} parent=0 // pred_fallthru
    _
  %v4 = vld [vmem:[%s0] ss:$0 sm:$0xff]
  %5 = vst [vmem:[%s1] sm:$0xf] %v4

// kernel: tile.0
$region0: #{tile.0}
  %s0 = inlined_call_operand.vmem [shape: f32[4,4], index: 0, kind: input, shape index: {}]
  %s1 = inlined_call_operand.vmem [shape: f32[16,1], index: 1, kind: output, shape index: {}]
  $region1: #{tile.0} parent=0
    #allocation0 [shape = 'u8[4096]{0}', space=vmem, size = 0x1000, scoped, tag = 'scoped mem for input reshape']
    %s3 = sshll.u32 1, 4
    %s4 = ssub.s32 %s3, 1
    %v5 = vld [vmem:[%s0] sm:%s4]
    %6 = vst [vmem:[#allocation0] sm:%s4] %v5
    %v7 = vld [vmem:[#allocation0] sm:$0xf]
    %vm8 = vcmask 7168
    %9 = vst.msk [vmem:[%s1] ss:$4 sm:$0xf] %vm8, %v7
    %v10 = vld [vmem:[#allocation0] sm:$0xf]
    %11 = vrot.lane.b32.xlu0 %v10, 127
    %v12 = vpop.permute.xlu0 %11
    %vm13 = vcmask 7168
    %s14 = scalar_lea.vmem %s1, 1
    %15 = vst.msk [vmem:[%s14] ss:$4 sm:$0xf] %vm13, %v12
    %v16 = vld [vmem:[#allocation0] sm:$0xf]
    %17 = vrot.lane.b32.xlu0 %v16, 126
    %v18 = vpop.permute.xlu0 %17
    %vm19 = vcmask 7168
    %s20 = scalar_lea.vmem %s1, 2
    %21 = vst.msk [vmem:[%s20] ss:$4 sm:$0xf] %vm19, %v18
    %v22 = vld [vmem:[#allocation0] sm:$0xf]
    %23 = vrot.lane.b32.xlu0 %v22, 125
    %v24 = vpop.permute.xlu0 %23
    %vm25 = vcmask 7168
    %s26 = scalar_lea.vmem %s1, 3
    %27 = vst.msk [vmem:[%s26] ss:$4 sm:$0xf] %vm25, %v24

// kernel: unet_up.5
$region0: #{unet_up.5}
  #allocation0 [shape = 'u32[]', space=smem, size = 0x4, offset = 0x4, fixed_abs, tag = 'smem constant byte address 0x4 - core index']
  #allocation1 [shape = 'u32[144,128]{1,0:T(1,128)}', space=vmem, size = 0x12000, scoped, tag = 'internal scratch']
  %s0 = inlined_call_operand.vmem [shape: f32[2,4,256], index: 0, kind: input, shape index: {}]
  %s1 = inlined_call_operand.vmem [shape: f32[2,4,256], index: 1, kind: input, shape index: {}]
  %s2 = inlined_call_operand.vmem [shape: bf16[16,4], index: 2, kind: input, shape index: {}]
  %s3 = inlined_call_operand.vmem [shape: bf16[16,4], index: 3, kind: input, shape index: {}]
  %s4 = inlined_call_operand.vmem [shape: f32[16,1], index: 4, kind: input, shape index: {}]
  %s5 = inlined_call_operand.vmem [shape: bf16[2,16,256], index: 5, kind: output, shape index: {}]
  %s6 = sld [smem:[#allocation0]]
  $region53: #{unet_up.5} parent=0
    _
  %s8 = ssub.s32 1, %s6
  %s9 = scalar_select 0, %s8, %s6
  loop: start=0, step=1, limit=4
  $region2: #{unet_up.5} parent=0 // loop_pre_header
    _
  $region3: #{unet_up.5} parent=0 // loop_header
    %s11 = sphi 0, %s15
    %p12 = scmp.ge.s32.totalorder %s11, 4
    %s21 = sphi 0, %s23
    %s24 = sphi 0, %s21
    %s25 = sphi 0, %s24
    %s41 = sphi 0, %s25
    %s47 = sphi 0, %s49
    %s50 = sphi 0, %s47
    %s51 = sphi 0, %s50
    %s67 = sphi 0, %s51
    %s71 = sphi 0, %s71
    %s73 = sphi 0, %s71
    %s74 = sphi 0, %s73
    %s88 = sphi 0, %s74
    %s92 = sphi 0, %s92
    %s94 = sphi 0, %s92
    %s95 = sphi 0, %s94
    %s109 = sphi 0, %s95
    %s113 = sphi 0, %s113
    %s115 = sphi 0, %s113
    %s116 = sphi 0, %s115
    %s130 = sphi 0, %s116
    %s136 = sphi 0, %s138
    %s139 = sphi 0, %s136
    %s140 = sphi 0, %s139
    %s156 = sphi 0, %s140
  $region4: #{unet_up.5} parent=0 // loop_header_branch
    %14 = sbr.rel (%p12) target = $region8
  $region5: #{unet_up.5} parent=0 // loop_body
    %s16 = ssub.s32 %s11, 1
    %s17 = ssub.s32 %s11, 2
    %s18 = sadd.s32 %s11, 1
    %s19 = ssub.s32 %s11, %s18
    %p20 = scmp.eq.s32.totalorder %s19, 0
    %s22 = sadd.s32 %s21, 1
    %s23 = scalar_select %p20, %s21, %s22
    %p26 = pneg %p20
    %p27 = scmp.eq.s32.totalorder %s11, 1
    %p28 = por %p26, %p27
    %p29 = scmp.ne.s32.totalorder %s21, %s24
    %p30 = scmp.eq.s32.totalorder %s11, 0
    %p31 = por %p29, %p30
    %p32 = scmp.ne.s32.totalorder %s21, %s24
    %p33 = scmp.eq.s32.totalorder %s16, 1
    %p34 = por %p32, %p33
    %p35 = scmp.ne.s32.totalorder %s24, %s25
    %p36 = scmp.eq.s32.totalorder %s16, 0
    %p37 = por %p35, %p36
    %p38 = scmp.ne.s32.totalorder %s24, %s25
    %p39 = scmp.eq.s32.totalorder %s17, 1
    %p40 = por %p38, %p39
    %p42 = scmp.ne.s32.totalorder %s25, %s41
    %p43 = scmp.eq.s32.totalorder %s17, 0
    %p44 = por %p42, %p43
    %s45 = ssub.s32 %s11, %s18
    %p46 = scmp.eq.s32.totalorder %s45, 0
    %s48 = sadd.s32 %s47, 1
    %s49 = scalar_select %p46, %s47, %s48
    %p52 = pneg %p46
    %p53 = scmp.eq.s32.totalorder %s11, 1
    %p54 = por %p52, %p53
    %p55 = scmp.ne.s32.totalorder %s47, %s50
    %p56 = scmp.eq.s32.totalorder %s11, 0
    %p57 = por %p55, %p56
    %p58 = scmp.ne.s32.totalorder %s47, %s50
    %p59 = scmp.eq.s32.totalorder %s16, 1
    %p60 = por %p58, %p59
    %p61 = scmp.ne.s32.totalorder %s50, %s51
    %p62 = scmp.eq.s32.totalorder %s16, 0
    %p63 = por %p61, %p62
    %p64 = scmp.ne.s32.totalorder %s50, %s51
    %p65 = scmp.eq.s32.totalorder %s17, 1
    %p66 = por %p64, %p65
    %p68 = scmp.ne.s32.totalorder %s51, %s67
    %p69 = scmp.eq.s32.totalorder %s17, 0
    %p70 = por %p68, %p69
    %s72 = sadd.s32 %s71, 1
    %p75 = scmp.eq.s32.totalorder %s11, 1
    %p76 = scmp.ne.s32.totalorder %s71, %s73
    %p77 = scmp.eq.s32.totalorder %s11, 0
    %p78 = por %p76, %p77
    %p79 = scmp.ne.s32.totalorder %s71, %s73
    %p80 = scmp.eq.s32.totalorder %s16, 1
    %p81 = por %p79, %p80
    %p82 = scmp.ne.s32.totalorder %s73, %s74
    %p83 = scmp.eq.s32.totalorder %s16, 0
    %p84 = por %p82, %p83
    %p85 = scmp.ne.s32.totalorder %s73, %s74
    %p86 = scmp.eq.s32.totalorder %s17, 1
    %p87 = por %p85, %p86
    %p89 = scmp.ne.s32.totalorder %s74, %s88
    %p90 = scmp.eq.s32.totalorder %s17, 0
    %p91 = por %p89, %p90
    %s93 = sadd.s32 %s92, 1
    %p96 = scmp.eq.s32.totalorder %s11, 1
    %p97 = scmp.ne.s32.totalorder %s92, %s94
    %p98 = scmp.eq.s32.totalorder %s11, 0
    %p99 = por %p97, %p98
    %p100 = scmp.ne.s32.totalorder %s92, %s94
    %p101 = scmp.eq.s32.totalorder %s16, 1
    %p102 = por %p100, %p101
    %p103 = scmp.ne.s32.totalorder %s94, %s95
    %p104 = scmp.eq.s32.totalorder %s16, 0
    %p105 = por %p103, %p104
    %p106 = scmp.ne.s32.totalorder %s94, %s95
    %p107 = scmp.eq.s32.totalorder %s17, 1
    %p108 = por %p106, %p107
    %p110 = scmp.ne.s32.totalorder %s95, %s109
    %p111 = scmp.eq.s32.totalorder %s17, 0
    %p112 = por %p110, %p111
    %s114 = sadd.s32 %s113, 1
    %p117 = scmp.eq.s32.totalorder %s11, 1
    %p118 = scmp.ne.s32.totalorder %s113, %s115
    %p119 = scmp.eq.s32.totalorder %s11, 0
    %p120 = por %p118, %p119
    %p121 = scmp.ne.s32.totalorder %s113, %s115
    %p122 = scmp.eq.s32.totalorder %s16, 1
    %p123 = por %p121, %p122
    %p124 = scmp.ne.s32.totalorder %s115, %s116
    %p125 = scmp.eq.s32.totalorder %s16, 0
    %p126 = por %p124, %p125
    %p127 = scmp.ne.s32.totalorder %s115, %s116
    %p128 = scmp.eq.s32.totalorder %s17, 1
    %p129 = por %p127, %p128
    %p131 = scmp.ne.s32.totalorder %s116, %s130
    %p132 = scmp.eq.s32.totalorder %s17, 0
    %p133 = por %p131, %p132
    %s134 = ssub.s32 %s11, %s18
    %p135 = scmp.eq.s32.totalorder %s134, 0
    %s137 = sadd.s32 %s136, 1
    %s138 = scalar_select %p135, %s136, %s137
    %p141 = pneg %p135
    %p142 = scmp.eq.s32.totalorder %s11, 1
    %p143 = por %p141, %p142
    %p144 = scmp.ne.s32.totalorder %s136, %s139
    %p145 = scmp.eq.s32.totalorder %s11, 0
    %p146 = por %p144, %p145
    %p147 = scmp.ne.s32.totalorder %s136, %s139
    %p148 = scmp.eq.s32.totalorder %s16, 1
    %p149 = por %p147, %p148
    %p150 = scmp.ne.s32.totalorder %s139, %s140
    %p151 = scmp.eq.s32.totalorder %s16, 0
    %p152 = por %p150, %p151
    %p153 = scmp.ne.s32.totalorder %s139, %s140
    %p154 = scmp.eq.s32.totalorder %s17, 1
    %p155 = por %p153, %p154
    %p157 = scmp.ne.s32.totalorder %s140, %s156
    %p158 = scmp.eq.s32.totalorder %s17, 0
    %p159 = por %p157, %p158
    %p160 = scmp.le.s32.totalorder 1, %s11
    %p161 = scmp.lt.s32.totalorder %s11, 3
    %p162 = pnand %p160, %p161
    %p163 = pneg %p162
    // Predicated region
    $region9: #{unet_up.5} parent=5 // pred_check
      _
    $region10: #{unet_up.5} parent=5 // pred_check_branch
      %165 = sbr.rel (%p162) target = $region12
    $region11: #{unet_up.5} parent=5 // pred_region
      %s166 = ssub.s32 %s11, 1
      // Predicated region
      $region13: #{unet_up.5} parent=11 // pred_check
        %p167 = pneg %p84
      $region14: #{unet_up.5} parent=11 // pred_check_branch
        %169 = sbr.rel (%p167) target = $region16
      $region15: #{unet_up.5} parent=11 // pred_region
        _
      $region16: #{unet_up.5} parent=11 // pred_fallthru
        _
      // Predicated region
      $region17: #{unet_up.5} parent=11 // pred_check
        %p170 = pneg %p105
      $region18: #{unet_up.5} parent=11 // pred_check_branch
        %172 = sbr.rel (%p170) target = $region20
      $region19: #{unet_up.5} parent=11 // pred_region
        _
      $region20: #{unet_up.5} parent=11 // pred_fallthru
        _
      // Predicated region
      $region21: #{unet_up.5} parent=11 // pred_check
        %p173 = pneg %p126
      $region22: #{unet_up.5} parent=11 // pred_check_branch
        %175 = sbr.rel (%p173) target = $region24
      $region23: #{unet_up.5} parent=11 // pred_region
        _
      $region24: #{unet_up.5} parent=11 // pred_fallthru
        _
    $region12: #{unet_up.5} parent=5 // pred_fallthru
      _
    %p176 = scmp.lt.s32.totalorder %s11, 2
    // Predicated region
    $region25: #{unet_up.5} parent=5 // pred_check
      %p177 = pneg %p176
    $region26: #{unet_up.5} parent=5 // pred_check_branch
      %179 = sbr.rel (%p177) target = $region28
    $region27: #{unet_up.5} parent=5 // pred_region
      // Predicated region
      $region29: #{unet_up.5} parent=27 // pred_check
        %p180 = pneg %p31
      $region30: #{unet_up.5} parent=27 // pred_check_branch
        %182 = sbr.rel (%p180) target = $region32
      $region31: #{unet_up.5} parent=27 // pred_region
        %p183 = scmp.lt.s32.totalorder %s11, 1
        %s184 = scalar_select %p183, %s11, 1
        %s185 = smul.addr %s184, 2
        %s186 = smul.addr %s185, 4
        %s187 = scalar_lea.vmem %s0, %s186
      $region32: #{unet_up.5} parent=27 // pred_fallthru
        _
      // Predicated region
      $region33: #{unet_up.5} parent=27 // pred_check
        %p188 = pneg %p57
      $region34: #{unet_up.5} parent=27 // pred_check_branch
        %190 = sbr.rel (%p188) target = $region36
      $region35: #{unet_up.5} parent=27 // pred_region
        %p191 = scmp.lt.s32.totalorder %s11, 1
        %s192 = scalar_select %p191, %s11, 1
        %s193 = smul.addr %s192, 2
        %s194 = smul.addr %s193, 4
        %s195 = scalar_lea.vmem %s1, %s194
      $region36: #{unet_up.5} parent=27 // pred_fallthru
        _
    $region28: #{unet_up.5} parent=5 // pred_fallthru
      _
    %p196 = scmp.le.s32.totalorder 1, %s11
    %p197 = scmp.lt.s32.totalorder %s11, 3
    %p198 = pnand %p196, %p197
    %p199 = pneg %p198
    // Predicated region
    $region37: #{unet_up.5} parent=5 // pred_check
      _
    $region38: #{unet_up.5} parent=5 // pred_check_branch
      %201 = sbr.rel (%p198) target = $region40
    $region39: #{unet_up.5} parent=5 // pred_region
      %s202 = ssub.s32 %s11, 1
      %p203 = scmp.lt.s32.totalorder %s16, 1
      %s204 = scalar_select %p203, %s16, 1
      %s205 = smul.addr %s204, 2
      %s206 = smul.addr %s205, 4
      %s207 = scalar_lea.vmem %s0, %s206
      %p208 = pneg %p37
      %p209 = pneg %p34
      %p210 = scmp.lt.s32.totalorder %s16, 1
      %s211 = scalar_select %p210, %s16, 1
      %s212 = smul.addr %s211, 2
      %s213 = smul.addr %s212, 4
      %s214 = scalar_lea.vmem %s1, %s213
      %p215 = pneg %p63
      %p216 = pneg %p60
      %p217 = pneg %p84
      %p218 = pneg %p81
      %p219 = pneg %p105
      %p220 = pneg %p102
      %p221 = pneg %p126
      %p222 = pneg %p123
      %p223 = pneg %p152
      %p224 = pneg %p149
      %p225 = scmp.lt.s32.totalorder %s16, 1
      %s226 = scalar_select %p225, %s16, 1
      %s227 = smul.addr %s226, 4
      %s228 = smul.addr %s227, 4
      %s229 = scalar_lea.vmem %s5, %s228
      %p230 = scmp.lt.s32.totalorder %s16, 1
      %s231 = scalar_select %p230, %s16, 1
      %s232 = smul.addr %s231, 2
      %s233 = smul.addr %s232, 4
      %s234 = scalar_lea.vmem %s0, %s233
      %p235 = scmp.lt.s32.totalorder %s16, 1
      %s236 = scalar_select %p235, %s16, 1
      %s237 = smul.addr %s236, 2
      %s238 = smul.addr %s237, 4
      %s239 = scalar_lea.vmem %s1, %s238
      %p240 = scmp.lt.s32.totalorder %s16, 1
      %s241 = scalar_select %p240, %s16, 1
      %s242 = smul.addr %s241, 4
      %s243 = smul.addr %s242, 4
      %s244 = scalar_lea.vmem %s5, %s243
      %v246 = vld [vmem:[%s234] sm:$0xff]
      %v248 = vcombine.high %v246, %v246
      %v250 = vpack.c.bf16 %v246, %v246
      %v251 = vpack.c.bf16 %v248, %v248
      %v252 = vld [vmem:[%s239] sm:$0xff]
      %v254 = vcombine.high %v252, %v252
      %v256 = vpack.c.bf16 %v252, %v252
      %v257 = vpack.c.bf16 %v254, %v254
      %v258 = vld [vmem:[%s2] sm:$0xf]
      %v259 = vld [vmem:[%s2 + $0x4] sm:$0xf]
      %v260 = vld [vmem:[%s3] sm:$0xf]
      %v261 = vld [vmem:[%s3 + $0x4] sm:$0xf]
      %v264 = vunpack.c.l.b16 %v260
      %v265 = vunpack.c.l.b16 %v261
      %v266 = vpack.c.b16 %v265, %v264
      %vm267 = vcmask 31744
      %v269 = vsel %vm267, %v266, 0
      %vm271 = vcmask 1041408
      %v273 = vsel %vm271, %v256, 0
      %v276 = vsel %vm271, %v257, 0
      %278 = vmatprep.subr.bf16.mxu0 0
      %279 = vmatpush1.bf16.msra.mxu0 0
      %280 = vmatprep.subr.bf16.mxu0 0
      %281 = vmatpush1.bf16.msra.mxu0 0
      %282 = vmatprep.subr.bf16.mxu0 0
      %283 = vmatpush1.bf16.msra.mxu0 0
      %284 = vmatprep.subr.bf16.mxu0 0
      %285 = vmatpush1.bf16.msra.mxu0 0
      %286 = vmatprep.subr.bf16.mxu0 0
      %287 = vmatpush1.bf16.msra.mxu0 0
      %288 = vmatprep.subr.bf16.mxu0 0
      %289 = vmatpush1.bf16.msra.mxu0 0
      %290 = vmatprep.subr.bf16.mxu0 0
      %291 = vmatpush1.bf16.msra.mxu0 0
      %292 = vmatprep.subr.bf16.mxu0 %v276
      %293 = vmatpush1.bf16.msra.mxu0 %v273
      %294 = vmatprep.subr.bf16.mxu0 0
      %295 = vmatpush2.bf16.msra.mxu0 0
      %296 = vmatprep.subr.bf16.mxu0 0
      %297 = vmatpush2.bf16.msra.mxu0 0
      %298 = vmatprep.subr.bf16.mxu0 0
      %299 = vmatpush2.bf16.msra.mxu0 0
      %300 = vmatprep.subr.bf16.mxu0 0
      %301 = vmatpush2.bf16.msra.mxu0 0
      %302 = vmatprep.subr.bf16.mxu0 0
      %303 = vmatpush2.bf16.msra.mxu0 0
      %304 = vmatprep.subr.bf16.mxu0 0
      %305 = vmatpush2.bf16.msra.mxu0 0
      %306 = vmatprep.subr.bf16.mxu0 0
      %307 = vmatpush2.bf16.msra.mxu0 0
      %308 = vmatprep.subr.bf16.mxu0 0
      %309 = vmatpush2.bf16.msra.mxu0 0
      %310 = vmatprep.mubr.bf16.mxu0 0
      %311 = vmatmul.mubr.bf16.gmra.mxu0 %v269
      %v312 = vpop.f32.mrf.mxu0
      %v313 = vadd.f32 0.0, %v312
      %v314 = vpop.f32.mrf.mxu0
      %v315 = vadd.f32 0.0, %v314
      %v316 = vpop.f32.mrf.mxu0
      %v317 = vadd.f32 0.0, %v316
      %v318 = vpop.f32.mrf.mxu0
      %v319 = vadd.f32 0.0, %v318
      %320 = vdwg.mxu0
      %v323 = vunpack.c.l.b16 %v258
      %v324 = vunpack.c.l.b16 %v259
      %v325 = vpack.c.b16 %v324, %v323
      %v327 = vsel %vm267, %v325, 0
      %v330 = vsel %vm271, %v250, 0
      %v333 = vsel %vm271, %v251, 0
      %335 = vmatprep.subr.bf16.mxu0 0
      %336 = vmatpush1.bf16.msra.mxu0 0
      %337 = vmatprep.subr.bf16.mxu0 0
      %338 = vmatpush1.bf16.msra.mxu0 0
      %339 = vmatprep.subr.bf16.mxu0 0
      %340 = vmatpush1.bf16.msra.mxu0 0
      %341 = vmatprep.subr.bf16.mxu0 0
      %342 = vmatpush1.bf16.msra.mxu0 0
      %343 = vmatprep.subr.bf16.mxu0 0
      %344 = vmatpush1.bf16.msra.mxu0 0
      %345 = vmatprep.subr.bf16.mxu0 0
      %346 = vmatpush1.bf16.msra.mxu0 0
      %347 = vmatprep.subr.bf16.mxu0 0
      %348 = vmatpush1.bf16.msra.mxu0 0
      %349 = vmatprep.subr.bf16.mxu0 %v333
      %350 = vmatpush1.bf16.msra.mxu0 %v330
      %351 = vmatprep.subr.bf16.mxu0 0
      %352 = vmatpush2.bf16.msra.mxu0 0
      %353 = vmatprep.subr.bf16.mxu0 0
      %354 = vmatpush2.bf16.msra.mxu0 0
      %355 = vmatprep.subr.bf16.mxu0 0
      %356 = vmatpush2.bf16.msra.mxu0 0
      %357 = vmatprep.subr.bf16.mxu0 0
      %358 = vmatpush2.bf16.msra.mxu0 0
      %359 = vmatprep.subr.bf16.mxu0 0
      %360 = vmatpush2.bf16.msra.mxu0 0
      %361 = vmatprep.subr.bf16.mxu0 0
      %362 = vmatpush2.bf16.msra.mxu0 0
      %363 = vmatprep.subr.bf16.mxu0 0
      %364 = vmatpush2.bf16.msra.mxu0 0
      %365 = vmatprep.subr.bf16.mxu0 0
      %366 = vmatpush2.bf16.msra.mxu0 0
      %367 = vmatprep.mubr.bf16.mxu0 0
      %368 = vmatmul.mubr.bf16.gmra.mxu0 %v327
      %v369 = vpop.f32.mrf.mxu0
      %v370 = vadd.f32 %v313, %v369
      %v371 = vpop.f32.mrf.mxu0
      %v372 = vadd.f32 %v315, %v371
      %v373 = vpop.f32.mrf.mxu0
      %v374 = vadd.f32 %v317, %v373
      %v375 = vpop.f32.mrf.mxu0
      %v376 = vadd.f32 %v319, %v375
      %377 = vdwg.mxu0
      %v378 = vld [vmem:[%s4] sm:$0xff]
      %v379 = vld [vmem:[%s4 + $0x8] sm:$0xff]
      %381 = vset.pattern.permute.xlu0 0
      %382 = vperm.xlu0 %381, %v378
      %v383 = vpop.permute.xlu0 %382
      %386 = vset.pattern.permute.xlu0 0
      %387 = vperm.xlu0 %386, %v379
      %v388 = vpop.permute.xlu0 %387
      %v390 = vadd.f32 %v370, %v383
      %v391 = vadd.f32 %v372, %v383
      %v392 = vadd.f32 %v374, %v388
      %v393 = vadd.f32 %v376, %v388
      %v394 = vpack.c.bf16 %v392, %v390
      %v395 = vpack.c.bf16 %v393, %v391
      %v398 = vunpack.c.l.b16 %v394
      %v399 = vunpack.c.l.b16 %v395
      %v400 = vunpack.c.h.b16 %v394
      %v401 = vunpack.c.h.b16 %v395
      %v402 = vpack.c.b16 %v399, %v398
      %v403 = vpack.c.b16 %v401, %v400
      %406 = vst [vmem:[%s244] sm:$0xff] %v402
      %407 = vst [vmem:[%s244 + $0x8] sm:$0xff] %v403
      %p408 = scmp.lt.s32.totalorder %s16, 1
      %s409 = scalar_select %p408, %s16, 1
      %s410 = smul.addr %s409, 4
      %s411 = smul.addr %s410, 4
      %s412 = scalar_lea.vmem %s5, %s411
      // Predicated region
      $region41: #{unet_up.5} parent=39 // pred_check
        %p413 = pneg %p149
      $region42: #{unet_up.5} parent=39 // pred_check_branch
        %415 = sbr.rel (%p413) target = $region44
      $region43: #{unet_up.5} parent=39 // pred_region
        _
      $region44: #{unet_up.5} parent=39 // pred_fallthru
        _
    $region40: #{unet_up.5} parent=5 // pred_fallthru
      _
    %p416 = scmp.le.s32.totalorder 2, %s11
    // Predicated region
    $region45: #{unet_up.5} parent=5 // pred_check
      %p417 = pneg %p416
    $region46: #{unet_up.5} parent=5 // pred_check_branch
      %419 = sbr.rel (%p417) target = $region48
    $region47: #{unet_up.5} parent=5 // pred_region
      %s420 = ssub.s32 %s11, 2
      // Predicated region
      $region49: #{unet_up.5} parent=47 // pred_check
        %p421 = pneg %p155
      $region50: #{unet_up.5} parent=47 // pred_check_branch
        %423 = sbr.rel (%p421) target = $region52
      $region51: #{unet_up.5} parent=47 // pred_region
        %p424 = scmp.lt.s32.totalorder %s17, 1
        %s425 = scalar_select %p424, %s17, 1
        %s426 = smul.addr %s425, 4
        %s427 = smul.addr %s426, 4
        %s428 = scalar_lea.vmem %s5, %s427
      $region52: #{unet_up.5} parent=47 // pred_fallthru
        _
    $region48: #{unet_up.5} parent=5 // pred_fallthru
      _
  $region6: #{unet_up.5} parent=0 // loop_footer
    %s15 = sadd.s32 1, %s11
  $region7: #{unet_up.5} parent=0 // loop_footer_branch
    %10 = sbr.rel target = $region3
  $region8: #{unet_up.5} parent=0 // loop_exit
    _

// kernel: unet_up.6
$region0: #{unet_up.6}
  #allocation0 [shape = 'u32[]', space=smem, size = 0x4, offset = 0x4, fixed_abs, tag = 'smem constant byte address 0x4 - core index']
  #allocation1 [shape = 'u32[144,128]{1,0:T(1,128)}', space=vmem, size = 0x12000, scoped, tag = 'internal scratch']
  #allocation2 [shape = 'bf16[4,1408]{1,0:T(4,128)(2,1)}', space=vmem, size = 0x2c00, scoped, tag = 'scratch operand']
  %s0 = inlined_call_operand.vmem [shape: bf16[2,4,1156], index: 0, kind: input, shape index: {}]
  %s1 = inlined_call_operand.vmem [shape: bf16[9,4,4], index: 1, kind: input, shape index: {}]
  %s2 = inlined_call_operand.vmem [shape: f32[1,1156], index: 2, kind: input, shape index: {}]
  %s3 = inlined_call_operand.vmem [shape: bf16[2,4,1156], index: 3, kind: output, shape index: {0}]
  %s4 = inlined_call_operand.vmem [shape: f32[2,4,2], index: 4, kind: output, shape index: {1}]
  %5 = xla_tuple %s3, %s4
  %s6 = sld [smem:[#allocation0]]
  $region53: #{unet_up.6} parent=0
    _
  %s8 = ssub.s32 1, %s6
  %s9 = scalar_select 0, %s8, %s6
  loop: start=0, step=1, limit=4
  $region2: #{unet_up.6} parent=0 // loop_pre_header
    _
  $region3: #{unet_up.6} parent=0 // loop_header
    %s11 = sphi 0, %s15
    %p12 = scmp.ge.s32.totalorder %s11, 4
    %s21 = sphi 0, %s23
    %s24 = sphi 0, %s21
    %s25 = sphi 0, %s24
    %s41 = sphi 0, %s25
    %s45 = sphi 0, %s45
    %s47 = sphi 0, %s45
    %s48 = sphi 0, %s47
    %s62 = sphi 0, %s48
    %s66 = sphi 0, %s66
    %s68 = sphi 0, %s66
    %s69 = sphi 0, %s68
    %s83 = sphi 0, %s69
    %s89 = sphi 0, %s91
    %s92 = sphi 0, %s89
    %s93 = sphi 0, %s92
    %s109 = sphi 0, %s93
    %s115 = sphi 0, %s117
    %s118 = sphi 0, %s115
    %s119 = sphi 0, %s118
    %s135 = sphi 0, %s119
  $region4: #{unet_up.6} parent=0 // loop_header_branch
    %14 = sbr.rel (%p12) target = $region8
  $region5: #{unet_up.6} parent=0 // loop_body
    %s16 = ssub.s32 %s11, 1
    %s17 = ssub.s32 %s11, 2
    %s18 = sadd.s32 %s11, 1
    %s19 = ssub.s32 %s11, %s18
    %p20 = scmp.eq.s32.totalorder %s19, 0
    %s22 = sadd.s32 %s21, 1
    %s23 = scalar_select %p20, %s21, %s22
    %p26 = pneg %p20
    %p27 = scmp.eq.s32.totalorder %s11, 1
    %p28 = por %p26, %p27
    %p29 = scmp.ne.s32.totalorder %s21, %s24
    %p30 = scmp.eq.s32.totalorder %s11, 0
    %p31 = por %p29, %p30
    %p32 = scmp.ne.s32.totalorder %s21, %s24
    %p33 = scmp.eq.s32.totalorder %s16, 1
    %p34 = por %p32, %p33
    %p35 = scmp.ne.s32.totalorder %s24, %s25
    %p36 = scmp.eq.s32.totalorder %s16, 0
    %p37 = por %p35, %p36
    %p38 = scmp.ne.s32.totalorder %s24, %s25
    %p39 = scmp.eq.s32.totalorder %s17, 1
    %p40 = por %p38, %p39
    %p42 = scmp.ne.s32.totalorder %s25, %s41
    %p43 = scmp.eq.s32.totalorder %s17, 0
    %p44 = por %p42, %p43
    %s46 = sadd.s32 %s45, 1
    %p49 = scmp.eq.s32.totalorder %s11, 1
    %p50 = scmp.ne.s32.totalorder %s45, %s47
    %p51 = scmp.eq.s32.totalorder %s11, 0
    %p52 = por %p50, %p51
    %p53 = scmp.ne.s32.totalorder %s45, %s47
    %p54 = scmp.eq.s32.totalorder %s16, 1
    %p55 = por %p53, %p54
    %p56 = scmp.ne.s32.totalorder %s47, %s48
    %p57 = scmp.eq.s32.totalorder %s16, 0
    %p58 = por %p56, %p57
    %p59 = scmp.ne.s32.totalorder %s47, %s48
    %p60 = scmp.eq.s32.totalorder %s17, 1
    %p61 = por %p59, %p60
    %p63 = scmp.ne.s32.totalorder %s48, %s62
    %p64 = scmp.eq.s32.totalorder %s17, 0
    %p65 = por %p63, %p64
    %s67 = sadd.s32 %s66, 1
    %p70 = scmp.eq.s32.totalorder %s11, 1
    %p71 = scmp.ne.s32.totalorder %s66, %s68
    %p72 = scmp.eq.s32.totalorder %s11, 0
    %p73 = por %p71, %p72
    %p74 = scmp.ne.s32.totalorder %s66, %s68
    %p75 = scmp.eq.s32.totalorder %s16, 1
    %p76 = por %p74, %p75
    %p77 = scmp.ne.s32.totalorder %s68, %s69
    %p78 = scmp.eq.s32.totalorder %s16, 0
    %p79 = por %p77, %p78
    %p80 = scmp.ne.s32.totalorder %s68, %s69
    %p81 = scmp.eq.s32.totalorder %s17, 1
    %p82 = por %p80, %p81
    %p84 = scmp.ne.s32.totalorder %s69, %s83
    %p85 = scmp.eq.s32.totalorder %s17, 0
    %p86 = por %p84, %p85
    %s87 = ssub.s32 %s11, %s18
    %p88 = scmp.eq.s32.totalorder %s87, 0
    %s90 = sadd.s32 %s89, 1
    %s91 = scalar_select %p88, %s89, %s90
    %p94 = pneg %p88
    %p95 = scmp.eq.s32.totalorder %s11, 1
    %p96 = por %p94, %p95
    %p97 = scmp.ne.s32.totalorder %s89, %s92
    %p98 = scmp.eq.s32.totalorder %s11, 0
    %p99 = por %p97, %p98
    %p100 = scmp.ne.s32.totalorder %s89, %s92
    %p101 = scmp.eq.s32.totalorder %s16, 1
    %p102 = por %p100, %p101
    %p103 = scmp.ne.s32.totalorder %s92, %s93
    %p104 = scmp.eq.s32.totalorder %s16, 0
    %p105 = por %p103, %p104
    %p106 = scmp.ne.s32.totalorder %s92, %s93
    %p107 = scmp.eq.s32.totalorder %s17, 1
    %p108 = por %p106, %p107
    %p110 = scmp.ne.s32.totalorder %s93, %s109
    %p111 = scmp.eq.s32.totalorder %s17, 0
    %p112 = por %p110, %p111
    %s113 = ssub.s32 %s11, %s18
    %p114 = scmp.eq.s32.totalorder %s113, 0
    %s116 = sadd.s32 %s115, 1
    %s117 = scalar_select %p114, %s115, %s116
    %p120 = pneg %p114
    %p121 = scmp.eq.s32.totalorder %s11, 1
    %p122 = por %p120, %p121
    %p123 = scmp.ne.s32.totalorder %s115, %s118
    %p124 = scmp.eq.s32.totalorder %s11, 0
    %p125 = por %p123, %p124
    %p126 = scmp.ne.s32.totalorder %s115, %s118
    %p127 = scmp.eq.s32.totalorder %s16, 1
    %p128 = por %p126, %p127
    %p129 = scmp.ne.s32.totalorder %s118, %s119
    %p130 = scmp.eq.s32.totalorder %s16, 0
    %p131 = por %p129, %p130
    %p132 = scmp.ne.s32.totalorder %s118, %s119
    %p133 = scmp.eq.s32.totalorder %s17, 1
    %p134 = por %p132, %p133
    %p136 = scmp.ne.s32.totalorder %s119, %s135
    %p137 = scmp.eq.s32.totalorder %s17, 0
    %p138 = por %p136, %p137
    %p139 = scmp.le.s32.totalorder 1, %s11
    %p140 = scmp.lt.s32.totalorder %s11, 3
    %p141 = pnand %p139, %p140
    %p142 = pneg %p141
    // Predicated region
    $region9: #{unet_up.6} parent=5 // pred_check
      _
    $region10: #{unet_up.6} parent=5 // pred_check_branch
      %144 = sbr.rel (%p141) target = $region12
    $region11: #{unet_up.6} parent=5 // pred_region
      %s145 = ssub.s32 %s11, 1
      // Predicated region
      $region13: #{unet_up.6} parent=11 // pred_check
        %p146 = pneg %p58
      $region14: #{unet_up.6} parent=11 // pred_check_branch
        %148 = sbr.rel (%p146) target = $region16
      $region15: #{unet_up.6} parent=11 // pred_region
        _
      $region16: #{unet_up.6} parent=11 // pred_fallthru
        _
      // Predicated region
      $region17: #{unet_up.6} parent=11 // pred_check
        %p149 = pneg %p79
      $region18: #{unet_up.6} parent=11 // pred_check_branch
        %151 = sbr.rel (%p149) target = $region20
      $region19: #{unet_up.6} parent=11 // pred_region
        _
      $region20: #{unet_up.6} parent=11 // pred_fallthru
        _
    $region12: #{unet_up.6} parent=5 // pred_fallthru
      _
    %p152 = scmp.lt.s32.totalorder %s11, 2
    // Predicated region
    $region21: #{unet_up.6} parent=5 // pred_check
      %p153 = pneg %p152
    $region22: #{unet_up.6} parent=5 // pred_check_branch
      %155 = sbr.rel (%p153) target = $region24
    $region23: #{unet_up.6} parent=5 // pred_region
      // Predicated region
      $region25: #{unet_up.6} parent=23 // pred_check
        %p156 = pneg %p31
      $region26: #{unet_up.6} parent=23 // pred_check_branch
        %158 = sbr.rel (%p156) target = $region28
      $region27: #{unet_up.6} parent=23 // pred_region
        %p159 = scmp.lt.s32.totalorder %s11, 1
        %s160 = scalar_select %p159, %s11, 1
        %s161 = smul.addr %s160, 10
        %s162 = smul.addr %s161, 2
        %s163 = scalar_lea.vmem %s0, %s162
      $region28: #{unet_up.6} parent=23 // pred_fallthru
        _
    $region24: #{unet_up.6} parent=5 // pred_fallthru
      _
    %p164 = scmp.le.s32.totalorder 1, %s11
    %p165 = scmp.lt.s32.totalorder %s11, 3
    %p166 = pnand %p164, %p165
    %p167 = pneg %p166
    // Predicated region
    $region29: #{unet_up.6} parent=5 // pred_check
      _
    $region30: #{unet_up.6} parent=5 // pred_check_branch
      %169 = sbr.rel (%p166) target = $region32
    $region31: #{unet_up.6} parent=5 // pred_region
      %s170 = ssub.s32 %s11, 1
      %p171 = scmp.lt.s32.totalorder %s16, 1
      %s172 = scalar_select %p171, %s16, 1
      %s173 = smul.addr %s172, 10
      %s174 = smul.addr %s173, 2
      %s175 = scalar_lea.vmem %s0, %s174
      %p176 = pneg %p37
      %p177 = pneg %p34
      %p178 = pneg %p58
      %p179 = pneg %p55
      %p180 = pneg %p79
      %p181 = pneg %p76
      %p182 = pneg %p105
      %p183 = pneg %p102
      %p184 = scmp.lt.s32.totalorder %s16, 1
      %s185 = scalar_select %p184, %s16, 1
      %s186 = smul.addr %s185, 10
      %s187 = smul.addr %s186, 2
      %s188 = scalar_lea.vmem %s3, %s187
      %p189 = pneg %p131
      %p190 = pneg %p128
      %p191 = scmp.lt.s32.totalorder %s16, 1
      %s192 = scalar_select %p191, %s16, 1
      %s193 = smul.addr %s192, 4
      %s194 = scalar_lea.vmem %s4, %s193
      %p195 = scmp.lt.s32.totalorder %s16, 1
      %s196 = scalar_select %p195, %s16, 1
      %s197 = smul.addr %s196, 10
      %s198 = smul.addr %s197, 2
      %s199 = scalar_lea.vmem %s0, %s198
      %p200 = scmp.lt.s32.totalorder %s16, 1
      %s201 = scalar_select %p200, %s16, 1
      %s202 = smul.addr %s201, 10
      %s203 = smul.addr %s202, 2
      %s204 = scalar_lea.vmem %s3, %s203
      %p205 = scmp.lt.s32.totalorder %s16, 1
      %s206 = scalar_select %p205, %s16, 1
      %s207 = smul.addr %s206, 4
      %s208 = scalar_lea.vmem %s4, %s207
      %v210 = vld [vmem:[%s2] sm:$0xff]
      %v211 = vld [vmem:[%s2 + $0x8] sm:$0x3]
      %v212 = vld [vmem:[%s199] sm:$0xff]
      %v213 = vld [vmem:[%s199 + $0x8] sm:$0xff]
      %v214 = vld [vmem:[%s199 + $0x10] sm:$0xf]
      %v215 = vunpack.c.l.bf16 %v212
      %v216 = vunpack.c.h.bf16 %v212
      %v217 = vunpack.c.l.bf16 %v213
      %v218 = vunpack.c.h.bf16 %v213
      %v219 = vunpack.c.l.bf16 %v214
      %v222 = vlaneseq
      %v223 = vshrl.u32 %v222, 7
      %v224 = vsub.s32 0, %v223
      %v225 = vrot.slane %v210, %v224
      %v226 = vlaneseq
      %v227 = vshrl.u32 %v226, 7
      %v228 = vsub.s32 1, %v227
      %v229 = vrot.slane %v210, %v228
      %v230 = vlaneseq
      %v231 = vshrl.u32 %v230, 7
      %v232 = vsub.s32 2, %v231
      %v233 = vrot.slane %v210, %v232
      %v234 = vlaneseq
      %v235 = vshrl.u32 %v234, 7
      %v236 = vsub.s32 3, %v235
      %v237 = vrot.slane %v210, %v236
      %v238 = vlaneseq
      %v239 = vshrl.u32 %v238, 7
      %v240 = vsub.s32 4, %v239
      %v241 = vrot.slane %v210, %v240
      %v242 = vlaneseq
      %v243 = vshrl.u32 %v242, 7
      %v244 = vsub.s32 5, %v243
      %v245 = vrot.slane %v210, %v244
      %v246 = vlaneseq
      %v247 = vshrl.u32 %v246, 7
      %v248 = vsub.s32 6, %v247
      %v249 = vrot.slane %v210, %v248
      %v250 = vlaneseq
      %v251 = vshrl.u32 %v250, 7
      %v252 = vsub.s32 7, %v251
      %v253 = vrot.slane %v210, %v252
      %v254 = vlaneseq
      %v255 = vshrl.u32 %v254, 7
      %v256 = vsub.s32 0, %v255
      %v257 = vrot.slane %v211, %v256
      %v258 = vlaneseq
      %v259 = vshrl.u32 %v258, 7
      %v260 = vsub.s32 1, %v259
      %v261 = vrot.slane %v211, %v260
      %v272 = vcombine.low %v225, %v229
      %v273 = vcombine.low %v233, %v237
      %v274 = vcombine.low %v241, %v245
      %v275 = vcombine.low %v249, %v253
      %v276 = vcombine.low %v257, %v261
      %v282 = vmul.f32 %v215, %v272
      %v283 = vmul.f32 %v216, %v273
      %v284 = vmul.f32 %v217, %v274
      %v285 = vmul.f32 %v218, %v275
      %v286 = vmul.f32 %v219, %v276
      %287 = vst [vmem:[#allocation2] sm:$0xff] 0
      %288 = vst [vmem:[#allocation2 + $0x8] sm:$0xff] 0
      %289 = vst [vmem:[#allocation2 + $0x10] sm:$0x3f] 0
      %v295 = vcombine.high %v282, %v282
      %v296 = vcombine.high %v283, %v283
      %v297 = vcombine.high %v284, %v284
      %v298 = vcombine.high %v285, %v285
      %v299 = vcombine.high %v286, %v286
      %v305 = vpack.c.bf16 %v282, %v282
      %v306 = vpack.c.bf16 %v295, %v295
      %v307 = vpack.c.bf16 %v283, %v283
      %v308 = vpack.c.bf16 %v296, %v296
      %v309 = vpack.c.bf16 %v284, %v284
      %v310 = vpack.c.bf16 %v297, %v297
      %v311 = vpack.c.bf16 %v285, %v285
      %v312 = vpack.c.bf16 %v298, %v298
      %v313 = vpack.c.bf16 %v286, %v286
      %v314 = vpack.c.bf16 %v299, %v299
      %v325 = vcombine.low %v305, %v306
      %v326 = vcombine.low %v307, %v308
      %v328 = vunpack.c.l.s4 1983009808
      %v329 = vunpack.c.0.s8 %v328
      %v330 = vlaneseq
      %v331 = vshrl.u32 %v330, 7
      %v332 = vsub.s32 %v329, %v331
      %v333 = vrot.slane %v325, %v332
      %v335 = vunpack.c.l.s4 1983009808
      %v336 = vunpack.c.0.s8 %v335
      %v337 = vlaneseq
      %v338 = vshrl.u32 %v337, 7
      %v339 = vsub.s32 %v336, %v338
      %v340 = vrot.slane %v326, %v339
      %v341 = vcombine.low %v333, %v340
      %v342 = vcombine.low %v309, %v310
      %v343 = vcombine.low %v311, %v312
      %v345 = vunpack.c.l.s4 1983009808
      %v346 = vunpack.c.0.s8 %v345
      %v347 = vlaneseq
      %v348 = vshrl.u32 %v347, 7
      %v349 = vsub.s32 %v346, %v348
      %v350 = vrot.slane %v342, %v349
      %v352 = vunpack.c.l.s4 1983009808
      %v353 = vunpack.c.0.s8 %v352
      %v354 = vlaneseq
      %v355 = vshrl.u32 %v354, 7
      %v356 = vsub.s32 %v353, %v355
      %v357 = vrot.slane %v343, %v356
      %v358 = vcombine.low %v350, %v357
      %v359 = vcombine.low %v313, %v314
      %v361 = vunpack.c.l.s4 1983009808
      %v362 = vunpack.c.0.s8 %v361
      %v363 = vlaneseq
      %v364 = vshrl.u32 %v363, 7
      %v365 = vsub.s32 %v362, %v364
      %v366 = vrot.slane %v359, %v365
      %370 = vst [vmem:[#allocation2 + $0x2] sm:$0xff] %v341
      %371 = vst [vmem:[#allocation2 + $0xa] sm:$0xff] %v358
      %vm372 = vcmask 1041408
      %vm373 = vcmask 27650
      %vm374 = vmor %vm373, %vm372
      %375 = vst.msk [vmem:[#allocation2 + $0x12] sm:$0xf] %vm374, %v366
      %v376 = vld [vmem:[#allocation2] sm:$0xff]
      %v377 = vld [vmem:[#allocation2 + $0x8] sm:$0xff]
      %v378 = vld [vmem:[#allocation2 + $0x10] sm:$0x3f]
      %v379 = vld [vmem:[%s1] sm:$0x3]
      %s380 = scalar_lea.vmem %s1, 2
      %v381 = vld [vmem:[%s380] sm:$0x3]
      %v385 = vcombine.high %v376, %v376
      %v387 = vunpack.c.l.s4 1983009808
      %v388 = vunpack.c.0.s8 %v387
      %v389 = vlaneseq
      %v390 = vshrl.u32 %v389, 7
      %v391 = vsub.s32 %v388, %v390
      %v392 = vrot.slane %v376, %v391
      %v394 = vunpack.c.l.s4 1983009808
      %v395 = vunpack.c.0.s8 %v394
      %v396 = vlaneseq
      %v397 = vshrl.u32 %v396, 7
      %v398 = vsub.s32 %v395, %v397
      %v399 = vrot.slane %v385, %v398
      %v400 = vcombine.high %v392, %v392
      %v401 = vcombine.high %v399, %v399
      %v402 = vcombine.high %v377, %v377
      %v404 = vunpack.c.l.s4 1983009808
      %v405 = vunpack.c.0.s8 %v404
      %v406 = vlaneseq
      %v407 = vshrl.u32 %v406, 7
      %v408 = vsub.s32 %v405, %v407
      %v409 = vrot.slane %v377, %v408
      %v411 = vunpack.c.l.s4 1983009808
      %v412 = vunpack.c.0.s8 %v411
      %v413 = vlaneseq
      %v414 = vshrl.u32 %v413, 7
      %v415 = vsub.s32 %v412, %v414
      %v416 = vrot.slane %v402, %v415
      %v417 = vcombine.high %v409, %v409
      %v418 = vcombine.high %v416, %v416
      %v420 = vunpack.c.l.s4 1983009808
      %v421 = vunpack.c.0.s8 %v420
      %v422 = vlaneseq
      %v423 = vshrl.u32 %v422, 7
      %v424 = vsub.s32 %v421, %v423
      %v425 = vrot.slane %v378, %v424
      %v426 = vcombine.high %v425, %v425
      %427 = vrot.lane.b32.xlu0 %v392, 34
      %v428 = vpop.permute.xlu0 %427
      %429 = vrot.lane.b32.xlu0 %v400, 34
      %v430 = vpop.permute.xlu0 %429
      %431 = vrot.lane.b32.xlu0 %v399, 34
      %v432 = vpop.permute.xlu0 %431
      %433 = vrot.lane.b32.xlu0 %v401, 34
      %v434 = vpop.permute.xlu0 %433
      %435 = vrot.lane.b32.xlu0 %v409, 34
      %v436 = vpop.permute.xlu0 %435
      %437 = vrot.lane.b32.xlu0 %v417, 34
      %v438 = vpop.permute.xlu0 %437
      %439 = vrot.lane.b32.xlu0 %v416, 34
      %v440 = vpop.permute.xlu0 %439
      %441 = vrot.lane.b32.xlu0 %v418, 34
      %v442 = vpop.permute.xlu0 %441
      %443 = vrot.lane.b32.xlu0 %v425, 34
      %v444 = vpop.permute.xlu0 %443
      %445 = vrot.lane.b32.xlu0 %v426, 34
      %v446 = vpop.permute.xlu0 %445
      %vm447 = vcmask 277504
      %v448 = vsel %vm447, %v428, %v430
      %v449 = vsel %vm447, %v430, %v432
      %v450 = vsel %vm447, %v432, %v434
      %v451 = vsel %vm447, %v434, %v436
      %v452 = vsel %vm447, %v436, %v438
      %v453 = vsel %vm447, %v438, %v440
      %v454 = vsel %vm447, %v440, %v442
      %v455 = vsel %vm447, %v442, %v444
      %v456 = vsel %vm447, %v444, %v446
      %vm457 = vcmask 31744
      %v459 = vsel %vm457, %v381, 0
      %v462 = vsel %vm372, %v448, 0
      %v465 = vsel %vm372, %v449, 0
      %v468 = vsel %vm372, %v450, 0
      %v471 = vsel %vm372, %v451, 0
      %v474 = vsel %vm372, %v452, 0
      %v477 = vsel %vm372, %v453, 0
      %v480 = vsel %vm372, %v454, 0
      %v483 = vsel %vm372, %v455, 0
      %v486 = vsel %vm372, %v456, 0
      %v489 = vsel %vm372, %v446, 0
      %491 = vmatprep.subr.bf16.mxu0 0
      %492 = vmatpush1.bf16.msra.mxu0 0
      %493 = vmatprep.subr.bf16.mxu0 0
      %494 = vmatpush1.bf16.msra.mxu0 0
      %495 = vmatprep.subr.bf16.mxu0 0
      %496 = vmatpush1.bf16.msra.mxu0 0
      %497 = vmatprep.subr.bf16.mxu0 0
      %498 = vmatpush1.bf16.msra.mxu0 0
      %499 = vmatprep.subr.bf16.mxu0 0
      %500 = vmatpush1.bf16.msra.mxu0 0
      %501 = vmatprep.subr.bf16.mxu0 0
      %502 = vmatpush1.bf16.msra.mxu0 0
      %503 = vmatprep.subr.bf16.mxu0 0
      %504 = vmatpush1.bf16.msra.mxu0 0
      %505 = vmatprep.subr.bf16.mxu0 %v465
      %506 = vmatpush1.bf16.msra.mxu0 %v462
      %507 = vmatprep.subr.bf16.mxu0 0
      %508 = vmatpush2.bf16.msra.mxu0 0
      %509 = vmatprep.subr.bf16.mxu0 0
      %510 = vmatpush2.bf16.msra.mxu0 0
      %511 = vmatprep.subr.bf16.mxu0 0
      %512 = vmatpush2.bf16.msra.mxu0 0
      %513 = vmatprep.subr.bf16.mxu0 0
      %514 = vmatpush2.bf16.msra.mxu0 0
      %515 = vmatprep.subr.bf16.mxu0 0
      %516 = vmatpush2.bf16.msra.mxu0 0
      %517 = vmatprep.subr.bf16.mxu0 0
      %518 = vmatpush2.bf16.msra.mxu0 0
      %519 = vmatprep.subr.bf16.mxu0 0
      %520 = vmatpush2.bf16.msra.mxu0 0
      %521 = vmatprep.subr.bf16.mxu0 0
      %522 = vmatpush2.bf16.msra.mxu0 0
      %523 = vmatprep.mubr.bf16.mxu0 0
      %524 = vmatmul.mubr.bf16.gmra.mxu0 %v459
      %v525 = vpop.f32.mrf.mxu0
      %v526 = vadd.f32 0.0, %v525
      %v527 = vpop.f32.mrf.mxu0
      %v528 = vadd.f32 0.0, %v527
      %v529 = vpop.f32.mrf.mxu0
      %v530 = vpop.f32.mrf.mxu0
      %531 = vdwg.mxu0
      %532 = vmatprep.subr.bf16.mxu0 0
      %533 = vmatpush1.bf16.msra.mxu0 0
      %534 = vmatprep.subr.bf16.mxu0 0
      %535 = vmatpush1.bf16.msra.mxu0 0
      %536 = vmatprep.subr.bf16.mxu0 0
      %537 = vmatpush1.bf16.msra.mxu0 0
      %538 = vmatprep.subr.bf16.mxu0 0
      %539 = vmatpush1.bf16.msra.mxu0 0
      %540 = vmatprep.subr.bf16.mxu0 0
      %541 = vmatpush1.bf16.msra.mxu0 0
      %542 = vmatprep.subr.bf16.mxu0 0
      %543 = vmatpush1.bf16.msra.mxu0 0
      %544 = vmatprep.subr.bf16.mxu0 0
      %545 = vmatpush1.bf16.msra.mxu0 0
      %546 = vmatprep.subr.bf16.mxu0 %v471
      %547 = vmatpush1.bf16.msra.mxu0 %v468
      %548 = vmatprep.subr.bf16.mxu0 0
      %549 = vmatpush2.bf16.msra.mxu0 0
      %550 = vmatprep.subr.bf16.mxu0 0
      %551 = vmatpush2.bf16.msra.mxu0 0
      %552 = vmatprep.subr.bf16.mxu0 0
      %553 = vmatpush2.bf16.msra.mxu0 0
      %554 = vmatprep.subr.bf16.mxu0 0
      %555 = vmatpush2.bf16.msra.mxu0 0
      %556 = vmatprep.subr.bf16.mxu0 0
      %557 = vmatpush2.bf16.msra.mxu0 0
      %558 = vmatprep.subr.bf16.mxu0 0
      %559 = vmatpush2.bf16.msra.mxu0 0
      %560 = vmatprep.subr.bf16.mxu0 0
      %561 = vmatpush2.bf16.msra.mxu0 0
      %562 = vmatprep.subr.bf16.mxu0 0
      %563 = vmatpush2.bf16.msra.mxu0 0
      %564 = vmatprep.mubr.bf16.mxu0 0
      %565 = vmatmul.mubr.bf16.gmra.mxu0 %v459
      %v566 = vpop.f32.mrf.mxu0
      %v567 = vadd.f32 0.0, %v566
      %v568 = vpop.f32.mrf.mxu0
      %v569 = vadd.f32 0.0, %v568
      %v570 = vpop.f32.mrf.mxu0
      %v571 = vpop.f32.mrf.mxu0
      %572 = vdwg.mxu0
      %573 = vmatprep.subr.bf16.mxu0 0
      %574 = vmatpush1.bf16.msra.mxu0 0
      %575 = vmatprep.subr.bf16.mxu0 0
      %576 = vmatpush1.bf16.msra.mxu0 0
      %577 = vmatprep.subr.bf16.mxu0 0
      %578 = vmatpush1.bf16.msra.mxu0 0
      %579 = vmatprep.subr.bf16.mxu0 0
      %580 = vmatpush1.bf16.msra.mxu0 0
      %581 = vmatprep.subr.bf16.mxu0 0
      %582 = vmatpush1.bf16.msra.mxu0 0
      %583 = vmatprep.subr.bf16.mxu0 0
      %584 = vmatpush1.bf16.msra.mxu0 0
      %585 = vmatprep.subr.bf16.mxu0 0
      %586 = vmatpush1.bf16.msra.mxu0 0
      %587 = vmatprep.subr.bf16.mxu0 %v477
      %588 = vmatpush1.bf16.msra.mxu0 %v474
      %589 = vmatprep.subr.bf16.mxu0 0
      %590 = vmatpush2.bf16.msra.mxu0 0
      %591 = vmatprep.subr.bf16.mxu0 0
      %592 = vmatpush2.bf16.msra.mxu0 0
      %593 = vmatprep.subr.bf16.mxu0 0
      %594 = vmatpush2.bf16.msra.mxu0 0
      %595 = vmatprep.subr.bf16.mxu0 0
      %596 = vmatpush2.bf16.msra.mxu0 0
      %597 = vmatprep.subr.bf16.mxu0 0
      %598 = vmatpush2.bf16.msra.mxu0 0
      %599 = vmatprep.subr.bf16.mxu0 0
      %600 = vmatpush2.bf16.msra.mxu0 0
      %601 = vmatprep.subr.bf16.mxu0 0
      %602 = vmatpush2.bf16.msra.mxu0 0
      %603 = vmatprep.subr.bf16.mxu0 0
      %604 = vmatpush2.bf16.msra.mxu0 0
      %605 = vmatprep.mubr.bf16.mxu0 0
      %606 = vmatmul.mubr.bf16.gmra.mxu0 %v459
      %v607 = vpop.f32.mrf.mxu0
      %v608 = vadd.f32 0.0, %v607
      %v609 = vpop.f32.mrf.mxu0
      %v610 = vadd.f32 0.0, %v609
      %v611 = vpop.f32.mrf.mxu0
      %v612 = vpop.f32.mrf.mxu0
      %613 = vdwg.mxu0
      %614 = vmatprep.subr.bf16.mxu0 0
      %615 = vmatpush1.bf16.msra.mxu0 0
      %616 = vmatprep.subr.bf16.mxu0 0
      %617 = vmatpush1.bf16.msra.mxu0 0
      %618 = vmatprep.subr.bf16.mxu0 0
      %619 = vmatpush1.bf16.msra.mxu0 0
      %620 = vmatprep.subr.bf16.mxu0 0
      %621 = vmatpush1.bf16.msra.mxu0 0
      %622 = vmatprep.subr.bf16.mxu0 0
      %623 = vmatpush1.bf16.msra.mxu0 0
      %624 = vmatprep.subr.bf16.mxu0 0
      %625 = vmatpush1.bf16.msra.mxu0 0
      %626 = vmatprep.subr.bf16.mxu0 0
      %627 = vmatpush1.bf16.msra.mxu0 0
      %628 = vmatprep.subr.bf16.mxu0 %v483
      %629 = vmatpush1.bf16.msra.mxu0 %v480
      %630 = vmatprep.subr.bf16.mxu0 0
      %631 = vmatpush2.bf16.msra.mxu0 0
      %632 = vmatprep.subr.bf16.mxu0 0
      %633 = vmatpush2.bf16.msra.mxu0 0
      %634 = vmatprep.subr.bf16.mxu0 0
      %635 = vmatpush2.bf16.msra.mxu0 0
      %636 = vmatprep.subr.bf16.mxu0 0
      %637 = vmatpush2.bf16.msra.mxu0 0
      %638 = vmatprep.subr.bf16.mxu0 0
      %639 = vmatpush2.bf16.msra.mxu0 0
      %640 = vmatprep.subr.bf16.mxu0 0
      %641 = vmatpush2.bf16.msra.mxu0 0
      %642 = vmatprep.subr.bf16.mxu0 0
      %643 = vmatpush2.bf16.msra.mxu0 0
      %644 = vmatprep.subr.bf16.mxu0 0
      %645 = vmatpush2.bf16.msra.mxu0 0
      %646 = vmatprep.mubr.bf16.mxu0 0
      %647 = vmatmul.mubr.bf16.gmra.mxu0 %v459
      %v648 = vpop.f32.mrf.mxu0
      %v649 = vadd.f32 0.0, %v648
      %v650 = vpop.f32.mrf.mxu0
      %v651 = vadd.f32 0.0, %v650
      %v652 = vpop.f32.mrf.mxu0
      %v653 = vpop.f32.mrf.mxu0
      %654 = vdwg.mxu0
      %655 = vmatprep.subr.bf16.mxu0 0
      %656 = vmatpush1.bf16.msra.mxu0 0
      %657 = vmatprep.subr.bf16.mxu0 0
      %658 = vmatpush1.bf16.msra.mxu0 0
      %659 = vmatprep.subr.bf16.mxu0 0
      %660 = vmatpush1.bf16.msra.mxu0 0
      %661 = vmatprep.subr.bf16.mxu0 0
      %662 = vmatpush1.bf16.msra.mxu0 0
      %663 = vmatprep.subr.bf16.mxu0 0
      %664 = vmatpush1.bf16.msra.mxu0 0
      %665 = vmatprep.subr.bf16.mxu0 0
      %666 = vmatpush1.bf16.msra.mxu0 0
      %667 = vmatprep.subr.bf16.mxu0 0
      %668 = vmatpush1.bf16.msra.mxu0 0
      %669 = vmatprep.subr.bf16.mxu0 %v489
      %670 = vmatpush1.bf16.msra.mxu0 %v486
      %671 = vmatprep.subr.bf16.mxu0 0
      %672 = vmatpush2.bf16.msra.mxu0 0
      %673 = vmatprep.subr.bf16.mxu0 0
      %674 = vmatpush2.bf16.msra.mxu0 0
      %675 = vmatprep.subr.bf16.mxu0 0
      %676 = vmatpush2.bf16.msra.mxu0 0
      %677 = vmatprep.subr.bf16.mxu0 0
      %678 = vmatpush2.bf16.msra.mxu0 0
      %679 = vmatprep.subr.bf16.mxu0 0
      %680 = vmatpush2.bf16.msra.mxu0 0
      %681 = vmatprep.subr.bf16.mxu0 0
      %682 = vmatpush2.bf16.msra.mxu0 0
      %683 = vmatprep.subr.bf16.mxu0 0
      %684 = vmatpush2.bf16.msra.mxu0 0
      %685 = vmatprep.subr.bf16.mxu0 0
      %686 = vmatpush2.bf16.msra.mxu0 0
      %687 = vmatprep.mubr.bf16.mxu0 0
      %688 = vmatmul.mubr.bf16.gmra.mxu0 %v459
      %v689 = vpop.f32.mrf.mxu0
      %v690 = vadd.f32 0.0, %v689
      %v691 = vpop.f32.mrf.mxu0
      %v692 = vadd.f32 0.0, %v691
      %v693 = vpop.f32.mrf.mxu0
      %v694 = vpop.f32.mrf.mxu0
      %695 = vdwg.mxu0
      %696 = vrot.lane.b32.xlu0 %v392, 35
      %v697 = vpop.permute.xlu0 %696
      %698 = vrot.lane.b32.xlu0 %v400, 35
      %v699 = vpop.permute.xlu0 %698
      %700 = vrot.lane.b32.xlu0 %v399, 35
      %v701 = vpop.permute.xlu0 %700
      %702 = vrot.lane.b32.xlu0 %v401, 35
      %v703 = vpop.permute.xlu0 %702
      %704 = vrot.lane.b32.xlu0 %v409, 35
      %v705 = vpop.permute.xlu0 %704
      %706 = vrot.lane.b32.xlu0 %v417, 35
      %v707 = vpop.permute.xlu0 %706
      %708 = vrot.lane.b32.xlu0 %v416, 35
      %v709 = vpop.permute.xlu0 %708
      %710 = vrot.lane.b32.xlu0 %v418, 35
      %v711 = vpop.permute.xlu0 %710
      %712 = vrot.lane.b32.xlu0 %v425, 35
      %v713 = vpop.permute.xlu0 %712
      %714 = vrot.lane.b32.xlu0 %v426, 35
      %v715 = vpop.permute.xlu0 %714
      %vm716 = vcmask 285696
      %v717 = vsel %vm716, %v697, %v699
      %v718 = vsel %vm716, %v699, %v701
      %v719 = vsel %vm716, %v701, %v703
      %v720 = vsel %vm716, %v703, %v705
      %v721 = vsel %vm716, %v705, %v707
      %v722 = vsel %vm716, %v707, %v709
      %v723 = vsel %vm716, %v709, %v711
      %v724 = vsel %vm716, %v711, %v713
      %v725 = vsel %vm716, %v713, %v715
      %v727 = vsel %vm457, %v379, 0
      %v730 = vsel %vm372, %v717, 0
      %v733 = vsel %vm372, %v718, 0
      %v736 = vsel %vm372, %v719, 0
      %v739 = vsel %vm372, %v720, 0
      %v742 = vsel %vm372, %v721, 0
      %v745 = vsel %vm372, %v722, 0
      %v748 = vsel %vm372, %v723, 0
      %v751 = vsel %vm372, %v724, 0
      %v754 = vsel %vm372, %v725, 0
      %v757 = vsel %vm372, %v715, 0
      %759 = vmatprep.subr.bf16.mxu0 0
      %760 = vmatpush1.bf16.msra.mxu0 0
      %761 = vmatprep.subr.bf16.mxu0 0
      %762 = vmatpush1.bf16.msra.mxu0 0
      %763 = vmatprep.subr.bf16.mxu0 0
      %764 = vmatpush1.bf16.msra.mxu0 0
      %765 = vmatprep.subr.bf16.mxu0 0
      %766 = vmatpush1.bf16.msra.mxu0 0
      %767 = vmatprep.subr.bf16.mxu0 0
      %768 = vmatpush1.bf16.msra.mxu0 0
      %769 = vmatprep.subr.bf16.mxu0 0
      %770 = vmatpush1.bf16.msra.mxu0 0
      %771 = vmatprep.subr.bf16.mxu0 0
      %772 = vmatpush1.bf16.msra.mxu0 0
      %773 = vmatprep.subr.bf16.mxu0 %v733
      %774 = vmatpush1.bf16.msra.mxu0 %v730
      %775 = vmatprep.subr.bf16.mxu0 0
      %776 = vmatpush2.bf16.msra.mxu0 0
      %777 = vmatprep.subr.bf16.mxu0 0
      %778 = vmatpush2.bf16.msra.mxu0 0
      %779 = vmatprep.subr.bf16.mxu0 0
      %780 = vmatpush2.bf16.msra.mxu0 0
      %781 = vmatprep.subr.bf16.mxu0 0
      %782 = vmatpush2.bf16.msra.mxu0 0
      %783 = vmatprep.subr.bf16.mxu0 0
      %784 = vmatpush2.bf16.msra.mxu0 0
      %785 = vmatprep.subr.bf16.mxu0 0
      %786 = vmatpush2.bf16.msra.mxu0 0
      %787 = vmatprep.subr.bf16.mxu0 0
      %788 = vmatpush2.bf16.msra.mxu0 0
      %789 = vmatprep.subr.bf16.mxu0 0
      %790 = vmatpush2.bf16.msra.mxu0 0
      %791 = vmatprep.mubr.bf16.mxu0 0
      %792 = vmatmul.mubr.bf16.gmra.mxu0 %v727
      %v793 = vpop.f32.mrf.mxu0
      %v794 = vadd.f32 %v526, %v793
      %v795 = vpop.f32.mrf.mxu0
      %v796 = vadd.f32 %v528, %v795
      %v797 = vpop.f32.mrf.mxu0
      %v798 = vpop.f32.mrf.mxu0
      %799 = vdwg.mxu0
      %800 = vmatprep.subr.bf16.mxu0 0
      %801 = vmatpush1.bf16.msra.mxu0 0
      %802 = vmatprep.subr.bf16.mxu0 0
      %803 = vmatpush1.bf16.msra.mxu0 0
      %804 = vmatprep.subr.bf16.mxu0 0
      %805 = vmatpush1.bf16.msra.mxu0 0
      %806 = vmatprep.subr.bf16.mxu0 0
      %807 = vmatpush1.bf16.msra.mxu0 0
      %808 = vmatprep.subr.bf16.mxu0 0
      %809 = vmatpush1.bf16.msra.mxu0 0
      %810 = vmatprep.subr.bf16.mxu0 0
      %811 = vmatpush1.bf16.msra.mxu0 0
      %812 = vmatprep.subr.bf16.mxu0 0
      %813 = vmatpush1.bf16.msra.mxu0 0
      %814 = vmatprep.subr.bf16.mxu0 %v739
      %815 = vmatpush1.bf16.msra.mxu0 %v736
      %816 = vmatprep.subr.bf16.mxu0 0
      %817 = vmatpush2.bf16.msra.mxu0 0
      %818 = vmatprep.subr.bf16.mxu0 0
      %819 = vmatpush2.bf16.msra.mxu0 0
      %820 = vmatprep.subr.bf16.mxu0 0
      %821 = vmatpush2.bf16.msra.mxu0 0
      %822 = vmatprep.subr.bf16.mxu0 0
      %823 = vmatpush2.bf16.msra.mxu0 0
      %824 = vmatprep.subr.bf16.mxu0 0
      %825 = vmatpush2.bf16.msra.mxu0 0
      %826 = vmatprep.subr.bf16.mxu0 0
      %827 = vmatpush2.bf16.msra.mxu0 0
      %828 = vmatprep.subr.bf16.mxu0 0
      %829 = vmatpush2.bf16.msra.mxu0 0
      %830 = vmatprep.subr.bf16.mxu0 0
      %831 = vmatpush2.bf16.msra.mxu0 0
      %832 = vmatprep.mubr.bf16.mxu0 0
      %833 = vmatmul.mubr.bf16.gmra.mxu0 %v727
      %v834 = vpop.f32.mrf.mxu0
      %v835 = vadd.f32 %v567, %v834
      %v836 = vpop.f32.mrf.mxu0
      %v837 = vadd.f32 %v569, %v836
      %v838 = vpop.f32.mrf.mxu0
      %v839 = vpop.f32.mrf.mxu0
      %840 = vdwg.mxu0
      %841 = vmatprep.subr.bf16.mxu0 0
      %842 = vmatpush1.bf16.msra.mxu0 0
      %843 = vmatprep.subr.bf16.mxu0 0
      %844 = vmatpush1.bf16.msra.mxu0 0
      %845 = vmatprep.subr.bf16.mxu0 0
      %846 = vmatpush1.bf16.msra.mxu0 0
      %847 = vmatprep.subr.bf16.mxu0 0
      %848 = vmatpush1.bf16.msra.mxu0 0
      %849 = vmatprep.subr.bf16.mxu0 0
      %850 = vmatpush1.bf16.msra.mxu0 0
      %851 = vmatprep.subr.bf16.mxu0 0
      %852 = vmatpush1.bf16.msra.mxu0 0
      %853 = vmatprep.subr.bf16.mxu0 0
      %854 = vmatpush1.bf16.msra.mxu0 0
      %855 = vmatprep.subr.bf16.mxu0 %v745
      %856 = vmatpush1.bf16.msra.mxu0 %v742
      %857 = vmatprep.subr.bf16.mxu0 0
      %858 = vmatpush2.bf16.msra.mxu0 0
      %859 = vmatprep.subr.bf16.mxu0 0
      %860 = vmatpush2.bf16.msra.mxu0 0
      %861 = vmatprep.subr.bf16.mxu0 0
      %862 = vmatpush2.bf16.msra.mxu0 0
      %863 = vmatprep.subr.bf16.mxu0 0
      %864 = vmatpush2.bf16.msra.mxu0 0
      %865 = vmatprep.subr.bf16.mxu0 0
      %866 = vmatpush2.bf16.msra.mxu0 0
      %867 = vmatprep.subr.bf16.mxu0 0
      %868 = vmatpush2.bf16.msra.mxu0 0
      %869 = vmatprep.subr.bf16.mxu0 0
      %870 = vmatpush2.bf16.msra.mxu0 0
      %871 = vmatprep.subr.bf16.mxu0 0
      %872 = vmatpush2.bf16.msra.mxu0 0
      %873 = vmatprep.mubr.bf16.mxu0 0
      %874 = vmatmul.mubr.bf16.gmra.mxu0 %v727
      %v875 = vpop.f32.mrf.mxu0
      %v876 = vadd.f32 %v608, %v875
      %v877 = vpop.f32.mrf.mxu0
      %v878 = vadd.f32 %v610, %v877
      %v879 = vpop.f32.mrf.mxu0
      %v880 = vpop.f32.mrf.mxu0
      %881 = vdwg.mxu0
      %882 = vmatprep.subr.bf16.mxu0 0
      %883 = vmatpush1.bf16.msra.mxu0 0
      %884 = vmatprep.subr.bf16.mxu0 0
      %885 = vmatpush1.bf16.msra.mxu0 0
      %886 = vmatprep.subr.bf16.mxu0 0
      %887 = vmatpush1.bf16.msra.mxu0 0
      %888 = vmatprep.subr.bf16.mxu0 0
      %889 = vmatpush1.bf16.msra.mxu0 0
      %890 = vmatprep.subr.bf16.mxu0 0
      %891 = vmatpush1.bf16.msra.mxu0 0
      %892 = vmatprep.subr.bf16.mxu0 0
      %893 = vmatpush1.bf16.msra.mxu0 0
      %894 = vmatprep.subr.bf16.mxu0 0
      %895 = vmatpush1.bf16.msra.mxu0 0
      %896 = vmatprep.subr.bf16.mxu0 %v751
      %897 = vmatpush1.bf16.msra.mxu0 %v748
      %898 = vmatprep.subr.bf16.mxu0 0
      %899 = vmatpush2.bf16.msra.mxu0 0
      %900 = vmatprep.subr.bf16.mxu0 0
      %901 = vmatpush2.bf16.msra.mxu0 0
      %902 = vmatprep.subr.bf16.mxu0 0
      %903 = vmatpush2.bf16.msra.mxu0 0
      %904 = vmatprep.subr.bf16.mxu0 0
      %905 = vmatpush2.bf16.msra.mxu0 0
      %906 = vmatprep.subr.bf16.mxu0 0
      %907 = vmatpush2.bf16.msra.mxu0 0
      %908 = vmatprep.subr.bf16.mxu0 0
      %909 = vmatpush2.bf16.msra.mxu0 0
      %910 = vmatprep.subr.bf16.mxu0 0
      %911 = vmatpush2.bf16.msra.mxu0 0
      %912 = vmatprep.subr.bf16.mxu0 0
      %913 = vmatpush2.bf16.msra.mxu0 0
      %914 = vmatprep.mubr.bf16.mxu0 0
      %915 = vmatmul.mubr.bf16.gmra.mxu0 %v727
      %v916 = vpop.f32.mrf.mxu0
      %v917 = vadd.f32 %v649, %v916
      %v918 = vpop.f32.mrf.mxu0
      %v919 = vadd.f32 %v651, %v918
      %v920 = vpop.f32.mrf.mxu0
      %v921 = vpop.f32.mrf.mxu0
      %922 = vdwg.mxu0
      %923 = vmatprep.subr.bf16.mxu0 0
      %924 = vmatpush1.bf16.msra.mxu0 0
      %925 = vmatprep.subr.bf16.mxu0 0
      %926 = vmatpush1.bf16.msra.mxu0 0
      %927 = vmatprep.subr.bf16.mxu0 0
      %928 = vmatpush1.bf16.msra.mxu0 0
      %929 = vmatprep.subr.bf16.mxu0 0
      %930 = vmatpush1.bf16.msra.mxu0 0
      %931 = vmatprep.subr.bf16.mxu0 0
      %932 = vmatpush1.bf16.msra.mxu0 0
      %933 = vmatprep.subr.bf16.mxu0 0
      %934 = vmatpush1.bf16.msra.mxu0 0
      %935 = vmatprep.subr.bf16.mxu0 0
      %936 = vmatpush1.bf16.msra.mxu0 0
      %937 = vmatprep.subr.bf16.mxu0 %v757
      %938 = vmatpush1.bf16.msra.mxu0 %v754
      %939 = vmatprep.subr.bf16.mxu0 0
      %940 = vmatpush2.bf16.msra.mxu0 0
      %941 = vmatprep.subr.bf16.mxu0 0
      %942 = vmatpush2.bf16.msra.mxu0 0
      %943 = vmatprep.subr.bf16.mxu0 0
      %944 = vmatpush2.bf16.msra.mxu0 0
      %945 = vmatprep.subr.bf16.mxu0 0
      %946 = vmatpush2.bf16.msra.mxu0 0
      %947 = vmatprep.subr.bf16.mxu0 0
      %948 = vmatpush2.bf16.msra.mxu0 0
      %949 = vmatprep.subr.bf16.mxu0 0
      %950 = vmatpush2.bf16.msra.mxu0 0
      %951 = vmatprep.subr.bf16.mxu0 0
      %952 = vmatpush2.bf16.msra.mxu0 0
      %953 = vmatprep.subr.bf16.mxu0 0
      %954 = vmatpush2.bf16.msra.mxu0 0
      %955 = vmatprep.mubr.bf16.mxu0 0
      %956 = vmatmul.mubr.bf16.gmra.mxu0 %v727
      %v957 = vpop.f32.mrf.mxu0
      %v958 = vadd.f32 %v690, %v957
      %v959 = vpop.f32.mrf.mxu0
      %v960 = vadd.f32 %v692, %v959
      %v961 = vpop.f32.mrf.mxu0
      %v962 = vpop.f32.mrf.mxu0
      %963 = vdwg.mxu0
      %s964 = scalar_lea.vmem %s1, 4
      %v965 = vld [vmem:[%s964] sm:$0x3]
      %966 = vrot.lane.b32.xlu0 %v392, 33
      %v967 = vpop.permute.xlu0 %966
      %968 = vrot.lane.b32.xlu0 %v400, 33
      %v969 = vpop.permute.xlu0 %968
      %970 = vrot.lane.b32.xlu0 %v399, 33
      %v971 = vpop.permute.xlu0 %970
      %972 = vrot.lane.b32.xlu0 %v401, 33
      %v973 = vpop.permute.xlu0 %972
      %974 = vrot.lane.b32.xlu0 %v409, 33
      %v975 = vpop.permute.xlu0 %974
      %976 = vrot.lane.b32.xlu0 %v417, 33
      %v977 = vpop.permute.xlu0 %976
      %978 = vrot.lane.b32.xlu0 %v416, 33
      %v979 = vpop.permute.xlu0 %978
      %980 = vrot.lane.b32.xlu0 %v418, 33
      %v981 = vpop.permute.xlu0 %980
      %982 = vrot.lane.b32.xlu0 %v425, 33
      %v983 = vpop.permute.xlu0 %982
      %984 = vrot.lane.b32.xlu0 %v426, 33
      %v985 = vpop.permute.xlu0 %984
      %vm986 = vcmask 269312
      %v987 = vsel %vm986, %v967, %v969
      %v988 = vsel %vm986, %v969, %v971
      %v989 = vsel %vm986, %v971, %v973
      %v990 = vsel %vm986, %v973, %v975
      %v991 = vsel %vm986, %v975, %v977
      %v992 = vsel %vm986, %v977, %v979
      %v993 = vsel %vm986, %v979, %v981
      %v994 = vsel %vm986, %v981, %v983
      %v995 = vsel %vm986, %v983, %v985
      %v997 = vsel %vm457, %v965, 0
      %v1000 = vsel %vm372, %v987, 0
      %v1003 = vsel %vm372, %v988, 0
      %v1006 = vsel %vm372, %v989, 0
      %v1009 = vsel %vm372, %v990, 0
      %v1012 = vsel %vm372, %v991, 0
      %v1015 = vsel %vm372, %v992, 0
      %v1018 = vsel %vm372, %v993, 0
      %v1021 = vsel %vm372, %v994, 0
      %v1024 = vsel %vm372, %v995, 0
      %v1027 = vsel %vm372, %v985, 0
      %1029 = vmatprep.subr.bf16.mxu0 0
      %1030 = vmatpush1.bf16.msra.mxu0 0
      %1031 = vmatprep.subr.bf16.mxu0 0
      %1032 = vmatpush1.bf16.msra.mxu0 0
      %1033 = vmatprep.subr.bf16.mxu0 0
      %1034 = vmatpush1.bf16.msra.mxu0 0
      %1035 = vmatprep.subr.bf16.mxu0 0
      %1036 = vmatpush1.bf16.msra.mxu0 0
      %1037 = vmatprep.subr.bf16.mxu0 0
      %1038 = vmatpush1.bf16.msra.mxu0 0
      %1039 = vmatprep.subr.bf16.mxu0 0
      %1040 = vmatpush1.bf16.msra.mxu0 0
      %1041 = vmatprep.subr.bf16.mxu0 0
      %1042 = vmatpush1.bf16.msra.mxu0 0
      %1043 = vmatprep.subr.bf16.mxu0 %v1003
      %1044 = vmatpush1.bf16.msra.mxu0 %v1000
      %1045 = vmatprep.subr.bf16.mxu0 0
      %1046 = vmatpush2.bf16.msra.mxu0 0
      %1047 = vmatprep.subr.bf16.mxu0 0
      %1048 = vmatpush2.bf16.msra.mxu0 0
      %1049 = vmatprep.subr.bf16.mxu0 0
      %1050 = vmatpush2.bf16.msra.mxu0 0
      %1051 = vmatprep.subr.bf16.mxu0 0
      %1052 = vmatpush2.bf16.msra.mxu0 0
      %1053 = vmatprep.subr.bf16.mxu0 0
      %1054 = vmatpush2.bf16.msra.mxu0 0
      %1055 = vmatprep.subr.bf16.mxu0 0
      %1056 = vmatpush2.bf16.msra.mxu0 0
      %1057 = vmatprep.subr.bf16.mxu0 0
      %1058 = vmatpush2.bf16.msra.mxu0 0
      %1059 = vmatprep.subr.bf16.mxu0 0
      %1060 = vmatpush2.bf16.msra.mxu0 0
      %1061 = vmatprep.mubr.bf16.mxu0 0
      %1062 = vmatmul.mubr.bf16.gmra.mxu0 %v997
      %v1063 = vpop.f32.mrf.mxu0
      %v1064 = vadd.f32 0.0, %v1063
      %v1065 = vpop.f32.mrf.mxu0
      %v1066 = vadd.f32 0.0, %v1065
      %v1067 = vpop.f32.mrf.mxu0
      %v1068 = vpop.f32.mrf.mxu0
      %1069 = vdwg.mxu0
      %1070 = vmatprep.subr.bf16.mxu0 0
      %1071 = vmatpush1.bf16.msra.mxu0 0
      %1072 = vmatprep.subr.bf16.mxu0 0
      %1073 = vmatpush1.bf16.msra.mxu0 0
      %1074 = vmatprep.subr.bf16.mxu0 0
      %1075 = vmatpush1.bf16.msra.mxu0 0
      %1076 = vmatprep.subr.bf16.mxu0 0
      %1077 = vmatpush1.bf16.msra.mxu0 0
      %1078 = vmatprep.subr.bf16.mxu0 0
      %1079 = vmatpush1.bf16.msra.mxu0 0
      %1080 = vmatprep.subr.bf16.mxu0 0
      %1081 = vmatpush1.bf16.msra.mxu0 0
      %1082 = vmatprep.subr.bf16.mxu0 0
      %1083 = vmatpush1.bf16.msra.mxu0 0
      %1084 = vmatprep.subr.bf16.mxu0 %v1009
      %1085 = vmatpush1.bf16.msra.mxu0 %v1006
      %1086 = vmatprep.subr.bf16.mxu0 0
      %1087 = vmatpush2.bf16.msra.mxu0 0
      %1088 = vmatprep.subr.bf16.mxu0 0
      %1089 = vmatpush2.bf16.msra.mxu0 0
      %1090 = vmatprep.subr.bf16.mxu0 0
      %1091 = vmatpush2.bf16.msra.mxu0 0
      %1092 = vmatprep.subr.bf16.mxu0 0
      %1093 = vmatpush2.bf16.msra.mxu0 0
      %1094 = vmatprep.subr.bf16.mxu0 0
      %1095 = vmatpush2.bf16.msra.mxu0 0
      %1096 = vmatprep.subr.bf16.mxu0 0
      %1097 = vmatpush2.bf16.msra.mxu0 0
      %1098 = vmatprep.subr.bf16.mxu0 0
      %1099 = vmatpush2.bf16.msra.mxu0 0
      %1100 = vmatprep.subr.bf16.mxu0 0
      %1101 = vmatpush2.bf16.msra.mxu0 0
      %1102 = vmatprep.mubr.bf16.mxu0 0
      %1103 = vmatmul.mubr.bf16.gmra.mxu0 %v997
      %v1104 = vpop.f32.mrf.mxu0
      %v1105 = vadd.f32 0.0, %v1104
      %v1106 = vpop.f32.mrf.mxu0
      %v1107 = vadd.f32 0.0, %v1106
      %v1108 = vpop.f32.mrf.mxu0
      %v1109 = vpop.f32.mrf.mxu0
      %1110 = vdwg.mxu0
      %1111 = vmatprep.subr.bf16.mxu0 0
      %1112 = vmatpush1.bf16.msra.mxu0 0
      %1113 = vmatprep.subr.bf16.mxu0 0
      %1114 = vmatpush1.bf16.msra.mxu0 0
      %1115 = vmatprep.subr.bf16.mxu0 0
      %1116 = vmatpush1.bf16.msra.mxu0 0
      %1117 = vmatprep.subr.bf16.mxu0 0
      %1118 = vmatpush1.bf16.msra.mxu0 0
      %1119 = vmatprep.subr.bf16.mxu0 0
      %1120 = vmatpush1.bf16.msra.mxu0 0
      %1121 = vmatprep.subr.bf16.mxu0 0
      %1122 = vmatpush1.bf16.msra.mxu0 0
      %1123 = vmatprep.subr.bf16.mxu0 0
      %1124 = vmatpush1.bf16.msra.mxu0 0
      %1125 = vmatprep.subr.bf16.mxu0 %v1015
      %1126 = vmatpush1.bf16.msra.mxu0 %v1012
      %1127 = vmatprep.subr.bf16.mxu0 0
      %1128 = vmatpush2.bf16.msra.mxu0 0
      %1129 = vmatprep.subr.bf16.mxu0 0
      %1130 = vmatpush2.bf16.msra.mxu0 0
      %1131 = vmatprep.subr.bf16.mxu0 0
      %1132 = vmatpush2.bf16.msra.mxu0 0
      %1133 = vmatprep.subr.bf16.mxu0 0
      %1134 = vmatpush2.bf16.msra.mxu0 0
      %1135 = vmatprep.subr.bf16.mxu0 0
      %1136 = vmatpush2.bf16.msra.mxu0 0
      %1137 = vmatprep.subr.bf16.mxu0 0
      %1138 = vmatpush2.bf16.msra.mxu0 0
      %1139 = vmatprep.subr.bf16.mxu0 0
      %1140 = vmatpush2.bf16.msra.mxu0 0
      %1141 = vmatprep.subr.bf16.mxu0 0
      %1142 = vmatpush2.bf16.msra.mxu0 0
      %1143 = vmatprep.mubr.bf16.mxu0 0
      %1144 = vmatmul.mubr.bf16.gmra.mxu0 %v997
      %v1145 = vpop.f32.mrf.mxu0
      %v1146 = vadd.f32 0.0, %v1145
      %v1147 = vpop.f32.mrf.mxu0
      %v1148 = vadd.f32 0.0, %v1147
      %v1149 = vpop.f32.mrf.mxu0
      %v1150 = vpop.f32.mrf.mxu0
      %1151 = vdwg.mxu0
      %1152 = vmatprep.subr.bf16.mxu0 0
      %1153 = vmatpush1.bf16.msra.mxu0 0
      %1154 = vmatprep.subr.bf16.mxu0 0
      %1155 = vmatpush1.bf16.msra.mxu0 0
      %1156 = vmatprep.subr.bf16.mxu0 0
      %1157 = vmatpush1.bf16.msra.mxu0 0
      %1158 = vmatprep.subr.bf16.mxu0 0
      %1159 = vmatpush1.bf16.msra.mxu0 0
      %1160 = vmatprep.subr.bf16.mxu0 0
      %1161 = vmatpush1.bf16.msra.mxu0 0
      %1162 = vmatprep.subr.bf16.mxu0 0
      %1163 = vmatpush1.bf16.msra.mxu0 0
      %1164 = vmatprep.subr.bf16.mxu0 0
      %1165 = vmatpush1.bf16.msra.mxu0 0
      %1166 = vmatprep.subr.bf16.mxu0 %v1021
      %1167 = vmatpush1.bf16.msra.mxu0 %v1018
      %1168 = vmatprep.subr.bf16.mxu0 0
      %1169 = vmatpush2.bf16.msra.mxu0 0
      %1170 = vmatprep.subr.bf16.mxu0 0
      %1171 = vmatpush2.bf16.msra.mxu0 0
      %1172 = vmatprep.subr.bf16.mxu0 0
      %1173 = vmatpush2.bf16.msra.mxu0 0
      %1174 = vmatprep.subr.bf16.mxu0 0
      %1175 = vmatpush2.bf16.msra.mxu0 0
      %1176 = vmatprep.subr.bf16.mxu0 0
      %1177 = vmatpush2.bf16.msra.mxu0 0
      %1178 = vmatprep.subr.bf16.mxu0 0
      %1179 = vmatpush2.bf16.msra.mxu0 0
      %1180 = vmatprep.subr.bf16.mxu0 0
      %1181 = vmatpush2.bf16.msra.mxu0 0
      %1182 = vmatprep.subr.bf16.mxu0 0
      %1183 = vmatpush2.bf16.msra.mxu0 0
      %1184 = vmatprep.mubr.bf16.mxu0 0
      %1185 = vmatmul.mubr.bf16.gmra.mxu0 %v997
      %v1186 = vpop.f32.mrf.mxu0
      %v1187 = vadd.f32 0.0, %v1186
      %v1188 = vpop.f32.mrf.mxu0
      %v1189 = vadd.f32 0.0, %v1188
      %v1190 = vpop.f32.mrf.mxu0
      %v1191 = vpop.f32.mrf.mxu0
      %1192 = vdwg.mxu0
      %1193 = vmatprep.subr.bf16.mxu0 0
      %1194 = vmatpush1.bf16.msra.mxu0 0
      %1195 = vmatprep.subr.bf16.mxu0 0
      %1196 = vmatpush1.bf16.msra.mxu0 0
      %1197 = vmatprep.subr.bf16.mxu0 0
      %1198 = vmatpush1.bf16.msra.mxu0 0
      %1199 = vmatprep.subr.bf16.mxu0 0
      %1200 = vmatpush1.bf16.msra.mxu0 0
      %1201 = vmatprep.subr.bf16.mxu0 0
      %1202 = vmatpush1.bf16.msra.mxu0 0
      %1203 = vmatprep.subr.bf16.mxu0 0
      %1204 = vmatpush1.bf16.msra.mxu0 0
      %1205 = vmatprep.subr.bf16.mxu0 0
      %1206 = vmatpush1.bf16.msra.mxu0 0
      %1207 = vmatprep.subr.bf16.mxu0 %v1027
      %1208 = vmatpush1.bf16.msra.mxu0 %v1024
      %1209 = vmatprep.subr.bf16.mxu0 0
      %1210 = vmatpush2.bf16.msra.mxu0 0
      %1211 = vmatprep.subr.bf16.mxu0 0
      %1212 = vmatpush2.bf16.msra.mxu0 0
      %1213 = vmatprep.subr.bf16.mxu0 0
      %1214 = vmatpush2.bf16.msra.mxu0 0
      %1215 = vmatprep.subr.bf16.mxu0 0
      %1216 = vmatpush2.bf16.msra.mxu0 0
      %1217 = vmatprep.subr.bf16.mxu0 0
      %1218 = vmatpush2.bf16.msra.mxu0 0
      %1219 = vmatprep.subr.bf16.mxu0 0
      %1220 = vmatpush2.bf16.msra.mxu0 0
      %1221 = vmatprep.subr.bf16.mxu0 0
      %1222 = vmatpush2.bf16.msra.mxu0 0
      %1223 = vmatprep.subr.bf16.mxu0 0
      %1224 = vmatpush2.bf16.msra.mxu0 0
      %1225 = vmatprep.mubr.bf16.mxu0 0
      %1226 = vmatmul.mubr.bf16.gmra.mxu0 %v997
      %v1227 = vpop.f32.mrf.mxu0
      %v1228 = vadd.f32 0.0, %v1227
      %v1229 = vpop.f32.mrf.mxu0
      %v1230 = vadd.f32 0.0, %v1229
      %v1231 = vpop.f32.mrf.mxu0
      %v1232 = vpop.f32.mrf.mxu0
      %1233 = vdwg.mxu0
      %v1234 = vadd.f32 %v794, %v1064
      %v1235 = vadd.f32 %v796, %v1066
      %v1236 = vadd.f32 %v835, %v1105
      %v1237 = vadd.f32 %v837, %v1107
      %v1238 = vadd.f32 %v876, %v1146
      %v1239 = vadd.f32 %v878, %v1148
      %v1240 = vadd.f32 %v917, %v1187
      %v1241 = vadd.f32 %v919, %v1189
      %v1242 = vadd.f32 %v958, %v1228
      %v1243 = vadd.f32 %v960, %v1230
      %s1244 = scalar_lea.vmem %s1, 6
      %v1245 = vld [vmem:[%s1244] sm:$0x3]
      %v1246 = vcombine.high %v378, %v378
      %v1248 = vunpack.c.l.s4 1983009808
      %v1249 = vunpack.c.0.s8 %v1248
      %v1250 = vlaneseq
      %v1251 = vshrl.u32 %v1250, 7
      %v1252 = vsub.s32 %v1249, %v1251
      %v1253 = vrot.slane %v1246, %v1252
      %1254 = vrot.lane.b32.xlu0 %v392, 1
      %v1255 = vpop.permute.xlu0 %1254
      %1256 = vrot.lane.b32.xlu0 %v400, 1
      %v1257 = vpop.permute.xlu0 %1256
      %1258 = vrot.lane.b32.xlu0 %v399, 1
      %v1259 = vpop.permute.xlu0 %1258
      %1260 = vrot.lane.b32.xlu0 %v401, 1
      %v1261 = vpop.permute.xlu0 %1260
      %1262 = vrot.lane.b32.xlu0 %v409, 1
      %v1263 = vpop.permute.xlu0 %1262
      %1264 = vrot.lane.b32.xlu0 %v417, 1
      %v1265 = vpop.permute.xlu0 %1264
      %1266 = vrot.lane.b32.xlu0 %v416, 1
      %v1267 = vpop.permute.xlu0 %1266
      %1268 = vrot.lane.b32.xlu0 %v418, 1
      %v1269 = vpop.permute.xlu0 %1268
      %1270 = vrot.lane.b32.xlu0 %v425, 1
      %v1271 = vpop.permute.xlu0 %1270
      %1272 = vrot.lane.b32.xlu0 %v426, 1
      %v1273 = vpop.permute.xlu0 %1272
      %1274 = vrot.lane.b32.xlu0 %v1253, 1
      %v1275 = vpop.permute.xlu0 %1274
      %vm1276 = vcmask 7168
      %v1277 = vsel %vm1276, %v1255, %v1257
      %v1278 = vsel %vm1276, %v1257, %v1259
      %v1279 = vsel %vm1276, %v1259, %v1261
      %v1280 = vsel %vm1276, %v1261, %v1263
      %v1281 = vsel %vm1276, %v1263, %v1265
      %v1282 = vsel %vm1276, %v1265, %v1267
      %v1283 = vsel %vm1276, %v1267, %v1269
      %v1284 = vsel %vm1276, %v1269, %v1271
      %v1285 = vsel %vm1276, %v1271, %v1273
      %v1286 = vsel %vm1276, %v1273, %v1275
      %v1288 = vsel %vm457, %v1245, 0
      %v1291 = vsel %vm372, %v1277, 0
      %v1294 = vsel %vm372, %v1278, 0
      %v1297 = vsel %vm372, %v1279, 0
      %v1300 = vsel %vm372, %v1280, 0
      %v1303 = vsel %vm372, %v1281, 0
      %v1306 = vsel %vm372, %v1282, 0
      %v1309 = vsel %vm372, %v1283, 0
      %v1312 = vsel %vm372, %v1284, 0
      %v1315 = vsel %vm372, %v1285, 0
      %v1318 = vsel %vm372, %v1286, 0
      %1320 = vmatprep.subr.bf16.mxu0 0
      %1321 = vmatpush1.bf16.msra.mxu0 0
      %1322 = vmatprep.subr.bf16.mxu0 0
      %1323 = vmatpush1.bf16.msra.mxu0 0
      %1324 = vmatprep.subr.bf16.mxu0 0
      %1325 = vmatpush1.bf16.msra.mxu0 0
      %1326 = vmatprep.subr.bf16.mxu0 0
      %1327 = vmatpush1.bf16.msra.mxu0 0
      %1328 = vmatprep.subr.bf16.mxu0 0
      %1329 = vmatpush1.bf16.msra.mxu0 0
      %1330 = vmatprep.subr.bf16.mxu0 0
      %1331 = vmatpush1.bf16.msra.mxu0 0
      %1332 = vmatprep.subr.bf16.mxu0 0
      %1333 = vmatpush1.bf16.msra.mxu0 0
      %1334 = vmatprep.subr.bf16.mxu0 %v1294
      %1335 = vmatpush1.bf16.msra.mxu0 %v1291
      %1336 = vmatprep.subr.bf16.mxu0 0
      %1337 = vmatpush2.bf16.msra.mxu0 0
      %1338 = vmatprep.subr.bf16.mxu0 0
      %1339 = vmatpush2.bf16.msra.mxu0 0
      %1340 = vmatprep.subr.bf16.mxu0 0
      %1341 = vmatpush2.bf16.msra.mxu0 0
      %1342 = vmatprep.subr.bf16.mxu0 0
      %1343 = vmatpush2.bf16.msra.mxu0 0
      %1344 = vmatprep.subr.bf16.mxu0 0
      %1345 = vmatpush2.bf16.msra.mxu0 0
      %1346 = vmatprep.subr.bf16.mxu0 0
      %1347 = vmatpush2.bf16.msra.mxu0 0
      %1348 = vmatprep.subr.bf16.mxu0 0
      %1349 = vmatpush2.bf16.msra.mxu0 0
      %1350 = vmatprep.subr.bf16.mxu0 0
      %1351 = vmatpush2.bf16.msra.mxu0 0
      %1352 = vmatprep.mubr.bf16.mxu0 0
      %1353 = vmatmul.mubr.bf16.gmra.mxu0 %v1288
      %v1354 = vpop.f32.mrf.mxu0
      %v1355 = vadd.f32 0.0, %v1354
      %v1356 = vpop.f32.mrf.mxu0
      %v1357 = vadd.f32 0.0, %v1356
      %v1358 = vpop.f32.mrf.mxu0
      %v1359 = vpop.f32.mrf.mxu0
      %1360 = vdwg.mxu0
      %1361 = vmatprep.subr.bf16.mxu0 0
      %1362 = vmatpush1.bf16.msra.mxu0 0
      %1363 = vmatprep.subr.bf16.mxu0 0
      %1364 = vmatpush1.bf16.msra.mxu0 0
      %1365 = vmatprep.subr.bf16.mxu0 0
      %1366 = vmatpush1.bf16.msra.mxu0 0
      %1367 = vmatprep.subr.bf16.mxu0 0
      %1368 = vmatpush1.bf16.msra.mxu0 0
      %1369 = vmatprep.subr.bf16.mxu0 0
      %1370 = vmatpush1.bf16.msra.mxu0 0
      %1371 = vmatprep.subr.bf16.mxu0 0
      %1372 = vmatpush1.bf16.msra.mxu0 0
      %1373 = vmatprep.subr.bf16.mxu0 0
      %1374 = vmatpush1.bf16.msra.mxu0 0
      %1375 = vmatprep.subr.bf16.mxu0 %v1300
      %1376 = vmatpush1.bf16.msra.mxu0 %v1297
      %1377 = vmatprep.subr.bf16.mxu0 0
      %1378 = vmatpush2.bf16.msra.mxu0 0
      %1379 = vmatprep.subr.bf16.mxu0 0
      %1380 = vmatpush2.bf16.msra.mxu0 0
      %1381 = vmatprep.subr.bf16.mxu0 0
      %1382 = vmatpush2.bf16.msra.mxu0 0
      %1383 = vmatprep.subr.bf16.mxu0 0
      %1384 = vmatpush2.bf16.msra.mxu0 0
      %1385 = vmatprep.subr.bf16.mxu0 0
      %1386 = vmatpush2.bf16.msra.mxu0 0
      %1387 = vmatprep.subr.bf16.mxu0 0
      %1388 = vmatpush2.bf16.msra.mxu0 0
      %1389 = vmatprep.subr.bf16.mxu0 0
      %1390 = vmatpush2.bf16.msra.mxu0 0
      %1391 = vmatprep.subr.bf16.mxu0 0
      %1392 = vmatpush2.bf16.msra.mxu0 0
      %1393 = vmatprep.mubr.bf16.mxu0 0
      %1394 = vmatmul.mubr.bf16.gmra.mxu0 %v1288
      %v1395 = vpop.f32.mrf.mxu0
      %v1396 = vadd.f32 0.0, %v1395
      %v1397 = vpop.f32.mrf.mxu0
      %v1398 = vadd.f32 0.0, %v1397
      %v1399 = vpop.f32.mrf.mxu0
      %v1400 = vpop.f32.mrf.mxu0
      %1401 = vdwg.mxu0
      %1402 = vmatprep.subr.bf16.mxu0 0
      %1403 = vmatpush1.bf16.msra.mxu0 0
      %1404 = vmatprep.subr.bf16.mxu0 0
      %1405 = vmatpush1.bf16.msra.mxu0 0
      %1406 = vmatprep.subr.bf16.mxu0 0
      %1407 = vmatpush1.bf16.msra.mxu0 0
      %1408 = vmatprep.subr.bf16.mxu0 0
      %1409 = vmatpush1.bf16.msra.mxu0 0
      %1410 = vmatprep.subr.bf16.mxu0 0
      %1411 = vmatpush1.bf16.msra.mxu0 0
      %1412 = vmatprep.subr.bf16.mxu0 0
      %1413 = vmatpush1.bf16.msra.mxu0 0
      %1414 = vmatprep.subr.bf16.mxu0 0
      %1415 = vmatpush1.bf16.msra.mxu0 0
      %1416 = vmatprep.subr.bf16.mxu0 %v1306
      %1417 = vmatpush1.bf16.msra.mxu0 %v1303
      %1418 = vmatprep.subr.bf16.mxu0 0
      %1419 = vmatpush2.bf16.msra.mxu0 0
      %1420 = vmatprep.subr.bf16.mxu0 0
      %1421 = vmatpush2.bf16.msra.mxu0 0
      %1422 = vmatprep.subr.bf16.mxu0 0
      %1423 = vmatpush2.bf16.msra.mxu0 0
      %1424 = vmatprep.subr.bf16.mxu0 0
      %1425 = vmatpush2.bf16.msra.mxu0 0
      %1426 = vmatprep.subr.bf16.mxu0 0
      %1427 = vmatpush2.bf16.msra.mxu0 0
      %1428 = vmatprep.subr.bf16.mxu0 0
      %1429 = vmatpush2.bf16.msra.mxu0 0
      %1430 = vmatprep.subr.bf16.mxu0 0
      %1431 = vmatpush2.bf16.msra.mxu0 0
      %1432 = vmatprep.subr.bf16.mxu0 0
      %1433 = vmatpush2.bf16.msra.mxu0 0
      %1434 = vmatprep.mubr.bf16.mxu0 0
      %1435 = vmatmul.mubr.bf16.gmra.mxu0 %v1288
      %v1436 = vpop.f32.mrf.mxu0
      %v1437 = vadd.f32 0.0, %v1436
      %v1438 = vpop.f32.mrf.mxu0
      %v1439 = vadd.f32 0.0, %v1438
      %v1440 = vpop.f32.mrf.mxu0
      %v1441 = vpop.f32.mrf.mxu0
      %1442 = vdwg.mxu0
      %1443 = vmatprep.subr.bf16.mxu0 0
      %1444 = vmatpush1.bf16.msra.mxu0 0
      %1445 = vmatprep.subr.bf16.mxu0 0
      %1446 = vmatpush1.bf16.msra.mxu0 0
      %1447 = vmatprep.subr.bf16.mxu0 0
      %1448 = vmatpush1.bf16.msra.mxu0 0
      %1449 = vmatprep.subr.bf16.mxu0 0
      %1450 = vmatpush1.bf16.msra.mxu0 0
      %1451 = vmatprep.subr.bf16.mxu0 0
      %1452 = vmatpush1.bf16.msra.mxu0 0
      %1453 = vmatprep.subr.bf16.mxu0 0
      %1454 = vmatpush1.bf16.msra.mxu0 0
      %1455 = vmatprep.subr.bf16.mxu0 0
      %1456 = vmatpush1.bf16.msra.mxu0 0
      %1457 = vmatprep.subr.bf16.mxu0 %v1312
      %1458 = vmatpush1.bf16.msra.mxu0 %v1309
      %1459 = vmatprep.subr.bf16.mxu0 0
      %1460 = vmatpush2.bf16.msra.mxu0 0
      %1461 = vmatprep.subr.bf16.mxu0 0
      %1462 = vmatpush2.bf16.msra.mxu0 0
      %1463 = vmatprep.subr.bf16.mxu0 0
      %1464 = vmatpush2.bf16.msra.mxu0 0
      %1465 = vmatprep.subr.bf16.mxu0 0
      %1466 = vmatpush2.bf16.msra.mxu0 0
      %1467 = vmatprep.subr.bf16.mxu0 0
      %1468 = vmatpush2.bf16.msra.mxu0 0
      %1469 = vmatprep.subr.bf16.mxu0 0
      %1470 = vmatpush2.bf16.msra.mxu0 0
      %1471 = vmatprep.subr.bf16.mxu0 0
      %1472 = vmatpush2.bf16.msra.mxu0 0
      %1473 = vmatprep.subr.bf16.mxu0 0
      %1474 = vmatpush2.bf16.msra.mxu0 0
      %1475 = vmatprep.mubr.bf16.mxu0 0
      %1476 = vmatmul.mubr.bf16.gmra.mxu0 %v1288
      %v1477 = vpop.f32.mrf.mxu0
      %v1478 = vadd.f32 0.0, %v1477
      %v1479 = vpop.f32.mrf.mxu0
      %v1480 = vadd.f32 0.0, %v1479
      %v1481 = vpop.f32.mrf.mxu0
      %v1482 = vpop.f32.mrf.mxu0
      %1483 = vdwg.mxu0
      %1484 = vmatprep.subr.bf16.mxu0 0
      %1485 = vmatpush1.bf16.msra.mxu0 0
      %1486 = vmatprep.subr.bf16.mxu0 0
      %1487 = vmatpush1.bf16.msra.mxu0 0
      %1488 = vmatprep.subr.bf16.mxu0 0
      %1489 = vmatpush1.bf16.msra.mxu0 0
      %1490 = vmatprep.subr.bf16.mxu0 0
      %1491 = vmatpush1.bf16.msra.mxu0 0
      %1492 = vmatprep.subr.bf16.mxu0 0
      %1493 = vmatpush1.bf16.msra.mxu0 0
      %1494 = vmatprep.subr.bf16.mxu0 0
      %1495 = vmatpush1.bf16.msra.mxu0 0
      %1496 = vmatprep.subr.bf16.mxu0 0
      %1497 = vmatpush1.bf16.msra.mxu0 0
      %1498 = vmatprep.subr.bf16.mxu0 %v1318
      %1499 = vmatpush1.bf16.msra.mxu0 %v1315
      %1500 = vmatprep.subr.bf16.mxu0 0
      %1501 = vmatpush2.bf16.msra.mxu0 0
      %1502 = vmatprep.subr.bf16.mxu0 0
      %1503 = vmatpush2.bf16.msra.mxu0 0
      %1504 = vmatprep.subr.bf16.mxu0 0
      %1505 = vmatpush2.bf16.msra.mxu0 0
      %1506 = vmatprep.subr.bf16.mxu0 0
      %1507 = vmatpush2.bf16.msra.mxu0 0
      %1508 = vmatprep.subr.bf16.mxu0 0
      %1509 = vmatpush2.bf16.msra.mxu0 0
      %1510 = vmatprep.subr.bf16.mxu0 0
      %1511 = vmatpush2.bf16.msra.mxu0 0
      %1512 = vmatprep.subr.bf16.mxu0 0
      %1513 = vmatpush2.bf16.msra.mxu0 0
      %1514 = vmatprep.subr.bf16.mxu0 0
      %1515 = vmatpush2.bf16.msra.mxu0 0
      %1516 = vmatprep.mubr.bf16.mxu0 0
      %1517 = vmatmul.mubr.bf16.gmra.mxu0 %v1288
      %v1518 = vpop.f32.mrf.mxu0
      %v1519 = vadd.f32 0.0, %v1518
      %v1520 = vpop.f32.mrf.mxu0
      %v1521 = vadd.f32 0.0, %v1520
      %v1522 = vpop.f32.mrf.mxu0
      %v1523 = vpop.f32.mrf.mxu0
      %1524 = vdwg.mxu0
      %v1525 = vadd.f32 %v1234, %v1355
      %v1526 = vadd.f32 %v1235, %v1357
      %v1527 = vadd.f32 %v1236, %v1396
      %v1528 = vadd.f32 %v1237, %v1398
      %v1529 = vadd.f32 %v1238, %v1437
      %v1530 = vadd.f32 %v1239, %v1439
      %v1531 = vadd.f32 %v1240, %v1478
      %v1532 = vadd.f32 %v1241, %v1480
      %v1533 = vadd.f32 %v1242, %v1519
      %v1534 = vadd.f32 %v1243, %v1521
      %s1535 = scalar_lea.vmem %s1, 8
      %v1536 = vld [vmem:[%s1535] sm:$0x3]
      %v1538 = vsel %vm457, %v1536, 0
      %v1541 = vsel %vm372, %v400, 0
      %v1544 = vsel %vm372, %v399, 0
      %v1547 = vsel %vm372, %v401, 0
      %v1550 = vsel %vm372, %v409, 0
      %v1553 = vsel %vm372, %v417, 0
      %v1556 = vsel %vm372, %v416, 0
      %v1559 = vsel %vm372, %v418, 0
      %v1562 = vsel %vm372, %v425, 0
      %v1565 = vsel %vm372, %v426, 0
      %v1568 = vsel %vm372, %v1253, 0
      %1570 = vmatprep.subr.bf16.mxu0 0
      %1571 = vmatpush1.bf16.msra.mxu0 0
      %1572 = vmatprep.subr.bf16.mxu0 0
      %1573 = vmatpush1.bf16.msra.mxu0 0
      %1574 = vmatprep.subr.bf16.mxu0 0
      %1575 = vmatpush1.bf16.msra.mxu0 0
      %1576 = vmatprep.subr.bf16.mxu0 0
      %1577 = vmatpush1.bf16.msra.mxu0 0
      %1578 = vmatprep.subr.bf16.mxu0 0
      %1579 = vmatpush1.bf16.msra.mxu0 0
      %1580 = vmatprep.subr.bf16.mxu0 0
      %1581 = vmatpush1.bf16.msra.mxu0 0
      %1582 = vmatprep.subr.bf16.mxu0 0
      %1583 = vmatpush1.bf16.msra.mxu0 0
      %1584 = vmatprep.subr.bf16.mxu0 %v1544
      %1585 = vmatpush1.bf16.msra.mxu0 %v1541
      %1586 = vmatprep.subr.bf16.mxu0 0
      %1587 = vmatpush2.bf16.msra.mxu0 0
      %1588 = vmatprep.subr.bf16.mxu0 0
      %1589 = vmatpush2.bf16.msra.mxu0 0
      %1590 = vmatprep.subr.bf16.mxu0 0
      %1591 = vmatpush2.bf16.msra.mxu0 0
      %1592 = vmatprep.subr.bf16.mxu0 0
      %1593 = vmatpush2.bf16.msra.mxu0 0
      %1594 = vmatprep.subr.bf16.mxu0 0
      %1595 = vmatpush2.bf16.msra.mxu0 0
      %1596 = vmatprep.subr.bf16.mxu0 0
      %1597 = vmatpush2.bf16.msra.mxu0 0
      %1598 = vmatprep.subr.bf16.mxu0 0
      %1599 = vmatpush2.bf16.msra.mxu0 0
      %1600 = vmatprep.subr.bf16.mxu0 0
      %1601 = vmatpush2.bf16.msra.mxu0 0
      %1602 = vmatprep.mubr.bf16.mxu0 0
      %1603 = vmatmul.mubr.bf16.gmra.mxu0 %v1538
      %v1604 = vpop.f32.mrf.mxu0
      %v1605 = vadd.f32 0.0, %v1604
      %v1606 = vpop.f32.mrf.mxu0
      %v1607 = vadd.f32 0.0, %v1606
      %v1608 = vpop.f32.mrf.mxu0
      %v1609 = vpop.f32.mrf.mxu0
      %1610 = vdwg.mxu0
      %1611 = vmatprep.subr.bf16.mxu0 0
      %1612 = vmatpush1.bf16.msra.mxu0 0
      %1613 = vmatprep.subr.bf16.mxu0 0
      %1614 = vmatpush1.bf16.msra.mxu0 0
      %1615 = vmatprep.subr.bf16.mxu0 0
      %1616 = vmatpush1.bf16.msra.mxu0 0
      %1617 = vmatprep.subr.bf16.mxu0 0
      %1618 = vmatpush1.bf16.msra.mxu0 0
      %1619 = vmatprep.subr.bf16.mxu0 0
      %1620 = vmatpush1.bf16.msra.mxu0 0
      %1621 = vmatprep.subr.bf16.mxu0 0
      %1622 = vmatpush1.bf16.msra.mxu0 0
      %1623 = vmatprep.subr.bf16.mxu0 0
      %1624 = vmatpush1.bf16.msra.mxu0 0
      %1625 = vmatprep.subr.bf16.mxu0 %v1550
      %1626 = vmatpush1.bf16.msra.mxu0 %v1547
      %1627 = vmatprep.subr.bf16.mxu0 0
      %1628 = vmatpush2.bf16.msra.mxu0 0
      %1629 = vmatprep.subr.bf16.mxu0 0
      %1630 = vmatpush2.bf16.msra.mxu0 0
      %1631 = vmatprep.subr.bf16.mxu0 0
      %1632 = vmatpush2.bf16.msra.mxu0 0
      %1633 = vmatprep.subr.bf16.mxu0 0
      %1634 = vmatpush2.bf16.msra.mxu0 0
      %1635 = vmatprep.subr.bf16.mxu0 0
      %1636 = vmatpush2.bf16.msra.mxu0 0
      %1637 = vmatprep.subr.bf16.mxu0 0
      %1638 = vmatpush2.bf16.msra.mxu0 0
      %1639 = vmatprep.subr.bf16.mxu0 0
      %1640 = vmatpush2.bf16.msra.mxu0 0
      %1641 = vmatprep.subr.bf16.mxu0 0
      %1642 = vmatpush2.bf16.msra.mxu0 0
      %1643 = vmatprep.mubr.bf16.mxu0 0
      %1644 = vmatmul.mubr.bf16.gmra.mxu0 %v1538
      %v1645 = vpop.f32.mrf.mxu0
      %v1646 = vadd.f32 0.0, %v1645
      %v1647 = vpop.f32.mrf.mxu0
      %v1648 = vadd.f32 0.0, %v1647
      %v1649 = vpop.f32.mrf.mxu0
      %v1650 = vpop.f32.mrf.mxu0
      %1651 = vdwg.mxu0
      %1652 = vmatprep.subr.bf16.mxu0 0
      %1653 = vmatpush1.bf16.msra.mxu0 0
      %1654 = vmatprep.subr.bf16.mxu0 0
      %1655 = vmatpush1.bf16.msra.mxu0 0
      %1656 = vmatprep.subr.bf16.mxu0 0
      %1657 = vmatpush1.bf16.msra.mxu0 0
      %1658 = vmatprep.subr.bf16.mxu0 0
      %1659 = vmatpush1.bf16.msra.mxu0 0
      %1660 = vmatprep.subr.bf16.mxu0 0
      %1661 = vmatpush1.bf16.msra.mxu0 0
      %1662 = vmatprep.subr.bf16.mxu0 0
      %1663 = vmatpush1.bf16.msra.mxu0 0
      %1664 = vmatprep.subr.bf16.mxu0 0
      %1665 = vmatpush1.bf16.msra.mxu0 0
      %1666 = vmatprep.subr.bf16.mxu0 %v1556
      %1667 = vmatpush1.bf16.msra.mxu0 %v1553
      %1668 = vmatprep.subr.bf16.mxu0 0
      %1669 = vmatpush2.bf16.msra.mxu0 0
      %1670 = vmatprep.subr.bf16.mxu0 0
      %1671 = vmatpush2.bf16.msra.mxu0 0
      %1672 = vmatprep.subr.bf16.mxu0 0
      %1673 = vmatpush2.bf16.msra.mxu0 0
      %1674 = vmatprep.subr.bf16.mxu0 0
      %1675 = vmatpush2.bf16.msra.mxu0 0
      %1676 = vmatprep.subr.bf16.mxu0 0
      %1677 = vmatpush2.bf16.msra.mxu0 0
      %1678 = vmatprep.subr.bf16.mxu0 0
      %1679 = vmatpush2.bf16.msra.mxu0 0
      %1680 = vmatprep.subr.bf16.mxu0 0
      %1681 = vmatpush2.bf16.msra.mxu0 0
      %1682 = vmatprep.subr.bf16.mxu0 0
      %1683 = vmatpush2.bf16.msra.mxu0 0
      %1684 = vmatprep.mubr.bf16.mxu0 0
      %1685 = vmatmul.mubr.bf16.gmra.mxu0 %v1538
      %v1686 = vpop.f32.mrf.mxu0
      %v1687 = vadd.f32 0.0, %v1686
      %v1688 = vpop.f32.mrf.mxu0
      %v1689 = vadd.f32 0.0, %v1688
      %v1690 = vpop.f32.mrf.mxu0
      %v1691 = vpop.f32.mrf.mxu0
      %1692 = vdwg.mxu0
      %1693 = vmatprep.subr.bf16.mxu0 0
      %1694 = vmatpush1.bf16.msra.mxu0 0
      %1695 = vmatprep.subr.bf16.mxu0 0
      %1696 = vmatpush1.bf16.msra.mxu0 0
      %1697 = vmatprep.subr.bf16.mxu0 0
      %1698 = vmatpush1.bf16.msra.mxu0 0
      %1699 = vmatprep.subr.bf16.mxu0 0
      %1700 = vmatpush1.bf16.msra.mxu0 0
      %1701 = vmatprep.subr.bf16.mxu0 0
      %1702 = vmatpush1.bf16.msra.mxu0 0
      %1703 = vmatprep.subr.bf16.mxu0 0
      %1704 = vmatpush1.bf16.msra.mxu0 0
      %1705 = vmatprep.subr.bf16.mxu0 0
      %1706 = vmatpush1.bf16.msra.mxu0 0
      %1707 = vmatprep.subr.bf16.mxu0 %v1562
      %1708 = vmatpush1.bf16.msra.mxu0 %v1559
      %1709 = vmatprep.subr.bf16.mxu0 0
      %1710 = vmatpush2.bf16.msra.mxu0 0
      %1711 = vmatprep.subr.bf16.mxu0 0
      %1712 = vmatpush2.bf16.msra.mxu0 0
      %1713 = vmatprep.subr.bf16.mxu0 0
      %1714 = vmatpush2.bf16.msra.mxu0 0
      %1715 = vmatprep.subr.bf16.mxu0 0
      %1716 = vmatpush2.bf16.msra.mxu0 0
      %1717 = vmatprep.subr.bf16.mxu0 0
      %1718 = vmatpush2.bf16.msra.mxu0 0
      %1719 = vmatprep.subr.bf16.mxu0 0
      %1720 = vmatpush2.bf16.msra.mxu0 0
      %1721 = vmatprep.subr.bf16.mxu0 0
      %1722 = vmatpush2.bf16.msra.mxu0 0
      %1723 = vmatprep.subr.bf16.mxu0 0
      %1724 = vmatpush2.bf16.msra.mxu0 0
      %1725 = vmatprep.mubr.bf16.mxu0 0
      %1726 = vmatmul.mubr.bf16.gmra.mxu0 %v1538
      %v1727 = vpop.f32.mrf.mxu0
      %v1728 = vadd.f32 0.0, %v1727
      %v1729 = vpop.f32.mrf.mxu0
      %v1730 = vadd.f32 0.0, %v1729
      %v1731 = vpop.f32.mrf.mxu0
      %v1732 = vpop.f32.mrf.mxu0
      %1733 = vdwg.mxu0
      %1734 = vmatprep.subr.bf16.mxu0 0
      %1735 = vmatpush1.bf16.msra.mxu0 0
      %1736 = vmatprep.subr.bf16.mxu0 0
      %1737 = vmatpush1.bf16.msra.mxu0 0
      %1738 = vmatprep.subr.bf16.mxu0 0
      %1739 = vmatpush1.bf16.msra.mxu0 0
      %1740 = vmatprep.subr.bf16.mxu0 0
      %1741 = vmatpush1.bf16.msra.mxu0 0
      %1742 = vmatprep.subr.bf16.mxu0 0
      %1743 = vmatpush1.bf16.msra.mxu0 0
      %1744 = vmatprep.subr.bf16.mxu0 0
      %1745 = vmatpush1.bf16.msra.mxu0 0
      %1746 = vmatprep.subr.bf16.mxu0 0
      %1747 = vmatpush1.bf16.msra.mxu0 0
      %1748 = vmatprep.subr.bf16.mxu0 %v1568
      %1749 = vmatpush1.bf16.msra.mxu0 %v1565
      %1750 = vmatprep.subr.bf16.mxu0 0
      %1751 = vmatpush2.bf16.msra.mxu0 0
      %1752 = vmatprep.subr.bf16.mxu0 0
      %1753 = vmatpush2.bf16.msra.mxu0 0
      %1754 = vmatprep.subr.bf16.mxu0 0
      %1755 = vmatpush2.bf16.msra.mxu0 0
      %1756 = vmatprep.subr.bf16.mxu0 0
      %1757 = vmatpush2.bf16.msra.mxu0 0
      %1758 = vmatprep.subr.bf16.mxu0 0
      %1759 = vmatpush2.bf16.msra.mxu0 0
      %1760 = vmatprep.subr.bf16.mxu0 0
      %1761 = vmatpush2.bf16.msra.mxu0 0
      %1762 = vmatprep.subr.bf16.mxu0 0
      %1763 = vmatpush2.bf16.msra.mxu0 0
      %1764 = vmatprep.subr.bf16.mxu0 0
      %1765 = vmatpush2.bf16.msra.mxu0 0
      %1766 = vmatprep.mubr.bf16.mxu0 0
      %1767 = vmatmul.mubr.bf16.gmra.mxu0 %v1538
      %v1768 = vpop.f32.mrf.mxu0
      %v1769 = vadd.f32 0.0, %v1768
      %v1770 = vpop.f32.mrf.mxu0
      %v1771 = vadd.f32 0.0, %v1770
      %v1772 = vpop.f32.mrf.mxu0
      %v1773 = vpop.f32.mrf.mxu0
      %1774 = vdwg.mxu0
      %v1775 = vadd.f32 %v1525, %v1605
      %v1776 = vadd.f32 %v1526, %v1607
      %v1777 = vadd.f32 %v1527, %v1646
      %v1778 = vadd.f32 %v1528, %v1648
      %v1779 = vadd.f32 %v1529, %v1687
      %v1780 = vadd.f32 %v1530, %v1689
      %v1781 = vadd.f32 %v1531, %v1728
      %v1782 = vadd.f32 %v1532, %v1730
      %v1783 = vadd.f32 %v1533, %v1769
      %v1784 = vadd.f32 %v1534, %v1771
      %s1785 = scalar_lea.vmem %s1, 10
      %v1786 = vld [vmem:[%s1785] sm:$0x3]
      %1787 = vrot.lane.b32.xlu0 %v400, 127
      %v1788 = vpop.permute.xlu0 %1787
      %1789 = vrot.lane.b32.xlu0 %v399, 127
      %v1790 = vpop.permute.xlu0 %1789
      %1791 = vrot.lane.b32.xlu0 %v401, 127
      %v1792 = vpop.permute.xlu0 %1791
      %1793 = vrot.lane.b32.xlu0 %v409, 127
      %v1794 = vpop.permute.xlu0 %1793
      %1795 = vrot.lane.b32.xlu0 %v417, 127
      %v1796 = vpop.permute.xlu0 %1795
      %1797 = vrot.lane.b32.xlu0 %v416, 127
      %v1798 = vpop.permute.xlu0 %1797
      %1799 = vrot.lane.b32.xlu0 %v418, 127
      %v1800 = vpop.permute.xlu0 %1799
      %1801 = vrot.lane.b32.xlu0 %v425, 127
      %v1802 = vpop.permute.xlu0 %1801
      %1803 = vrot.lane.b32.xlu0 %v426, 127
      %v1804 = vpop.permute.xlu0 %1803
      %1805 = vrot.lane.b32.xlu0 %v1253, 127
      %v1806 = vpop.permute.xlu0 %1805
      %vm1807 = vcmask 1039360
      %v1808 = vsel %vm1807, %v1788, %v1790
      %v1809 = vsel %vm1807, %v1790, %v1792
      %v1810 = vsel %vm1807, %v1792, %v1794
      %v1811 = vsel %vm1807, %v1794, %v1796
      %v1812 = vsel %vm1807, %v1796, %v1798
      %v1813 = vsel %vm1807, %v1798, %v1800
      %v1814 = vsel %vm1807, %v1800, %v1802
      %v1815 = vsel %vm1807, %v1802, %v1804
      %v1816 = vsel %vm1807, %v1804, %v1806
      %v1818 = vsel %vm457, %v1786, 0
      %v1821 = vsel %vm372, %v1808, 0
      %v1824 = vsel %vm372, %v1809, 0
      %v1827 = vsel %vm372, %v1810, 0
      %v1830 = vsel %vm372, %v1811, 0
      %v1833 = vsel %vm372, %v1812, 0
      %v1836 = vsel %vm372, %v1813, 0
      %v1839 = vsel %vm372, %v1814, 0
      %v1842 = vsel %vm372, %v1815, 0
      %v1845 = vsel %vm372, %v1816, 0
      %v1848 = vsel %vm372, %v1806, 0
      %1850 = vmatprep.subr.bf16.mxu0 0
      %1851 = vmatpush1.bf16.msra.mxu0 0
      %1852 = vmatprep.subr.bf16.mxu0 0
      %1853 = vmatpush1.bf16.msra.mxu0 0
      %1854 = vmatprep.subr.bf16.mxu0 0
      %1855 = vmatpush1.bf16.msra.mxu0 0
      %1856 = vmatprep.subr.bf16.mxu0 0
      %1857 = vmatpush1.bf16.msra.mxu0 0
      %1858 = vmatprep.subr.bf16.mxu0 0
      %1859 = vmatpush1.bf16.msra.mxu0 0
      %1860 = vmatprep.subr.bf16.mxu0 0
      %1861 = vmatpush1.bf16.msra.mxu0 0
      %1862 = vmatprep.subr.bf16.mxu0 0
      %1863 = vmatpush1.bf16.msra.mxu0 0
      %1864 = vmatprep.subr.bf16.mxu0 %v1824
      %1865 = vmatpush1.bf16.msra.mxu0 %v1821
      %1866 = vmatprep.subr.bf16.mxu0 0
      %1867 = vmatpush2.bf16.msra.mxu0 0
      %1868 = vmatprep.subr.bf16.mxu0 0
      %1869 = vmatpush2.bf16.msra.mxu0 0
      %1870 = vmatprep.subr.bf16.mxu0 0
      %1871 = vmatpush2.bf16.msra.mxu0 0
      %1872 = vmatprep.subr.bf16.mxu0 0
      %1873 = vmatpush2.bf16.msra.mxu0 0
      %1874 = vmatprep.subr.bf16.mxu0 0
      %1875 = vmatpush2.bf16.msra.mxu0 0
      %1876 = vmatprep.subr.bf16.mxu0 0
      %1877 = vmatpush2.bf16.msra.mxu0 0
      %1878 = vmatprep.subr.bf16.mxu0 0
      %1879 = vmatpush2.bf16.msra.mxu0 0
      %1880 = vmatprep.subr.bf16.mxu0 0
      %1881 = vmatpush2.bf16.msra.mxu0 0
      %1882 = vmatprep.mubr.bf16.mxu0 0
      %1883 = vmatmul.mubr.bf16.gmra.mxu0 %v1818
      %v1884 = vpop.f32.mrf.mxu0
      %v1885 = vadd.f32 0.0, %v1884
      %v1886 = vpop.f32.mrf.mxu0
      %v1887 = vadd.f32 0.0, %v1886
      %v1888 = vpop.f32.mrf.mxu0
      %v1889 = vpop.f32.mrf.mxu0
      %1890 = vdwg.mxu0
      %1891 = vmatprep.subr.bf16.mxu0 0
      %1892 = vmatpush1.bf16.msra.mxu0 0
      %1893 = vmatprep.subr.bf16.mxu0 0
      %1894 = vmatpush1.bf16.msra.mxu0 0
      %1895 = vmatprep.subr.bf16.mxu0 0
      %1896 = vmatpush1.bf16.msra.mxu0 0
      %1897 = vmatprep.subr.bf16.mxu0 0
      %1898 = vmatpush1.bf16.msra.mxu0 0
      %1899 = vmatprep.subr.bf16.mxu0 0
      %1900 = vmatpush1.bf16.msra.mxu0 0
      %1901 = vmatprep.subr.bf16.mxu0 0
      %1902 = vmatpush1.bf16.msra.mxu0 0
      %1903 = vmatprep.subr.bf16.mxu0 0
      %1904 = vmatpush1.bf16.msra.mxu0 0
      %1905 = vmatprep.subr.bf16.mxu0 %v1830
      %1906 = vmatpush1.bf16.msra.mxu0 %v1827
      %1907 = vmatprep.subr.bf16.mxu0 0
      %1908 = vmatpush2.bf16.msra.mxu0 0
      %1909 = vmatprep.subr.bf16.mxu0 0
      %1910 = vmatpush2.bf16.msra.mxu0 0
      %1911 = vmatprep.subr.bf16.mxu0 0
      %1912 = vmatpush2.bf16.msra.mxu0 0
      %1913 = vmatprep.subr.bf16.mxu0 0
      %1914 = vmatpush2.bf16.msra.mxu0 0
      %1915 = vmatprep.subr.bf16.mxu0 0
      %1916 = vmatpush2.bf16.msra.mxu0 0
      %1917 = vmatprep.subr.bf16.mxu0 0
      %1918 = vmatpush2.bf16.msra.mxu0 0
      %1919 = vmatprep.subr.bf16.mxu0 0
      %1920 = vmatpush2.bf16.msra.mxu0 0
      %1921 = vmatprep.subr.bf16.mxu0 0
      %1922 = vmatpush2.bf16.msra.mxu0 0
      %1923 = vmatprep.mubr.bf16.mxu0 0
      %1924 = vmatmul.mubr.bf16.gmra.mxu0 %v1818
      %v1925 = vpop.f32.mrf.mxu0
      %v1926 = vadd.f32 0.0, %v1925
      %v1927 = vpop.f32.mrf.mxu0
      %v1928 = vadd.f32 0.0, %v1927
      %v1929 = vpop.f32.mrf.mxu0
      %v1930 = vpop.f32.mrf.mxu0
      %1931 = vdwg.mxu0
      %1932 = vmatprep.subr.bf16.mxu0 0
      %1933 = vmatpush1.bf16.msra.mxu0 0
      %1934 = vmatprep.subr.bf16.mxu0 0
      %1935 = vmatpush1.bf16.msra.mxu0 0
      %1936 = vmatprep.subr.bf16.mxu0 0
      %1937 = vmatpush1.bf16.msra.mxu0 0
      %1938 = vmatprep.subr.bf16.mxu0 0
      %1939 = vmatpush1.bf16.msra.mxu0 0
      %1940 = vmatprep.subr.bf16.mxu0 0
      %1941 = vmatpush1.bf16.msra.mxu0 0
      %1942 = vmatprep.subr.bf16.mxu0 0
      %1943 = vmatpush1.bf16.msra.mxu0 0
      %1944 = vmatprep.subr.bf16.mxu0 0
      %1945 = vmatpush1.bf16.msra.mxu0 0
      %1946 = vmatprep.subr.bf16.mxu0 %v1836
      %1947 = vmatpush1.bf16.msra.mxu0 %v1833
      %1948 = vmatprep.subr.bf16.mxu0 0
      %1949 = vmatpush2.bf16.msra.mxu0 0
      %1950 = vmatprep.subr.bf16.mxu0 0
      %1951 = vmatpush2.bf16.msra.mxu0 0
      %1952 = vmatprep.subr.bf16.mxu0 0
      %1953 = vmatpush2.bf16.msra.mxu0 0
      %1954 = vmatprep.subr.bf16.mxu0 0
      %1955 = vmatpush2.bf16.msra.mxu0 0
      %1956 = vmatprep.subr.bf16.mxu0 0
      %1957 = vmatpush2.bf16.msra.mxu0 0
      %1958 = vmatprep.subr.bf16.mxu0 0
      %1959 = vmatpush2.bf16.msra.mxu0 0
      %1960 = vmatprep.subr.bf16.mxu0 0
      %1961 = vmatpush2.bf16.msra.mxu0 0
      %1962 = vmatprep.subr.bf16.mxu0 0
      %1963 = vmatpush2.bf16.msra.mxu0 0
      %1964 = vmatprep.mubr.bf16.mxu0 0
      %1965 = vmatmul.mubr.bf16.gmra.mxu0 %v1818
      %v1966 = vpop.f32.mrf.mxu0
      %v1967 = vadd.f32 0.0, %v1966
      %v1968 = vpop.f32.mrf.mxu0
      %v1969 = vadd.f32 0.0, %v1968
      %v1970 = vpop.f32.mrf.mxu0
      %v1971 = vpop.f32.mrf.mxu0
      %1972 = vdwg.mxu0
      %1973 = vmatprep.subr.bf16.mxu0 0
      %1974 = vmatpush1.bf16.msra.mxu0 0
      %1975 = vmatprep.subr.bf16.mxu0 0
      %1976 = vmatpush1.bf16.msra.mxu0 0
      %1977 = vmatprep.subr.bf16.mxu0 0
      %1978 = vmatpush1.bf16.msra.mxu0 0
      %1979 = vmatprep.subr.bf16.mxu0 0
      %1980 = vmatpush1.bf16.msra.mxu0 0
      %1981 = vmatprep.subr.bf16.mxu0 0
      %1982 = vmatpush1.bf16.msra.mxu0 0
      %1983 = vmatprep.subr.bf16.mxu0 0
      %1984 = vmatpush1.bf16.msra.mxu0 0
      %1985 = vmatprep.subr.bf16.mxu0 0
      %1986 = vmatpush1.bf16.msra.mxu0 0
      %1987 = vmatprep.subr.bf16.mxu0 %v1842
      %1988 = vmatpush1.bf16.msra.mxu0 %v1839
      %1989 = vmatprep.subr.bf16.mxu0 0
      %1990 = vmatpush2.bf16.msra.mxu0 0
      %1991 = vmatprep.subr.bf16.mxu0 0
      %1992 = vmatpush2.bf16.msra.mxu0 0
      %1993 = vmatprep.subr.bf16.mxu0 0
      %1994 = vmatpush2.bf16.msra.mxu0 0
      %1995 = vmatprep.subr.bf16.mxu0 0
      %1996 = vmatpush2.bf16.msra.mxu0 0
      %1997 = vmatprep.subr.bf16.mxu0 0
      %1998 = vmatpush2.bf16.msra.mxu0 0
      %1999 = vmatprep.subr.bf16.mxu0 0
      %2000 = vmatpush2.bf16.msra.mxu0 0
      %2001 = vmatprep.subr.bf16.mxu0 0
      %2002 = vmatpush2.bf16.msra.mxu0 0
      %2003 = vmatprep.subr.bf16.mxu0 0
      %2004 = vmatpush2.bf16.msra.mxu0 0
      %2005 = vmatprep.mubr.bf16.mxu0 0
      %2006 = vmatmul.mubr.bf16.gmra.mxu0 %v1818
      %v2007 = vpop.f32.mrf.mxu0
      %v2008 = vadd.f32 0.0, %v2007
      %v2009 = vpop.f32.mrf.mxu0
      %v2010 = vadd.f32 0.0, %v2009
      %v2011 = vpop.f32.mrf.mxu0
      %v2012 = vpop.f32.mrf.mxu0
      %2013 = vdwg.mxu0
      %2014 = vmatprep.subr.bf16.mxu0 0
      %2015 = vmatpush1.bf16.msra.mxu0 0
      %2016 = vmatprep.subr.bf16.mxu0 0
      %2017 = vmatpush1.bf16.msra.mxu0 0
      %2018 = vmatprep.subr.bf16.mxu0 0
      %2019 = vmatpush1.bf16.msra.mxu0 0
      %2020 = vmatprep.subr.bf16.mxu0 0
      %2021 = vmatpush1.bf16.msra.mxu0 0
      %2022 = vmatprep.subr.bf16.mxu0 0
      %2023 = vmatpush1.bf16.msra.mxu0 0
      %2024 = vmatprep.subr.bf16.mxu0 0
      %2025 = vmatpush1.bf16.msra.mxu0 0
      %2026 = vmatprep.subr.bf16.mxu0 0
      %2027 = vmatpush1.bf16.msra.mxu0 0
      %2028 = vmatprep.subr.bf16.mxu0 %v1848
      %2029 = vmatpush1.bf16.msra.mxu0 %v1845
      %2030 = vmatprep.subr.bf16.mxu0 0
      %2031 = vmatpush2.bf16.msra.mxu0 0
      %2032 = vmatprep.subr.bf16.mxu0 0
      %2033 = vmatpush2.bf16.msra.mxu0 0
      %2034 = vmatprep.subr.bf16.mxu0 0
      %2035 = vmatpush2.bf16.msra.mxu0 0
      %2036 = vmatprep.subr.bf16.mxu0 0
      %2037 = vmatpush2.bf16.msra.mxu0 0
      %2038 = vmatprep.subr.bf16.mxu0 0
      %2039 = vmatpush2.bf16.msra.mxu0 0
      %2040 = vmatprep.subr.bf16.mxu0 0
      %2041 = vmatpush2.bf16.msra.mxu0 0
      %2042 = vmatprep.subr.bf16.mxu0 0
      %2043 = vmatpush2.bf16.msra.mxu0 0
      %2044 = vmatprep.subr.bf16.mxu0 0
      %2045 = vmatpush2.bf16.msra.mxu0 0
      %2046 = vmatprep.mubr.bf16.mxu0 0
      %2047 = vmatmul.mubr.bf16.gmra.mxu0 %v1818
      %v2048 = vpop.f32.mrf.mxu0
      %v2049 = vadd.f32 0.0, %v2048
      %v2050 = vpop.f32.mrf.mxu0
      %v2051 = vadd.f32 0.0, %v2050
      %v2052 = vpop.f32.mrf.mxu0
      %v2053 = vpop.f32.mrf.mxu0
      %2054 = vdwg.mxu0
      %v2055 = vadd.f32 %v1775, %v1885
      %v2056 = vadd.f32 %v1776, %v1887
      %v2057 = vadd.f32 %v1777, %v1926
      %v2058 = vadd.f32 %v1778, %v1928
      %v2059 = vadd.f32 %v1779, %v1967
      %v2060 = vadd.f32 %v1780, %v1969
      %v2061 = vadd.f32 %v1781, %v2008
      %v2062 = vadd.f32 %v1782, %v2010
      %v2063 = vadd.f32 %v1783, %v2049
      %v2064 = vadd.f32 %v1784, %v2051
      %s2065 = scalar_lea.vmem %s1, 12
      %v2066 = vld [vmem:[%s2065] sm:$0x3]
      %2067 = vrot.lane.b32.xlu0 %v400, 95
      %v2068 = vpop.permute.xlu0 %2067
      %2069 = vrot.lane.b32.xlu0 %v399, 95
      %v2070 = vpop.permute.xlu0 %2069
      %2071 = vrot.lane.b32.xlu0 %v401, 95
      %v2072 = vpop.permute.xlu0 %2071
      %2073 = vrot.lane.b32.xlu0 %v409, 95
      %v2074 = vpop.permute.xlu0 %2073
      %2075 = vrot.lane.b32.xlu0 %v417, 95
      %v2076 = vpop.permute.xlu0 %2075
      %2077 = vrot.lane.b32.xlu0 %v416, 95
      %v2078 = vpop.permute.xlu0 %2077
      %2079 = vrot.lane.b32.xlu0 %v418, 95
      %v2080 = vpop.permute.xlu0 %2079
      %2081 = vrot.lane.b32.xlu0 %v425, 95
      %v2082 = vpop.permute.xlu0 %2081
      %2083 = vrot.lane.b32.xlu0 %v426, 95
      %v2084 = vpop.permute.xlu0 %2083
      %2085 = vrot.lane.b32.xlu0 %v1253, 95
      %v2086 = vpop.permute.xlu0 %2085
      %vm2087 = vcmask 777216
      %v2088 = vsel %vm2087, %v2068, %v2070
      %v2089 = vsel %vm2087, %v2070, %v2072
      %v2090 = vsel %vm2087, %v2072, %v2074
      %v2091 = vsel %vm2087, %v2074, %v2076
      %v2092 = vsel %vm2087, %v2076, %v2078
      %v2093 = vsel %vm2087, %v2078, %v2080
      %v2094 = vsel %vm2087, %v2080, %v2082
      %v2095 = vsel %vm2087, %v2082, %v2084
      %v2096 = vsel %vm2087, %v2084, %v2086
      %v2098 = vsel %vm457, %v2066, 0
      %v2101 = vsel %vm372, %v2088, 0
      %v2104 = vsel %vm372, %v2089, 0
      %v2107 = vsel %vm372, %v2090, 0
      %v2110 = vsel %vm372, %v2091, 0
      %v2113 = vsel %vm372, %v2092, 0
      %v2116 = vsel %vm372, %v2093, 0
      %v2119 = vsel %vm372, %v2094, 0
      %v2122 = vsel %vm372, %v2095, 0
      %v2125 = vsel %vm372, %v2096, 0
      %v2128 = vsel %vm372, %v2086, 0
      %2130 = vmatprep.subr.bf16.mxu0 0
      %2131 = vmatpush1.bf16.msra.mxu0 0
      %2132 = vmatprep.subr.bf16.mxu0 0
      %2133 = vmatpush1.bf16.msra.mxu0 0
      %2134 = vmatprep.subr.bf16.mxu0 0
      %2135 = vmatpush1.bf16.msra.mxu0 0
      %2136 = vmatprep.subr.bf16.mxu0 0
      %2137 = vmatpush1.bf16.msra.mxu0 0
      %2138 = vmatprep.subr.bf16.mxu0 0
      %2139 = vmatpush1.bf16.msra.mxu0 0
      %2140 = vmatprep.subr.bf16.mxu0 0
      %2141 = vmatpush1.bf16.msra.mxu0 0
      %2142 = vmatprep.subr.bf16.mxu0 0
      %2143 = vmatpush1.bf16.msra.mxu0 0
      %2144 = vmatprep.subr.bf16.mxu0 %v2104
      %2145 = vmatpush1.bf16.msra.mxu0 %v2101
      %2146 = vmatprep.subr.bf16.mxu0 0
      %2147 = vmatpush2.bf16.msra.mxu0 0
      %2148 = vmatprep.subr.bf16.mxu0 0
      %2149 = vmatpush2.bf16.msra.mxu0 0
      %2150 = vmatprep.subr.bf16.mxu0 0
      %2151 = vmatpush2.bf16.msra.mxu0 0
      %2152 = vmatprep.subr.bf16.mxu0 0
      %2153 = vmatpush2.bf16.msra.mxu0 0
      %2154 = vmatprep.subr.bf16.mxu0 0
      %2155 = vmatpush2.bf16.msra.mxu0 0
      %2156 = vmatprep.subr.bf16.mxu0 0
      %2157 = vmatpush2.bf16.msra.mxu0 0
      %2158 = vmatprep.subr.bf16.mxu0 0
      %2159 = vmatpush2.bf16.msra.mxu0 0
      %2160 = vmatprep.subr.bf16.mxu0 0
      %2161 = vmatpush2.bf16.msra.mxu0 0
      %2162 = vmatprep.mubr.bf16.mxu0 0
      %2163 = vmatmul.mubr.bf16.gmra.mxu0 %v2098
      %v2164 = vpop.f32.mrf.mxu0
      %v2165 = vadd.f32 0.0, %v2164
      %v2166 = vpop.f32.mrf.mxu0
      %v2167 = vadd.f32 0.0, %v2166
      %v2168 = vpop.f32.mrf.mxu0
      %v2169 = vpop.f32.mrf.mxu0
      %2170 = vdwg.mxu0
      %2171 = vmatprep.subr.bf16.mxu0 0
      %2172 = vmatpush1.bf16.msra.mxu0 0
      %2173 = vmatprep.subr.bf16.mxu0 0
      %2174 = vmatpush1.bf16.msra.mxu0 0
      %2175 = vmatprep.subr.bf16.mxu0 0
      %2176 = vmatpush1.bf16.msra.mxu0 0
      %2177 = vmatprep.subr.bf16.mxu0 0
      %2178 = vmatpush1.bf16.msra.mxu0 0
      %2179 = vmatprep.subr.bf16.mxu0 0
      %2180 = vmatpush1.bf16.msra.mxu0 0
      %2181 = vmatprep.subr.bf16.mxu0 0
      %2182 = vmatpush1.bf16.msra.mxu0 0
      %2183 = vmatprep.subr.bf16.mxu0 0
      %2184 = vmatpush1.bf16.msra.mxu0 0
      %2185 = vmatprep.subr.bf16.mxu0 %v2110
      %2186 = vmatpush1.bf16.msra.mxu0 %v2107
      %2187 = vmatprep.subr.bf16.mxu0 0
      %2188 = vmatpush2.bf16.msra.mxu0 0
      %2189 = vmatprep.subr.bf16.mxu0 0
      %2190 = vmatpush2.bf16.msra.mxu0 0
      %2191 = vmatprep.subr.bf16.mxu0 0
      %2192 = vmatpush2.bf16.msra.mxu0 0
      %2193 = vmatprep.subr.bf16.mxu0 0
      %2194 = vmatpush2.bf16.msra.mxu0 0
      %2195 = vmatprep.subr.bf16.mxu0 0
      %2196 = vmatpush2.bf16.msra.mxu0 0
      %2197 = vmatprep.subr.bf16.mxu0 0
      %2198 = vmatpush2.bf16.msra.mxu0 0
      %2199 = vmatprep.subr.bf16.mxu0 0
      %2200 = vmatpush2.bf16.msra.mxu0 0
      %2201 = vmatprep.subr.bf16.mxu0 0
      %2202 = vmatpush2.bf16.msra.mxu0 0
      %2203 = vmatprep.mubr.bf16.mxu0 0
      %2204 = vmatmul.mubr.bf16.gmra.mxu0 %v2098
      %v2205 = vpop.f32.mrf.mxu0
      %v2206 = vadd.f32 0.0, %v2205
      %v2207 = vpop.f32.mrf.mxu0
      %v2208 = vadd.f32 0.0, %v2207
      %v2209 = vpop.f32.mrf.mxu0
      %v2210 = vpop.f32.mrf.mxu0
      %2211 = vdwg.mxu0
      %2212 = vmatprep.subr.bf16.mxu0 0
      %2213 = vmatpush1.bf16.msra.mxu0 0
      %2214 = vmatprep.subr.bf16.mxu0 0
      %2215 = vmatpush1.bf16.msra.mxu0 0
      %2216 = vmatprep.subr.bf16.mxu0 0
      %2217 = vmatpush1.bf16.msra.mxu0 0
      %2218 = vmatprep.subr.bf16.mxu0 0
      %2219 = vmatpush1.bf16.msra.mxu0 0
      %2220 = vmatprep.subr.bf16.mxu0 0
      %2221 = vmatpush1.bf16.msra.mxu0 0
      %2222 = vmatprep.subr.bf16.mxu0 0
      %2223 = vmatpush1.bf16.msra.mxu0 0
      %2224 = vmatprep.subr.bf16.mxu0 0
      %2225 = vmatpush1.bf16.msra.mxu0 0
      %2226 = vmatprep.subr.bf16.mxu0 %v2116
      %2227 = vmatpush1.bf16.msra.mxu0 %v2113
      %2228 = vmatprep.subr.bf16.mxu0 0
      %2229 = vmatpush2.bf16.msra.mxu0 0
      %2230 = vmatprep.subr.bf16.mxu0 0
      %2231 = vmatpush2.bf16.msra.mxu0 0
      %2232 = vmatprep.subr.bf16.mxu0 0
      %2233 = vmatpush2.bf16.msra.mxu0 0
      %2234 = vmatprep.subr.bf16.mxu0 0
      %2235 = vmatpush2.bf16.msra.mxu0 0
      %2236 = vmatprep.subr.bf16.mxu0 0
      %2237 = vmatpush2.bf16.msra.mxu0 0
      %2238 = vmatprep.subr.bf16.mxu0 0
      %2239 = vmatpush2.bf16.msra.mxu0 0
      %2240 = vmatprep.subr.bf16.mxu0 0
      %2241 = vmatpush2.bf16.msra.mxu0 0
      %2242 = vmatprep.subr.bf16.mxu0 0
      %2243 = vmatpush2.bf16.msra.mxu0 0
      %2244 = vmatprep.mubr.bf16.mxu0 0
      %2245 = vmatmul.mubr.bf16.gmra.mxu0 %v2098
      %v2246 = vpop.f32.mrf.mxu0
      %v2247 = vadd.f32 0.0, %v2246
      %v2248 = vpop.f32.mrf.mxu0
      %v2249 = vadd.f32 0.0, %v2248
      %v2250 = vpop.f32.mrf.mxu0
      %v2251 = vpop.f32.mrf.mxu0
      %2252 = vdwg.mxu0
      %2253 = vmatprep.subr.bf16.mxu0 0
      %2254 = vmatpush1.bf16.msra.mxu0 0
      %2255 = vmatprep.subr.bf16.mxu0 0
      %2256 = vmatpush1.bf16.msra.mxu0 0
      %2257 = vmatprep.subr.bf16.mxu0 0
      %2258 = vmatpush1.bf16.msra.mxu0 0
      %2259 = vmatprep.subr.bf16.mxu0 0
      %2260 = vmatpush1.bf16.msra.mxu0 0
      %2261 = vmatprep.subr.bf16.mxu0 0
      %2262 = vmatpush1.bf16.msra.mxu0 0
      %2263 = vmatprep.subr.bf16.mxu0 0
      %2264 = vmatpush1.bf16.msra.mxu0 0
      %2265 = vmatprep.subr.bf16.mxu0 0
      %2266 = vmatpush1.bf16.msra.mxu0 0
      %2267 = vmatprep.subr.bf16.mxu0 %v2122
      %2268 = vmatpush1.bf16.msra.mxu0 %v2119
      %2269 = vmatprep.subr.bf16.mxu0 0
      %2270 = vmatpush2.bf16.msra.mxu0 0
      %2271 = vmatprep.subr.bf16.mxu0 0
      %2272 = vmatpush2.bf16.msra.mxu0 0
      %2273 = vmatprep.subr.bf16.mxu0 0
      %2274 = vmatpush2.bf16.msra.mxu0 0
      %2275 = vmatprep.subr.bf16.mxu0 0
      %2276 = vmatpush2.bf16.msra.mxu0 0
      %2277 = vmatprep.subr.bf16.mxu0 0
      %2278 = vmatpush2.bf16.msra.mxu0 0
      %2279 = vmatprep.subr.bf16.mxu0 0
      %2280 = vmatpush2.bf16.msra.mxu0 0
      %2281 = vmatprep.subr.bf16.mxu0 0
      %2282 = vmatpush2.bf16.msra.mxu0 0
      %2283 = vmatprep.subr.bf16.mxu0 0
      %2284 = vmatpush2.bf16.msra.mxu0 0
      %2285 = vmatprep.mubr.bf16.mxu0 0
      %2286 = vmatmul.mubr.bf16.gmra.mxu0 %v2098
      %v2287 = vpop.f32.mrf.mxu0
      %v2288 = vadd.f32 0.0, %v2287
      %v2289 = vpop.f32.mrf.mxu0
      %v2290 = vadd.f32 0.0, %v2289
      %v2291 = vpop.f32.mrf.mxu0
      %v2292 = vpop.f32.mrf.mxu0
      %2293 = vdwg.mxu0
      %2294 = vmatprep.subr.bf16.mxu0 0
      %2295 = vmatpush1.bf16.msra.mxu0 0
      %2296 = vmatprep.subr.bf16.mxu0 0
      %2297 = vmatpush1.bf16.msra.mxu0 0
      %2298 = vmatprep.subr.bf16.mxu0 0
      %2299 = vmatpush1.bf16.msra.mxu0 0
      %2300 = vmatprep.subr.bf16.mxu0 0
      %2301 = vmatpush1.bf16.msra.mxu0 0
      %2302 = vmatprep.subr.bf16.mxu0 0
      %2303 = vmatpush1.bf16.msra.mxu0 0
      %2304 = vmatprep.subr.bf16.mxu0 0
      %2305 = vmatpush1.bf16.msra.mxu0 0
      %2306 = vmatprep.subr.bf16.mxu0 0
      %2307 = vmatpush1.bf16.msra.mxu0 0
      %2308 = vmatprep.subr.bf16.mxu0 %v2128
      %2309 = vmatpush1.bf16.msra.mxu0 %v2125
      %2310 = vmatprep.subr.bf16.mxu0 0
      %2311 = vmatpush2.bf16.msra.mxu0 0
      %2312 = vmatprep.subr.bf16.mxu0 0
      %2313 = vmatpush2.bf16.msra.mxu0 0
      %2314 = vmatprep.subr.bf16.mxu0 0
      %2315 = vmatpush2.bf16.msra.mxu0 0
      %2316 = vmatprep.subr.bf16.mxu0 0
      %2317 = vmatpush2.bf16.msra.mxu0 0
      %2318 = vmatprep.subr.bf16.mxu0 0
      %2319 = vmatpush2.bf16.msra.mxu0 0
      %2320 = vmatprep.subr.bf16.mxu0 0
      %2321 = vmatpush2.bf16.msra.mxu0 0
      %2322 = vmatprep.subr.bf16.mxu0 0
      %2323 = vmatpush2.bf16.msra.mxu0 0
      %2324 = vmatprep.subr.bf16.mxu0 0
      %2325 = vmatpush2.bf16.msra.mxu0 0
      %2326 = vmatprep.mubr.bf16.mxu0 0
      %2327 = vmatmul.mubr.bf16.gmra.mxu0 %v2098
      %v2328 = vpop.f32.mrf.mxu0
      %v2329 = vadd.f32 0.0, %v2328
      %v2330 = vpop.f32.mrf.mxu0
      %v2331 = vadd.f32 0.0, %v2330
      %v2332 = vpop.f32.mrf.mxu0
      %v2333 = vpop.f32.mrf.mxu0
      %2334 = vdwg.mxu0
      %v2335 = vadd.f32 %v2055, %v2165
      %v2336 = vadd.f32 %v2056, %v2167
      %v2337 = vadd.f32 %v2057, %v2206
      %v2338 = vadd.f32 %v2058, %v2208
      %v2339 = vadd.f32 %v2059, %v2247
      %v2340 = vadd.f32 %v2060, %v2249
      %v2341 = vadd.f32 %v2061, %v2288
      %v2342 = vadd.f32 %v2062, %v2290
      %v2343 = vadd.f32 %v2063, %v2329
      %v2344 = vadd.f32 %v2064, %v2331
      %s2345 = scalar_lea.vmem %s1, 14
      %v2346 = vld [vmem:[%s2345] sm:$0x3]
      %2347 = vrot.lane.b32.xlu0 %v400, 94
      %v2348 = vpop.permute.xlu0 %2347
      %2349 = vrot.lane.b32.xlu0 %v399, 94
      %v2350 = vpop.permute.xlu0 %2349
      %2351 = vrot.lane.b32.xlu0 %v401, 94
      %v2352 = vpop.permute.xlu0 %2351
      %2353 = vrot.lane.b32.xlu0 %v409, 94
      %v2354 = vpop.permute.xlu0 %2353
      %2355 = vrot.lane.b32.xlu0 %v417, 94
      %v2356 = vpop.permute.xlu0 %2355
      %2357 = vrot.lane.b32.xlu0 %v416, 94
      %v2358 = vpop.permute.xlu0 %2357
      %2359 = vrot.lane.b32.xlu0 %v418, 94
      %v2360 = vpop.permute.xlu0 %2359
      %2361 = vrot.lane.b32.xlu0 %v425, 94
      %v2362 = vpop.permute.xlu0 %2361
      %2363 = vrot.lane.b32.xlu0 %v426, 94
      %v2364 = vpop.permute.xlu0 %2363
      %2365 = vrot.lane.b32.xlu0 %v1253, 94
      %v2366 = vpop.permute.xlu0 %2365
      %vm2367 = vcmask 769024
      %v2368 = vsel %vm2367, %v2348, %v2350
      %v2369 = vsel %vm2367, %v2350, %v2352
      %v2370 = vsel %vm2367, %v2352, %v2354
      %v2371 = vsel %vm2367, %v2354, %v2356
      %v2372 = vsel %vm2367, %v2356, %v2358
      %v2373 = vsel %vm2367, %v2358, %v2360
      %v2374 = vsel %vm2367, %v2360, %v2362
      %v2375 = vsel %vm2367, %v2362, %v2364
      %v2376 = vsel %vm2367, %v2364, %v2366
      %v2378 = vsel %vm457, %v2346, 0
      %v2381 = vsel %vm372, %v2368, 0
      %v2384 = vsel %vm372, %v2369, 0
      %v2387 = vsel %vm372, %v2370, 0
      %v2390 = vsel %vm372, %v2371, 0
      %v2393 = vsel %vm372, %v2372, 0
      %v2396 = vsel %vm372, %v2373, 0
      %v2399 = vsel %vm372, %v2374, 0
      %v2402 = vsel %vm372, %v2375, 0
      %v2405 = vsel %vm372, %v2376, 0
      %v2408 = vsel %vm372, %v2366, 0
      %2410 = vmatprep.subr.bf16.mxu0 0
      %2411 = vmatpush1.bf16.msra.mxu0 0
      %2412 = vmatprep.subr.bf16.mxu0 0
      %2413 = vmatpush1.bf16.msra.mxu0 0
      %2414 = vmatprep.subr.bf16.mxu0 0
      %2415 = vmatpush1.bf16.msra.mxu0 0
      %2416 = vmatprep.subr.bf16.mxu0 0
      %2417 = vmatpush1.bf16.msra.mxu0 0
      %2418 = vmatprep.subr.bf16.mxu0 0
      %2419 = vmatpush1.bf16.msra.mxu0 0
      %2420 = vmatprep.subr.bf16.mxu0 0
      %2421 = vmatpush1.bf16.msra.mxu0 0
      %2422 = vmatprep.subr.bf16.mxu0 0
      %2423 = vmatpush1.bf16.msra.mxu0 0
      %2424 = vmatprep.subr.bf16.mxu0 %v2384
      %2425 = vmatpush1.bf16.msra.mxu0 %v2381
      %2426 = vmatprep.subr.bf16.mxu0 0
      %2427 = vmatpush2.bf16.msra.mxu0 0
      %2428 = vmatprep.subr.bf16.mxu0 0
      %2429 = vmatpush2.bf16.msra.mxu0 0
      %2430 = vmatprep.subr.bf16.mxu0 0
      %2431 = vmatpush2.bf16.msra.mxu0 0
      %2432 = vmatprep.subr.bf16.mxu0 0
      %2433 = vmatpush2.bf16.msra.mxu0 0
      %2434 = vmatprep.subr.bf16.mxu0 0
      %2435 = vmatpush2.bf16.msra.mxu0 0
      %2436 = vmatprep.subr.bf16.mxu0 0
      %2437 = vmatpush2.bf16.msra.mxu0 0
      %2438 = vmatprep.subr.bf16.mxu0 0
      %2439 = vmatpush2.bf16.msra.mxu0 0
      %2440 = vmatprep.subr.bf16.mxu0 0
      %2441 = vmatpush2.bf16.msra.mxu0 0
      %2442 = vmatprep.mubr.bf16.mxu0 0
      %2443 = vmatmul.mubr.bf16.gmra.mxu0 %v2378
      %v2444 = vpop.f32.mrf.mxu0
      %v2445 = vadd.f32 0.0, %v2444
      %v2446 = vpop.f32.mrf.mxu0
      %v2447 = vadd.f32 0.0, %v2446
      %v2448 = vpop.f32.mrf.mxu0
      %v2449 = vpop.f32.mrf.mxu0
      %2450 = vdwg.mxu0
      %2451 = vmatprep.subr.bf16.mxu0 0
      %2452 = vmatpush1.bf16.msra.mxu0 0
      %2453 = vmatprep.subr.bf16.mxu0 0
      %2454 = vmatpush1.bf16.msra.mxu0 0
      %2455 = vmatprep.subr.bf16.mxu0 0
      %2456 = vmatpush1.bf16.msra.mxu0 0
      %2457 = vmatprep.subr.bf16.mxu0 0
      %2458 = vmatpush1.bf16.msra.mxu0 0
      %2459 = vmatprep.subr.bf16.mxu0 0
      %2460 = vmatpush1.bf16.msra.mxu0 0
      %2461 = vmatprep.subr.bf16.mxu0 0
      %2462 = vmatpush1.bf16.msra.mxu0 0
      %2463 = vmatprep.subr.bf16.mxu0 0
      %2464 = vmatpush1.bf16.msra.mxu0 0
      %2465 = vmatprep.subr.bf16.mxu0 %v2390
      %2466 = vmatpush1.bf16.msra.mxu0 %v2387
      %2467 = vmatprep.subr.bf16.mxu0 0
      %2468 = vmatpush2.bf16.msra.mxu0 0
      %2469 = vmatprep.subr.bf16.mxu0 0
      %2470 = vmatpush2.bf16.msra.mxu0 0
      %2471 = vmatprep.subr.bf16.mxu0 0
      %2472 = vmatpush2.bf16.msra.mxu0 0
      %2473 = vmatprep.subr.bf16.mxu0 0
      %2474 = vmatpush2.bf16.msra.mxu0 0
      %2475 = vmatprep.subr.bf16.mxu0 0
      %2476 = vmatpush2.bf16.msra.mxu0 0
      %2477 = vmatprep.subr.bf16.mxu0 0
      %2478 = vmatpush2.bf16.msra.mxu0 0
      %2479 = vmatprep.subr.bf16.mxu0 0
      %2480 = vmatpush2.bf16.msra.mxu0 0
      %2481 = vmatprep.subr.bf16.mxu0 0
      %2482 = vmatpush2.bf16.msra.mxu0 0
      %2483 = vmatprep.mubr.bf16.mxu0 0
      %2484 = vmatmul.mubr.bf16.gmra.mxu0 %v2378
      %v2485 = vpop.f32.mrf.mxu0
      %v2486 = vadd.f32 0.0, %v2485
      %v2487 = vpop.f32.mrf.mxu0
      %v2488 = vadd.f32 0.0, %v2487
      %v2489 = vpop.f32.mrf.mxu0
      %v2490 = vpop.f32.mrf.mxu0
      %2491 = vdwg.mxu0
      %2492 = vmatprep.subr.bf16.mxu0 0
      %2493 = vmatpush1.bf16.msra.mxu0 0
      %2494 = vmatprep.subr.bf16.mxu0 0
      %2495 = vmatpush1.bf16.msra.mxu0 0
      %2496 = vmatprep.subr.bf16.mxu0 0
      %2497 = vmatpush1.bf16.msra.mxu0 0
      %2498 = vmatprep.subr.bf16.mxu0 0
      %2499 = vmatpush1.bf16.msra.mxu0 0
      %2500 = vmatprep.subr.bf16.mxu0 0
      %2501 = vmatpush1.bf16.msra.mxu0 0
      %2502 = vmatprep.subr.bf16.mxu0 0
      %2503 = vmatpush1.bf16.msra.mxu0 0
      %2504 = vmatprep.subr.bf16.mxu0 0
      %2505 = vmatpush1.bf16.msra.mxu0 0
      %2506 = vmatprep.subr.bf16.mxu0 %v2396
      %2507 = vmatpush1.bf16.msra.mxu0 %v2393
      %2508 = vmatprep.subr.bf16.mxu0 0
      %2509 = vmatpush2.bf16.msra.mxu0 0
      %2510 = vmatprep.subr.bf16.mxu0 0
      %2511 = vmatpush2.bf16.msra.mxu0 0
      %2512 = vmatprep.subr.bf16.mxu0 0
      %2513 = vmatpush2.bf16.msra.mxu0 0
      %2514 = vmatprep.subr.bf16.mxu0 0
      %2515 = vmatpush2.bf16.msra.mxu0 0
      %2516 = vmatprep.subr.bf16.mxu0 0
      %2517 = vmatpush2.bf16.msra.mxu0 0
      %2518 = vmatprep.subr.bf16.mxu0 0
      %2519 = vmatpush2.bf16.msra.mxu0 0
      %2520 = vmatprep.subr.bf16.mxu0 0
      %2521 = vmatpush2.bf16.msra.mxu0 0
      %2522 = vmatprep.subr.bf16.mxu0 0
      %2523 = vmatpush2.bf16.msra.mxu0 0
      %2524 = vmatprep.mubr.bf16.mxu0 0
      %2525 = vmatmul.mubr.bf16.gmra.mxu0 %v2378
      %v2526 = vpop.f32.mrf.mxu0
      %v2527 = vadd.f32 0.0, %v2526
      %v2528 = vpop.f32.mrf.mxu0
      %v2529 = vadd.f32 0.0, %v2528
      %v2530 = vpop.f32.mrf.mxu0
      %v2531 = vpop.f32.mrf.mxu0
      %2532 = vdwg.mxu0
      %2533 = vmatprep.subr.bf16.mxu0 0
      %2534 = vmatpush1.bf16.msra.mxu0 0
      %2535 = vmatprep.subr.bf16.mxu0 0
      %2536 = vmatpush1.bf16.msra.mxu0 0
      %2537 = vmatprep.subr.bf16.mxu0 0
      %2538 = vmatpush1.bf16.msra.mxu0 0
      %2539 = vmatprep.subr.bf16.mxu0 0
      %2540 = vmatpush1.bf16.msra.mxu0 0
      %2541 = vmatprep.subr.bf16.mxu0 0
      %2542 = vmatpush1.bf16.msra.mxu0 0
      %2543 = vmatprep.subr.bf16.mxu0 0
      %2544 = vmatpush1.bf16.msra.mxu0 0
      %2545 = vmatprep.subr.bf16.mxu0 0
      %2546 = vmatpush1.bf16.msra.mxu0 0
      %2547 = vmatprep.subr.bf16.mxu0 %v2402
      %2548 = vmatpush1.bf16.msra.mxu0 %v2399
      %2549 = vmatprep.subr.bf16.mxu0 0
      %2550 = vmatpush2.bf16.msra.mxu0 0
      %2551 = vmatprep.subr.bf16.mxu0 0
      %2552 = vmatpush2.bf16.msra.mxu0 0
      %2553 = vmatprep.subr.bf16.mxu0 0
      %2554 = vmatpush2.bf16.msra.mxu0 0
      %2555 = vmatprep.subr.bf16.mxu0 0
      %2556 = vmatpush2.bf16.msra.mxu0 0
      %2557 = vmatprep.subr.bf16.mxu0 0
      %2558 = vmatpush2.bf16.msra.mxu0 0
      %2559 = vmatprep.subr.bf16.mxu0 0
      %2560 = vmatpush2.bf16.msra.mxu0 0
      %2561 = vmatprep.subr.bf16.mxu0 0
      %2562 = vmatpush2.bf16.msra.mxu0 0
      %2563 = vmatprep.subr.bf16.mxu0 0
      %2564 = vmatpush2.bf16.msra.mxu0 0
      %2565 = vmatprep.mubr.bf16.mxu0 0
      %2566 = vmatmul.mubr.bf16.gmra.mxu0 %v2378
      %v2567 = vpop.f32.mrf.mxu0
      %v2568 = vadd.f32 0.0, %v2567
      %v2569 = vpop.f32.mrf.mxu0
      %v2570 = vadd.f32 0.0, %v2569
      %v2571 = vpop.f32.mrf.mxu0
      %v2572 = vpop.f32.mrf.mxu0
      %2573 = vdwg.mxu0
      %2574 = vmatprep.subr.bf16.mxu0 0
      %2575 = vmatpush1.bf16.msra.mxu0 0
      %2576 = vmatprep.subr.bf16.mxu0 0
      %2577 = vmatpush1.bf16.msra.mxu0 0
      %2578 = vmatprep.subr.bf16.mxu0 0
      %2579 = vmatpush1.bf16.msra.mxu0 0
      %2580 = vmatprep.subr.bf16.mxu0 0
      %2581 = vmatpush1.bf16.msra.mxu0 0
      %2582 = vmatprep.subr.bf16.mxu0 0
      %2583 = vmatpush1.bf16.msra.mxu0 0
      %2584 = vmatprep.subr.bf16.mxu0 0
      %2585 = vmatpush1.bf16.msra.mxu0 0
      %2586 = vmatprep.subr.bf16.mxu0 0
      %2587 = vmatpush1.bf16.msra.mxu0 0
      %2588 = vmatprep.subr.bf16.mxu0 %v2408
      %2589 = vmatpush1.bf16.msra.mxu0 %v2405
      %2590 = vmatprep.subr.bf16.mxu0 0
      %2591 = vmatpush2.bf16.msra.mxu0 0
      %2592 = vmatprep.subr.bf16.mxu0 0
      %2593 = vmatpush2.bf16.msra.mxu0 0
      %2594 = vmatprep.subr.bf16.mxu0 0
      %2595 = vmatpush2.bf16.msra.mxu0 0
      %2596 = vmatprep.subr.bf16.mxu0 0
      %2597 = vmatpush2.bf16.msra.mxu0 0
      %2598 = vmatprep.subr.bf16.mxu0 0
      %2599 = vmatpush2.bf16.msra.mxu0 0
      %2600 = vmatprep.subr.bf16.mxu0 0
      %2601 = vmatpush2.bf16.msra.mxu0 0
      %2602 = vmatprep.subr.bf16.mxu0 0
      %2603 = vmatpush2.bf16.msra.mxu0 0
      %2604 = vmatprep.subr.bf16.mxu0 0
      %2605 = vmatpush2.bf16.msra.mxu0 0
      %2606 = vmatprep.mubr.bf16.mxu0 0
      %2607 = vmatmul.mubr.bf16.gmra.mxu0 %v2378
      %v2608 = vpop.f32.mrf.mxu0
      %v2609 = vadd.f32 0.0, %v2608
      %v2610 = vpop.f32.mrf.mxu0
      %v2611 = vadd.f32 0.0, %v2610
      %v2612 = vpop.f32.mrf.mxu0
      %v2613 = vpop.f32.mrf.mxu0
      %2614 = vdwg.mxu0
      %v2615 = vadd.f32 %v2335, %v2445
      %v2616 = vadd.f32 %v2336, %v2447
      %v2617 = vadd.f32 %v2337, %v2486
      %v2618 = vadd.f32 %v2338, %v2488
      %v2619 = vadd.f32 %v2339, %v2527
      %v2620 = vadd.f32 %v2340, %v2529
      %v2621 = vadd.f32 %v2341, %v2568
      %v2622 = vadd.f32 %v2342, %v2570
      %v2623 = vadd.f32 %v2343, %v2609
      %v2624 = vadd.f32 %v2344, %v2611
      %s2625 = scalar_lea.vmem %s1, 16
      %v2626 = vld [vmem:[%s2625] sm:$0x3]
      %2627 = vrot.lane.b32.xlu0 %v400, 93
      %v2628 = vpop.permute.xlu0 %2627
      %2629 = vrot.lane.b32.xlu0 %v399, 93
      %v2630 = vpop.permute.xlu0 %2629
      %2631 = vrot.lane.b32.xlu0 %v401, 93
      %v2632 = vpop.permute.xlu0 %2631
      %2633 = vrot.lane.b32.xlu0 %v409, 93
      %v2634 = vpop.permute.xlu0 %2633
      %2635 = vrot.lane.b32.xlu0 %v417, 93
      %v2636 = vpop.permute.xlu0 %2635
      %2637 = vrot.lane.b32.xlu0 %v416, 93
      %v2638 = vpop.permute.xlu0 %2637
      %2639 = vrot.lane.b32.xlu0 %v418, 93
      %v2640 = vpop.permute.xlu0 %2639
      %2641 = vrot.lane.b32.xlu0 %v425, 93
      %v2642 = vpop.permute.xlu0 %2641
      %2643 = vrot.lane.b32.xlu0 %v426, 93
      %v2644 = vpop.permute.xlu0 %2643
      %2645 = vrot.lane.b32.xlu0 %v1253, 93
      %v2646 = vpop.permute.xlu0 %2645
      %vm2647 = vcmask 760832
      %v2648 = vsel %vm2647, %v2628, %v2630
      %v2649 = vsel %vm2647, %v2630, %v2632
      %v2650 = vsel %vm2647, %v2632, %v2634
      %v2651 = vsel %vm2647, %v2634, %v2636
      %v2652 = vsel %vm2647, %v2636, %v2638
      %v2653 = vsel %vm2647, %v2638, %v2640
      %v2654 = vsel %vm2647, %v2640, %v2642
      %v2655 = vsel %vm2647, %v2642, %v2644
      %v2656 = vsel %vm2647, %v2644, %v2646
      %v2658 = vsel %vm457, %v2626, 0
      %v2661 = vsel %vm372, %v2648, 0
      %v2664 = vsel %vm372, %v2649, 0
      %v2667 = vsel %vm372, %v2650, 0
      %v2670 = vsel %vm372, %v2651, 0
      %v2673 = vsel %vm372, %v2652, 0
      %v2676 = vsel %vm372, %v2653, 0
      %v2679 = vsel %vm372, %v2654, 0
      %v2682 = vsel %vm372, %v2655, 0
      %v2685 = vsel %vm372, %v2656, 0
      %v2688 = vsel %vm372, %v2646, 0
      %2690 = vmatprep.subr.bf16.mxu0 0
      %2691 = vmatpush1.bf16.msra.mxu0 0
      %2692 = vmatprep.subr.bf16.mxu0 0
      %2693 = vmatpush1.bf16.msra.mxu0 0
      %2694 = vmatprep.subr.bf16.mxu0 0
      %2695 = vmatpush1.bf16.msra.mxu0 0
      %2696 = vmatprep.subr.bf16.mxu0 0
      %2697 = vmatpush1.bf16.msra.mxu0 0
      %2698 = vmatprep.subr.bf16.mxu0 0
      %2699 = vmatpush1.bf16.msra.mxu0 0
      %2700 = vmatprep.subr.bf16.mxu0 0
      %2701 = vmatpush1.bf16.msra.mxu0 0
      %2702 = vmatprep.subr.bf16.mxu0 0
      %2703 = vmatpush1.bf16.msra.mxu0 0
      %2704 = vmatprep.subr.bf16.mxu0 %v2664
      %2705 = vmatpush1.bf16.msra.mxu0 %v2661
      %2706 = vmatprep.subr.bf16.mxu0 0
      %2707 = vmatpush2.bf16.msra.mxu0 0
      %2708 = vmatprep.subr.bf16.mxu0 0
      %2709 = vmatpush2.bf16.msra.mxu0 0
      %2710 = vmatprep.subr.bf16.mxu0 0
      %2711 = vmatpush2.bf16.msra.mxu0 0
      %2712 = vmatprep.subr.bf16.mxu0 0
      %2713 = vmatpush2.bf16.msra.mxu0 0
      %2714 = vmatprep.subr.bf16.mxu0 0
      %2715 = vmatpush2.bf16.msra.mxu0 0
      %2716 = vmatprep.subr.bf16.mxu0 0
      %2717 = vmatpush2.bf16.msra.mxu0 0
      %2718 = vmatprep.subr.bf16.mxu0 0
      %2719 = vmatpush2.bf16.msra.mxu0 0
      %2720 = vmatprep.subr.bf16.mxu0 0
      %2721 = vmatpush2.bf16.msra.mxu0 0
      %2722 = vmatprep.mubr.bf16.mxu0 0
      %2723 = vmatmul.mubr.bf16.gmra.mxu0 %v2658
      %v2724 = vpop.f32.mrf.mxu0
      %v2725 = vadd.f32 0.0, %v2724
      %v2726 = vpop.f32.mrf.mxu0
      %v2727 = vadd.f32 0.0, %v2726
      %v2728 = vpop.f32.mrf.mxu0
      %v2729 = vpop.f32.mrf.mxu0
      %2730 = vdwg.mxu0
      %2731 = vmatprep.subr.bf16.mxu0 0
      %2732 = vmatpush1.bf16.msra.mxu0 0
      %2733 = vmatprep.subr.bf16.mxu0 0
      %2734 = vmatpush1.bf16.msra.mxu0 0
      %2735 = vmatprep.subr.bf16.mxu0 0
      %2736 = vmatpush1.bf16.msra.mxu0 0
      %2737 = vmatprep.subr.bf16.mxu0 0
      %2738 = vmatpush1.bf16.msra.mxu0 0
      %2739 = vmatprep.subr.bf16.mxu0 0
      %2740 = vmatpush1.bf16.msra.mxu0 0
      %2741 = vmatprep.subr.bf16.mxu0 0
      %2742 = vmatpush1.bf16.msra.mxu0 0
      %2743 = vmatprep.subr.bf16.mxu0 0
      %2744 = vmatpush1.bf16.msra.mxu0 0
      %2745 = vmatprep.subr.bf16.mxu0 %v2670
      %2746 = vmatpush1.bf16.msra.mxu0 %v2667
      %2747 = vmatprep.subr.bf16.mxu0 0
      %2748 = vmatpush2.bf16.msra.mxu0 0
      %2749 = vmatprep.subr.bf16.mxu0 0
      %2750 = vmatpush2.bf16.msra.mxu0 0
      %2751 = vmatprep.subr.bf16.mxu0 0
      %2752 = vmatpush2.bf16.msra.mxu0 0
      %2753 = vmatprep.subr.bf16.mxu0 0
      %2754 = vmatpush2.bf16.msra.mxu0 0
      %2755 = vmatprep.subr.bf16.mxu0 0
      %2756 = vmatpush2.bf16.msra.mxu0 0
      %2757 = vmatprep.subr.bf16.mxu0 0
      %2758 = vmatpush2.bf16.msra.mxu0 0
      %2759 = vmatprep.subr.bf16.mxu0 0
      %2760 = vmatpush2.bf16.msra.mxu0 0
      %2761 = vmatprep.subr.bf16.mxu0 0
      %2762 = vmatpush2.bf16.msra.mxu0 0
      %2763 = vmatprep.mubr.bf16.mxu0 0
      %2764 = vmatmul.mubr.bf16.gmra.mxu0 %v2658
      %v2765 = vpop.f32.mrf.mxu0
      %v2766 = vadd.f32 0.0, %v2765
      %v2767 = vpop.f32.mrf.mxu0
      %v2768 = vadd.f32 0.0, %v2767
      %v2769 = vpop.f32.mrf.mxu0
      %v2770 = vpop.f32.mrf.mxu0
      %2771 = vdwg.mxu0
      %2772 = vmatprep.subr.bf16.mxu0 0
      %2773 = vmatpush1.bf16.msra.mxu0 0
      %2774 = vmatprep.subr.bf16.mxu0 0
      %2775 = vmatpush1.bf16.msra.mxu0 0
      %2776 = vmatprep.subr.bf16.mxu0 0
      %2777 = vmatpush1.bf16.msra.mxu0 0
      %2778 = vmatprep.subr.bf16.mxu0 0
      %2779 = vmatpush1.bf16.msra.mxu0 0
      %2780 = vmatprep.subr.bf16.mxu0 0
      %2781 = vmatpush1.bf16.msra.mxu0 0
      %2782 = vmatprep.subr.bf16.mxu0 0
      %2783 = vmatpush1.bf16.msra.mxu0 0
      %2784 = vmatprep.subr.bf16.mxu0 0
      %2785 = vmatpush1.bf16.msra.mxu0 0
      %2786 = vmatprep.subr.bf16.mxu0 %v2676
      %2787 = vmatpush1.bf16.msra.mxu0 %v2673
      %2788 = vmatprep.subr.bf16.mxu0 0
      %2789 = vmatpush2.bf16.msra.mxu0 0
      %2790 = vmatprep.subr.bf16.mxu0 0
      %2791 = vmatpush2.bf16.msra.mxu0 0
      %2792 = vmatprep.subr.bf16.mxu0 0
      %2793 = vmatpush2.bf16.msra.mxu0 0
      %2794 = vmatprep.subr.bf16.mxu0 0
      %2795 = vmatpush2.bf16.msra.mxu0 0
      %2796 = vmatprep.subr.bf16.mxu0 0
      %2797 = vmatpush2.bf16.msra.mxu0 0
      %2798 = vmatprep.subr.bf16.mxu0 0
      %2799 = vmatpush2.bf16.msra.mxu0 0
      %2800 = vmatprep.subr.bf16.mxu0 0
      %2801 = vmatpush2.bf16.msra.mxu0 0
      %2802 = vmatprep.subr.bf16.mxu0 0
      %2803 = vmatpush2.bf16.msra.mxu0 0
      %2804 = vmatprep.mubr.bf16.mxu0 0
      %2805 = vmatmul.mubr.bf16.gmra.mxu0 %v2658
      %v2806 = vpop.f32.mrf.mxu0
      %v2807 = vadd.f32 0.0, %v2806
      %v2808 = vpop.f32.mrf.mxu0
      %v2809 = vadd.f32 0.0, %v2808
      %v2810 = vpop.f32.mrf.mxu0
      %v2811 = vpop.f32.mrf.mxu0
      %2812 = vdwg.mxu0
      %2813 = vmatprep.subr.bf16.mxu0 0
      %2814 = vmatpush1.bf16.msra.mxu0 0
      %2815 = vmatprep.subr.bf16.mxu0 0
      %2816 = vmatpush1.bf16.msra.mxu0 0
      %2817 = vmatprep.subr.bf16.mxu0 0
      %2818 = vmatpush1.bf16.msra.mxu0 0
      %2819 = vmatprep.subr.bf16.mxu0 0
      %2820 = vmatpush1.bf16.msra.mxu0 0
      %2821 = vmatprep.subr.bf16.mxu0 0
      %2822 = vmatpush1.bf16.msra.mxu0 0
      %2823 = vmatprep.subr.bf16.mxu0 0
      %2824 = vmatpush1.bf16.msra.mxu0 0
      %2825 = vmatprep.subr.bf16.mxu0 0
      %2826 = vmatpush1.bf16.msra.mxu0 0
      %2827 = vmatprep.subr.bf16.mxu0 %v2682
      %2828 = vmatpush1.bf16.msra.mxu0 %v2679
      %2829 = vmatprep.subr.bf16.mxu0 0
      %2830 = vmatpush2.bf16.msra.mxu0 0
      %2831 = vmatprep.subr.bf16.mxu0 0
      %2832 = vmatpush2.bf16.msra.mxu0 0
      %2833 = vmatprep.subr.bf16.mxu0 0
      %2834 = vmatpush2.bf16.msra.mxu0 0
      %2835 = vmatprep.subr.bf16.mxu0 0
      %2836 = vmatpush2.bf16.msra.mxu0 0
      %2837 = vmatprep.subr.bf16.mxu0 0
      %2838 = vmatpush2.bf16.msra.mxu0 0
      %2839 = vmatprep.subr.bf16.mxu0 0
      %2840 = vmatpush2.bf16.msra.mxu0 0
      %2841 = vmatprep.subr.bf16.mxu0 0
      %2842 = vmatpush2.bf16.msra.mxu0 0
      %2843 = vmatprep.subr.bf16.mxu0 0
      %2844 = vmatpush2.bf16.msra.mxu0 0
      %2845 = vmatprep.mubr.bf16.mxu0 0
      %2846 = vmatmul.mubr.bf16.gmra.mxu0 %v2658
      %v2847 = vpop.f32.mrf.mxu0
      %v2848 = vadd.f32 0.0, %v2847
      %v2849 = vpop.f32.mrf.mxu0
      %v2850 = vadd.f32 0.0, %v2849
      %v2851 = vpop.f32.mrf.mxu0
      %v2852 = vpop.f32.mrf.mxu0
      %2853 = vdwg.mxu0
      %2854 = vmatprep.subr.bf16.mxu0 0
      %2855 = vmatpush1.bf16.msra.mxu0 0
      %2856 = vmatprep.subr.bf16.mxu0 0
      %2857 = vmatpush1.bf16.msra.mxu0 0
      %2858 = vmatprep.subr.bf16.mxu0 0
      %2859 = vmatpush1.bf16.msra.mxu0 0
      %2860 = vmatprep.subr.bf16.mxu0 0
      %2861 = vmatpush1.bf16.msra.mxu0 0
      %2862 = vmatprep.subr.bf16.mxu0 0
      %2863 = vmatpush1.bf16.msra.mxu0 0
      %2864 = vmatprep.subr.bf16.mxu0 0
      %2865 = vmatpush1.bf16.msra.mxu0 0
      %2866 = vmatprep.subr.bf16.mxu0 0
      %2867 = vmatpush1.bf16.msra.mxu0 0
      %2868 = vmatprep.subr.bf16.mxu0 %v2688
      %2869 = vmatpush1.bf16.msra.mxu0 %v2685
      %2870 = vmatprep.subr.bf16.mxu0 0
      %2871 = vmatpush2.bf16.msra.mxu0 0
      %2872 = vmatprep.subr.bf16.mxu0 0
      %2873 = vmatpush2.bf16.msra.mxu0 0
      %2874 = vmatprep.subr.bf16.mxu0 0
      %2875 = vmatpush2.bf16.msra.mxu0 0
      %2876 = vmatprep.subr.bf16.mxu0 0
      %2877 = vmatpush2.bf16.msra.mxu0 0
      %2878 = vmatprep.subr.bf16.mxu0 0
      %2879 = vmatpush2.bf16.msra.mxu0 0
      %2880 = vmatprep.subr.bf16.mxu0 0
      %2881 = vmatpush2.bf16.msra.mxu0 0
      %2882 = vmatprep.subr.bf16.mxu0 0
      %2883 = vmatpush2.bf16.msra.mxu0 0
      %2884 = vmatprep.subr.bf16.mxu0 0
      %2885 = vmatpush2.bf16.msra.mxu0 0
      %2886 = vmatprep.mubr.bf16.mxu0 0
      %2887 = vmatmul.mubr.bf16.gmra.mxu0 %v2658
      %v2888 = vpop.f32.mrf.mxu0
      %v2889 = vadd.f32 0.0, %v2888
      %v2890 = vpop.f32.mrf.mxu0
      %v2891 = vadd.f32 0.0, %v2890
      %v2892 = vpop.f32.mrf.mxu0
      %v2893 = vpop.f32.mrf.mxu0
      %2894 = vdwg.mxu0
      %v2895 = vadd.f32 %v2615, %v2725
      %v2896 = vadd.f32 %v2616, %v2727
      %v2897 = vadd.f32 %v2617, %v2766
      %v2898 = vadd.f32 %v2618, %v2768
      %v2899 = vadd.f32 %v2619, %v2807
      %v2900 = vadd.f32 %v2620, %v2809
      %v2901 = vadd.f32 %v2621, %v2848
      %v2902 = vadd.f32 %v2622, %v2850
      %v2903 = vadd.f32 %v2623, %v2889
      %v2904 = vadd.f32 %v2624, %v2891
      %v2905 = vpack.c.bf16 %v2895, %v2895
      %v2906 = vpack.c.bf16 %v2896, %v2896
      %v2907 = vpack.c.bf16 %v2897, %v2897
      %v2908 = vpack.c.bf16 %v2898, %v2898
      %v2909 = vpack.c.bf16 %v2899, %v2899
      %v2910 = vpack.c.bf16 %v2900, %v2900
      %v2911 = vpack.c.bf16 %v2901, %v2901
      %v2912 = vpack.c.bf16 %v2902, %v2902
      %v2913 = vpack.c.bf16 %v2903, %v2903
      %v2914 = vpack.c.bf16 %v2904, %v2904
      %v2925 = vcombine.low %v2905, %v2906
      %v2926 = vcombine.low %v2907, %v2908
      %v2928 = vunpack.c.l.s4 1983009808
      %v2929 = vunpack.c.0.s8 %v2928
      %v2930 = vlaneseq
      %v2931 = vshrl.u32 %v2930, 7
      %v2932 = vsub.s32 %v2929, %v2931
      %v2933 = vrot.slane %v2925, %v2932
      %v2935 = vunpack.c.l.s4 1983009808
      %v2936 = vunpack.c.0.s8 %v2935
      %v2937 = vlaneseq
      %v2938 = vshrl.u32 %v2937, 7
      %v2939 = vsub.s32 %v2936, %v2938
      %v2940 = vrot.slane %v2926, %v2939
      %v2941 = vcombine.low %v2933, %v2940
      %v2942 = vcombine.low %v2909, %v2910
      %v2943 = vcombine.low %v2911, %v2912
      %v2945 = vunpack.c.l.s4 1983009808
      %v2946 = vunpack.c.0.s8 %v2945
      %v2947 = vlaneseq
      %v2948 = vshrl.u32 %v2947, 7
      %v2949 = vsub.s32 %v2946, %v2948
      %v2950 = vrot.slane %v2942, %v2949
      %v2952 = vunpack.c.l.s4 1983009808
      %v2953 = vunpack.c.0.s8 %v2952
      %v2954 = vlaneseq
      %v2955 = vshrl.u32 %v2954, 7
      %v2956 = vsub.s32 %v2953, %v2955
      %v2957 = vrot.slane %v2943, %v2956
      %v2958 = vcombine.low %v2950, %v2957
      %v2959 = vcombine.low %v2913, %v2914
      %v2961 = vunpack.c.l.s4 1983009808
      %v2962 = vunpack.c.0.s8 %v2961
      %v2963 = vlaneseq
      %v2964 = vshrl.u32 %v2963, 7
      %v2965 = vsub.s32 %v2962, %v2964
      %v2966 = vrot.slane %v2959, %v2965
      %2970 = vst [vmem:[%s204] sm:$0xff] %v2941
      %2971 = vst [vmem:[%s204 + $0x8] sm:$0xff] %v2958
      %2972 = vst.msk [vmem:[%s204 + $0x10] sm:$0xf] %vm374, %v2966
      %v2973 = vmul.f32 %v2895, %v225
      %v2974 = vmul.f32 %v2896, %v229
      %v2975 = vmul.f32 %v2897, %v233
      %v2976 = vmul.f32 %v2898, %v237
      %v2977 = vmul.f32 %v2899, %v241
      %v2978 = vmul.f32 %v2900, %v245
      %v2979 = vmul.f32 %v2901, %v249
      %v2980 = vmul.f32 %v2902, %v253
      %v2981 = vmul.f32 %v2903, %v257
      %v2982 = vmul.f32 %v2904, %v261
      %vm2983 = vcmask 1043456
      %v2984 = vsel %vm2983, %v2973, 0.0
      %v2985 = vsel %vm2983, %v2974, 0.0
      %v2986 = vadd.f32 %v2984, %v2985
      %v2987 = vsel %vm2983, %v2975, 0.0
      %v2988 = vadd.f32 %v2986, %v2987
      %v2989 = vsel %vm2983, %v2976, 0.0
      %v2990 = vadd.f32 %v2988, %v2989
      %v2991 = vsel %vm2983, %v2977, 0.0
      %v2992 = vadd.f32 %v2990, %v2991
      %v2993 = vsel %vm2983, %v2978, 0.0
      %v2994 = vadd.f32 %v2992, %v2993
      %v2995 = vsel %vm2983, %v2979, 0.0
      %v2996 = vadd.f32 %v2994, %v2995
      %v2997 = vsel %vm2983, %v2980, 0.0
      %v2998 = vadd.f32 %v2996, %v2997
      %v2999 = vsel %vm2983, %v2981, 0.0
      %v3000 = vadd.f32 %v2998, %v2999
      %vm3001 = vcmask 27648
      %v3002 = vsel %vm3001, %v2982, 0.0
      %v3003 = vadd.f32 %v3000, %v3002
      %3004 = vadd.xlane.f32.xlu0 %v3003
      %v3005 = vpop.xlane.xlu0 %3004
      %v3006 = vmul.f32 %v3005, 0.0009765625
      %v3007 = vsub.f32 %v2895, %v3006
      %v3008 = vsub.f32 %v2896, %v3006
      %v3009 = vsub.f32 %v2897, %v3006
      %v3010 = vsub.f32 %v2898, %v3006
      %v3011 = vsub.f32 %v2899, %v3006
      %v3012 = vsub.f32 %v2900, %v3006
      %v3013 = vsub.f32 %v2901, %v3006
      %v3014 = vsub.f32 %v2902, %v3006
      %v3015 = vsub.f32 %v2903, %v3006
      %v3016 = vsub.f32 %v2904, %v3006
      %v3017 = vmul.f32 %v3007, %v225
      %v3018 = vmul.f32 %v3008, %v229
      %v3019 = vmul.f32 %v3009, %v233
      %v3020 = vmul.f32 %v3010, %v237
      %v3021 = vmul.f32 %v3011, %v241
      %v3022 = vmul.f32 %v3012, %v245
      %v3023 = vmul.f32 %v3013, %v249
      %v3024 = vmul.f32 %v3014, %v253
      %v3025 = vmul.f32 %v3015, %v257
      %v3026 = vmul.f32 %v3016, %v261
      %v3027 = vmul.f32 %v3017, %v3017
      %v3028 = vmul.f32 %v3018, %v3018
      %v3029 = vmul.f32 %v3019, %v3019
      %v3030 = vmul.f32 %v3020, %v3020
      %v3031 = vmul.f32 %v3021, %v3021
      %v3032 = vmul.f32 %v3022, %v3022
      %v3033 = vmul.f32 %v3023, %v3023
      %v3034 = vmul.f32 %v3024, %v3024
      %v3035 = vmul.f32 %v3025, %v3025
      %v3036 = vmul.f32 %v3026, %v3026
      %v3037 = vsel %vm2983, %v3027, 0.0
      %v3038 = vsel %vm2983, %v3028, 0.0
      %v3039 = vadd.f32 %v3037, %v3038
      %v3040 = vsel %vm2983, %v3029, 0.0
      %v3041 = vadd.f32 %v3039, %v3040
      %v3042 = vsel %vm2983, %v3030, 0.0
      %v3043 = vadd.f32 %v3041, %v3042
      %v3044 = vsel %vm2983, %v3031, 0.0
      %v3045 = vadd.f32 %v3043, %v3044
      %v3046 = vsel %vm2983, %v3032, 0.0
      %v3047 = vadd.f32 %v3045, %v3046
      %v3048 = vsel %vm2983, %v3033, 0.0
      %v3049 = vadd.f32 %v3047, %v3048
      %v3050 = vsel %vm2983, %v3034, 0.0
      %v3051 = vadd.f32 %v3049, %v3050
      %v3052 = vsel %vm2983, %v3035, 0.0
      %v3053 = vadd.f32 %v3051, %v3052
      %v3054 = vsel %vm3001, %v3036, 0.0
      %v3055 = vadd.f32 %v3053, %v3054
      %3056 = vadd.xlane.f32.xlu0 %v3055
      %v3057 = vpop.xlane.xlu0 %3056
      %vm3058 = vcmask 3072
      %3059 = vst.msk [vmem:[%s208] sm:$0xf] %vm3058, %v3005
      %vm3060 = vcmask 11272
      %3061 = vst.msk [vmem:[%s208] sm:$0xf] %vm3060, %v3057
      %p3062 = scmp.lt.s32.totalorder %s16, 1
      %s3063 = scalar_select %p3062, %s16, 1
      %s3064 = smul.addr %s3063, 10
      %s3065 = smul.addr %s3064, 2
      %s3066 = scalar_lea.vmem %s3, %s3065
      %p3067 = scmp.lt.s32.totalorder %s16, 1
      %s3068 = scalar_select %p3067, %s16, 1
      %s3069 = smul.addr %s3068, 4
      %s3070 = scalar_lea.vmem %s4, %s3069
      // Predicated region
      $region33: #{unet_up.6} parent=31 // pred_check
        %p3071 = pneg %p102
      $region34: #{unet_up.6} parent=31 // pred_check_branch
        %3073 = sbr.rel (%p3071) target = $region36
      $region35: #{unet_up.6} parent=31 // pred_region
        _
      $region36: #{unet_up.6} parent=31 // pred_fallthru
        _
      // Predicated region
      $region37: #{unet_up.6} parent=31 // pred_check
        %p3074 = pneg %p128
      $region38: #{unet_up.6} parent=31 // pred_check_branch
        %3076 = sbr.rel (%p3074) target = $region40
      $region39: #{unet_up.6} parent=31 // pred_region
        _
      $region40: #{unet_up.6} parent=31 // pred_fallthru
        _
    $region32: #{unet_up.6} parent=5 // pred_fallthru
      _
    %p3077 = scmp.le.s32.totalorder 2, %s11
    // Predicated region
    $region41: #{unet_up.6} parent=5 // pred_check
      %p3078 = pneg %p3077
    $region42: #{unet_up.6} parent=5 // pred_check_branch
      %3080 = sbr.rel (%p3078) target = $region44
    $region43: #{unet_up.6} parent=5 // pred_region
      %s3081 = ssub.s32 %s11, 2
      // Predicated region
      $region45: #{unet_up.6} parent=43 // pred_check
        %p3082 = pneg %p108
      $region46: #{unet_up.6} parent=43 // pred_check_branch
        %3084 = sbr.rel (%p3082) target = $region48
      $region47: #{unet_up.6} parent=43 // pred_region
        %p3085 = scmp.lt.s32.totalorder %s17, 1
        %s3086 = scalar_select %p3085, %s17, 1
        %s3087 = smul.addr %s3086, 10
        %s3088 = smul.addr %s3087, 2
        %s3089 = scalar_lea.vmem %s3, %s3088
      $region48: #{unet_up.6} parent=43 // pred_fallthru
        _
      // Predicated region
      $region49: #{unet_up.6} parent=43 // pred_check
        %p3090 = pneg %p134
      $region50: #{unet_up.6} parent=43 // pred_check_branch
        %3092 = sbr.rel (%p3090) target = $region52
      $region51: #{unet_up.6} parent=43 // pred_region
        %p3093 = scmp.lt.s32.totalorder %s17, 1
        %s3094 = scalar_select %p3093, %s17, 1
        %s3095 = smul.addr %s3094, 4
        %s3096 = scalar_lea.vmem %s4, %s3095
      $region52: #{unet_up.6} parent=43 // pred_fallthru
        _
    $region44: #{unet_up.6} parent=5 // pred_fallthru
      _
  $region6: #{unet_up.6} parent=0 // loop_footer
    %s15 = sadd.s32 1, %s11
  $region7: #{unet_up.6} parent=0 // loop_footer_branch
    %10 = sbr.rel target = $region3
  $region8: #{unet_up.6} parent=0 // loop_exit
    _

// kernel: unet_up.7
$region0: #{unet_up.7}
  #allocation0 [shape = 'u32[]', space=smem, size = 0x4, offset = 0x4, fixed_abs, tag = 'smem constant byte address 0x4 - core index']
  #allocation1 [shape = 'u32[144,128]{1,0:T(1,128)}', space=vmem, size = 0x12000, scoped, tag = 'internal scratch']
  #allocation2 [shape = 'bf16[4,1408]{1,0:T(4,128)(2,1)}', space=vmem, size = 0x2c00, scoped, tag = 'scratch operand']
  %s0 = inlined_call_operand.vmem [shape: bf16[2,4,1156], index: 0, kind: input, shape index: {}]
  %s1 = inlined_call_operand.vmem [shape: f32[4,1], index: 1, kind: input, shape index: {}]
  %s2 = inlined_call_operand.vmem [shape: f32[4,1], index: 2, kind: input, shape index: {}]
  %s3 = inlined_call_operand.vmem [shape: bf16[9,4,4], index: 3, kind: input, shape index: {}]
  %s4 = inlined_call_operand.vmem [shape: f32[1,1156], index: 4, kind: input, shape index: {}]
  %s5 = inlined_call_operand.vmem [shape: bf16[2,4,1156], index: 5, kind: output, shape index: {0}]
  %s6 = inlined_call_operand.vmem [shape: f32[2,4,2], index: 6, kind: output, shape index: {1}]
  %7 = xla_tuple %s5, %s6
  %s8 = sld [smem:[#allocation0]]
  $region61: #{unet_up.7} parent=0
    _
  %s10 = ssub.s32 1, %s8
  %s11 = scalar_select 0, %s10, %s8
  loop: start=0, step=1, limit=4
  $region2: #{unet_up.7} parent=0 // loop_pre_header
    _
  $region3: #{unet_up.7} parent=0 // loop_header
    %s13 = sphi 0, %s17
    %p14 = scmp.ge.s32.totalorder %s13, 4
    %s23 = sphi 0, %s25
    %s26 = sphi 0, %s23
    %s27 = sphi 0, %s26
    %s43 = sphi 0, %s27
    %s47 = sphi 0, %s47
    %s49 = sphi 0, %s47
    %s50 = sphi 0, %s49
    %s64 = sphi 0, %s50
    %s68 = sphi 0, %s68
    %s70 = sphi 0, %s68
    %s71 = sphi 0, %s70
    %s85 = sphi 0, %s71
    %s89 = sphi 0, %s89
    %s91 = sphi 0, %s89
    %s92 = sphi 0, %s91
    %s106 = sphi 0, %s92
    %s110 = sphi 0, %s110
    %s112 = sphi 0, %s110
    %s113 = sphi 0, %s112
    %s127 = sphi 0, %s113
    %s133 = sphi 0, %s135
    %s136 = sphi 0, %s133
    %s137 = sphi 0, %s136
    %s153 = sphi 0, %s137
    %s159 = sphi 0, %s161
    %s162 = sphi 0, %s159
    %s163 = sphi 0, %s162
    %s179 = sphi 0, %s163
  $region4: #{unet_up.7} parent=0 // loop_header_branch
    %16 = sbr.rel (%p14) target = $region8
  $region5: #{unet_up.7} parent=0 // loop_body
    %s18 = ssub.s32 %s13, 1
    %s19 = ssub.s32 %s13, 2
    %s20 = sadd.s32 %s13, 1
    %s21 = ssub.s32 %s13, %s20
    %p22 = scmp.eq.s32.totalorder %s21, 0
    %s24 = sadd.s32 %s23, 1
    %s25 = scalar_select %p22, %s23, %s24
    %p28 = pneg %p22
    %p29 = scmp.eq.s32.totalorder %s13, 1
    %p30 = por %p28, %p29
    %p31 = scmp.ne.s32.totalorder %s23, %s26
    %p32 = scmp.eq.s32.totalorder %s13, 0
    %p33 = por %p31, %p32
    %p34 = scmp.ne.s32.totalorder %s23, %s26
    %p35 = scmp.eq.s32.totalorder %s18, 1
    %p36 = por %p34, %p35
    %p37 = scmp.ne.s32.totalorder %s26, %s27
    %p38 = scmp.eq.s32.totalorder %s18, 0
    %p39 = por %p37, %p38
    %p40 = scmp.ne.s32.totalorder %s26, %s27
    %p41 = scmp.eq.s32.totalorder %s19, 1
    %p42 = por %p40, %p41
    %p44 = scmp.ne.s32.totalorder %s27, %s43
    %p45 = scmp.eq.s32.totalorder %s19, 0
    %p46 = por %p44, %p45
    %s48 = sadd.s32 %s47, 1
    %p51 = scmp.eq.s32.totalorder %s13, 1
    %p52 = scmp.ne.s32.totalorder %s47, %s49
    %p53 = scmp.eq.s32.totalorder %s13, 0
    %p54 = por %p52, %p53
    %p55 = scmp.ne.s32.totalorder %s47, %s49
    %p56 = scmp.eq.s32.totalorder %s18, 1
    %p57 = por %p55, %p56
    %p58 = scmp.ne.s32.totalorder %s49, %s50
    %p59 = scmp.eq.s32.totalorder %s18, 0
    %p60 = por %p58, %p59
    %p61 = scmp.ne.s32.totalorder %s49, %s50
    %p62 = scmp.eq.s32.totalorder %s19, 1
    %p63 = por %p61, %p62
    %p65 = scmp.ne.s32.totalorder %s50, %s64
    %p66 = scmp.eq.s32.totalorder %s19, 0
    %p67 = por %p65, %p66
    %s69 = sadd.s32 %s68, 1
    %p72 = scmp.eq.s32.totalorder %s13, 1
    %p73 = scmp.ne.s32.totalorder %s68, %s70
    %p74 = scmp.eq.s32.totalorder %s13, 0
    %p75 = por %p73, %p74
    %p76 = scmp.ne.s32.totalorder %s68, %s70
    %p77 = scmp.eq.s32.totalorder %s18, 1
    %p78 = por %p76, %p77
    %p79 = scmp.ne.s32.totalorder %s70, %s71
    %p80 = scmp.eq.s32.totalorder %s18, 0
    %p81 = por %p79, %p80
    %p82 = scmp.ne.s32.totalorder %s70, %s71
    %p83 = scmp.eq.s32.totalorder %s19, 1
    %p84 = por %p82, %p83
    %p86 = scmp.ne.s32.totalorder %s71, %s85
    %p87 = scmp.eq.s32.totalorder %s19, 0
    %p88 = por %p86, %p87
    %s90 = sadd.s32 %s89, 1
    %p93 = scmp.eq.s32.totalorder %s13, 1
    %p94 = scmp.ne.s32.totalorder %s89, %s91
    %p95 = scmp.eq.s32.totalorder %s13, 0
    %p96 = por %p94, %p95
    %p97 = scmp.ne.s32.totalorder %s89, %s91
    %p98 = scmp.eq.s32.totalorder %s18, 1
    %p99 = por %p97, %p98
    %p100 = scmp.ne.s32.totalorder %s91, %s92
    %p101 = scmp.eq.s32.totalorder %s18, 0
    %p102 = por %p100, %p101
    %p103 = scmp.ne.s32.totalorder %s91, %s92
    %p104 = scmp.eq.s32.totalorder %s19, 1
    %p105 = por %p103, %p104
    %p107 = scmp.ne.s32.totalorder %s92, %s106
    %p108 = scmp.eq.s32.totalorder %s19, 0
    %p109 = por %p107, %p108
    %s111 = sadd.s32 %s110, 1
    %p114 = scmp.eq.s32.totalorder %s13, 1
    %p115 = scmp.ne.s32.totalorder %s110, %s112
    %p116 = scmp.eq.s32.totalorder %s13, 0
    %p117 = por %p115, %p116
    %p118 = scmp.ne.s32.totalorder %s110, %s112
    %p119 = scmp.eq.s32.totalorder %s18, 1
    %p120 = por %p118, %p119
    %p121 = scmp.ne.s32.totalorder %s112, %s113
    %p122 = scmp.eq.s32.totalorder %s18, 0
    %p123 = por %p121, %p122
    %p124 = scmp.ne.s32.totalorder %s112, %s113
    %p125 = scmp.eq.s32.totalorder %s19, 1
    %p126 = por %p124, %p125
    %p128 = scmp.ne.s32.totalorder %s113, %s127
    %p129 = scmp.eq.s32.totalorder %s19, 0
    %p130 = por %p128, %p129
    %s131 = ssub.s32 %s13, %s20
    %p132 = scmp.eq.s32.totalorder %s131, 0
    %s134 = sadd.s32 %s133, 1
    %s135 = scalar_select %p132, %s133, %s134
    %p138 = pneg %p132
    %p139 = scmp.eq.s32.totalorder %s13, 1
    %p140 = por %p138, %p139
    %p141 = scmp.ne.s32.totalorder %s133, %s136
    %p142 = scmp.eq.s32.totalorder %s13, 0
    %p143 = por %p141, %p142
    %p144 = scmp.ne.s32.totalorder %s133, %s136
    %p145 = scmp.eq.s32.totalorder %s18, 1
    %p146 = por %p144, %p145
    %p147 = scmp.ne.s32.totalorder %s136, %s137
    %p148 = scmp.eq.s32.totalorder %s18, 0
    %p149 = por %p147, %p148
    %p150 = scmp.ne.s32.totalorder %s136, %s137
    %p151 = scmp.eq.s32.totalorder %s19, 1
    %p152 = por %p150, %p151
    %p154 = scmp.ne.s32.totalorder %s137, %s153
    %p155 = scmp.eq.s32.totalorder %s19, 0
    %p156 = por %p154, %p155
    %s157 = ssub.s32 %s13, %s20
    %p158 = scmp.eq.s32.totalorder %s157, 0
    %s160 = sadd.s32 %s159, 1
    %s161 = scalar_select %p158, %s159, %s160
    %p164 = pneg %p158
    %p165 = scmp.eq.s32.totalorder %s13, 1
    %p166 = por %p164, %p165
    %p167 = scmp.ne.s32.totalorder %s159, %s162
    %p168 = scmp.eq.s32.totalorder %s13, 0
    %p169 = por %p167, %p168
    %p170 = scmp.ne.s32.totalorder %s159, %s162
    %p171 = scmp.eq.s32.totalorder %s18, 1
    %p172 = por %p170, %p171
    %p173 = scmp.ne.s32.totalorder %s162, %s163
    %p174 = scmp.eq.s32.totalorder %s18, 0
    %p175 = por %p173, %p174
    %p176 = scmp.ne.s32.totalorder %s162, %s163
    %p177 = scmp.eq.s32.totalorder %s19, 1
    %p178 = por %p176, %p177
    %p180 = scmp.ne.s32.totalorder %s163, %s179
    %p181 = scmp.eq.s32.totalorder %s19, 0
    %p182 = por %p180, %p181
    %p183 = scmp.le.s32.totalorder 1, %s13
    %p184 = scmp.lt.s32.totalorder %s13, 3
    %p185 = pnand %p183, %p184
    %p186 = pneg %p185
    // Predicated region
    $region9: #{unet_up.7} parent=5 // pred_check
      _
    $region10: #{unet_up.7} parent=5 // pred_check_branch
      %188 = sbr.rel (%p185) target = $region12
    $region11: #{unet_up.7} parent=5 // pred_region
      %s189 = ssub.s32 %s13, 1
      // Predicated region
      $region13: #{unet_up.7} parent=11 // pred_check
        %p190 = pneg %p60
      $region14: #{unet_up.7} parent=11 // pred_check_branch
        %192 = sbr.rel (%p190) target = $region16
      $region15: #{unet_up.7} parent=11 // pred_region
        _
      $region16: #{unet_up.7} parent=11 // pred_fallthru
        _
      // Predicated region
      $region17: #{unet_up.7} parent=11 // pred_check
        %p193 = pneg %p81
      $region18: #{unet_up.7} parent=11 // pred_check_branch
        %195 = sbr.rel (%p193) target = $region20
      $region19: #{unet_up.7} parent=11 // pred_region
        _
      $region20: #{unet_up.7} parent=11 // pred_fallthru
        _
      // Predicated region
      $region21: #{unet_up.7} parent=11 // pred_check
        %p196 = pneg %p102
      $region22: #{unet_up.7} parent=11 // pred_check_branch
        %198 = sbr.rel (%p196) target = $region24
      $region23: #{unet_up.7} parent=11 // pred_region
        _
      $region24: #{unet_up.7} parent=11 // pred_fallthru
        _
      // Predicated region
      $region25: #{unet_up.7} parent=11 // pred_check
        %p199 = pneg %p123
      $region26: #{unet_up.7} parent=11 // pred_check_branch
        %201 = sbr.rel (%p199) target = $region28
      $region27: #{unet_up.7} parent=11 // pred_region
        _
      $region28: #{unet_up.7} parent=11 // pred_fallthru
        _
    $region12: #{unet_up.7} parent=5 // pred_fallthru
      _
    %p202 = scmp.lt.s32.totalorder %s13, 2
    // Predicated region
    $region29: #{unet_up.7} parent=5 // pred_check
      %p203 = pneg %p202
    $region30: #{unet_up.7} parent=5 // pred_check_branch
      %205 = sbr.rel (%p203) target = $region32
    $region31: #{unet_up.7} parent=5 // pred_region
      // Predicated region
      $region33: #{unet_up.7} parent=31 // pred_check
        %p206 = pneg %p33
      $region34: #{unet_up.7} parent=31 // pred_check_branch
        %208 = sbr.rel (%p206) target = $region36
      $region35: #{unet_up.7} parent=31 // pred_region
        %p209 = scmp.lt.s32.totalorder %s13, 1
        %s210 = scalar_select %p209, %s13, 1
        %s211 = smul.addr %s210, 10
        %s212 = smul.addr %s211, 2
        %s213 = scalar_lea.vmem %s0, %s212
      $region36: #{unet_up.7} parent=31 // pred_fallthru
        _
    $region32: #{unet_up.7} parent=5 // pred_fallthru
      _
    %p214 = scmp.le.s32.totalorder 1, %s13
    %p215 = scmp.lt.s32.totalorder %s13, 3
    %p216 = pnand %p214, %p215
    %p217 = pneg %p216
    // Predicated region
    $region37: #{unet_up.7} parent=5 // pred_check
      _
    $region38: #{unet_up.7} parent=5 // pred_check_branch
      %219 = sbr.rel (%p216) target = $region40
    $region39: #{unet_up.7} parent=5 // pred_region
      %s220 = ssub.s32 %s13, 1
      %p221 = scmp.lt.s32.totalorder %s18, 1
      %s222 = scalar_select %p221, %s18, 1
      %s223 = smul.addr %s222, 10
      %s224 = smul.addr %s223, 2
      %s225 = scalar_lea.vmem %s0, %s224
      %p226 = pneg %p39
      %p227 = pneg %p36
      %p228 = pneg %p60
      %p229 = pneg %p57
      %p230 = pneg %p81
      %p231 = pneg %p78
      %p232 = pneg %p102
      %p233 = pneg %p99
      %p234 = pneg %p123
      %p235 = pneg %p120
      %p236 = pneg %p149
      %p237 = pneg %p146
      %p238 = scmp.lt.s32.totalorder %s18, 1
      %s239 = scalar_select %p238, %s18, 1
      %s240 = smul.addr %s239, 10
      %s241 = smul.addr %s240, 2
      %s242 = scalar_lea.vmem %s5, %s241
      %p243 = pneg %p175
      %p244 = pneg %p172
      %p245 = scmp.lt.s32.totalorder %s18, 1
      %s246 = scalar_select %p245, %s18, 1
      %s247 = smul.addr %s246, 4
      %s248 = scalar_lea.vmem %s6, %s247
      %p249 = scmp.lt.s32.totalorder %s18, 1
      %s250 = scalar_select %p249, %s18, 1
      %s251 = smul.addr %s250, 10
      %s252 = smul.addr %s251, 2
      %s253 = scalar_lea.vmem %s0, %s252
      %p254 = scmp.lt.s32.totalorder %s18, 1
      %s255 = scalar_select %p254, %s18, 1
      %s256 = smul.addr %s255, 10
      %s257 = smul.addr %s256, 2
      %s258 = scalar_lea.vmem %s5, %s257
      %p259 = scmp.lt.s32.totalorder %s18, 1
      %s260 = scalar_select %p259, %s18, 1
      %s261 = smul.addr %s260, 4
      %s262 = scalar_lea.vmem %s6, %s261
      %v264 = vld [vmem:[%s4] sm:$0xff]
      %v265 = vld [vmem:[%s4 + $0x8] sm:$0x3]
      %v266 = vld [vmem:[%s253] sm:$0xff]
      %v267 = vld [vmem:[%s253 + $0x8] sm:$0xff]
      %v268 = vld [vmem:[%s253 + $0x10] sm:$0xf]
      %v269 = vunpack.c.l.bf16 %v266
      %v270 = vunpack.c.h.bf16 %v266
      %v271 = vunpack.c.l.bf16 %v267
      %v272 = vunpack.c.h.bf16 %v267
      %v273 = vunpack.c.l.bf16 %v268
      %v274 = vld [vmem:[%s1] sm:$0xf]
      %276 = vset.pattern.permute.xlu0 0
      %277 = vperm.xlu0 %276, %v274
      %v278 = vpop.permute.xlu0 %277
      %v280 = vunpack.c.l.s4 839922192
      %v281 = vunpack.c.0.s8 %v280
      %v282 = vlaneseq
      %v283 = vshrl.u32 %v282, 7
      %v284 = vsub.s32 %v281, %v283
      %v285 = vrot.slane %v278, %v284
      %v287 = vmul.f32 %v269, %v285
      %v288 = vmul.f32 %v270, %v285
      %v289 = vmul.f32 %v271, %v285
      %v290 = vmul.f32 %v272, %v285
      %v291 = vmul.f32 %v273, %v285
      %v292 = vld [vmem:[%s2] sm:$0xf]
      %294 = vset.pattern.permute.xlu0 0
      %295 = vperm.xlu0 %294, %v292
      %v296 = vpop.permute.xlu0 %295
      %v298 = vunpack.c.l.s4 839922192
      %v299 = vunpack.c.0.s8 %v298
      %v300 = vlaneseq
      %v301 = vshrl.u32 %v300, 7
      %v302 = vsub.s32 %v299, %v301
      %v303 = vrot.slane %v296, %v302
      %v305 = vadd.f32 %v287, %v303
      %v306 = vadd.f32 %v288, %v303
      %v307 = vadd.f32 %v289, %v303
      %v308 = vadd.f32 %v290, %v303
      %v309 = vadd.f32 %v291, %v303
      %v310 = vmul.f32 %v305, 0.5
      %v311 = vmul.f32 %v306, 0.5
      %v312 = vmul.f32 %v307, 0.5
      %v313 = vmul.f32 %v308, 0.5
      %v314 = vmul.f32 %v309, 0.5
      %v315 = vmul.f32 %v305, 0.70710677
      %v316 = vmul.f32 %v306, 0.70710677
      %v317 = vmul.f32 %v307, 0.70710677
      %v318 = vmul.f32 %v308, 0.70710677
      %v319 = vmul.f32 %v309, 0.70710677
      %v320 = verf.f32.pop %v315
      %v321 = verf.f32.pop %v316
      %v322 = verf.f32.pop %v317
      %v323 = verf.f32.pop %v318
      %v324 = verf.f32.pop %v319
      %v325 = vadd.f32 %v320, 1.0
      %v326 = vadd.f32 %v321, 1.0
      %v327 = vadd.f32 %v322, 1.0
      %v328 = vadd.f32 %v323, 1.0
      %v329 = vadd.f32 %v324, 1.0
      %v330 = vmul.f32 %v310, %v325
      %v331 = vmul.f32 %v311, %v326
      %v332 = vmul.f32 %v312, %v327
      %v333 = vmul.f32 %v313, %v328
      %v334 = vmul.f32 %v314, %v329
      %v337 = vlaneseq
      %v338 = vshrl.u32 %v337, 7
      %v339 = vsub.s32 0, %v338
      %v340 = vrot.slane %v264, %v339
      %v341 = vlaneseq
      %v342 = vshrl.u32 %v341, 7
      %v343 = vsub.s32 1, %v342
      %v344 = vrot.slane %v264, %v343
      %v345 = vlaneseq
      %v346 = vshrl.u32 %v345, 7
      %v347 = vsub.s32 2, %v346
      %v348 = vrot.slane %v264, %v347
      %v349 = vlaneseq
      %v350 = vshrl.u32 %v349, 7
      %v351 = vsub.s32 3, %v350
      %v352 = vrot.slane %v264, %v351
      %v353 = vlaneseq
      %v354 = vshrl.u32 %v353, 7
      %v355 = vsub.s32 4, %v354
      %v356 = vrot.slane %v264, %v355
      %v357 = vlaneseq
      %v358 = vshrl.u32 %v357, 7
      %v359 = vsub.s32 5, %v358
      %v360 = vrot.slane %v264, %v359
      %v361 = vlaneseq
      %v362 = vshrl.u32 %v361, 7
      %v363 = vsub.s32 6, %v362
      %v364 = vrot.slane %v264, %v363
      %v365 = vlaneseq
      %v366 = vshrl.u32 %v365, 7
      %v367 = vsub.s32 7, %v366
      %v368 = vrot.slane %v264, %v367
      %v369 = vlaneseq
      %v370 = vshrl.u32 %v369, 7
      %v371 = vsub.s32 0, %v370
      %v372 = vrot.slane %v265, %v371
      %v373 = vlaneseq
      %v374 = vshrl.u32 %v373, 7
      %v375 = vsub.s32 1, %v374
      %v376 = vrot.slane %v265, %v375
      %v387 = vcombine.low %v340, %v344
      %v388 = vcombine.low %v348, %v352
      %v389 = vcombine.low %v356, %v360
      %v390 = vcombine.low %v364, %v368
      %v391 = vcombine.low %v372, %v376
      %v397 = vmul.f32 %v330, %v387
      %v398 = vmul.f32 %v331, %v388
      %v399 = vmul.f32 %v332, %v389
      %v400 = vmul.f32 %v333, %v390
      %v401 = vmul.f32 %v334, %v391
      %402 = vst [vmem:[#allocation2] sm:$0xff] 0
      %403 = vst [vmem:[#allocation2 + $0x8] sm:$0xff] 0
      %404 = vst [vmem:[#allocation2 + $0x10] sm:$0x3f] 0
      %v410 = vcombine.high %v397, %v397
      %v411 = vcombine.high %v398, %v398
      %v412 = vcombine.high %v399, %v399
      %v413 = vcombine.high %v400, %v400
      %v414 = vcombine.high %v401, %v401
      %v420 = vpack.c.bf16 %v397, %v397
      %v421 = vpack.c.bf16 %v410, %v410
      %v422 = vpack.c.bf16 %v398, %v398
      %v423 = vpack.c.bf16 %v411, %v411
      %v424 = vpack.c.bf16 %v399, %v399
      %v425 = vpack.c.bf16 %v412, %v412
      %v426 = vpack.c.bf16 %v400, %v400
      %v427 = vpack.c.bf16 %v413, %v413
      %v428 = vpack.c.bf16 %v401, %v401
      %v429 = vpack.c.bf16 %v414, %v414
      %v440 = vcombine.low %v420, %v421
      %v441 = vcombine.low %v422, %v423
      %v443 = vunpack.c.l.s4 1983009808
      %v444 = vunpack.c.0.s8 %v443
      %v445 = vlaneseq
      %v446 = vshrl.u32 %v445, 7
      %v447 = vsub.s32 %v444, %v446
      %v448 = vrot.slane %v440, %v447
      %v450 = vunpack.c.l.s4 1983009808
      %v451 = vunpack.c.0.s8 %v450
      %v452 = vlaneseq
      %v453 = vshrl.u32 %v452, 7
      %v454 = vsub.s32 %v451, %v453
      %v455 = vrot.slane %v441, %v454
      %v456 = vcombine.low %v448, %v455
      %v457 = vcombine.low %v424, %v425
      %v458 = vcombine.low %v426, %v427
      %v460 = vunpack.c.l.s4 1983009808
      %v461 = vunpack.c.0.s8 %v460
      %v462 = vlaneseq
      %v463 = vshrl.u32 %v462, 7
      %v464 = vsub.s32 %v461, %v463
      %v465 = vrot.slane %v457, %v464
      %v467 = vunpack.c.l.s4 1983009808
      %v468 = vunpack.c.0.s8 %v467
      %v469 = vlaneseq
      %v470 = vshrl.u32 %v469, 7
      %v471 = vsub.s32 %v468, %v470
      %v472 = vrot.slane %v458, %v471
      %v473 = vcombine.low %v465, %v472
      %v474 = vcombine.low %v428, %v429
      %v476 = vunpack.c.l.s4 1983009808
      %v477 = vunpack.c.0.s8 %v476
      %v478 = vlaneseq
      %v479 = vshrl.u32 %v478, 7
      %v480 = vsub.s32 %v477, %v479
      %v481 = vrot.slane %v474, %v480
      %485 = vst [vmem:[#allocation2 + $0x2] sm:$0xff] %v456
      %486 = vst [vmem:[#allocation2 + $0xa] sm:$0xff] %v473
      %vm487 = vcmask 1041408
      %vm488 = vcmask 27650
      %vm489 = vmor %vm488, %vm487
      %490 = vst.msk [vmem:[#allocation2 + $0x12] sm:$0xf] %vm489, %v481
      %v491 = vld [vmem:[#allocation2] sm:$0xff]
      %v492 = vld [vmem:[#allocation2 + $0x8] sm:$0xff]
      %v493 = vld [vmem:[#allocation2 + $0x10] sm:$0x3f]
      %v494 = vld [vmem:[%s3] sm:$0x3]
      %s495 = scalar_lea.vmem %s3, 2
      %v496 = vld [vmem:[%s495] sm:$0x3]
      %v500 = vcombine.high %v491, %v491
      %v502 = vunpack.c.l.s4 1983009808
      %v503 = vunpack.c.0.s8 %v502
      %v504 = vlaneseq
      %v505 = vshrl.u32 %v504, 7
      %v506 = vsub.s32 %v503, %v505
      %v507 = vrot.slane %v491, %v506
      %v509 = vunpack.c.l.s4 1983009808
      %v510 = vunpack.c.0.s8 %v509
      %v511 = vlaneseq
      %v512 = vshrl.u32 %v511, 7
      %v513 = vsub.s32 %v510, %v512
      %v514 = vrot.slane %v500, %v513
      %v515 = vcombine.high %v507, %v507
      %v516 = vcombine.high %v514, %v514
      %v517 = vcombine.high %v492, %v492
      %v519 = vunpack.c.l.s4 1983009808
      %v520 = vunpack.c.0.s8 %v519
      %v521 = vlaneseq
      %v522 = vshrl.u32 %v521, 7
      %v523 = vsub.s32 %v520, %v522
      %v524 = vrot.slane %v492, %v523
      %v526 = vunpack.c.l.s4 1983009808
      %v527 = vunpack.c.0.s8 %v526
      %v528 = vlaneseq
      %v529 = vshrl.u32 %v528, 7
      %v530 = vsub.s32 %v527, %v529
      %v531 = vrot.slane %v517, %v530
      %v532 = vcombine.high %v524, %v524
      %v533 = vcombine.high %v531, %v531
      %v535 = vunpack.c.l.s4 1983009808
      %v536 = vunpack.c.0.s8 %v535
      %v537 = vlaneseq
      %v538 = vshrl.u32 %v537, 7
      %v539 = vsub.s32 %v536, %v538
      %v540 = vrot.slane %v493, %v539
      %v541 = vcombine.high %v540, %v540
      %542 = vrot.lane.b32.xlu0 %v507, 34
      %v543 = vpop.permute.xlu0 %542
      %544 = vrot.lane.b32.xlu0 %v515, 34
      %v545 = vpop.permute.xlu0 %544
      %546 = vrot.lane.b32.xlu0 %v514, 34
      %v547 = vpop.permute.xlu0 %546
      %548 = vrot.lane.b32.xlu0 %v516, 34
      %v549 = vpop.permute.xlu0 %548
      %550 = vrot.lane.b32.xlu0 %v524, 34
      %v551 = vpop.permute.xlu0 %550
      %552 = vrot.lane.b32.xlu0 %v532, 34
      %v553 = vpop.permute.xlu0 %552
      %554 = vrot.lane.b32.xlu0 %v531, 34
      %v555 = vpop.permute.xlu0 %554
      %556 = vrot.lane.b32.xlu0 %v533, 34
      %v557 = vpop.permute.xlu0 %556
      %558 = vrot.lane.b32.xlu0 %v540, 34
      %v559 = vpop.permute.xlu0 %558
      %560 = vrot.lane.b32.xlu0 %v541, 34
      %v561 = vpop.permute.xlu0 %560
      %vm562 = vcmask 277504
      %v563 = vsel %vm562, %v543, %v545
      %v564 = vsel %vm562, %v545, %v547
      %v565 = vsel %vm562, %v547, %v549
      %v566 = vsel %vm562, %v549, %v551
      %v567 = vsel %vm562, %v551, %v553
      %v568 = vsel %vm562, %v553, %v555
      %v569 = vsel %vm562, %v555, %v557
      %v570 = vsel %vm562, %v557, %v559
      %v571 = vsel %vm562, %v559, %v561
      %vm572 = vcmask 31744
      %v574 = vsel %vm572, %v496, 0
      %v577 = vsel %vm487, %v563, 0
      %v580 = vsel %vm487, %v564, 0
      %v583 = vsel %vm487, %v565, 0
      %v586 = vsel %vm487, %v566, 0
      %v589 = vsel %vm487, %v567, 0
      %v592 = vsel %vm487, %v568, 0
      %v595 = vsel %vm487, %v569, 0
      %v598 = vsel %vm487, %v570, 0
      %v601 = vsel %vm487, %v571, 0
      %v604 = vsel %vm487, %v561, 0
      %606 = vmatprep.subr.bf16.mxu0 0
      %607 = vmatpush1.bf16.msra.mxu0 0
      %608 = vmatprep.subr.bf16.mxu0 0
      %609 = vmatpush1.bf16.msra.mxu0 0
      %610 = vmatprep.subr.bf16.mxu0 0
      %611 = vmatpush1.bf16.msra.mxu0 0
      %612 = vmatprep.subr.bf16.mxu0 0
      %613 = vmatpush1.bf16.msra.mxu0 0
      %614 = vmatprep.subr.bf16.mxu0 0
      %615 = vmatpush1.bf16.msra.mxu0 0
      %616 = vmatprep.subr.bf16.mxu0 0
      %617 = vmatpush1.bf16.msra.mxu0 0
      %618 = vmatprep.subr.bf16.mxu0 0
      %619 = vmatpush1.bf16.msra.mxu0 0
      %620 = vmatprep.subr.bf16.mxu0 %v580
      %621 = vmatpush1.bf16.msra.mxu0 %v577
      %622 = vmatprep.subr.bf16.mxu0 0
      %623 = vmatpush2.bf16.msra.mxu0 0
      %624 = vmatprep.subr.bf16.mxu0 0
      %625 = vmatpush2.bf16.msra.mxu0 0
      %626 = vmatprep.subr.bf16.mxu0 0
      %627 = vmatpush2.bf16.msra.mxu0 0
      %628 = vmatprep.subr.bf16.mxu0 0
      %629 = vmatpush2.bf16.msra.mxu0 0
      %630 = vmatprep.subr.bf16.mxu0 0
      %631 = vmatpush2.bf16.msra.mxu0 0
      %632 = vmatprep.subr.bf16.mxu0 0
      %633 = vmatpush2.bf16.msra.mxu0 0
      %634 = vmatprep.subr.bf16.mxu0 0
      %635 = vmatpush2.bf16.msra.mxu0 0
      %636 = vmatprep.subr.bf16.mxu0 0
      %637 = vmatpush2.bf16.msra.mxu0 0
      %638 = vmatprep.mubr.bf16.mxu0 0
      %639 = vmatmul.mubr.bf16.gmra.mxu0 %v574
      %v640 = vpop.f32.mrf.mxu0
      %v641 = vadd.f32 0.0, %v640
      %v642 = vpop.f32.mrf.mxu0
      %v643 = vadd.f32 0.0, %v642
      %v644 = vpop.f32.mrf.mxu0
      %v645 = vpop.f32.mrf.mxu0
      %646 = vdwg.mxu0
      %647 = vmatprep.subr.bf16.mxu0 0
      %648 = vmatpush1.bf16.msra.mxu0 0
      %649 = vmatprep.subr.bf16.mxu0 0
      %650 = vmatpush1.bf16.msra.mxu0 0
      %651 = vmatprep.subr.bf16.mxu0 0
      %652 = vmatpush1.bf16.msra.mxu0 0
      %653 = vmatprep.subr.bf16.mxu0 0
      %654 = vmatpush1.bf16.msra.mxu0 0
      %655 = vmatprep.subr.bf16.mxu0 0
      %656 = vmatpush1.bf16.msra.mxu0 0
      %657 = vmatprep.subr.bf16.mxu0 0
      %658 = vmatpush1.bf16.msra.mxu0 0
      %659 = vmatprep.subr.bf16.mxu0 0
      %660 = vmatpush1.bf16.msra.mxu0 0
      %661 = vmatprep.subr.bf16.mxu0 %v586
      %662 = vmatpush1.bf16.msra.mxu0 %v583
      %663 = vmatprep.subr.bf16.mxu0 0
      %664 = vmatpush2.bf16.msra.mxu0 0
      %665 = vmatprep.subr.bf16.mxu0 0
      %666 = vmatpush2.bf16.msra.mxu0 0
      %667 = vmatprep.subr.bf16.mxu0 0
      %668 = vmatpush2.bf16.msra.mxu0 0
      %669 = vmatprep.subr.bf16.mxu0 0
      %670 = vmatpush2.bf16.msra.mxu0 0
      %671 = vmatprep.subr.bf16.mxu0 0
      %672 = vmatpush2.bf16.msra.mxu0 0
      %673 = vmatprep.subr.bf16.mxu0 0
      %674 = vmatpush2.bf16.msra.mxu0 0
      %675 = vmatprep.subr.bf16.mxu0 0
      %676 = vmatpush2.bf16.msra.mxu0 0
      %677 = vmatprep.subr.bf16.mxu0 0
      %678 = vmatpush2.bf16.msra.mxu0 0
      %679 = vmatprep.mubr.bf16.mxu0 0
      %680 = vmatmul.mubr.bf16.gmra.mxu0 %v574
      %v681 = vpop.f32.mrf.mxu0
      %v682 = vadd.f32 0.0, %v681
      %v683 = vpop.f32.mrf.mxu0
      %v684 = vadd.f32 0.0, %v683
      %v685 = vpop.f32.mrf.mxu0
      %v686 = vpop.f32.mrf.mxu0
      %687 = vdwg.mxu0
      %688 = vmatprep.subr.bf16.mxu0 0
      %689 = vmatpush1.bf16.msra.mxu0 0
      %690 = vmatprep.subr.bf16.mxu0 0
      %691 = vmatpush1.bf16.msra.mxu0 0
      %692 = vmatprep.subr.bf16.mxu0 0
      %693 = vmatpush1.bf16.msra.mxu0 0
      %694 = vmatprep.subr.bf16.mxu0 0
      %695 = vmatpush1.bf16.msra.mxu0 0
      %696 = vmatprep.subr.bf16.mxu0 0
      %697 = vmatpush1.bf16.msra.mxu0 0
      %698 = vmatprep.subr.bf16.mxu0 0
      %699 = vmatpush1.bf16.msra.mxu0 0
      %700 = vmatprep.subr.bf16.mxu0 0
      %701 = vmatpush1.bf16.msra.mxu0 0
      %702 = vmatprep.subr.bf16.mxu0 %v592
      %703 = vmatpush1.bf16.msra.mxu0 %v589
      %704 = vmatprep.subr.bf16.mxu0 0
      %705 = vmatpush2.bf16.msra.mxu0 0
      %706 = vmatprep.subr.bf16.mxu0 0
      %707 = vmatpush2.bf16.msra.mxu0 0
      %708 = vmatprep.subr.bf16.mxu0 0
      %709 = vmatpush2.bf16.msra.mxu0 0
      %710 = vmatprep.subr.bf16.mxu0 0
      %711 = vmatpush2.bf16.msra.mxu0 0
      %712 = vmatprep.subr.bf16.mxu0 0
      %713 = vmatpush2.bf16.msra.mxu0 0
      %714 = vmatprep.subr.bf16.mxu0 0
      %715 = vmatpush2.bf16.msra.mxu0 0
      %716 = vmatprep.subr.bf16.mxu0 0
      %717 = vmatpush2.bf16.msra.mxu0 0
      %718 = vmatprep.subr.bf16.mxu0 0
      %719 = vmatpush2.bf16.msra.mxu0 0
      %720 = vmatprep.mubr.bf16.mxu0 0
      %721 = vmatmul.mubr.bf16.gmra.mxu0 %v574
      %v722 = vpop.f32.mrf.mxu0
      %v723 = vadd.f32 0.0, %v722
      %v724 = vpop.f32.mrf.mxu0
      %v725 = vadd.f32 0.0, %v724
      %v726 = vpop.f32.mrf.mxu0
      %v727 = vpop.f32.mrf.mxu0
      %728 = vdwg.mxu0
      %729 = vmatprep.subr.bf16.mxu0 0
      %730 = vmatpush1.bf16.msra.mxu0 0
      %731 = vmatprep.subr.bf16.mxu0 0
      %732 = vmatpush1.bf16.msra.mxu0 0
      %733 = vmatprep.subr.bf16.mxu0 0
      %734 = vmatpush1.bf16.msra.mxu0 0
      %735 = vmatprep.subr.bf16.mxu0 0
      %736 = vmatpush1.bf16.msra.mxu0 0
      %737 = vmatprep.subr.bf16.mxu0 0
      %738 = vmatpush1.bf16.msra.mxu0 0
      %739 = vmatprep.subr.bf16.mxu0 0
      %740 = vmatpush1.bf16.msra.mxu0 0
      %741 = vmatprep.subr.bf16.mxu0 0
      %742 = vmatpush1.bf16.msra.mxu0 0
      %743 = vmatprep.subr.bf16.mxu0 %v598
      %744 = vmatpush1.bf16.msra.mxu0 %v595
      %745 = vmatprep.subr.bf16.mxu0 0
      %746 = vmatpush2.bf16.msra.mxu0 0
      %747 = vmatprep.subr.bf16.mxu0 0
      %748 = vmatpush2.bf16.msra.mxu0 0
      %749 = vmatprep.subr.bf16.mxu0 0
      %750 = vmatpush2.bf16.msra.mxu0 0
      %751 = vmatprep.subr.bf16.mxu0 0
      %752 = vmatpush2.bf16.msra.mxu0 0
      %753 = vmatprep.subr.bf16.mxu0 0
      %754 = vmatpush2.bf16.msra.mxu0 0
      %755 = vmatprep.subr.bf16.mxu0 0
      %756 = vmatpush2.bf16.msra.mxu0 0
      %757 = vmatprep.subr.bf16.mxu0 0
      %758 = vmatpush2.bf16.msra.mxu0 0
      %759 = vmatprep.subr.bf16.mxu0 0
      %760 = vmatpush2.bf16.msra.mxu0 0
      %761 = vmatprep.mubr.bf16.mxu0 0
      %762 = vmatmul.mubr.bf16.gmra.mxu0 %v574
      %v763 = vpop.f32.mrf.mxu0
      %v764 = vadd.f32 0.0, %v763
      %v765 = vpop.f32.mrf.mxu0
      %v766 = vadd.f32 0.0, %v765
      %v767 = vpop.f32.mrf.mxu0
      %v768 = vpop.f32.mrf.mxu0
      %769 = vdwg.mxu0
      %770 = vmatprep.subr.bf16.mxu0 0
      %771 = vmatpush1.bf16.msra.mxu0 0
      %772 = vmatprep.subr.bf16.mxu0 0
      %773 = vmatpush1.bf16.msra.mxu0 0
      %774 = vmatprep.subr.bf16.mxu0 0
      %775 = vmatpush1.bf16.msra.mxu0 0
      %776 = vmatprep.subr.bf16.mxu0 0
      %777 = vmatpush1.bf16.msra.mxu0 0
      %778 = vmatprep.subr.bf16.mxu0 0
      %779 = vmatpush1.bf16.msra.mxu0 0
      %780 = vmatprep.subr.bf16.mxu0 0
      %781 = vmatpush1.bf16.msra.mxu0 0
      %782 = vmatprep.subr.bf16.mxu0 0
      %783 = vmatpush1.bf16.msra.mxu0 0
      %784 = vmatprep.subr.bf16.mxu0 %v604
      %785 = vmatpush1.bf16.msra.mxu0 %v601
      %786 = vmatprep.subr.bf16.mxu0 0
      %787 = vmatpush2.bf16.msra.mxu0 0
      %788 = vmatprep.subr.bf16.mxu0 0
      %789 = vmatpush2.bf16.msra.mxu0 0
      %790 = vmatprep.subr.bf16.mxu0 0
      %791 = vmatpush2.bf16.msra.mxu0 0
      %792 = vmatprep.subr.bf16.mxu0 0
      %793 = vmatpush2.bf16.msra.mxu0 0
      %794 = vmatprep.subr.bf16.mxu0 0
      %795 = vmatpush2.bf16.msra.mxu0 0
      %796 = vmatprep.subr.bf16.mxu0 0
      %797 = vmatpush2.bf16.msra.mxu0 0
      %798 = vmatprep.subr.bf16.mxu0 0
      %799 = vmatpush2.bf16.msra.mxu0 0
      %800 = vmatprep.subr.bf16.mxu0 0
      %801 = vmatpush2.bf16.msra.mxu0 0
      %802 = vmatprep.mubr.bf16.mxu0 0
      %803 = vmatmul.mubr.bf16.gmra.mxu0 %v574
      %v804 = vpop.f32.mrf.mxu0
      %v805 = vadd.f32 0.0, %v804
      %v806 = vpop.f32.mrf.mxu0
      %v807 = vadd.f32 0.0, %v806
      %v808 = vpop.f32.mrf.mxu0
      %v809 = vpop.f32.mrf.mxu0
      %810 = vdwg.mxu0
      %811 = vrot.lane.b32.xlu0 %v507, 35
      %v812 = vpop.permute.xlu0 %811
      %813 = vrot.lane.b32.xlu0 %v515, 35
      %v814 = vpop.permute.xlu0 %813
      %815 = vrot.lane.b32.xlu0 %v514, 35
      %v816 = vpop.permute.xlu0 %815
      %817 = vrot.lane.b32.xlu0 %v516, 35
      %v818 = vpop.permute.xlu0 %817
      %819 = vrot.lane.b32.xlu0 %v524, 35
      %v820 = vpop.permute.xlu0 %819
      %821 = vrot.lane.b32.xlu0 %v532, 35
      %v822 = vpop.permute.xlu0 %821
      %823 = vrot.lane.b32.xlu0 %v531, 35
      %v824 = vpop.permute.xlu0 %823
      %825 = vrot.lane.b32.xlu0 %v533, 35
      %v826 = vpop.permute.xlu0 %825
      %827 = vrot.lane.b32.xlu0 %v540, 35
      %v828 = vpop.permute.xlu0 %827
      %829 = vrot.lane.b32.xlu0 %v541, 35
      %v830 = vpop.permute.xlu0 %829
      %vm831 = vcmask 285696
      %v832 = vsel %vm831, %v812, %v814
      %v833 = vsel %vm831, %v814, %v816
      %v834 = vsel %vm831, %v816, %v818
      %v835 = vsel %vm831, %v818, %v820
      %v836 = vsel %vm831, %v820, %v822
      %v837 = vsel %vm831, %v822, %v824
      %v838 = vsel %vm831, %v824, %v826
      %v839 = vsel %vm831, %v826, %v828
      %v840 = vsel %vm831, %v828, %v830
      %v842 = vsel %vm572, %v494, 0
      %v845 = vsel %vm487, %v832, 0
      %v848 = vsel %vm487, %v833, 0
      %v851 = vsel %vm487, %v834, 0
      %v854 = vsel %vm487, %v835, 0
      %v857 = vsel %vm487, %v836, 0
      %v860 = vsel %vm487, %v837, 0
      %v863 = vsel %vm487, %v838, 0
      %v866 = vsel %vm487, %v839, 0
      %v869 = vsel %vm487, %v840, 0
      %v872 = vsel %vm487, %v830, 0
      %874 = vmatprep.subr.bf16.mxu0 0
      %875 = vmatpush1.bf16.msra.mxu0 0
      %876 = vmatprep.subr.bf16.mxu0 0
      %877 = vmatpush1.bf16.msra.mxu0 0
      %878 = vmatprep.subr.bf16.mxu0 0
      %879 = vmatpush1.bf16.msra.mxu0 0
      %880 = vmatprep.subr.bf16.mxu0 0
      %881 = vmatpush1.bf16.msra.mxu0 0
      %882 = vmatprep.subr.bf16.mxu0 0
      %883 = vmatpush1.bf16.msra.mxu0 0
      %884 = vmatprep.subr.bf16.mxu0 0
      %885 = vmatpush1.bf16.msra.mxu0 0
      %886 = vmatprep.subr.bf16.mxu0 0
      %887 = vmatpush1.bf16.msra.mxu0 0
      %888 = vmatprep.subr.bf16.mxu0 %v848
      %889 = vmatpush1.bf16.msra.mxu0 %v845
      %890 = vmatprep.subr.bf16.mxu0 0
      %891 = vmatpush2.bf16.msra.mxu0 0
      %892 = vmatprep.subr.bf16.mxu0 0
      %893 = vmatpush2.bf16.msra.mxu0 0
      %894 = vmatprep.subr.bf16.mxu0 0
      %895 = vmatpush2.bf16.msra.mxu0 0
      %896 = vmatprep.subr.bf16.mxu0 0
      %897 = vmatpush2.bf16.msra.mxu0 0
      %898 = vmatprep.subr.bf16.mxu0 0
      %899 = vmatpush2.bf16.msra.mxu0 0
      %900 = vmatprep.subr.bf16.mxu0 0
      %901 = vmatpush2.bf16.msra.mxu0 0
      %902 = vmatprep.subr.bf16.mxu0 0
      %903 = vmatpush2.bf16.msra.mxu0 0
      %904 = vmatprep.subr.bf16.mxu0 0
      %905 = vmatpush2.bf16.msra.mxu0 0
      %906 = vmatprep.mubr.bf16.mxu0 0
      %907 = vmatmul.mubr.bf16.gmra.mxu0 %v842
      %v908 = vpop.f32.mrf.mxu0
      %v909 = vadd.f32 %v641, %v908
      %v910 = vpop.f32.mrf.mxu0
      %v911 = vadd.f32 %v643, %v910
      %v912 = vpop.f32.mrf.mxu0
      %v913 = vpop.f32.mrf.mxu0
      %914 = vdwg.mxu0
      %915 = vmatprep.subr.bf16.mxu0 0
      %916 = vmatpush1.bf16.msra.mxu0 0
      %917 = vmatprep.subr.bf16.mxu0 0
      %918 = vmatpush1.bf16.msra.mxu0 0
      %919 = vmatprep.subr.bf16.mxu0 0
      %920 = vmatpush1.bf16.msra.mxu0 0
      %921 = vmatprep.subr.bf16.mxu0 0
      %922 = vmatpush1.bf16.msra.mxu0 0
      %923 = vmatprep.subr.bf16.mxu0 0
      %924 = vmatpush1.bf16.msra.mxu0 0
      %925 = vmatprep.subr.bf16.mxu0 0
      %926 = vmatpush1.bf16.msra.mxu0 0
      %927 = vmatprep.subr.bf16.mxu0 0
      %928 = vmatpush1.bf16.msra.mxu0 0
      %929 = vmatprep.subr.bf16.mxu0 %v854
      %930 = vmatpush1.bf16.msra.mxu0 %v851
      %931 = vmatprep.subr.bf16.mxu0 0
      %932 = vmatpush2.bf16.msra.mxu0 0
      %933 = vmatprep.subr.bf16.mxu0 0
      %934 = vmatpush2.bf16.msra.mxu0 0
      %935 = vmatprep.subr.bf16.mxu0 0
      %936 = vmatpush2.bf16.msra.mxu0 0
      %937 = vmatprep.subr.bf16.mxu0 0
      %938 = vmatpush2.bf16.msra.mxu0 0
      %939 = vmatprep.subr.bf16.mxu0 0
      %940 = vmatpush2.bf16.msra.mxu0 0
      %941 = vmatprep.subr.bf16.mxu0 0
      %942 = vmatpush2.bf16.msra.mxu0 0
      %943 = vmatprep.subr.bf16.mxu0 0
      %944 = vmatpush2.bf16.msra.mxu0 0
      %945 = vmatprep.subr.bf16.mxu0 0
      %946 = vmatpush2.bf16.msra.mxu0 0
      %947 = vmatprep.mubr.bf16.mxu0 0
      %948 = vmatmul.mubr.bf16.gmra.mxu0 %v842
      %v949 = vpop.f32.mrf.mxu0
      %v950 = vadd.f32 %v682, %v949
      %v951 = vpop.f32.mrf.mxu0
      %v952 = vadd.f32 %v684, %v951
      %v953 = vpop.f32.mrf.mxu0
      %v954 = vpop.f32.mrf.mxu0
      %955 = vdwg.mxu0
      %956 = vmatprep.subr.bf16.mxu0 0
      %957 = vmatpush1.bf16.msra.mxu0 0
      %958 = vmatprep.subr.bf16.mxu0 0
      %959 = vmatpush1.bf16.msra.mxu0 0
      %960 = vmatprep.subr.bf16.mxu0 0
      %961 = vmatpush1.bf16.msra.mxu0 0
      %962 = vmatprep.subr.bf16.mxu0 0
      %963 = vmatpush1.bf16.msra.mxu0 0
      %964 = vmatprep.subr.bf16.mxu0 0
      %965 = vmatpush1.bf16.msra.mxu0 0
      %966 = vmatprep.subr.bf16.mxu0 0
      %967 = vmatpush1.bf16.msra.mxu0 0
      %968 = vmatprep.subr.bf16.mxu0 0
      %969 = vmatpush1.bf16.msra.mxu0 0
      %970 = vmatprep.subr.bf16.mxu0 %v860
      %971 = vmatpush1.bf16.msra.mxu0 %v857
      %972 = vmatprep.subr.bf16.mxu0 0
      %973 = vmatpush2.bf16.msra.mxu0 0
      %974 = vmatprep.subr.bf16.mxu0 0
      %975 = vmatpush2.bf16.msra.mxu0 0
      %976 = vmatprep.subr.bf16.mxu0 0
      %977 = vmatpush2.bf16.msra.mxu0 0
      %978 = vmatprep.subr.bf16.mxu0 0
      %979 = vmatpush2.bf16.msra.mxu0 0
      %980 = vmatprep.subr.bf16.mxu0 0
      %981 = vmatpush2.bf16.msra.mxu0 0
      %982 = vmatprep.subr.bf16.mxu0 0
      %983 = vmatpush2.bf16.msra.mxu0 0
      %984 = vmatprep.subr.bf16.mxu0 0
      %985 = vmatpush2.bf16.msra.mxu0 0
      %986 = vmatprep.subr.bf16.mxu0 0
      %987 = vmatpush2.bf16.msra.mxu0 0
      %988 = vmatprep.mubr.bf16.mxu0 0
      %989 = vmatmul.mubr.bf16.gmra.mxu0 %v842
      %v990 = vpop.f32.mrf.mxu0
      %v991 = vadd.f32 %v723, %v990
      %v992 = vpop.f32.mrf.mxu0
      %v993 = vadd.f32 %v725, %v992
      %v994 = vpop.f32.mrf.mxu0
      %v995 = vpop.f32.mrf.mxu0
      %996 = vdwg.mxu0
      %997 = vmatprep.subr.bf16.mxu0 0
      %998 = vmatpush1.bf16.msra.mxu0 0
      %999 = vmatprep.subr.bf16.mxu0 0
      %1000 = vmatpush1.bf16.msra.mxu0 0
      %1001 = vmatprep.subr.bf16.mxu0 0
      %1002 = vmatpush1.bf16.msra.mxu0 0
      %1003 = vmatprep.subr.bf16.mxu0 0
      %1004 = vmatpush1.bf16.msra.mxu0 0
      %1005 = vmatprep.subr.bf16.mxu0 0
      %1006 = vmatpush1.bf16.msra.mxu0 0
      %1007 = vmatprep.subr.bf16.mxu0 0
      %1008 = vmatpush1.bf16.msra.mxu0 0
      %1009 = vmatprep.subr.bf16.mxu0 0
      %1010 = vmatpush1.bf16.msra.mxu0 0
      %1011 = vmatprep.subr.bf16.mxu0 %v866
      %1012 = vmatpush1.bf16.msra.mxu0 %v863
      %1013 = vmatprep.subr.bf16.mxu0 0
      %1014 = vmatpush2.bf16.msra.mxu0 0
      %1015 = vmatprep.subr.bf16.mxu0 0
      %1016 = vmatpush2.bf16.msra.mxu0 0
      %1017 = vmatprep.subr.bf16.mxu0 0
      %1018 = vmatpush2.bf16.msra.mxu0 0
      %1019 = vmatprep.subr.bf16.mxu0 0
      %1020 = vmatpush2.bf16.msra.mxu0 0
      %1021 = vmatprep.subr.bf16.mxu0 0
      %1022 = vmatpush2.bf16.msra.mxu0 0
      %1023 = vmatprep.subr.bf16.mxu0 0
      %1024 = vmatpush2.bf16.msra.mxu0 0
      %1025 = vmatprep.subr.bf16.mxu0 0
      %1026 = vmatpush2.bf16.msra.mxu0 0
      %1027 = vmatprep.subr.bf16.mxu0 0
      %1028 = vmatpush2.bf16.msra.mxu0 0
      %1029 = vmatprep.mubr.bf16.mxu0 0
      %1030 = vmatmul.mubr.bf16.gmra.mxu0 %v842
      %v1031 = vpop.f32.mrf.mxu0
      %v1032 = vadd.f32 %v764, %v1031
      %v1033 = vpop.f32.mrf.mxu0
      %v1034 = vadd.f32 %v766, %v1033
      %v1035 = vpop.f32.mrf.mxu0
      %v1036 = vpop.f32.mrf.mxu0
      %1037 = vdwg.mxu0
      %1038 = vmatprep.subr.bf16.mxu0 0
      %1039 = vmatpush1.bf16.msra.mxu0 0
      %1040 = vmatprep.subr.bf16.mxu0 0
      %1041 = vmatpush1.bf16.msra.mxu0 0
      %1042 = vmatprep.subr.bf16.mxu0 0
      %1043 = vmatpush1.bf16.msra.mxu0 0
      %1044 = vmatprep.subr.bf16.mxu0 0
      %1045 = vmatpush1.bf16.msra.mxu0 0
      %1046 = vmatprep.subr.bf16.mxu0 0
      %1047 = vmatpush1.bf16.msra.mxu0 0
      %1048 = vmatprep.subr.bf16.mxu0 0
      %1049 = vmatpush1.bf16.msra.mxu0 0
      %1050 = vmatprep.subr.bf16.mxu0 0
      %1051 = vmatpush1.bf16.msra.mxu0 0
      %1052 = vmatprep.subr.bf16.mxu0 %v872
      %1053 = vmatpush1.bf16.msra.mxu0 %v869
      %1054 = vmatprep.subr.bf16.mxu0 0
      %1055 = vmatpush2.bf16.msra.mxu0 0
      %1056 = vmatprep.subr.bf16.mxu0 0
      %1057 = vmatpush2.bf16.msra.mxu0 0
      %1058 = vmatprep.subr.bf16.mxu0 0
      %1059 = vmatpush2.bf16.msra.mxu0 0
      %1060 = vmatprep.subr.bf16.mxu0 0
      %1061 = vmatpush2.bf16.msra.mxu0 0
      %1062 = vmatprep.subr.bf16.mxu0 0
      %1063 = vmatpush2.bf16.msra.mxu0 0
      %1064 = vmatprep.subr.bf16.mxu0 0
      %1065 = vmatpush2.bf16.msra.mxu0 0
      %1066 = vmatprep.subr.bf16.mxu0 0
      %1067 = vmatpush2.bf16.msra.mxu0 0
      %1068 = vmatprep.subr.bf16.mxu0 0
      %1069 = vmatpush2.bf16.msra.mxu0 0
      %1070 = vmatprep.mubr.bf16.mxu0 0
      %1071 = vmatmul.mubr.bf16.gmra.mxu0 %v842
      %v1072 = vpop.f32.mrf.mxu0
      %v1073 = vadd.f32 %v805, %v1072
      %v1074 = vpop.f32.mrf.mxu0
      %v1075 = vadd.f32 %v807, %v1074
      %v1076 = vpop.f32.mrf.mxu0
      %v1077 = vpop.f32.mrf.mxu0
      %1078 = vdwg.mxu0
      %s1079 = scalar_lea.vmem %s3, 4
      %v1080 = vld [vmem:[%s1079] sm:$0x3]
      %1081 = vrot.lane.b32.xlu0 %v507, 33
      %v1082 = vpop.permute.xlu0 %1081
      %1083 = vrot.lane.b32.xlu0 %v515, 33
      %v1084 = vpop.permute.xlu0 %1083
      %1085 = vrot.lane.b32.xlu0 %v514, 33
      %v1086 = vpop.permute.xlu0 %1085
      %1087 = vrot.lane.b32.xlu0 %v516, 33
      %v1088 = vpop.permute.xlu0 %1087
      %1089 = vrot.lane.b32.xlu0 %v524, 33
      %v1090 = vpop.permute.xlu0 %1089
      %1091 = vrot.lane.b32.xlu0 %v532, 33
      %v1092 = vpop.permute.xlu0 %1091
      %1093 = vrot.lane.b32.xlu0 %v531, 33
      %v1094 = vpop.permute.xlu0 %1093
      %1095 = vrot.lane.b32.xlu0 %v533, 33
      %v1096 = vpop.permute.xlu0 %1095
      %1097 = vrot.lane.b32.xlu0 %v540, 33
      %v1098 = vpop.permute.xlu0 %1097
      %1099 = vrot.lane.b32.xlu0 %v541, 33
      %v1100 = vpop.permute.xlu0 %1099
      %vm1101 = vcmask 269312
      %v1102 = vsel %vm1101, %v1082, %v1084
      %v1103 = vsel %vm1101, %v1084, %v1086
      %v1104 = vsel %vm1101, %v1086, %v1088
      %v1105 = vsel %vm1101, %v1088, %v1090
      %v1106 = vsel %vm1101, %v1090, %v1092
      %v1107 = vsel %vm1101, %v1092, %v1094
      %v1108 = vsel %vm1101, %v1094, %v1096
      %v1109 = vsel %vm1101, %v1096, %v1098
      %v1110 = vsel %vm1101, %v1098, %v1100
      %v1112 = vsel %vm572, %v1080, 0
      %v1115 = vsel %vm487, %v1102, 0
      %v1118 = vsel %vm487, %v1103, 0
      %v1121 = vsel %vm487, %v1104, 0
      %v1124 = vsel %vm487, %v1105, 0
      %v1127 = vsel %vm487, %v1106, 0
      %v1130 = vsel %vm487, %v1107, 0
      %v1133 = vsel %vm487, %v1108, 0
      %v1136 = vsel %vm487, %v1109, 0
      %v1139 = vsel %vm487, %v1110, 0
      %v1142 = vsel %vm487, %v1100, 0
      %1144 = vmatprep.subr.bf16.mxu0 0
      %1145 = vmatpush1.bf16.msra.mxu0 0
      %1146 = vmatprep.subr.bf16.mxu0 0
      %1147 = vmatpush1.bf16.msra.mxu0 0
      %1148 = vmatprep.subr.bf16.mxu0 0
      %1149 = vmatpush1.bf16.msra.mxu0 0
      %1150 = vmatprep.subr.bf16.mxu0 0
      %1151 = vmatpush1.bf16.msra.mxu0 0
      %1152 = vmatprep.subr.bf16.mxu0 0
      %1153 = vmatpush1.bf16.msra.mxu0 0
      %1154 = vmatprep.subr.bf16.mxu0 0
      %1155 = vmatpush1.bf16.msra.mxu0 0
      %1156 = vmatprep.subr.bf16.mxu0 0
      %1157 = vmatpush1.bf16.msra.mxu0 0
      %1158 = vmatprep.subr.bf16.mxu0 %v1118
      %1159 = vmatpush1.bf16.msra.mxu0 %v1115
      %1160 = vmatprep.subr.bf16.mxu0 0
      %1161 = vmatpush2.bf16.msra.mxu0 0
      %1162 = vmatprep.subr.bf16.mxu0 0
      %1163 = vmatpush2.bf16.msra.mxu0 0
      %1164 = vmatprep.subr.bf16.mxu0 0
      %1165 = vmatpush2.bf16.msra.mxu0 0
      %1166 = vmatprep.subr.bf16.mxu0 0
      %1167 = vmatpush2.bf16.msra.mxu0 0
      %1168 = vmatprep.subr.bf16.mxu0 0
      %1169 = vmatpush2.bf16.msra.mxu0 0
      %1170 = vmatprep.subr.bf16.mxu0 0
      %1171 = vmatpush2.bf16.msra.mxu0 0
      %1172 = vmatprep.subr.bf16.mxu0 0
      %1173 = vmatpush2.bf16.msra.mxu0 0
      %1174 = vmatprep.subr.bf16.mxu0 0
      %1175 = vmatpush2.bf16.msra.mxu0 0
      %1176 = vmatprep.mubr.bf16.mxu0 0
      %1177 = vmatmul.mubr.bf16.gmra.mxu0 %v1112
      %v1178 = vpop.f32.mrf.mxu0
      %v1179 = vadd.f32 0.0, %v1178
      %v1180 = vpop.f32.mrf.mxu0
      %v1181 = vadd.f32 0.0, %v1180
      %v1182 = vpop.f32.mrf.mxu0
      %v1183 = vpop.f32.mrf.mxu0
      %1184 = vdwg.mxu0
      %1185 = vmatprep.subr.bf16.mxu0 0
      %1186 = vmatpush1.bf16.msra.mxu0 0
      %1187 = vmatprep.subr.bf16.mxu0 0
      %1188 = vmatpush1.bf16.msra.mxu0 0
      %1189 = vmatprep.subr.bf16.mxu0 0
      %1190 = vmatpush1.bf16.msra.mxu0 0
      %1191 = vmatprep.subr.bf16.mxu0 0
      %1192 = vmatpush1.bf16.msra.mxu0 0
      %1193 = vmatprep.subr.bf16.mxu0 0
      %1194 = vmatpush1.bf16.msra.mxu0 0
      %1195 = vmatprep.subr.bf16.mxu0 0
      %1196 = vmatpush1.bf16.msra.mxu0 0
      %1197 = vmatprep.subr.bf16.mxu0 0
      %1198 = vmatpush1.bf16.msra.mxu0 0
      %1199 = vmatprep.subr.bf16.mxu0 %v1124
      %1200 = vmatpush1.bf16.msra.mxu0 %v1121
      %1201 = vmatprep.subr.bf16.mxu0 0
      %1202 = vmatpush2.bf16.msra.mxu0 0
      %1203 = vmatprep.subr.bf16.mxu0 0
      %1204 = vmatpush2.bf16.msra.mxu0 0
      %1205 = vmatprep.subr.bf16.mxu0 0
      %1206 = vmatpush2.bf16.msra.mxu0 0
      %1207 = vmatprep.subr.bf16.mxu0 0
      %1208 = vmatpush2.bf16.msra.mxu0 0
      %1209 = vmatprep.subr.bf16.mxu0 0
      %1210 = vmatpush2.bf16.msra.mxu0 0
      %1211 = vmatprep.subr.bf16.mxu0 0
      %1212 = vmatpush2.bf16.msra.mxu0 0
      %1213 = vmatprep.subr.bf16.mxu0 0
      %1214 = vmatpush2.bf16.msra.mxu0 0
      %1215 = vmatprep.subr.bf16.mxu0 0
      %1216 = vmatpush2.bf16.msra.mxu0 0
      %1217 = vmatprep.mubr.bf16.mxu0 0
      %1218 = vmatmul.mubr.bf16.gmra.mxu0 %v1112
      %v1219 = vpop.f32.mrf.mxu0
      %v1220 = vadd.f32 0.0, %v1219
      %v1221 = vpop.f32.mrf.mxu0
      %v1222 = vadd.f32 0.0, %v1221
      %v1223 = vpop.f32.mrf.mxu0
      %v1224 = vpop.f32.mrf.mxu0
      %1225 = vdwg.mxu0
      %1226 = vmatprep.subr.bf16.mxu0 0
      %1227 = vmatpush1.bf16.msra.mxu0 0
      %1228 = vmatprep.subr.bf16.mxu0 0
      %1229 = vmatpush1.bf16.msra.mxu0 0
      %1230 = vmatprep.subr.bf16.mxu0 0
      %1231 = vmatpush1.bf16.msra.mxu0 0
      %1232 = vmatprep.subr.bf16.mxu0 0
      %1233 = vmatpush1.bf16.msra.mxu0 0
      %1234 = vmatprep.subr.bf16.mxu0 0
      %1235 = vmatpush1.bf16.msra.mxu0 0
      %1236 = vmatprep.subr.bf16.mxu0 0
      %1237 = vmatpush1.bf16.msra.mxu0 0
      %1238 = vmatprep.subr.bf16.mxu0 0
      %1239 = vmatpush1.bf16.msra.mxu0 0
      %1240 = vmatprep.subr.bf16.mxu0 %v1130
      %1241 = vmatpush1.bf16.msra.mxu0 %v1127
      %1242 = vmatprep.subr.bf16.mxu0 0
      %1243 = vmatpush2.bf16.msra.mxu0 0
      %1244 = vmatprep.subr.bf16.mxu0 0
      %1245 = vmatpush2.bf16.msra.mxu0 0
      %1246 = vmatprep.subr.bf16.mxu0 0
      %1247 = vmatpush2.bf16.msra.mxu0 0
      %1248 = vmatprep.subr.bf16.mxu0 0
      %1249 = vmatpush2.bf16.msra.mxu0 0
      %1250 = vmatprep.subr.bf16.mxu0 0
      %1251 = vmatpush2.bf16.msra.mxu0 0
      %1252 = vmatprep.subr.bf16.mxu0 0
      %1253 = vmatpush2.bf16.msra.mxu0 0
      %1254 = vmatprep.subr.bf16.mxu0 0
      %1255 = vmatpush2.bf16.msra.mxu0 0
      %1256 = vmatprep.subr.bf16.mxu0 0
      %1257 = vmatpush2.bf16.msra.mxu0 0
      %1258 = vmatprep.mubr.bf16.mxu0 0
      %1259 = vmatmul.mubr.bf16.gmra.mxu0 %v1112
      %v1260 = vpop.f32.mrf.mxu0
      %v1261 = vadd.f32 0.0, %v1260
      %v1262 = vpop.f32.mrf.mxu0
      %v1263 = vadd.f32 0.0, %v1262
      %v1264 = vpop.f32.mrf.mxu0
      %v1265 = vpop.f32.mrf.mxu0
      %1266 = vdwg.mxu0
      %1267 = vmatprep.subr.bf16.mxu0 0
      %1268 = vmatpush1.bf16.msra.mxu0 0
      %1269 = vmatprep.subr.bf16.mxu0 0
      %1270 = vmatpush1.bf16.msra.mxu0 0
      %1271 = vmatprep.subr.bf16.mxu0 0
      %1272 = vmatpush1.bf16.msra.mxu0 0
      %1273 = vmatprep.subr.bf16.mxu0 0
      %1274 = vmatpush1.bf16.msra.mxu0 0
      %1275 = vmatprep.subr.bf16.mxu0 0
      %1276 = vmatpush1.bf16.msra.mxu0 0
      %1277 = vmatprep.subr.bf16.mxu0 0
      %1278 = vmatpush1.bf16.msra.mxu0 0
      %1279 = vmatprep.subr.bf16.mxu0 0
      %1280 = vmatpush1.bf16.msra.mxu0 0
      %1281 = vmatprep.subr.bf16.mxu0 %v1136
      %1282 = vmatpush1.bf16.msra.mxu0 %v1133
      %1283 = vmatprep.subr.bf16.mxu0 0
      %1284 = vmatpush2.bf16.msra.mxu0 0
      %1285 = vmatprep.subr.bf16.mxu0 0
      %1286 = vmatpush2.bf16.msra.mxu0 0
      %1287 = vmatprep.subr.bf16.mxu0 0
      %1288 = vmatpush2.bf16.msra.mxu0 0
      %1289 = vmatprep.subr.bf16.mxu0 0
      %1290 = vmatpush2.bf16.msra.mxu0 0
      %1291 = vmatprep.subr.bf16.mxu0 0
      %1292 = vmatpush2.bf16.msra.mxu0 0
      %1293 = vmatprep.subr.bf16.mxu0 0
      %1294 = vmatpush2.bf16.msra.mxu0 0
      %1295 = vmatprep.subr.bf16.mxu0 0
      %1296 = vmatpush2.bf16.msra.mxu0 0
      %1297 = vmatprep.subr.bf16.mxu0 0
      %1298 = vmatpush2.bf16.msra.mxu0 0
      %1299 = vmatprep.mubr.bf16.mxu0 0
      %1300 = vmatmul.mubr.bf16.gmra.mxu0 %v1112
      %v1301 = vpop.f32.mrf.mxu0
      %v1302 = vadd.f32 0.0, %v1301
      %v1303 = vpop.f32.mrf.mxu0
      %v1304 = vadd.f32 0.0, %v1303
      %v1305 = vpop.f32.mrf.mxu0
      %v1306 = vpop.f32.mrf.mxu0
      %1307 = vdwg.mxu0
      %1308 = vmatprep.subr.bf16.mxu0 0
      %1309 = vmatpush1.bf16.msra.mxu0 0
      %1310 = vmatprep.subr.bf16.mxu0 0
      %1311 = vmatpush1.bf16.msra.mxu0 0
      %1312 = vmatprep.subr.bf16.mxu0 0
      %1313 = vmatpush1.bf16.msra.mxu0 0
      %1314 = vmatprep.subr.bf16.mxu0 0
      %1315 = vmatpush1.bf16.msra.mxu0 0
      %1316 = vmatprep.subr.bf16.mxu0 0
      %1317 = vmatpush1.bf16.msra.mxu0 0
      %1318 = vmatprep.subr.bf16.mxu0 0
      %1319 = vmatpush1.bf16.msra.mxu0 0
      %1320 = vmatprep.subr.bf16.mxu0 0
      %1321 = vmatpush1.bf16.msra.mxu0 0
      %1322 = vmatprep.subr.bf16.mxu0 %v1142
      %1323 = vmatpush1.bf16.msra.mxu0 %v1139
      %1324 = vmatprep.subr.bf16.mxu0 0
      %1325 = vmatpush2.bf16.msra.mxu0 0
      %1326 = vmatprep.subr.bf16.mxu0 0
      %1327 = vmatpush2.bf16.msra.mxu0 0
      %1328 = vmatprep.subr.bf16.mxu0 0
      %1329 = vmatpush2.bf16.msra.mxu0 0
      %1330 = vmatprep.subr.bf16.mxu0 0
      %1331 = vmatpush2.bf16.msra.mxu0 0
      %1332 = vmatprep.subr.bf16.mxu0 0
      %1333 = vmatpush2.bf16.msra.mxu0 0
      %1334 = vmatprep.subr.bf16.mxu0 0
      %1335 = vmatpush2.bf16.msra.mxu0 0
      %1336 = vmatprep.subr.bf16.mxu0 0
      %1337 = vmatpush2.bf16.msra.mxu0 0
      %1338 = vmatprep.subr.bf16.mxu0 0
      %1339 = vmatpush2.bf16.msra.mxu0 0
      %1340 = vmatprep.mubr.bf16.mxu0 0
      %1341 = vmatmul.mubr.bf16.gmra.mxu0 %v1112
      %v1342 = vpop.f32.mrf.mxu0
      %v1343 = vadd.f32 0.0, %v1342
      %v1344 = vpop.f32.mrf.mxu0
      %v1345 = vadd.f32 0.0, %v1344
      %v1346 = vpop.f32.mrf.mxu0
      %v1347 = vpop.f32.mrf.mxu0
      %1348 = vdwg.mxu0
      %v1349 = vadd.f32 %v909, %v1179
      %v1350 = vadd.f32 %v911, %v1181
      %v1351 = vadd.f32 %v950, %v1220
      %v1352 = vadd.f32 %v952, %v1222
      %v1353 = vadd.f32 %v991, %v1261
      %v1354 = vadd.f32 %v993, %v1263
      %v1355 = vadd.f32 %v1032, %v1302
      %v1356 = vadd.f32 %v1034, %v1304
      %v1357 = vadd.f32 %v1073, %v1343
      %v1358 = vadd.f32 %v1075, %v1345
      %s1359 = scalar_lea.vmem %s3, 6
      %v1360 = vld [vmem:[%s1359] sm:$0x3]
      %v1361 = vcombine.high %v493, %v493
      %v1363 = vunpack.c.l.s4 1983009808
      %v1364 = vunpack.c.0.s8 %v1363
      %v1365 = vlaneseq
      %v1366 = vshrl.u32 %v1365, 7
      %v1367 = vsub.s32 %v1364, %v1366
      %v1368 = vrot.slane %v1361, %v1367
      %1369 = vrot.lane.b32.xlu0 %v507, 1
      %v1370 = vpop.permute.xlu0 %1369
      %1371 = vrot.lane.b32.xlu0 %v515, 1
      %v1372 = vpop.permute.xlu0 %1371
      %1373 = vrot.lane.b32.xlu0 %v514, 1
      %v1374 = vpop.permute.xlu0 %1373
      %1375 = vrot.lane.b32.xlu0 %v516, 1
      %v1376 = vpop.permute.xlu0 %1375
      %1377 = vrot.lane.b32.xlu0 %v524, 1
      %v1378 = vpop.permute.xlu0 %1377
      %1379 = vrot.lane.b32.xlu0 %v532, 1
      %v1380 = vpop.permute.xlu0 %1379
      %1381 = vrot.lane.b32.xlu0 %v531, 1
      %v1382 = vpop.permute.xlu0 %1381
      %1383 = vrot.lane.b32.xlu0 %v533, 1
      %v1384 = vpop.permute.xlu0 %1383
      %1385 = vrot.lane.b32.xlu0 %v540, 1
      %v1386 = vpop.permute.xlu0 %1385
      %1387 = vrot.lane.b32.xlu0 %v541, 1
      %v1388 = vpop.permute.xlu0 %1387
      %1389 = vrot.lane.b32.xlu0 %v1368, 1
      %v1390 = vpop.permute.xlu0 %1389
      %vm1391 = vcmask 7168
      %v1392 = vsel %vm1391, %v1370, %v1372
      %v1393 = vsel %vm1391, %v1372, %v1374
      %v1394 = vsel %vm1391, %v1374, %v1376
      %v1395 = vsel %vm1391, %v1376, %v1378
      %v1396 = vsel %vm1391, %v1378, %v1380
      %v1397 = vsel %vm1391, %v1380, %v1382
      %v1398 = vsel %vm1391, %v1382, %v1384
      %v1399 = vsel %vm1391, %v1384, %v1386
      %v1400 = vsel %vm1391, %v1386, %v1388
      %v1401 = vsel %vm1391, %v1388, %v1390
      %v1403 = vsel %vm572, %v1360, 0
      %v1406 = vsel %vm487, %v1392, 0
      %v1409 = vsel %vm487, %v1393, 0
      %v1412 = vsel %vm487, %v1394, 0
      %v1415 = vsel %vm487, %v1395, 0
      %v1418 = vsel %vm487, %v1396, 0
      %v1421 = vsel %vm487, %v1397, 0
      %v1424 = vsel %vm487, %v1398, 0
      %v1427 = vsel %vm487, %v1399, 0
      %v1430 = vsel %vm487, %v1400, 0
      %v1433 = vsel %vm487, %v1401, 0
      %1435 = vmatprep.subr.bf16.mxu0 0
      %1436 = vmatpush1.bf16.msra.mxu0 0
      %1437 = vmatprep.subr.bf16.mxu0 0
      %1438 = vmatpush1.bf16.msra.mxu0 0
      %1439 = vmatprep.subr.bf16.mxu0 0
      %1440 = vmatpush1.bf16.msra.mxu0 0
      %1441 = vmatprep.subr.bf16.mxu0 0
      %1442 = vmatpush1.bf16.msra.mxu0 0
      %1443 = vmatprep.subr.bf16.mxu0 0
      %1444 = vmatpush1.bf16.msra.mxu0 0
      %1445 = vmatprep.subr.bf16.mxu0 0
      %1446 = vmatpush1.bf16.msra.mxu0 0
      %1447 = vmatprep.subr.bf16.mxu0 0
      %1448 = vmatpush1.bf16.msra.mxu0 0
      %1449 = vmatprep.subr.bf16.mxu0 %v1409
      %1450 = vmatpush1.bf16.msra.mxu0 %v1406
      %1451 = vmatprep.subr.bf16.mxu0 0
      %1452 = vmatpush2.bf16.msra.mxu0 0
      %1453 = vmatprep.subr.bf16.mxu0 0
      %1454 = vmatpush2.bf16.msra.mxu0 0
      %1455 = vmatprep.subr.bf16.mxu0 0
      %1456 = vmatpush2.bf16.msra.mxu0 0
      %1457 = vmatprep.subr.bf16.mxu0 0
      %1458 = vmatpush2.bf16.msra.mxu0 0
      %1459 = vmatprep.subr.bf16.mxu0 0
      %1460 = vmatpush2.bf16.msra.mxu0 0
      %1461 = vmatprep.subr.bf16.mxu0 0
      %1462 = vmatpush2.bf16.msra.mxu0 0
      %1463 = vmatprep.subr.bf16.mxu0 0
      %1464 = vmatpush2.bf16.msra.mxu0 0
      %1465 = vmatprep.subr.bf16.mxu0 0
      %1466 = vmatpush2.bf16.msra.mxu0 0
      %1467 = vmatprep.mubr.bf16.mxu0 0
      %1468 = vmatmul.mubr.bf16.gmra.mxu0 %v1403
      %v1469 = vpop.f32.mrf.mxu0
      %v1470 = vadd.f32 0.0, %v1469
      %v1471 = vpop.f32.mrf.mxu0
      %v1472 = vadd.f32 0.0, %v1471
      %v1473 = vpop.f32.mrf.mxu0
      %v1474 = vpop.f32.mrf.mxu0
      %1475 = vdwg.mxu0
      %1476 = vmatprep.subr.bf16.mxu0 0
      %1477 = vmatpush1.bf16.msra.mxu0 0
      %1478 = vmatprep.subr.bf16.mxu0 0
      %1479 = vmatpush1.bf16.msra.mxu0 0
      %1480 = vmatprep.subr.bf16.mxu0 0
      %1481 = vmatpush1.bf16.msra.mxu0 0
      %1482 = vmatprep.subr.bf16.mxu0 0
      %1483 = vmatpush1.bf16.msra.mxu0 0
      %1484 = vmatprep.subr.bf16.mxu0 0
      %1485 = vmatpush1.bf16.msra.mxu0 0
      %1486 = vmatprep.subr.bf16.mxu0 0
      %1487 = vmatpush1.bf16.msra.mxu0 0
      %1488 = vmatprep.subr.bf16.mxu0 0
      %1489 = vmatpush1.bf16.msra.mxu0 0
      %1490 = vmatprep.subr.bf16.mxu0 %v1415
      %1491 = vmatpush1.bf16.msra.mxu0 %v1412
      %1492 = vmatprep.subr.bf16.mxu0 0
      %1493 = vmatpush2.bf16.msra.mxu0 0
      %1494 = vmatprep.subr.bf16.mxu0 0
      %1495 = vmatpush2.bf16.msra.mxu0 0
      %1496 = vmatprep.subr.bf16.mxu0 0
      %1497 = vmatpush2.bf16.msra.mxu0 0
      %1498 = vmatprep.subr.bf16.mxu0 0
      %1499 = vmatpush2.bf16.msra.mxu0 0
      %1500 = vmatprep.subr.bf16.mxu0 0
      %1501 = vmatpush2.bf16.msra.mxu0 0
      %1502 = vmatprep.subr.bf16.mxu0 0
      %1503 = vmatpush2.bf16.msra.mxu0 0
      %1504 = vmatprep.subr.bf16.mxu0 0
      %1505 = vmatpush2.bf16.msra.mxu0 0
      %1506 = vmatprep.subr.bf16.mxu0 0
      %1507 = vmatpush2.bf16.msra.mxu0 0
      %1508 = vmatprep.mubr.bf16.mxu0 0
      %1509 = vmatmul.mubr.bf16.gmra.mxu0 %v1403
      %v1510 = vpop.f32.mrf.mxu0
      %v1511 = vadd.f32 0.0, %v1510
      %v1512 = vpop.f32.mrf.mxu0
      %v1513 = vadd.f32 0.0, %v1512
      %v1514 = vpop.f32.mrf.mxu0
      %v1515 = vpop.f32.mrf.mxu0
      %1516 = vdwg.mxu0
      %1517 = vmatprep.subr.bf16.mxu0 0
      %1518 = vmatpush1.bf16.msra.mxu0 0
      %1519 = vmatprep.subr.bf16.mxu0 0
      %1520 = vmatpush1.bf16.msra.mxu0 0
      %1521 = vmatprep.subr.bf16.mxu0 0
      %1522 = vmatpush1.bf16.msra.mxu0 0
      %1523 = vmatprep.subr.bf16.mxu0 0
      %1524 = vmatpush1.bf16.msra.mxu0 0
      %1525 = vmatprep.subr.bf16.mxu0 0
      %1526 = vmatpush1.bf16.msra.mxu0 0
      %1527 = vmatprep.subr.bf16.mxu0 0
      %1528 = vmatpush1.bf16.msra.mxu0 0
      %1529 = vmatprep.subr.bf16.mxu0 0
      %1530 = vmatpush1.bf16.msra.mxu0 0
      %1531 = vmatprep.subr.bf16.mxu0 %v1421
      %1532 = vmatpush1.bf16.msra.mxu0 %v1418
      %1533 = vmatprep.subr.bf16.mxu0 0
      %1534 = vmatpush2.bf16.msra.mxu0 0
      %1535 = vmatprep.subr.bf16.mxu0 0
      %1536 = vmatpush2.bf16.msra.mxu0 0
      %1537 = vmatprep.subr.bf16.mxu0 0
      %1538 = vmatpush2.bf16.msra.mxu0 0
      %1539 = vmatprep.subr.bf16.mxu0 0
      %1540 = vmatpush2.bf16.msra.mxu0 0
      %1541 = vmatprep.subr.bf16.mxu0 0
      %1542 = vmatpush2.bf16.msra.mxu0 0
      %1543 = vmatprep.subr.bf16.mxu0 0
      %1544 = vmatpush2.bf16.msra.mxu0 0
      %1545 = vmatprep.subr.bf16.mxu0 0
      %1546 = vmatpush2.bf16.msra.mxu0 0
      %1547 = vmatprep.subr.bf16.mxu0 0
      %1548 = vmatpush2.bf16.msra.mxu0 0
      %1549 = vmatprep.mubr.bf16.mxu0 0
      %1550 = vmatmul.mubr.bf16.gmra.mxu0 %v1403
      %v1551 = vpop.f32.mrf.mxu0
      %v1552 = vadd.f32 0.0, %v1551
      %v1553 = vpop.f32.mrf.mxu0
      %v1554 = vadd.f32 0.0, %v1553
      %v1555 = vpop.f32.mrf.mxu0
      %v1556 = vpop.f32.mrf.mxu0
      %1557 = vdwg.mxu0
      %1558 = vmatprep.subr.bf16.mxu0 0
      %1559 = vmatpush1.bf16.msra.mxu0 0
      %1560 = vmatprep.subr.bf16.mxu0 0
      %1561 = vmatpush1.bf16.msra.mxu0 0
      %1562 = vmatprep.subr.bf16.mxu0 0
      %1563 = vmatpush1.bf16.msra.mxu0 0
      %1564 = vmatprep.subr.bf16.mxu0 0
      %1565 = vmatpush1.bf16.msra.mxu0 0
      %1566 = vmatprep.subr.bf16.mxu0 0
      %1567 = vmatpush1.bf16.msra.mxu0 0
      %1568 = vmatprep.subr.bf16.mxu0 0
      %1569 = vmatpush1.bf16.msra.mxu0 0
      %1570 = vmatprep.subr.bf16.mxu0 0
      %1571 = vmatpush1.bf16.msra.mxu0 0
      %1572 = vmatprep.subr.bf16.mxu0 %v1427
      %1573 = vmatpush1.bf16.msra.mxu0 %v1424
      %1574 = vmatprep.subr.bf16.mxu0 0
      %1575 = vmatpush2.bf16.msra.mxu0 0
      %1576 = vmatprep.subr.bf16.mxu0 0
      %1577 = vmatpush2.bf16.msra.mxu0 0
      %1578 = vmatprep.subr.bf16.mxu0 0
      %1579 = vmatpush2.bf16.msra.mxu0 0
      %1580 = vmatprep.subr.bf16.mxu0 0
      %1581 = vmatpush2.bf16.msra.mxu0 0
      %1582 = vmatprep.subr.bf16.mxu0 0
      %1583 = vmatpush2.bf16.msra.mxu0 0
      %1584 = vmatprep.subr.bf16.mxu0 0
      %1585 = vmatpush2.bf16.msra.mxu0 0
      %1586 = vmatprep.subr.bf16.mxu0 0
      %1587 = vmatpush2.bf16.msra.mxu0 0
      %1588 = vmatprep.subr.bf16.mxu0 0
      %1589 = vmatpush2.bf16.msra.mxu0 0
      %1590 = vmatprep.mubr.bf16.mxu0 0
      %1591 = vmatmul.mubr.bf16.gmra.mxu0 %v1403
      %v1592 = vpop.f32.mrf.mxu0
      %v1593 = vadd.f32 0.0, %v1592
      %v1594 = vpop.f32.mrf.mxu0
      %v1595 = vadd.f32 0.0, %v1594
      %v1596 = vpop.f32.mrf.mxu0
      %v1597 = vpop.f32.mrf.mxu0
      %1598 = vdwg.mxu0
      %1599 = vmatprep.subr.bf16.mxu0 0
      %1600 = vmatpush1.bf16.msra.mxu0 0
      %1601 = vmatprep.subr.bf16.mxu0 0
      %1602 = vmatpush1.bf16.msra.mxu0 0
      %1603 = vmatprep.subr.bf16.mxu0 0
      %1604 = vmatpush1.bf16.msra.mxu0 0
      %1605 = vmatprep.subr.bf16.mxu0 0
      %1606 = vmatpush1.bf16.msra.mxu0 0
      %1607 = vmatprep.subr.bf16.mxu0 0
      %1608 = vmatpush1.bf16.msra.mxu0 0
      %1609 = vmatprep.subr.bf16.mxu0 0
      %1610 = vmatpush1.bf16.msra.mxu0 0
      %1611 = vmatprep.subr.bf16.mxu0 0
      %1612 = vmatpush1.bf16.msra.mxu0 0
      %1613 = vmatprep.subr.bf16.mxu0 %v1433
      %1614 = vmatpush1.bf16.msra.mxu0 %v1430
      %1615 = vmatprep.subr.bf16.mxu0 0
      %1616 = vmatpush2.bf16.msra.mxu0 0
      %1617 = vmatprep.subr.bf16.mxu0 0
      %1618 = vmatpush2.bf16.msra.mxu0 0
      %1619 = vmatprep.subr.bf16.mxu0 0
      %1620 = vmatpush2.bf16.msra.mxu0 0
      %1621 = vmatprep.subr.bf16.mxu0 0
      %1622 = vmatpush2.bf16.msra.mxu0 0
      %1623 = vmatprep.subr.bf16.mxu0 0
      %1624 = vmatpush2.bf16.msra.mxu0 0
      %1625 = vmatprep.subr.bf16.mxu0 0
      %1626 = vmatpush2.bf16.msra.mxu0 0
      %1627 = vmatprep.subr.bf16.mxu0 0
      %1628 = vmatpush2.bf16.msra.mxu0 0
      %1629 = vmatprep.subr.bf16.mxu0 0
      %1630 = vmatpush2.bf16.msra.mxu0 0
      %1631 = vmatprep.mubr.bf16.mxu0 0
      %1632 = vmatmul.mubr.bf16.gmra.mxu0 %v1403
      %v1633 = vpop.f32.mrf.mxu0
      %v1634 = vadd.f32 0.0, %v1633
      %v1635 = vpop.f32.mrf.mxu0
      %v1636 = vadd.f32 0.0, %v1635
      %v1637 = vpop.f32.mrf.mxu0
      %v1638 = vpop.f32.mrf.mxu0
      %1639 = vdwg.mxu0
      %v1640 = vadd.f32 %v1349, %v1470
      %v1641 = vadd.f32 %v1350, %v1472
      %v1642 = vadd.f32 %v1351, %v1511
      %v1643 = vadd.f32 %v1352, %v1513
      %v1644 = vadd.f32 %v1353, %v1552
      %v1645 = vadd.f32 %v1354, %v1554
      %v1646 = vadd.f32 %v1355, %v1593
      %v1647 = vadd.f32 %v1356, %v1595
      %v1648 = vadd.f32 %v1357, %v1634
      %v1649 = vadd.f32 %v1358, %v1636
      %s1650 = scalar_lea.vmem %s3, 8
      %v1651 = vld [vmem:[%s1650] sm:$0x3]
      %v1653 = vsel %vm572, %v1651, 0
      %v1656 = vsel %vm487, %v515, 0
      %v1659 = vsel %vm487, %v514, 0
      %v1662 = vsel %vm487, %v516, 0
      %v1665 = vsel %vm487, %v524, 0
      %v1668 = vsel %vm487, %v532, 0
      %v1671 = vsel %vm487, %v531, 0
      %v1674 = vsel %vm487, %v533, 0
      %v1677 = vsel %vm487, %v540, 0
      %v1680 = vsel %vm487, %v541, 0
      %v1683 = vsel %vm487, %v1368, 0
      %1685 = vmatprep.subr.bf16.mxu0 0
      %1686 = vmatpush1.bf16.msra.mxu0 0
      %1687 = vmatprep.subr.bf16.mxu0 0
      %1688 = vmatpush1.bf16.msra.mxu0 0
      %1689 = vmatprep.subr.bf16.mxu0 0
      %1690 = vmatpush1.bf16.msra.mxu0 0
      %1691 = vmatprep.subr.bf16.mxu0 0
      %1692 = vmatpush1.bf16.msra.mxu0 0
      %1693 = vmatprep.subr.bf16.mxu0 0
      %1694 = vmatpush1.bf16.msra.mxu0 0
      %1695 = vmatprep.subr.bf16.mxu0 0
      %1696 = vmatpush1.bf16.msra.mxu0 0
      %1697 = vmatprep.subr.bf16.mxu0 0
      %1698 = vmatpush1.bf16.msra.mxu0 0
      %1699 = vmatprep.subr.bf16.mxu0 %v1659
      %1700 = vmatpush1.bf16.msra.mxu0 %v1656
      %1701 = vmatprep.subr.bf16.mxu0 0
      %1702 = vmatpush2.bf16.msra.mxu0 0
      %1703 = vmatprep.subr.bf16.mxu0 0
      %1704 = vmatpush2.bf16.msra.mxu0 0
      %1705 = vmatprep.subr.bf16.mxu0 0
      %1706 = vmatpush2.bf16.msra.mxu0 0
      %1707 = vmatprep.subr.bf16.mxu0 0
      %1708 = vmatpush2.bf16.msra.mxu0 0
      %1709 = vmatprep.subr.bf16.mxu0 0
      %1710 = vmatpush2.bf16.msra.mxu0 0
      %1711 = vmatprep.subr.bf16.mxu0 0
      %1712 = vmatpush2.bf16.msra.mxu0 0
      %1713 = vmatprep.subr.bf16.mxu0 0
      %1714 = vmatpush2.bf16.msra.mxu0 0
      %1715 = vmatprep.subr.bf16.mxu0 0
      %1716 = vmatpush2.bf16.msra.mxu0 0
      %1717 = vmatprep.mubr.bf16.mxu0 0
      %1718 = vmatmul.mubr.bf16.gmra.mxu0 %v1653
      %v1719 = vpop.f32.mrf.mxu0
      %v1720 = vadd.f32 0.0, %v1719
      %v1721 = vpop.f32.mrf.mxu0
      %v1722 = vadd.f32 0.0, %v1721
      %v1723 = vpop.f32.mrf.mxu0
      %v1724 = vpop.f32.mrf.mxu0
      %1725 = vdwg.mxu0
      %1726 = vmatprep.subr.bf16.mxu0 0
      %1727 = vmatpush1.bf16.msra.mxu0 0
      %1728 = vmatprep.subr.bf16.mxu0 0
      %1729 = vmatpush1.bf16.msra.mxu0 0
      %1730 = vmatprep.subr.bf16.mxu0 0
      %1731 = vmatpush1.bf16.msra.mxu0 0
      %1732 = vmatprep.subr.bf16.mxu0 0
      %1733 = vmatpush1.bf16.msra.mxu0 0
      %1734 = vmatprep.subr.bf16.mxu0 0
      %1735 = vmatpush1.bf16.msra.mxu0 0
      %1736 = vmatprep.subr.bf16.mxu0 0
      %1737 = vmatpush1.bf16.msra.mxu0 0
      %1738 = vmatprep.subr.bf16.mxu0 0
      %1739 = vmatpush1.bf16.msra.mxu0 0
      %1740 = vmatprep.subr.bf16.mxu0 %v1665
      %1741 = vmatpush1.bf16.msra.mxu0 %v1662
      %1742 = vmatprep.subr.bf16.mxu0 0
      %1743 = vmatpush2.bf16.msra.mxu0 0
      %1744 = vmatprep.subr.bf16.mxu0 0
      %1745 = vmatpush2.bf16.msra.mxu0 0
      %1746 = vmatprep.subr.bf16.mxu0 0
      %1747 = vmatpush2.bf16.msra.mxu0 0
      %1748 = vmatprep.subr.bf16.mxu0 0
      %1749 = vmatpush2.bf16.msra.mxu0 0
      %1750 = vmatprep.subr.bf16.mxu0 0
      %1751 = vmatpush2.bf16.msra.mxu0 0
      %1752 = vmatprep.subr.bf16.mxu0 0
      %1753 = vmatpush2.bf16.msra.mxu0 0
      %1754 = vmatprep.subr.bf16.mxu0 0
      %1755 = vmatpush2.bf16.msra.mxu0 0
      %1756 = vmatprep.subr.bf16.mxu0 0
      %1757 = vmatpush2.bf16.msra.mxu0 0
      %1758 = vmatprep.mubr.bf16.mxu0 0
      %1759 = vmatmul.mubr.bf16.gmra.mxu0 %v1653
      %v1760 = vpop.f32.mrf.mxu0
      %v1761 = vadd.f32 0.0, %v1760
      %v1762 = vpop.f32.mrf.mxu0
      %v1763 = vadd.f32 0.0, %v1762
      %v1764 = vpop.f32.mrf.mxu0
      %v1765 = vpop.f32.mrf.mxu0
      %1766 = vdwg.mxu0
      %1767 = vmatprep.subr.bf16.mxu0 0
      %1768 = vmatpush1.bf16.msra.mxu0 0
      %1769 = vmatprep.subr.bf16.mxu0 0
      %1770 = vmatpush1.bf16.msra.mxu0 0
      %1771 = vmatprep.subr.bf16.mxu0 0
      %1772 = vmatpush1.bf16.msra.mxu0 0
      %1773 = vmatprep.subr.bf16.mxu0 0
      %1774 = vmatpush1.bf16.msra.mxu0 0
      %1775 = vmatprep.subr.bf16.mxu0 0
      %1776 = vmatpush1.bf16.msra.mxu0 0
      %1777 = vmatprep.subr.bf16.mxu0 0
      %1778 = vmatpush1.bf16.msra.mxu0 0
      %1779 = vmatprep.subr.bf16.mxu0 0
      %1780 = vmatpush1.bf16.msra.mxu0 0
      %1781 = vmatprep.subr.bf16.mxu0 %v1671
      %1782 = vmatpush1.bf16.msra.mxu0 %v1668
      %1783 = vmatprep.subr.bf16.mxu0 0
      %1784 = vmatpush2.bf16.msra.mxu0 0
      %1785 = vmatprep.subr.bf16.mxu0 0
      %1786 = vmatpush2.bf16.msra.mxu0 0
      %1787 = vmatprep.subr.bf16.mxu0 0
      %1788 = vmatpush2.bf16.msra.mxu0 0
      %1789 = vmatprep.subr.bf16.mxu0 0
      %1790 = vmatpush2.bf16.msra.mxu0 0
      %1791 = vmatprep.subr.bf16.mxu0 0
      %1792 = vmatpush2.bf16.msra.mxu0 0
      %1793 = vmatprep.subr.bf16.mxu0 0
      %1794 = vmatpush2.bf16.msra.mxu0 0
      %1795 = vmatprep.subr.bf16.mxu0 0
      %1796 = vmatpush2.bf16.msra.mxu0 0
      %1797 = vmatprep.subr.bf16.mxu0 0
      %1798 = vmatpush2.bf16.msra.mxu0 0
      %1799 = vmatprep.mubr.bf16.mxu0 0
      %1800 = vmatmul.mubr.bf16.gmra.mxu0 %v1653
      %v1801 = vpop.f32.mrf.mxu0
      %v1802 = vadd.f32 0.0, %v1801
      %v1803 = vpop.f32.mrf.mxu0
      %v1804 = vadd.f32 0.0, %v1803
      %v1805 = vpop.f32.mrf.mxu0
      %v1806 = vpop.f32.mrf.mxu0
      %1807 = vdwg.mxu0
      %1808 = vmatprep.subr.bf16.mxu0 0
      %1809 = vmatpush1.bf16.msra.mxu0 0
      %1810 = vmatprep.subr.bf16.mxu0 0
      %1811 = vmatpush1.bf16.msra.mxu0 0
      %1812 = vmatprep.subr.bf16.mxu0 0
      %1813 = vmatpush1.bf16.msra.mxu0 0
      %1814 = vmatprep.subr.bf16.mxu0 0
      %1815 = vmatpush1.bf16.msra.mxu0 0
      %1816 = vmatprep.subr.bf16.mxu0 0
      %1817 = vmatpush1.bf16.msra.mxu0 0
      %1818 = vmatprep.subr.bf16.mxu0 0
      %1819 = vmatpush1.bf16.msra.mxu0 0
      %1820 = vmatprep.subr.bf16.mxu0 0
      %1821 = vmatpush1.bf16.msra.mxu0 0
      %1822 = vmatprep.subr.bf16.mxu0 %v1677
      %1823 = vmatpush1.bf16.msra.mxu0 %v1674
      %1824 = vmatprep.subr.bf16.mxu0 0
      %1825 = vmatpush2.bf16.msra.mxu0 0
      %1826 = vmatprep.subr.bf16.mxu0 0
      %1827 = vmatpush2.bf16.msra.mxu0 0
      %1828 = vmatprep.subr.bf16.mxu0 0
      %1829 = vmatpush2.bf16.msra.mxu0 0
      %1830 = vmatprep.subr.bf16.mxu0 0
      %1831 = vmatpush2.bf16.msra.mxu0 0
      %1832 = vmatprep.subr.bf16.mxu0 0
      %1833 = vmatpush2.bf16.msra.mxu0 0
      %1834 = vmatprep.subr.bf16.mxu0 0
      %1835 = vmatpush2.bf16.msra.mxu0 0
      %1836 = vmatprep.subr.bf16.mxu0 0
      %1837 = vmatpush2.bf16.msra.mxu0 0
      %1838 = vmatprep.subr.bf16.mxu0 0
      %1839 = vmatpush2.bf16.msra.mxu0 0
      %1840 = vmatprep.mubr.bf16.mxu0 0
      %1841 = vmatmul.mubr.bf16.gmra.mxu0 %v1653
      %v1842 = vpop.f32.mrf.mxu0
      %v1843 = vadd.f32 0.0, %v1842
      %v1844 = vpop.f32.mrf.mxu0
      %v1845 = vadd.f32 0.0, %v1844
      %v1846 = vpop.f32.mrf.mxu0
      %v1847 = vpop.f32.mrf.mxu0
      %1848 = vdwg.mxu0
      %1849 = vmatprep.subr.bf16.mxu0 0
      %1850 = vmatpush1.bf16.msra.mxu0 0
      %1851 = vmatprep.subr.bf16.mxu0 0
      %1852 = vmatpush1.bf16.msra.mxu0 0
      %1853 = vmatprep.subr.bf16.mxu0 0
      %1854 = vmatpush1.bf16.msra.mxu0 0
      %1855 = vmatprep.subr.bf16.mxu0 0
      %1856 = vmatpush1.bf16.msra.mxu0 0
      %1857 = vmatprep.subr.bf16.mxu0 0
      %1858 = vmatpush1.bf16.msra.mxu0 0
      %1859 = vmatprep.subr.bf16.mxu0 0
      %1860 = vmatpush1.bf16.msra.mxu0 0
      %1861 = vmatprep.subr.bf16.mxu0 0
      %1862 = vmatpush1.bf16.msra.mxu0 0
      %1863 = vmatprep.subr.bf16.mxu0 %v1683
      %1864 = vmatpush1.bf16.msra.mxu0 %v1680
      %1865 = vmatprep.subr.bf16.mxu0 0
      %1866 = vmatpush2.bf16.msra.mxu0 0
      %1867 = vmatprep.subr.bf16.mxu0 0
      %1868 = vmatpush2.bf16.msra.mxu0 0
      %1869 = vmatprep.subr.bf16.mxu0 0
      %1870 = vmatpush2.bf16.msra.mxu0 0
      %1871 = vmatprep.subr.bf16.mxu0 0
      %1872 = vmatpush2.bf16.msra.mxu0 0
      %1873 = vmatprep.subr.bf16.mxu0 0
      %1874 = vmatpush2.bf16.msra.mxu0 0
      %1875 = vmatprep.subr.bf16.mxu0 0
      %1876 = vmatpush2.bf16.msra.mxu0 0
      %1877 = vmatprep.subr.bf16.mxu0 0
      %1878 = vmatpush2.bf16.msra.mxu0 0
      %1879 = vmatprep.subr.bf16.mxu0 0
      %1880 = vmatpush2.bf16.msra.mxu0 0
      %1881 = vmatprep.mubr.bf16.mxu0 0
      %1882 = vmatmul.mubr.bf16.gmra.mxu0 %v1653
      %v1883 = vpop.f32.mrf.mxu0
      %v1884 = vadd.f32 0.0, %v1883
      %v1885 = vpop.f32.mrf.mxu0
      %v1886 = vadd.f32 0.0, %v1885
      %v1887 = vpop.f32.mrf.mxu0
      %v1888 = vpop.f32.mrf.mxu0
      %1889 = vdwg.mxu0
      %v1890 = vadd.f32 %v1640, %v1720
      %v1891 = vadd.f32 %v1641, %v1722
      %v1892 = vadd.f32 %v1642, %v1761
      %v1893 = vadd.f32 %v1643, %v1763
      %v1894 = vadd.f32 %v1644, %v1802
      %v1895 = vadd.f32 %v1645, %v1804
      %v1896 = vadd.f32 %v1646, %v1843
      %v1897 = vadd.f32 %v1647, %v1845
      %v1898 = vadd.f32 %v1648, %v1884
      %v1899 = vadd.f32 %v1649, %v1886
      %s1900 = scalar_lea.vmem %s3, 10
      %v1901 = vld [vmem:[%s1900] sm:$0x3]
      %1902 = vrot.lane.b32.xlu0 %v515, 127
      %v1903 = vpop.permute.xlu0 %1902
      %1904 = vrot.lane.b32.xlu0 %v514, 127
      %v1905 = vpop.permute.xlu0 %1904
      %1906 = vrot.lane.b32.xlu0 %v516, 127
      %v1907 = vpop.permute.xlu0 %1906
      %1908 = vrot.lane.b32.xlu0 %v524, 127
      %v1909 = vpop.permute.xlu0 %1908
      %1910 = vrot.lane.b32.xlu0 %v532, 127
      %v1911 = vpop.permute.xlu0 %1910
      %1912 = vrot.lane.b32.xlu0 %v531, 127
      %v1913 = vpop.permute.xlu0 %1912
      %1914 = vrot.lane.b32.xlu0 %v533, 127
      %v1915 = vpop.permute.xlu0 %1914
      %1916 = vrot.lane.b32.xlu0 %v540, 127
      %v1917 = vpop.permute.xlu0 %1916
      %1918 = vrot.lane.b32.xlu0 %v541, 127
      %v1919 = vpop.permute.xlu0 %1918
      %1920 = vrot.lane.b32.xlu0 %v1368, 127
      %v1921 = vpop.permute.xlu0 %1920
      %vm1922 = vcmask 1039360
      %v1923 = vsel %vm1922, %v1903, %v1905
      %v1924 = vsel %vm1922, %v1905, %v1907
      %v1925 = vsel %vm1922, %v1907, %v1909
      %v1926 = vsel %vm1922, %v1909, %v1911
      %v1927 = vsel %vm1922, %v1911, %v1913
      %v1928 = vsel %vm1922, %v1913, %v1915
      %v1929 = vsel %vm1922, %v1915, %v1917
      %v1930 = vsel %vm1922, %v1917, %v1919
      %v1931 = vsel %vm1922, %v1919, %v1921
      %v1933 = vsel %vm572, %v1901, 0
      %v1936 = vsel %vm487, %v1923, 0
      %v1939 = vsel %vm487, %v1924, 0
      %v1942 = vsel %vm487, %v1925, 0
      %v1945 = vsel %vm487, %v1926, 0
      %v1948 = vsel %vm487, %v1927, 0
      %v1951 = vsel %vm487, %v1928, 0
      %v1954 = vsel %vm487, %v1929, 0
      %v1957 = vsel %vm487, %v1930, 0
      %v1960 = vsel %vm487, %v1931, 0
      %v1963 = vsel %vm487, %v1921, 0
      %1965 = vmatprep.subr.bf16.mxu0 0
      %1966 = vmatpush1.bf16.msra.mxu0 0
      %1967 = vmatprep.subr.bf16.mxu0 0
      %1968 = vmatpush1.bf16.msra.mxu0 0
      %1969 = vmatprep.subr.bf16.mxu0 0
      %1970 = vmatpush1.bf16.msra.mxu0 0
      %1971 = vmatprep.subr.bf16.mxu0 0
      %1972 = vmatpush1.bf16.msra.mxu0 0
      %1973 = vmatprep.subr.bf16.mxu0 0
      %1974 = vmatpush1.bf16.msra.mxu0 0
      %1975 = vmatprep.subr.bf16.mxu0 0
      %1976 = vmatpush1.bf16.msra.mxu0 0
      %1977 = vmatprep.subr.bf16.mxu0 0
      %1978 = vmatpush1.bf16.msra.mxu0 0
      %1979 = vmatprep.subr.bf16.mxu0 %v1939
      %1980 = vmatpush1.bf16.msra.mxu0 %v1936
      %1981 = vmatprep.subr.bf16.mxu0 0
      %1982 = vmatpush2.bf16.msra.mxu0 0
      %1983 = vmatprep.subr.bf16.mxu0 0
      %1984 = vmatpush2.bf16.msra.mxu0 0
      %1985 = vmatprep.subr.bf16.mxu0 0
      %1986 = vmatpush2.bf16.msra.mxu0 0
      %1987 = vmatprep.subr.bf16.mxu0 0
      %1988 = vmatpush2.bf16.msra.mxu0 0
      %1989 = vmatprep.subr.bf16.mxu0 0
      %1990 = vmatpush2.bf16.msra.mxu0 0
      %1991 = vmatprep.subr.bf16.mxu0 0
      %1992 = vmatpush2.bf16.msra.mxu0 0
      %1993 = vmatprep.subr.bf16.mxu0 0
      %1994 = vmatpush2.bf16.msra.mxu0 0
      %1995 = vmatprep.subr.bf16.mxu0 0
      %1996 = vmatpush2.bf16.msra.mxu0 0
      %1997 = vmatprep.mubr.bf16.mxu0 0
      %1998 = vmatmul.mubr.bf16.gmra.mxu0 %v1933
      %v1999 = vpop.f32.mrf.mxu0
      %v2000 = vadd.f32 0.0, %v1999
      %v2001 = vpop.f32.mrf.mxu0
      %v2002 = vadd.f32 0.0, %v2001
      %v2003 = vpop.f32.mrf.mxu0
      %v2004 = vpop.f32.mrf.mxu0
      %2005 = vdwg.mxu0
      %2006 = vmatprep.subr.bf16.mxu0 0
      %2007 = vmatpush1.bf16.msra.mxu0 0
      %2008 = vmatprep.subr.bf16.mxu0 0
      %2009 = vmatpush1.bf16.msra.mxu0 0
      %2010 = vmatprep.subr.bf16.mxu0 0
      %2011 = vmatpush1.bf16.msra.mxu0 0
      %2012 = vmatprep.subr.bf16.mxu0 0
      %2013 = vmatpush1.bf16.msra.mxu0 0
      %2014 = vmatprep.subr.bf16.mxu0 0
      %2015 = vmatpush1.bf16.msra.mxu0 0
      %2016 = vmatprep.subr.bf16.mxu0 0
      %2017 = vmatpush1.bf16.msra.mxu0 0
      %2018 = vmatprep.subr.bf16.mxu0 0
      %2019 = vmatpush1.bf16.msra.mxu0 0
      %2020 = vmatprep.subr.bf16.mxu0 %v1945
      %2021 = vmatpush1.bf16.msra.mxu0 %v1942
      %2022 = vmatprep.subr.bf16.mxu0 0
      %2023 = vmatpush2.bf16.msra.mxu0 0
      %2024 = vmatprep.subr.bf16.mxu0 0
      %2025 = vmatpush2.bf16.msra.mxu0 0
      %2026 = vmatprep.subr.bf16.mxu0 0
      %2027 = vmatpush2.bf16.msra.mxu0 0
      %2028 = vmatprep.subr.bf16.mxu0 0
      %2029 = vmatpush2.bf16.msra.mxu0 0
      %2030 = vmatprep.subr.bf16.mxu0 0
      %2031 = vmatpush2.bf16.msra.mxu0 0
      %2032 = vmatprep.subr.bf16.mxu0 0
      %2033 = vmatpush2.bf16.msra.mxu0 0
      %2034 = vmatprep.subr.bf16.mxu0 0
      %2035 = vmatpush2.bf16.msra.mxu0 0
      %2036 = vmatprep.subr.bf16.mxu0 0
      %2037 = vmatpush2.bf16.msra.mxu0 0
      %2038 = vmatprep.mubr.bf16.mxu0 0
      %2039 = vmatmul.mubr.bf16.gmra.mxu0 %v1933
      %v2040 = vpop.f32.mrf.mxu0
      %v2041 = vadd.f32 0.0, %v2040
      %v2042 = vpop.f32.mrf.mxu0
      %v2043 = vadd.f32 0.0, %v2042
      %v2044 = vpop.f32.mrf.mxu0
      %v2045 = vpop.f32.mrf.mxu0
      %2046 = vdwg.mxu0
      %2047 = vmatprep.subr.bf16.mxu0 0
      %2048 = vmatpush1.bf16.msra.mxu0 0
      %2049 = vmatprep.subr.bf16.mxu0 0
      %2050 = vmatpush1.bf16.msra.mxu0 0
      %2051 = vmatprep.subr.bf16.mxu0 0
      %2052 = vmatpush1.bf16.msra.mxu0 0
      %2053 = vmatprep.subr.bf16.mxu0 0
      %2054 = vmatpush1.bf16.msra.mxu0 0
      %2055 = vmatprep.subr.bf16.mxu0 0
      %2056 = vmatpush1.bf16.msra.mxu0 0
      %2057 = vmatprep.subr.bf16.mxu0 0
      %2058 = vmatpush1.bf16.msra.mxu0 0
      %2059 = vmatprep.subr.bf16.mxu0 0
      %2060 = vmatpush1.bf16.msra.mxu0 0
      %2061 = vmatprep.subr.bf16.mxu0 %v1951
      %2062 = vmatpush1.bf16.msra.mxu0 %v1948
      %2063 = vmatprep.subr.bf16.mxu0 0
      %2064 = vmatpush2.bf16.msra.mxu0 0
      %2065 = vmatprep.subr.bf16.mxu0 0
      %2066 = vmatpush2.bf16.msra.mxu0 0
      %2067 = vmatprep.subr.bf16.mxu0 0
      %2068 = vmatpush2.bf16.msra.mxu0 0
      %2069 = vmatprep.subr.bf16.mxu0 0
      %2070 = vmatpush2.bf16.msra.mxu0 0
      %2071 = vmatprep.subr.bf16.mxu0 0
      %2072 = vmatpush2.bf16.msra.mxu0 0
      %2073 = vmatprep.subr.bf16.mxu0 0
      %2074 = vmatpush2.bf16.msra.mxu0 0
      %2075 = vmatprep.subr.bf16.mxu0 0
      %2076 = vmatpush2.bf16.msra.mxu0 0
      %2077 = vmatprep.subr.bf16.mxu0 0
      %2078 = vmatpush2.bf16.msra.mxu0 0
      %2079 = vmatprep.mubr.bf16.mxu0 0
      %2080 = vmatmul.mubr.bf16.gmra.mxu0 %v1933
      %v2081 = vpop.f32.mrf.mxu0
      %v2082 = vadd.f32 0.0, %v2081
      %v2083 = vpop.f32.mrf.mxu0
      %v2084 = vadd.f32 0.0, %v2083
      %v2085 = vpop.f32.mrf.mxu0
      %v2086 = vpop.f32.mrf.mxu0
      %2087 = vdwg.mxu0
      %2088 = vmatprep.subr.bf16.mxu0 0
      %2089 = vmatpush1.bf16.msra.mxu0 0
      %2090 = vmatprep.subr.bf16.mxu0 0
      %2091 = vmatpush1.bf16.msra.mxu0 0
      %2092 = vmatprep.subr.bf16.mxu0 0
      %2093 = vmatpush1.bf16.msra.mxu0 0
      %2094 = vmatprep.subr.bf16.mxu0 0
      %2095 = vmatpush1.bf16.msra.mxu0 0
      %2096 = vmatprep.subr.bf16.mxu0 0
      %2097 = vmatpush1.bf16.msra.mxu0 0
      %2098 = vmatprep.subr.bf16.mxu0 0
      %2099 = vmatpush1.bf16.msra.mxu0 0
      %2100 = vmatprep.subr.bf16.mxu0 0
      %2101 = vmatpush1.bf16.msra.mxu0 0
      %2102 = vmatprep.subr.bf16.mxu0 %v1957
      %2103 = vmatpush1.bf16.msra.mxu0 %v1954
      %2104 = vmatprep.subr.bf16.mxu0 0
      %2105 = vmatpush2.bf16.msra.mxu0 0
      %2106 = vmatprep.subr.bf16.mxu0 0
      %2107 = vmatpush2.bf16.msra.mxu0 0
      %2108 = vmatprep.subr.bf16.mxu0 0
      %2109 = vmatpush2.bf16.msra.mxu0 0
      %2110 = vmatprep.subr.bf16.mxu0 0
      %2111 = vmatpush2.bf16.msra.mxu0 0
      %2112 = vmatprep.subr.bf16.mxu0 0
      %2113 = vmatpush2.bf16.msra.mxu0 0
      %2114 = vmatprep.subr.bf16.mxu0 0
      %2115 = vmatpush2.bf16.msra.mxu0 0
      %2116 = vmatprep.subr.bf16.mxu0 0
      %2117 = vmatpush2.bf16.msra.mxu0 0
      %2118 = vmatprep.subr.bf16.mxu0 0
      %2119 = vmatpush2.bf16.msra.mxu0 0
      %2120 = vmatprep.mubr.bf16.mxu0 0
      %2121 = vmatmul.mubr.bf16.gmra.mxu0 %v1933
      %v2122 = vpop.f32.mrf.mxu0
      %v2123 = vadd.f32 0.0, %v2122
      %v2124 = vpop.f32.mrf.mxu0
      %v2125 = vadd.f32 0.0, %v2124
      %v2126 = vpop.f32.mrf.mxu0
      %v2127 = vpop.f32.mrf.mxu0
      %2128 = vdwg.mxu0
      %2129 = vmatprep.subr.bf16.mxu0 0
      %2130 = vmatpush1.bf16.msra.mxu0 0
      %2131 = vmatprep.subr.bf16.mxu0 0
      %2132 = vmatpush1.bf16.msra.mxu0 0
      %2133 = vmatprep.subr.bf16.mxu0 0
      %2134 = vmatpush1.bf16.msra.mxu0 0
      %2135 = vmatprep.subr.bf16.mxu0 0
      %2136 = vmatpush1.bf16.msra.mxu0 0
      %2137 = vmatprep.subr.bf16.mxu0 0
      %2138 = vmatpush1.bf16.msra.mxu0 0
      %2139 = vmatprep.subr.bf16.mxu0 0
      %2140 = vmatpush1.bf16.msra.mxu0 0
      %2141 = vmatprep.subr.bf16.mxu0 0
      %2142 = vmatpush1.bf16.msra.mxu0 0
      %2143 = vmatprep.subr.bf16.mxu0 %v1963
      %2144 = vmatpush1.bf16.msra.mxu0 %v1960
      %2145 = vmatprep.subr.bf16.mxu0 0
      %2146 = vmatpush2.bf16.msra.mxu0 0
      %2147 = vmatprep.subr.bf16.mxu0 0
      %2148 = vmatpush2.bf16.msra.mxu0 0
      %2149 = vmatprep.subr.bf16.mxu0 0
      %2150 = vmatpush2.bf16.msra.mxu0 0
      %2151 = vmatprep.subr.bf16.mxu0 0
      %2152 = vmatpush2.bf16.msra.mxu0 0
      %2153 = vmatprep.subr.bf16.mxu0 0
      %2154 = vmatpush2.bf16.msra.mxu0 0
      %2155 = vmatprep.subr.bf16.mxu0 0
      %2156 = vmatpush2.bf16.msra.mxu0 0
      %2157 = vmatprep.subr.bf16.mxu0 0
      %2158 = vmatpush2.bf16.msra.mxu0 0
      %2159 = vmatprep.subr.bf16.mxu0 0
      %2160 = vmatpush2.bf16.msra.mxu0 0
      %2161 = vmatprep.mubr.bf16.mxu0 0
      %2162 = vmatmul.mubr.bf16.gmra.mxu0 %v1933
      %v2163 = vpop.f32.mrf.mxu0
      %v2164 = vadd.f32 0.0, %v2163
      %v2165 = vpop.f32.mrf.mxu0
      %v2166 = vadd.f32 0.0, %v2165
      %v2167 = vpop.f32.mrf.mxu0
      %v2168 = vpop.f32.mrf.mxu0
      %2169 = vdwg.mxu0
      %v2170 = vadd.f32 %v1890, %v2000
      %v2171 = vadd.f32 %v1891, %v2002
      %v2172 = vadd.f32 %v1892, %v2041
      %v2173 = vadd.f32 %v1893, %v2043
      %v2174 = vadd.f32 %v1894, %v2082
      %v2175 = vadd.f32 %v1895, %v2084
      %v2176 = vadd.f32 %v1896, %v2123
      %v2177 = vadd.f32 %v1897, %v2125
      %v2178 = vadd.f32 %v1898, %v2164
      %v2179 = vadd.f32 %v1899, %v2166
      %s2180 = scalar_lea.vmem %s3, 12
      %v2181 = vld [vmem:[%s2180] sm:$0x3]
      %2182 = vrot.lane.b32.xlu0 %v515, 95
      %v2183 = vpop.permute.xlu0 %2182
      %2184 = vrot.lane.b32.xlu0 %v514, 95
      %v2185 = vpop.permute.xlu0 %2184
      %2186 = vrot.lane.b32.xlu0 %v516, 95
      %v2187 = vpop.permute.xlu0 %2186
      %2188 = vrot.lane.b32.xlu0 %v524, 95
      %v2189 = vpop.permute.xlu0 %2188
      %2190 = vrot.lane.b32.xlu0 %v532, 95
      %v2191 = vpop.permute.xlu0 %2190
      %2192 = vrot.lane.b32.xlu0 %v531, 95
      %v2193 = vpop.permute.xlu0 %2192
      %2194 = vrot.lane.b32.xlu0 %v533, 95
      %v2195 = vpop.permute.xlu0 %2194
      %2196 = vrot.lane.b32.xlu0 %v540, 95
      %v2197 = vpop.permute.xlu0 %2196
      %2198 = vrot.lane.b32.xlu0 %v541, 95
      %v2199 = vpop.permute.xlu0 %2198
      %2200 = vrot.lane.b32.xlu0 %v1368, 95
      %v2201 = vpop.permute.xlu0 %2200
      %vm2202 = vcmask 777216
      %v2203 = vsel %vm2202, %v2183, %v2185
      %v2204 = vsel %vm2202, %v2185, %v2187
      %v2205 = vsel %vm2202, %v2187, %v2189
      %v2206 = vsel %vm2202, %v2189, %v2191
      %v2207 = vsel %vm2202, %v2191, %v2193
      %v2208 = vsel %vm2202, %v2193, %v2195
      %v2209 = vsel %vm2202, %v2195, %v2197
      %v2210 = vsel %vm2202, %v2197, %v2199
      %v2211 = vsel %vm2202, %v2199, %v2201
      %v2213 = vsel %vm572, %v2181, 0
      %v2216 = vsel %vm487, %v2203, 0
      %v2219 = vsel %vm487, %v2204, 0
      %v2222 = vsel %vm487, %v2205, 0
      %v2225 = vsel %vm487, %v2206, 0
      %v2228 = vsel %vm487, %v2207, 0
      %v2231 = vsel %vm487, %v2208, 0
      %v2234 = vsel %vm487, %v2209, 0
      %v2237 = vsel %vm487, %v2210, 0
      %v2240 = vsel %vm487, %v2211, 0
      %v2243 = vsel %vm487, %v2201, 0
      %2245 = vmatprep.subr.bf16.mxu0 0
      %2246 = vmatpush1.bf16.msra.mxu0 0
      %2247 = vmatprep.subr.bf16.mxu0 0
      %2248 = vmatpush1.bf16.msra.mxu0 0
      %2249 = vmatprep.subr.bf16.mxu0 0
      %2250 = vmatpush1.bf16.msra.mxu0 0
      %2251 = vmatprep.subr.bf16.mxu0 0
      %2252 = vmatpush1.bf16.msra.mxu0 0
      %2253 = vmatprep.subr.bf16.mxu0 0
      %2254 = vmatpush1.bf16.msra.mxu0 0
      %2255 = vmatprep.subr.bf16.mxu0 0
      %2256 = vmatpush1.bf16.msra.mxu0 0
      %2257 = vmatprep.subr.bf16.mxu0 0
      %2258 = vmatpush1.bf16.msra.mxu0 0
      %2259 = vmatprep.subr.bf16.mxu0 %v2219
      %2260 = vmatpush1.bf16.msra.mxu0 %v2216
      %2261 = vmatprep.subr.bf16.mxu0 0
      %2262 = vmatpush2.bf16.msra.mxu0 0
      %2263 = vmatprep.subr.bf16.mxu0 0
      %2264 = vmatpush2.bf16.msra.mxu0 0
      %2265 = vmatprep.subr.bf16.mxu0 0
      %2266 = vmatpush2.bf16.msra.mxu0 0
      %2267 = vmatprep.subr.bf16.mxu0 0
      %2268 = vmatpush2.bf16.msra.mxu0 0
      %2269 = vmatprep.subr.bf16.mxu0 0
      %2270 = vmatpush2.bf16.msra.mxu0 0
      %2271 = vmatprep.subr.bf16.mxu0 0
      %2272 = vmatpush2.bf16.msra.mxu0 0
      %2273 = vmatprep.subr.bf16.mxu0 0
      %2274 = vmatpush2.bf16.msra.mxu0 0
      %2275 = vmatprep.subr.bf16.mxu0 0
      %2276 = vmatpush2.bf16.msra.mxu0 0
      %2277 = vmatprep.mubr.bf16.mxu0 0
      %2278 = vmatmul.mubr.bf16.gmra.mxu0 %v2213
      %v2279 = vpop.f32.mrf.mxu0
      %v2280 = vadd.f32 0.0, %v2279
      %v2281 = vpop.f32.mrf.mxu0
      %v2282 = vadd.f32 0.0, %v2281
      %v2283 = vpop.f32.mrf.mxu0
      %v2284 = vpop.f32.mrf.mxu0
      %2285 = vdwg.mxu0
      %2286 = vmatprep.subr.bf16.mxu0 0
      %2287 = vmatpush1.bf16.msra.mxu0 0
      %2288 = vmatprep.subr.bf16.mxu0 0
      %2289 = vmatpush1.bf16.msra.mxu0 0
      %2290 = vmatprep.subr.bf16.mxu0 0
      %2291 = vmatpush1.bf16.msra.mxu0 0
      %2292 = vmatprep.subr.bf16.mxu0 0
      %2293 = vmatpush1.bf16.msra.mxu0 0
      %2294 = vmatprep.subr.bf16.mxu0 0
      %2295 = vmatpush1.bf16.msra.mxu0 0
      %2296 = vmatprep.subr.bf16.mxu0 0
      %2297 = vmatpush1.bf16.msra.mxu0 0
      %2298 = vmatprep.subr.bf16.mxu0 0
      %2299 = vmatpush1.bf16.msra.mxu0 0
      %2300 = vmatprep.subr.bf16.mxu0 %v2225
      %2301 = vmatpush1.bf16.msra.mxu0 %v2222
      %2302 = vmatprep.subr.bf16.mxu0 0
      %2303 = vmatpush2.bf16.msra.mxu0 0
      %2304 = vmatprep.subr.bf16.mxu0 0
      %2305 = vmatpush2.bf16.msra.mxu0 0
      %2306 = vmatprep.subr.bf16.mxu0 0
      %2307 = vmatpush2.bf16.msra.mxu0 0
      %2308 = vmatprep.subr.bf16.mxu0 0
      %2309 = vmatpush2.bf16.msra.mxu0 0
      %2310 = vmatprep.subr.bf16.mxu0 0
      %2311 = vmatpush2.bf16.msra.mxu0 0
      %2312 = vmatprep.subr.bf16.mxu0 0
      %2313 = vmatpush2.bf16.msra.mxu0 0
      %2314 = vmatprep.subr.bf16.mxu0 0
      %2315 = vmatpush2.bf16.msra.mxu0 0
      %2316 = vmatprep.subr.bf16.mxu0 0
      %2317 = vmatpush2.bf16.msra.mxu0 0
      %2318 = vmatprep.mubr.bf16.mxu0 0
      %2319 = vmatmul.mubr.bf16.gmra.mxu0 %v2213
      %v2320 = vpop.f32.mrf.mxu0
      %v2321 = vadd.f32 0.0, %v2320
      %v2322 = vpop.f32.mrf.mxu0
      %v2323 = vadd.f32 0.0, %v2322
      %v2324 = vpop.f32.mrf.mxu0
      %v2325 = vpop.f32.mrf.mxu0
      %2326 = vdwg.mxu0
      %2327 = vmatprep.subr.bf16.mxu0 0
      %2328 = vmatpush1.bf16.msra.mxu0 0
      %2329 = vmatprep.subr.bf16.mxu0 0
      %2330 = vmatpush1.bf16.msra.mxu0 0
      %2331 = vmatprep.subr.bf16.mxu0 0
      %2332 = vmatpush1.bf16.msra.mxu0 0
      %2333 = vmatprep.subr.bf16.mxu0 0
      %2334 = vmatpush1.bf16.msra.mxu0 0
      %2335 = vmatprep.subr.bf16.mxu0 0
      %2336 = vmatpush1.bf16.msra.mxu0 0
      %2337 = vmatprep.subr.bf16.mxu0 0
      %2338 = vmatpush1.bf16.msra.mxu0 0
      %2339 = vmatprep.subr.bf16.mxu0 0
      %2340 = vmatpush1.bf16.msra.mxu0 0
      %2341 = vmatprep.subr.bf16.mxu0 %v2231
      %2342 = vmatpush1.bf16.msra.mxu0 %v2228
      %2343 = vmatprep.subr.bf16.mxu0 0
      %2344 = vmatpush2.bf16.msra.mxu0 0
      %2345 = vmatprep.subr.bf16.mxu0 0
      %2346 = vmatpush2.bf16.msra.mxu0 0
      %2347 = vmatprep.subr.bf16.mxu0 0
      %2348 = vmatpush2.bf16.msra.mxu0 0
      %2349 = vmatprep.subr.bf16.mxu0 0
      %2350 = vmatpush2.bf16.msra.mxu0 0
      %2351 = vmatprep.subr.bf16.mxu0 0
      %2352 = vmatpush2.bf16.msra.mxu0 0
      %2353 = vmatprep.subr.bf16.mxu0 0
      %2354 = vmatpush2.bf16.msra.mxu0 0
      %2355 = vmatprep.subr.bf16.mxu0 0
      %2356 = vmatpush2.bf16.msra.mxu0 0
      %2357 = vmatprep.subr.bf16.mxu0 0
      %2358 = vmatpush2.bf16.msra.mxu0 0
      %2359 = vmatprep.mubr.bf16.mxu0 0
      %2360 = vmatmul.mubr.bf16.gmra.mxu0 %v2213
      %v2361 = vpop.f32.mrf.mxu0
      %v2362 = vadd.f32 0.0, %v2361
      %v2363 = vpop.f32.mrf.mxu0
      %v2364 = vadd.f32 0.0, %v2363
      %v2365 = vpop.f32.mrf.mxu0
      %v2366 = vpop.f32.mrf.mxu0
      %2367 = vdwg.mxu0
      %2368 = vmatprep.subr.bf16.mxu0 0
      %2369 = vmatpush1.bf16.msra.mxu0 0
      %2370 = vmatprep.subr.bf16.mxu0 0
      %2371 = vmatpush1.bf16.msra.mxu0 0
      %2372 = vmatprep.subr.bf16.mxu0 0
      %2373 = vmatpush1.bf16.msra.mxu0 0
      %2374 = vmatprep.subr.bf16.mxu0 0
      %2375 = vmatpush1.bf16.msra.mxu0 0
      %2376 = vmatprep.subr.bf16.mxu0 0
      %2377 = vmatpush1.bf16.msra.mxu0 0
      %2378 = vmatprep.subr.bf16.mxu0 0
      %2379 = vmatpush1.bf16.msra.mxu0 0
      %2380 = vmatprep.subr.bf16.mxu0 0
      %2381 = vmatpush1.bf16.msra.mxu0 0
      %2382 = vmatprep.subr.bf16.mxu0 %v2237
      %2383 = vmatpush1.bf16.msra.mxu0 %v2234
      %2384 = vmatprep.subr.bf16.mxu0 0
      %2385 = vmatpush2.bf16.msra.mxu0 0
      %2386 = vmatprep.subr.bf16.mxu0 0
      %2387 = vmatpush2.bf16.msra.mxu0 0
      %2388 = vmatprep.subr.bf16.mxu0 0
      %2389 = vmatpush2.bf16.msra.mxu0 0
      %2390 = vmatprep.subr.bf16.mxu0 0
      %2391 = vmatpush2.bf16.msra.mxu0 0
      %2392 = vmatprep.subr.bf16.mxu0 0
      %2393 = vmatpush2.bf16.msra.mxu0 0
      %2394 = vmatprep.subr.bf16.mxu0 0
      %2395 = vmatpush2.bf16.msra.mxu0 0
      %2396 = vmatprep.subr.bf16.mxu0 0
      %2397 = vmatpush2.bf16.msra.mxu0 0
      %2398 = vmatprep.subr.bf16.mxu0 0
      %2399 = vmatpush2.bf16.msra.mxu0 0
      %2400 = vmatprep.mubr.bf16.mxu0 0
      %2401 = vmatmul.mubr.bf16.gmra.mxu0 %v2213
      %v2402 = vpop.f32.mrf.mxu0
      %v2403 = vadd.f32 0.0, %v2402
      %v2404 = vpop.f32.mrf.mxu0
      %v2405 = vadd.f32 0.0, %v2404
      %v2406 = vpop.f32.mrf.mxu0
      %v2407 = vpop.f32.mrf.mxu0
      %2408 = vdwg.mxu0
      %2409 = vmatprep.subr.bf16.mxu0 0
      %2410 = vmatpush1.bf16.msra.mxu0 0
      %2411 = vmatprep.subr.bf16.mxu0 0
      %2412 = vmatpush1.bf16.msra.mxu0 0
      %2413 = vmatprep.subr.bf16.mxu0 0
      %2414 = vmatpush1.bf16.msra.mxu0 0
      %2415 = vmatprep.subr.bf16.mxu0 0
      %2416 = vmatpush1.bf16.msra.mxu0 0
      %2417 = vmatprep.subr.bf16.mxu0 0
      %2418 = vmatpush1.bf16.msra.mxu0 0
      %2419 = vmatprep.subr.bf16.mxu0 0
      %2420 = vmatpush1.bf16.msra.mxu0 0
      %2421 = vmatprep.subr.bf16.mxu0 0
      %2422 = vmatpush1.bf16.msra.mxu0 0
      %2423 = vmatprep.subr.bf16.mxu0 %v2243
      %2424 = vmatpush1.bf16.msra.mxu0 %v2240
      %2425 = vmatprep.subr.bf16.mxu0 0
      %2426 = vmatpush2.bf16.msra.mxu0 0
      %2427 = vmatprep.subr.bf16.mxu0 0
      %2428 = vmatpush2.bf16.msra.mxu0 0
      %2429 = vmatprep.subr.bf16.mxu0 0
      %2430 = vmatpush2.bf16.msra.mxu0 0
      %2431 = vmatprep.subr.bf16.mxu0 0
      %2432 = vmatpush2.bf16.msra.mxu0 0
      %2433 = vmatprep.subr.bf16.mxu0 0
      %2434 = vmatpush2.bf16.msra.mxu0 0
      %2435 = vmatprep.subr.bf16.mxu0 0
      %2436 = vmatpush2.bf16.msra.mxu0 0
      %2437 = vmatprep.subr.bf16.mxu0 0
      %2438 = vmatpush2.bf16.msra.mxu0 0
      %2439 = vmatprep.subr.bf16.mxu0 0
      %2440 = vmatpush2.bf16.msra.mxu0 0
      %2441 = vmatprep.mubr.bf16.mxu0 0
      %2442 = vmatmul.mubr.bf16.gmra.mxu0 %v2213
      %v2443 = vpop.f32.mrf.mxu0
      %v2444 = vadd.f32 0.0, %v2443
      %v2445 = vpop.f32.mrf.mxu0
      %v2446 = vadd.f32 0.0, %v2445
      %v2447 = vpop.f32.mrf.mxu0
      %v2448 = vpop.f32.mrf.mxu0
      %2449 = vdwg.mxu0
      %v2450 = vadd.f32 %v2170, %v2280
      %v2451 = vadd.f32 %v2171, %v2282
      %v2452 = vadd.f32 %v2172, %v2321
      %v2453 = vadd.f32 %v2173, %v2323
      %v2454 = vadd.f32 %v2174, %v2362
      %v2455 = vadd.f32 %v2175, %v2364
      %v2456 = vadd.f32 %v2176, %v2403
      %v2457 = vadd.f32 %v2177, %v2405
      %v2458 = vadd.f32 %v2178, %v2444
      %v2459 = vadd.f32 %v2179, %v2446
      %s2460 = scalar_lea.vmem %s3, 14
      %v2461 = vld [vmem:[%s2460] sm:$0x3]
      %2462 = vrot.lane.b32.xlu0 %v515, 94
      %v2463 = vpop.permute.xlu0 %2462
      %2464 = vrot.lane.b32.xlu0 %v514, 94
      %v2465 = vpop.permute.xlu0 %2464
      %2466 = vrot.lane.b32.xlu0 %v516, 94
      %v2467 = vpop.permute.xlu0 %2466
      %2468 = vrot.lane.b32.xlu0 %v524, 94
      %v2469 = vpop.permute.xlu0 %2468
      %2470 = vrot.lane.b32.xlu0 %v532, 94
      %v2471 = vpop.permute.xlu0 %2470
      %2472 = vrot.lane.b32.xlu0 %v531, 94
      %v2473 = vpop.permute.xlu0 %2472
      %2474 = vrot.lane.b32.xlu0 %v533, 94
      %v2475 = vpop.permute.xlu0 %2474
      %2476 = vrot.lane.b32.xlu0 %v540, 94
      %v2477 = vpop.permute.xlu0 %2476
      %2478 = vrot.lane.b32.xlu0 %v541, 94
      %v2479 = vpop.permute.xlu0 %2478
      %2480 = vrot.lane.b32.xlu0 %v1368, 94
      %v2481 = vpop.permute.xlu0 %2480
      %vm2482 = vcmask 769024
      %v2483 = vsel %vm2482, %v2463, %v2465
      %v2484 = vsel %vm2482, %v2465, %v2467
      %v2485 = vsel %vm2482, %v2467, %v2469
      %v2486 = vsel %vm2482, %v2469, %v2471
      %v2487 = vsel %vm2482, %v2471, %v2473
      %v2488 = vsel %vm2482, %v2473, %v2475
      %v2489 = vsel %vm2482, %v2475, %v2477
      %v2490 = vsel %vm2482, %v2477, %v2479
      %v2491 = vsel %vm2482, %v2479, %v2481
      %v2493 = vsel %vm572, %v2461, 0
      %v2496 = vsel %vm487, %v2483, 0
      %v2499 = vsel %vm487, %v2484, 0
      %v2502 = vsel %vm487, %v2485, 0
      %v2505 = vsel %vm487, %v2486, 0
      %v2508 = vsel %vm487, %v2487, 0
      %v2511 = vsel %vm487, %v2488, 0
      %v2514 = vsel %vm487, %v2489, 0
      %v2517 = vsel %vm487, %v2490, 0
      %v2520 = vsel %vm487, %v2491, 0
      %v2523 = vsel %vm487, %v2481, 0
      %2525 = vmatprep.subr.bf16.mxu0 0
      %2526 = vmatpush1.bf16.msra.mxu0 0
      %2527 = vmatprep.subr.bf16.mxu0 0
      %2528 = vmatpush1.bf16.msra.mxu0 0
      %2529 = vmatprep.subr.bf16.mxu0 0
      %2530 = vmatpush1.bf16.msra.mxu0 0
      %2531 = vmatprep.subr.bf16.mxu0 0
      %2532 = vmatpush1.bf16.msra.mxu0 0
      %2533 = vmatprep.subr.bf16.mxu0 0
      %2534 = vmatpush1.bf16.msra.mxu0 0
      %2535 = vmatprep.subr.bf16.mxu0 0
      %2536 = vmatpush1.bf16.msra.mxu0 0
      %2537 = vmatprep.subr.bf16.mxu0 0
      %2538 = vmatpush1.bf16.msra.mxu0 0
      %2539 = vmatprep.subr.bf16.mxu0 %v2499
      %2540 = vmatpush1.bf16.msra.mxu0 %v2496
      %2541 = vmatprep.subr.bf16.mxu0 0
      %2542 = vmatpush2.bf16.msra.mxu0 0
      %2543 = vmatprep.subr.bf16.mxu0 0
      %2544 = vmatpush2.bf16.msra.mxu0 0
      %2545 = vmatprep.subr.bf16.mxu0 0
      %2546 = vmatpush2.bf16.msra.mxu0 0
      %2547 = vmatprep.subr.bf16.mxu0 0
      %2548 = vmatpush2.bf16.msra.mxu0 0
      %2549 = vmatprep.subr.bf16.mxu0 0
      %2550 = vmatpush2.bf16.msra.mxu0 0
      %2551 = vmatprep.subr.bf16.mxu0 0
      %2552 = vmatpush2.bf16.msra.mxu0 0
      %2553 = vmatprep.subr.bf16.mxu0 0
      %2554 = vmatpush2.bf16.msra.mxu0 0
      %2555 = vmatprep.subr.bf16.mxu0 0
      %2556 = vmatpush2.bf16.msra.mxu0 0
      %2557 = vmatprep.mubr.bf16.mxu0 0
      %2558 = vmatmul.mubr.bf16.gmra.mxu0 %v2493
      %v2559 = vpop.f32.mrf.mxu0
      %v2560 = vadd.f32 0.0, %v2559
      %v2561 = vpop.f32.mrf.mxu0
      %v2562 = vadd.f32 0.0, %v2561
      %v2563 = vpop.f32.mrf.mxu0
      %v2564 = vpop.f32.mrf.mxu0
      %2565 = vdwg.mxu0
      %2566 = vmatprep.subr.bf16.mxu0 0
      %2567 = vmatpush1.bf16.msra.mxu0 0
      %2568 = vmatprep.subr.bf16.mxu0 0
      %2569 = vmatpush1.bf16.msra.mxu0 0
      %2570 = vmatprep.subr.bf16.mxu0 0
      %2571 = vmatpush1.bf16.msra.mxu0 0
      %2572 = vmatprep.subr.bf16.mxu0 0
      %2573 = vmatpush1.bf16.msra.mxu0 0
      %2574 = vmatprep.subr.bf16.mxu0 0
      %2575 = vmatpush1.bf16.msra.mxu0 0
      %2576 = vmatprep.subr.bf16.mxu0 0
      %2577 = vmatpush1.bf16.msra.mxu0 0
      %2578 = vmatprep.subr.bf16.mxu0 0
      %2579 = vmatpush1.bf16.msra.mxu0 0
      %2580 = vmatprep.subr.bf16.mxu0 %v2505
      %2581 = vmatpush1.bf16.msra.mxu0 %v2502
      %2582 = vmatprep.subr.bf16.mxu0 0
      %2583 = vmatpush2.bf16.msra.mxu0 0
      %2584 = vmatprep.subr.bf16.mxu0 0
      %2585 = vmatpush2.bf16.msra.mxu0 0
      %2586 = vmatprep.subr.bf16.mxu0 0
      %2587 = vmatpush2.bf16.msra.mxu0 0
      %2588 = vmatprep.subr.bf16.mxu0 0
      %2589 = vmatpush2.bf16.msra.mxu0 0
      %2590 = vmatprep.subr.bf16.mxu0 0
      %2591 = vmatpush2.bf16.msra.mxu0 0
      %2592 = vmatprep.subr.bf16.mxu0 0
      %2593 = vmatpush2.bf16.msra.mxu0 0
      %2594 = vmatprep.subr.bf16.mxu0 0
      %2595 = vmatpush2.bf16.msra.mxu0 0
      %2596 = vmatprep.subr.bf16.mxu0 0
      %2597 = vmatpush2.bf16.msra.mxu0 0
      %2598 = vmatprep.mubr.bf16.mxu0 0
      %2599 = vmatmul.mubr.bf16.gmra.mxu0 %v2493
      %v2600 = vpop.f32.mrf.mxu0
      %v2601 = vadd.f32 0.0, %v2600
      %v2602 = vpop.f32.mrf.mxu0
      %v2603 = vadd.f32 0.0, %v2602
      %v2604 = vpop.f32.mrf.mxu0
      %v2605 = vpop.f32.mrf.mxu0
      %2606 = vdwg.mxu0
      %2607 = vmatprep.subr.bf16.mxu0 0
      %2608 = vmatpush1.bf16.msra.mxu0 0
      %2609 = vmatprep.subr.bf16.mxu0 0
      %2610 = vmatpush1.bf16.msra.mxu0 0
      %2611 = vmatprep.subr.bf16.mxu0 0
      %2612 = vmatpush1.bf16.msra.mxu0 0
      %2613 = vmatprep.subr.bf16.mxu0 0
      %2614 = vmatpush1.bf16.msra.mxu0 0
      %2615 = vmatprep.subr.bf16.mxu0 0
      %2616 = vmatpush1.bf16.msra.mxu0 0
      %2617 = vmatprep.subr.bf16.mxu0 0
      %2618 = vmatpush1.bf16.msra.mxu0 0
      %2619 = vmatprep.subr.bf16.mxu0 0
      %2620 = vmatpush1.bf16.msra.mxu0 0
      %2621 = vmatprep.subr.bf16.mxu0 %v2511
      %2622 = vmatpush1.bf16.msra.mxu0 %v2508
      %2623 = vmatprep.subr.bf16.mxu0 0
      %2624 = vmatpush2.bf16.msra.mxu0 0
      %2625 = vmatprep.subr.bf16.mxu0 0
      %2626 = vmatpush2.bf16.msra.mxu0 0
      %2627 = vmatprep.subr.bf16.mxu0 0
      %2628 = vmatpush2.bf16.msra.mxu0 0
      %2629 = vmatprep.subr.bf16.mxu0 0
      %2630 = vmatpush2.bf16.msra.mxu0 0
      %2631 = vmatprep.subr.bf16.mxu0 0
      %2632 = vmatpush2.bf16.msra.mxu0 0
      %2633 = vmatprep.subr.bf16.mxu0 0
      %2634 = vmatpush2.bf16.msra.mxu0 0
      %2635 = vmatprep.subr.bf16.mxu0 0
      %2636 = vmatpush2.bf16.msra.mxu0 0
      %2637 = vmatprep.subr.bf16.mxu0 0
      %2638 = vmatpush2.bf16.msra.mxu0 0
      %2639 = vmatprep.mubr.bf16.mxu0 0
      %2640 = vmatmul.mubr.bf16.gmra.mxu0 %v2493
      %v2641 = vpop.f32.mrf.mxu0
      %v2642 = vadd.f32 0.0, %v2641
      %v2643 = vpop.f32.mrf.mxu0
      %v2644 = vadd.f32 0.0, %v2643
      %v2645 = vpop.f32.mrf.mxu0
      %v2646 = vpop.f32.mrf.mxu0
      %2647 = vdwg.mxu0
      %2648 = vmatprep.subr.bf16.mxu0 0
      %2649 = vmatpush1.bf16.msra.mxu0 0
      %2650 = vmatprep.subr.bf16.mxu0 0
      %2651 = vmatpush1.bf16.msra.mxu0 0
      %2652 = vmatprep.subr.bf16.mxu0 0
      %2653 = vmatpush1.bf16.msra.mxu0 0
      %2654 = vmatprep.subr.bf16.mxu0 0
      %2655 = vmatpush1.bf16.msra.mxu0 0
      %2656 = vmatprep.subr.bf16.mxu0 0
      %2657 = vmatpush1.bf16.msra.mxu0 0
      %2658 = vmatprep.subr.bf16.mxu0 0
      %2659 = vmatpush1.bf16.msra.mxu0 0
      %2660 = vmatprep.subr.bf16.mxu0 0
      %2661 = vmatpush1.bf16.msra.mxu0 0
      %2662 = vmatprep.subr.bf16.mxu0 %v2517
      %2663 = vmatpush1.bf16.msra.mxu0 %v2514
      %2664 = vmatprep.subr.bf16.mxu0 0
      %2665 = vmatpush2.bf16.msra.mxu0 0
      %2666 = vmatprep.subr.bf16.mxu0 0
      %2667 = vmatpush2.bf16.msra.mxu0 0
      %2668 = vmatprep.subr.bf16.mxu0 0
      %2669 = vmatpush2.bf16.msra.mxu0 0
      %2670 = vmatprep.subr.bf16.mxu0 0
      %2671 = vmatpush2.bf16.msra.mxu0 0
      %2672 = vmatprep.subr.bf16.mxu0 0
      %2673 = vmatpush2.bf16.msra.mxu0 0
      %2674 = vmatprep.subr.bf16.mxu0 0
      %2675 = vmatpush2.bf16.msra.mxu0 0
      %2676 = vmatprep.subr.bf16.mxu0 0
      %2677 = vmatpush2.bf16.msra.mxu0 0
      %2678 = vmatprep.subr.bf16.mxu0 0
      %2679 = vmatpush2.bf16.msra.mxu0 0
      %2680 = vmatprep.mubr.bf16.mxu0 0
      %2681 = vmatmul.mubr.bf16.gmra.mxu0 %v2493
      %v2682 = vpop.f32.mrf.mxu0
      %v2683 = vadd.f32 0.0, %v2682
      %v2684 = vpop.f32.mrf.mxu0
      %v2685 = vadd.f32 0.0, %v2684
      %v2686 = vpop.f32.mrf.mxu0
      %v2687 = vpop.f32.mrf.mxu0
      %2688 = vdwg.mxu0
      %2689 = vmatprep.subr.bf16.mxu0 0
      %2690 = vmatpush1.bf16.msra.mxu0 0
      %2691 = vmatprep.subr.bf16.mxu0 0
      %2692 = vmatpush1.bf16.msra.mxu0 0
      %2693 = vmatprep.subr.bf16.mxu0 0
      %2694 = vmatpush1.bf16.msra.mxu0 0
      %2695 = vmatprep.subr.bf16.mxu0 0
      %2696 = vmatpush1.bf16.msra.mxu0 0
      %2697 = vmatprep.subr.bf16.mxu0 0
      %2698 = vmatpush1.bf16.msra.mxu0 0
      %2699 = vmatprep.subr.bf16.mxu0 0
      %2700 = vmatpush1.bf16.msra.mxu0 0
      %2701 = vmatprep.subr.bf16.mxu0 0
      %2702 = vmatpush1.bf16.msra.mxu0 0
      %2703 = vmatprep.subr.bf16.mxu0 %v2523
      %2704 = vmatpush1.bf16.msra.mxu0 %v2520
      %2705 = vmatprep.subr.bf16.mxu0 0
      %2706 = vmatpush2.bf16.msra.mxu0 0
      %2707 = vmatprep.subr.bf16.mxu0 0
      %2708 = vmatpush2.bf16.msra.mxu0 0
      %2709 = vmatprep.subr.bf16.mxu0 0
      %2710 = vmatpush2.bf16.msra.mxu0 0
      %2711 = vmatprep.subr.bf16.mxu0 0
      %2712 = vmatpush2.bf16.msra.mxu0 0
      %2713 = vmatprep.subr.bf16.mxu0 0
      %2714 = vmatpush2.bf16.msra.mxu0 0
      %2715 = vmatprep.subr.bf16.mxu0 0
      %2716 = vmatpush2.bf16.msra.mxu0 0
      %2717 = vmatprep.subr.bf16.mxu0 0
      %2718 = vmatpush2.bf16.msra.mxu0 0
      %2719 = vmatprep.subr.bf16.mxu0 0
      %2720 = vmatpush2.bf16.msra.mxu0 0
      %2721 = vmatprep.mubr.bf16.mxu0 0
      %2722 = vmatmul.mubr.bf16.gmra.mxu0 %v2493
      %v2723 = vpop.f32.mrf.mxu0
      %v2724 = vadd.f32 0.0, %v2723
      %v2725 = vpop.f32.mrf.mxu0
      %v2726 = vadd.f32 0.0, %v2725
      %v2727 = vpop.f32.mrf.mxu0
      %v2728 = vpop.f32.mrf.mxu0
      %2729 = vdwg.mxu0
      %v2730 = vadd.f32 %v2450, %v2560
      %v2731 = vadd.f32 %v2451, %v2562
      %v2732 = vadd.f32 %v2452, %v2601
      %v2733 = vadd.f32 %v2453, %v2603
      %v2734 = vadd.f32 %v2454, %v2642
      %v2735 = vadd.f32 %v2455, %v2644
      %v2736 = vadd.f32 %v2456, %v2683
      %v2737 = vadd.f32 %v2457, %v2685
      %v2738 = vadd.f32 %v2458, %v2724
      %v2739 = vadd.f32 %v2459, %v2726
      %s2740 = scalar_lea.vmem %s3, 16
      %v2741 = vld [vmem:[%s2740] sm:$0x3]
      %2742 = vrot.lane.b32.xlu0 %v515, 93
      %v2743 = vpop.permute.xlu0 %2742
      %2744 = vrot.lane.b32.xlu0 %v514, 93
      %v2745 = vpop.permute.xlu0 %2744
      %2746 = vrot.lane.b32.xlu0 %v516, 93
      %v2747 = vpop.permute.xlu0 %2746
      %2748 = vrot.lane.b32.xlu0 %v524, 93
      %v2749 = vpop.permute.xlu0 %2748
      %2750 = vrot.lane.b32.xlu0 %v532, 93
      %v2751 = vpop.permute.xlu0 %2750
      %2752 = vrot.lane.b32.xlu0 %v531, 93
      %v2753 = vpop.permute.xlu0 %2752
      %2754 = vrot.lane.b32.xlu0 %v533, 93
      %v2755 = vpop.permute.xlu0 %2754
      %2756 = vrot.lane.b32.xlu0 %v540, 93
      %v2757 = vpop.permute.xlu0 %2756
      %2758 = vrot.lane.b32.xlu0 %v541, 93
      %v2759 = vpop.permute.xlu0 %2758
      %2760 = vrot.lane.b32.xlu0 %v1368, 93
      %v2761 = vpop.permute.xlu0 %2760
      %vm2762 = vcmask 760832
      %v2763 = vsel %vm2762, %v2743, %v2745
      %v2764 = vsel %vm2762, %v2745, %v2747
      %v2765 = vsel %vm2762, %v2747, %v2749
      %v2766 = vsel %vm2762, %v2749, %v2751
      %v2767 = vsel %vm2762, %v2751, %v2753
      %v2768 = vsel %vm2762, %v2753, %v2755
      %v2769 = vsel %vm2762, %v2755, %v2757
      %v2770 = vsel %vm2762, %v2757, %v2759
      %v2771 = vsel %vm2762, %v2759, %v2761
      %v2773 = vsel %vm572, %v2741, 0
      %v2776 = vsel %vm487, %v2763, 0
      %v2779 = vsel %vm487, %v2764, 0
      %v2782 = vsel %vm487, %v2765, 0
      %v2785 = vsel %vm487, %v2766, 0
      %v2788 = vsel %vm487, %v2767, 0
      %v2791 = vsel %vm487, %v2768, 0
      %v2794 = vsel %vm487, %v2769, 0
      %v2797 = vsel %vm487, %v2770, 0
      %v2800 = vsel %vm487, %v2771, 0
      %v2803 = vsel %vm487, %v2761, 0
      %2805 = vmatprep.subr.bf16.mxu0 0
      %2806 = vmatpush1.bf16.msra.mxu0 0
      %2807 = vmatprep.subr.bf16.mxu0 0
      %2808 = vmatpush1.bf16.msra.mxu0 0
      %2809 = vmatprep.subr.bf16.mxu0 0
      %2810 = vmatpush1.bf16.msra.mxu0 0
      %2811 = vmatprep.subr.bf16.mxu0 0
      %2812 = vmatpush1.bf16.msra.mxu0 0
      %2813 = vmatprep.subr.bf16.mxu0 0
      %2814 = vmatpush1.bf16.msra.mxu0 0
      %2815 = vmatprep.subr.bf16.mxu0 0
      %2816 = vmatpush1.bf16.msra.mxu0 0
      %2817 = vmatprep.subr.bf16.mxu0 0
      %2818 = vmatpush1.bf16.msra.mxu0 0
      %2819 = vmatprep.subr.bf16.mxu0 %v2779
      %2820 = vmatpush1.bf16.msra.mxu0 %v2776
      %2821 = vmatprep.subr.bf16.mxu0 0
      %2822 = vmatpush2.bf16.msra.mxu0 0
      %2823 = vmatprep.subr.bf16.mxu0 0
      %2824 = vmatpush2.bf16.msra.mxu0 0
      %2825 = vmatprep.subr.bf16.mxu0 0
      %2826 = vmatpush2.bf16.msra.mxu0 0
      %2827 = vmatprep.subr.bf16.mxu0 0
      %2828 = vmatpush2.bf16.msra.mxu0 0
      %2829 = vmatprep.subr.bf16.mxu0 0
      %2830 = vmatpush2.bf16.msra.mxu0 0
      %2831 = vmatprep.subr.bf16.mxu0 0
      %2832 = vmatpush2.bf16.msra.mxu0 0
      %2833 = vmatprep.subr.bf16.mxu0 0
      %2834 = vmatpush2.bf16.msra.mxu0 0
      %2835 = vmatprep.subr.bf16.mxu0 0
      %2836 = vmatpush2.bf16.msra.mxu0 0
      %2837 = vmatprep.mubr.bf16.mxu0 0
      %2838 = vmatmul.mubr.bf16.gmra.mxu0 %v2773
      %v2839 = vpop.f32.mrf.mxu0
      %v2840 = vadd.f32 0.0, %v2839
      %v2841 = vpop.f32.mrf.mxu0
      %v2842 = vadd.f32 0.0, %v2841
      %v2843 = vpop.f32.mrf.mxu0
      %v2844 = vpop.f32.mrf.mxu0
      %2845 = vdwg.mxu0
      %2846 = vmatprep.subr.bf16.mxu0 0
      %2847 = vmatpush1.bf16.msra.mxu0 0
      %2848 = vmatprep.subr.bf16.mxu0 0
      %2849 = vmatpush1.bf16.msra.mxu0 0
      %2850 = vmatprep.subr.bf16.mxu0 0
      %2851 = vmatpush1.bf16.msra.mxu0 0
      %2852 = vmatprep.subr.bf16.mxu0 0
      %2853 = vmatpush1.bf16.msra.mxu0 0
      %2854 = vmatprep.subr.bf16.mxu0 0
      %2855 = vmatpush1.bf16.msra.mxu0 0
      %2856 = vmatprep.subr.bf16.mxu0 0
      %2857 = vmatpush1.bf16.msra.mxu0 0
      %2858 = vmatprep.subr.bf16.mxu0 0
      %2859 = vmatpush1.bf16.msra.mxu0 0
      %2860 = vmatprep.subr.bf16.mxu0 %v2785
      %2861 = vmatpush1.bf16.msra.mxu0 %v2782
      %2862 = vmatprep.subr.bf16.mxu0 0
      %2863 = vmatpush2.bf16.msra.mxu0 0
      %2864 = vmatprep.subr.bf16.mxu0 0
      %2865 = vmatpush2.bf16.msra.mxu0 0
      %2866 = vmatprep.subr.bf16.mxu0 0
      %2867 = vmatpush2.bf16.msra.mxu0 0
      %2868 = vmatprep.subr.bf16.mxu0 0
      %2869 = vmatpush2.bf16.msra.mxu0 0
      %2870 = vmatprep.subr.bf16.mxu0 0
      %2871 = vmatpush2.bf16.msra.mxu0 0
      %2872 = vmatprep.subr.bf16.mxu0 0
      %2873 = vmatpush2.bf16.msra.mxu0 0
      %2874 = vmatprep.subr.bf16.mxu0 0
      %2875 = vmatpush2.bf16.msra.mxu0 0
      %2876 = vmatprep.subr.bf16.mxu0 0
      %2877 = vmatpush2.bf16.msra.mxu0 0
      %2878 = vmatprep.mubr.bf16.mxu0 0
      %2879 = vmatmul.mubr.bf16.gmra.mxu0 %v2773
      %v2880 = vpop.f32.mrf.mxu0
      %v2881 = vadd.f32 0.0, %v2880
      %v2882 = vpop.f32.mrf.mxu0
      %v2883 = vadd.f32 0.0, %v2882
      %v2884 = vpop.f32.mrf.mxu0
      %v2885 = vpop.f32.mrf.mxu0
      %2886 = vdwg.mxu0
      %2887 = vmatprep.subr.bf16.mxu0 0
      %2888 = vmatpush1.bf16.msra.mxu0 0
      %2889 = vmatprep.subr.bf16.mxu0 0
      %2890 = vmatpush1.bf16.msra.mxu0 0
      %2891 = vmatprep.subr.bf16.mxu0 0
      %2892 = vmatpush1.bf16.msra.mxu0 0
      %2893 = vmatprep.subr.bf16.mxu0 0
      %2894 = vmatpush1.bf16.msra.mxu0 0
      %2895 = vmatprep.subr.bf16.mxu0 0
      %2896 = vmatpush1.bf16.msra.mxu0 0
      %2897 = vmatprep.subr.bf16.mxu0 0
      %2898 = vmatpush1.bf16.msra.mxu0 0
      %2899 = vmatprep.subr.bf16.mxu0 0
      %2900 = vmatpush1.bf16.msra.mxu0 0
      %2901 = vmatprep.subr.bf16.mxu0 %v2791
      %2902 = vmatpush1.bf16.msra.mxu0 %v2788
      %2903 = vmatprep.subr.bf16.mxu0 0
      %2904 = vmatpush2.bf16.msra.mxu0 0
      %2905 = vmatprep.subr.bf16.mxu0 0
      %2906 = vmatpush2.bf16.msra.mxu0 0
      %2907 = vmatprep.subr.bf16.mxu0 0
      %2908 = vmatpush2.bf16.msra.mxu0 0
      %2909 = vmatprep.subr.bf16.mxu0 0
      %2910 = vmatpush2.bf16.msra.mxu0 0
      %2911 = vmatprep.subr.bf16.mxu0 0
      %2912 = vmatpush2.bf16.msra.mxu0 0
      %2913 = vmatprep.subr.bf16.mxu0 0
      %2914 = vmatpush2.bf16.msra.mxu0 0
      %2915 = vmatprep.subr.bf16.mxu0 0
      %2916 = vmatpush2.bf16.msra.mxu0 0
      %2917 = vmatprep.subr.bf16.mxu0 0
      %2918 = vmatpush2.bf16.msra.mxu0 0
      %2919 = vmatprep.mubr.bf16.mxu0 0
      %2920 = vmatmul.mubr.bf16.gmra.mxu0 %v2773
      %v2921 = vpop.f32.mrf.mxu0
      %v2922 = vadd.f32 0.0, %v2921
      %v2923 = vpop.f32.mrf.mxu0
      %v2924 = vadd.f32 0.0, %v2923
      %v2925 = vpop.f32.mrf.mxu0
      %v2926 = vpop.f32.mrf.mxu0
      %2927 = vdwg.mxu0
      %2928 = vmatprep.subr.bf16.mxu0 0
      %2929 = vmatpush1.bf16.msra.mxu0 0
      %2930 = vmatprep.subr.bf16.mxu0 0
      %2931 = vmatpush1.bf16.msra.mxu0 0
      %2932 = vmatprep.subr.bf16.mxu0 0
      %2933 = vmatpush1.bf16.msra.mxu0 0
      %2934 = vmatprep.subr.bf16.mxu0 0
      %2935 = vmatpush1.bf16.msra.mxu0 0
      %2936 = vmatprep.subr.bf16.mxu0 0
      %2937 = vmatpush1.bf16.msra.mxu0 0
      %2938 = vmatprep.subr.bf16.mxu0 0
      %2939 = vmatpush1.bf16.msra.mxu0 0
      %2940 = vmatprep.subr.bf16.mxu0 0
      %2941 = vmatpush1.bf16.msra.mxu0 0
      %2942 = vmatprep.subr.bf16.mxu0 %v2797
      %2943 = vmatpush1.bf16.msra.mxu0 %v2794
      %2944 = vmatprep.subr.bf16.mxu0 0
      %2945 = vmatpush2.bf16.msra.mxu0 0
      %2946 = vmatprep.subr.bf16.mxu0 0
      %2947 = vmatpush2.bf16.msra.mxu0 0
      %2948 = vmatprep.subr.bf16.mxu0 0
      %2949 = vmatpush2.bf16.msra.mxu0 0
      %2950 = vmatprep.subr.bf16.mxu0 0
      %2951 = vmatpush2.bf16.msra.mxu0 0
      %2952 = vmatprep.subr.bf16.mxu0 0
      %2953 = vmatpush2.bf16.msra.mxu0 0
      %2954 = vmatprep.subr.bf16.mxu0 0
      %2955 = vmatpush2.bf16.msra.mxu0 0
      %2956 = vmatprep.subr.bf16.mxu0 0
      %2957 = vmatpush2.bf16.msra.mxu0 0
      %2958 = vmatprep.subr.bf16.mxu0 0
      %2959 = vmatpush2.bf16.msra.mxu0 0
      %2960 = vmatprep.mubr.bf16.mxu0 0
      %2961 = vmatmul.mubr.bf16.gmra.mxu0 %v2773
      %v2962 = vpop.f32.mrf.mxu0
      %v2963 = vadd.f32 0.0, %v2962
      %v2964 = vpop.f32.mrf.mxu0
      %v2965 = vadd.f32 0.0, %v2964
      %v2966 = vpop.f32.mrf.mxu0
      %v2967 = vpop.f32.mrf.mxu0
      %2968 = vdwg.mxu0
      %2969 = vmatprep.subr.bf16.mxu0 0
      %2970 = vmatpush1.bf16.msra.mxu0 0
      %2971 = vmatprep.subr.bf16.mxu0 0
      %2972 = vmatpush1.bf16.msra.mxu0 0
      %2973 = vmatprep.subr.bf16.mxu0 0
      %2974 = vmatpush1.bf16.msra.mxu0 0
      %2975 = vmatprep.subr.bf16.mxu0 0
      %2976 = vmatpush1.bf16.msra.mxu0 0
      %2977 = vmatprep.subr.bf16.mxu0 0
      %2978 = vmatpush1.bf16.msra.mxu0 0
      %2979 = vmatprep.subr.bf16.mxu0 0
      %2980 = vmatpush1.bf16.msra.mxu0 0
      %2981 = vmatprep.subr.bf16.mxu0 0
      %2982 = vmatpush1.bf16.msra.mxu0 0
      %2983 = vmatprep.subr.bf16.mxu0 %v2803
      %2984 = vmatpush1.bf16.msra.mxu0 %v2800
      %2985 = vmatprep.subr.bf16.mxu0 0
      %2986 = vmatpush2.bf16.msra.mxu0 0
      %2987 = vmatprep.subr.bf16.mxu0 0
      %2988 = vmatpush2.bf16.msra.mxu0 0
      %2989 = vmatprep.subr.bf16.mxu0 0
      %2990 = vmatpush2.bf16.msra.mxu0 0
      %2991 = vmatprep.subr.bf16.mxu0 0
      %2992 = vmatpush2.bf16.msra.mxu0 0
      %2993 = vmatprep.subr.bf16.mxu0 0
      %2994 = vmatpush2.bf16.msra.mxu0 0
      %2995 = vmatprep.subr.bf16.mxu0 0
      %2996 = vmatpush2.bf16.msra.mxu0 0
      %2997 = vmatprep.subr.bf16.mxu0 0
      %2998 = vmatpush2.bf16.msra.mxu0 0
      %2999 = vmatprep.subr.bf16.mxu0 0
      %3000 = vmatpush2.bf16.msra.mxu0 0
      %3001 = vmatprep.mubr.bf16.mxu0 0
      %3002 = vmatmul.mubr.bf16.gmra.mxu0 %v2773
      %v3003 = vpop.f32.mrf.mxu0
      %v3004 = vadd.f32 0.0, %v3003
      %v3005 = vpop.f32.mrf.mxu0
      %v3006 = vadd.f32 0.0, %v3005
      %v3007 = vpop.f32.mrf.mxu0
      %v3008 = vpop.f32.mrf.mxu0
      %3009 = vdwg.mxu0
      %v3010 = vadd.f32 %v2730, %v2840
      %v3011 = vadd.f32 %v2731, %v2842
      %v3012 = vadd.f32 %v2732, %v2881
      %v3013 = vadd.f32 %v2733, %v2883
      %v3014 = vadd.f32 %v2734, %v2922
      %v3015 = vadd.f32 %v2735, %v2924
      %v3016 = vadd.f32 %v2736, %v2963
      %v3017 = vadd.f32 %v2737, %v2965
      %v3018 = vadd.f32 %v2738, %v3004
      %v3019 = vadd.f32 %v2739, %v3006
      %v3020 = vpack.c.bf16 %v3010, %v3010
      %v3021 = vpack.c.bf16 %v3011, %v3011
      %v3022 = vpack.c.bf16 %v3012, %v3012
      %v3023 = vpack.c.bf16 %v3013, %v3013
      %v3024 = vpack.c.bf16 %v3014, %v3014
      %v3025 = vpack.c.bf16 %v3015, %v3015
      %v3026 = vpack.c.bf16 %v3016, %v3016
      %v3027 = vpack.c.bf16 %v3017, %v3017
      %v3028 = vpack.c.bf16 %v3018, %v3018
      %v3029 = vpack.c.bf16 %v3019, %v3019
      %v3040 = vcombine.low %v3020, %v3021
      %v3041 = vcombine.low %v3022, %v3023
      %v3043 = vunpack.c.l.s4 1983009808
      %v3044 = vunpack.c.0.s8 %v3043
      %v3045 = vlaneseq
      %v3046 = vshrl.u32 %v3045, 7
      %v3047 = vsub.s32 %v3044, %v3046
      %v3048 = vrot.slane %v3040, %v3047
      %v3050 = vunpack.c.l.s4 1983009808
      %v3051 = vunpack.c.0.s8 %v3050
      %v3052 = vlaneseq
      %v3053 = vshrl.u32 %v3052, 7
      %v3054 = vsub.s32 %v3051, %v3053
      %v3055 = vrot.slane %v3041, %v3054
      %v3056 = vcombine.low %v3048, %v3055
      %v3057 = vcombine.low %v3024, %v3025
      %v3058 = vcombine.low %v3026, %v3027
      %v3060 = vunpack.c.l.s4 1983009808
      %v3061 = vunpack.c.0.s8 %v3060
      %v3062 = vlaneseq
      %v3063 = vshrl.u32 %v3062, 7
      %v3064 = vsub.s32 %v3061, %v3063
      %v3065 = vrot.slane %v3057, %v3064
      %v3067 = vunpack.c.l.s4 1983009808
      %v3068 = vunpack.c.0.s8 %v3067
      %v3069 = vlaneseq
      %v3070 = vshrl.u32 %v3069, 7
      %v3071 = vsub.s32 %v3068, %v3070
      %v3072 = vrot.slane %v3058, %v3071
      %v3073 = vcombine.low %v3065, %v3072
      %v3074 = vcombine.low %v3028, %v3029
      %v3076 = vunpack.c.l.s4 1983009808
      %v3077 = vunpack.c.0.s8 %v3076
      %v3078 = vlaneseq
      %v3079 = vshrl.u32 %v3078, 7
      %v3080 = vsub.s32 %v3077, %v3079
      %v3081 = vrot.slane %v3074, %v3080
      %3085 = vst [vmem:[%s258] sm:$0xff] %v3056
      %3086 = vst [vmem:[%s258 + $0x8] sm:$0xff] %v3073
      %3087 = vst.msk [vmem:[%s258 + $0x10] sm:$0xf] %vm489, %v3081
      %v3088 = vmul.f32 %v3010, %v340
      %v3089 = vmul.f32 %v3011, %v344
      %v3090 = vmul.f32 %v3012, %v348
      %v3091 = vmul.f32 %v3013, %v352
      %v3092 = vmul.f32 %v3014, %v356
      %v3093 = vmul.f32 %v3015, %v360
      %v3094 = vmul.f32 %v3016, %v364
      %v3095 = vmul.f32 %v3017, %v368
      %v3096 = vmul.f32 %v3018, %v372
      %v3097 = vmul.f32 %v3019, %v376
      %vm3098 = vcmask 1043456
      %v3099 = vsel %vm3098, %v3088, 0.0
      %v3100 = vsel %vm3098, %v3089, 0.0
      %v3101 = vadd.f32 %v3099, %v3100
      %v3102 = vsel %vm3098, %v3090, 0.0
      %v3103 = vadd.f32 %v3101, %v3102
      %v3104 = vsel %vm3098, %v3091, 0.0
      %v3105 = vadd.f32 %v3103, %v3104
      %v3106 = vsel %vm3098, %v3092, 0.0
      %v3107 = vadd.f32 %v3105, %v3106
      %v3108 = vsel %vm3098, %v3093, 0.0
      %v3109 = vadd.f32 %v3107, %v3108
      %v3110 = vsel %vm3098, %v3094, 0.0
      %v3111 = vadd.f32 %v3109, %v3110
      %v3112 = vsel %vm3098, %v3095, 0.0
      %v3113 = vadd.f32 %v3111, %v3112
      %v3114 = vsel %vm3098, %v3096, 0.0
      %v3115 = vadd.f32 %v3113, %v3114
      %vm3116 = vcmask 27648
      %v3117 = vsel %vm3116, %v3097, 0.0
      %v3118 = vadd.f32 %v3115, %v3117
      %3119 = vadd.xlane.f32.xlu0 %v3118
      %v3120 = vpop.xlane.xlu0 %3119
      %v3121 = vmul.f32 %v3120, 0.0009765625
      %v3122 = vsub.f32 %v3010, %v3121
      %v3123 = vsub.f32 %v3011, %v3121
      %v3124 = vsub.f32 %v3012, %v3121
      %v3125 = vsub.f32 %v3013, %v3121
      %v3126 = vsub.f32 %v3014, %v3121
      %v3127 = vsub.f32 %v3015, %v3121
      %v3128 = vsub.f32 %v3016, %v3121
      %v3129 = vsub.f32 %v3017, %v3121
      %v3130 = vsub.f32 %v3018, %v3121
      %v3131 = vsub.f32 %v3019, %v3121
      %v3132 = vmul.f32 %v3122, %v340
      %v3133 = vmul.f32 %v3123, %v344
      %v3134 = vmul.f32 %v3124, %v348
      %v3135 = vmul.f32 %v3125, %v352
      %v3136 = vmul.f32 %v3126, %v356
      %v3137 = vmul.f32 %v3127, %v360
      %v3138 = vmul.f32 %v3128, %v364
      %v3139 = vmul.f32 %v3129, %v368
      %v3140 = vmul.f32 %v3130, %v372
      %v3141 = vmul.f32 %v3131, %v376
      %v3142 = vmul.f32 %v3132, %v3132
      %v3143 = vmul.f32 %v3133, %v3133
      %v3144 = vmul.f32 %v3134, %v3134
      %v3145 = vmul.f32 %v3135, %v3135
      %v3146 = vmul.f32 %v3136, %v3136
      %v3147 = vmul.f32 %v3137, %v3137
      %v3148 = vmul.f32 %v3138, %v3138
      %v3149 = vmul.f32 %v3139, %v3139
      %v3150 = vmul.f32 %v3140, %v3140
      %v3151 = vmul.f32 %v3141, %v3141
      %v3152 = vsel %vm3098, %v3142, 0.0
      %v3153 = vsel %vm3098, %v3143, 0.0
      %v3154 = vadd.f32 %v3152, %v3153
      %v3155 = vsel %vm3098, %v3144, 0.0
      %v3156 = vadd.f32 %v3154, %v3155
      %v3157 = vsel %vm3098, %v3145, 0.0
      %v3158 = vadd.f32 %v3156, %v3157
      %v3159 = vsel %vm3098, %v3146, 0.0
      %v3160 = vadd.f32 %v3158, %v3159
      %v3161 = vsel %vm3098, %v3147, 0.0
      %v3162 = vadd.f32 %v3160, %v3161
      %v3163 = vsel %vm3098, %v3148, 0.0
      %v3164 = vadd.f32 %v3162, %v3163
      %v3165 = vsel %vm3098, %v3149, 0.0
      %v3166 = vadd.f32 %v3164, %v3165
      %v3167 = vsel %vm3098, %v3150, 0.0
      %v3168 = vadd.f32 %v3166, %v3167
      %v3169 = vsel %vm3116, %v3151, 0.0
      %v3170 = vadd.f32 %v3168, %v3169
      %3171 = vadd.xlane.f32.xlu0 %v3170
      %v3172 = vpop.xlane.xlu0 %3171
      %vm3173 = vcmask 3072
      %3174 = vst.msk [vmem:[%s262] sm:$0xf] %vm3173, %v3120
      %vm3175 = vcmask 11272
      %3176 = vst.msk [vmem:[%s262] sm:$0xf] %vm3175, %v3172
      %p3177 = scmp.lt.s32.totalorder %s18, 1
      %s3178 = scalar_select %p3177, %s18, 1
      %s3179 = smul.addr %s3178, 10
      %s3180 = smul.addr %s3179, 2
      %s3181 = scalar_lea.vmem %s5, %s3180
      %p3182 = scmp.lt.s32.totalorder %s18, 1
      %s3183 = scalar_select %p3182, %s18, 1
      %s3184 = smul.addr %s3183, 4
      %s3185 = scalar_lea.vmem %s6, %s3184
      // Predicated region
      $region41: #{unet_up.7} parent=39 // pred_check
        %p3186 = pneg %p146
      $region42: #{unet_up.7} parent=39 // pred_check_branch
        %3188 = sbr.rel (%p3186) target = $region44
      $region43: #{unet_up.7} parent=39 // pred_region
        _
      $region44: #{unet_up.7} parent=39 // pred_fallthru
        _
      // Predicated region
      $region45: #{unet_up.7} parent=39 // pred_check
        %p3189 = pneg %p172
      $region46: #{unet_up.7} parent=39 // pred_check_branch
        %3191 = sbr.rel (%p3189) target = $region48
      $region47: #{unet_up.7} parent=39 // pred_region
        _
      $region48: #{unet_up.7} parent=39 // pred_fallthru
        _
    $region40: #{unet_up.7} parent=5 // pred_fallthru
      _
    %p3192 = scmp.le.s32.totalorder 2, %s13
    // Predicated region
    $region49: #{unet_up.7} parent=5 // pred_check
      %p3193 = pneg %p3192
    $region50: #{unet_up.7} parent=5 // pred_check_branch
      %3195 = sbr.rel (%p3193) target = $region52
    $region51: #{unet_up.7} parent=5 // pred_region
      %s3196 = ssub.s32 %s13, 2
      // Predicated region
      $region53: #{unet_up.7} parent=51 // pred_check
        %p3197 = pneg %p152
      $region54: #{unet_up.7} parent=51 // pred_check_branch
        %3199 = sbr.rel (%p3197) target = $region56
      $region55: #{unet_up.7} parent=51 // pred_region
        %p3200 = scmp.lt.s32.totalorder %s19, 1
        %s3201 = scalar_select %p3200, %s19, 1
        %s3202 = smul.addr %s3201, 10
        %s3203 = smul.addr %s3202, 2
        %s3204 = scalar_lea.vmem %s5, %s3203
      $region56: #{unet_up.7} parent=51 // pred_fallthru
        _
      // Predicated region
      $region57: #{unet_up.7} parent=51 // pred_check
        %p3205 = pneg %p178
      $region58: #{unet_up.7} parent=51 // pred_check_branch
        %3207 = sbr.rel (%p3205) target = $region60
      $region59: #{unet_up.7} parent=51 // pred_region
        %p3208 = scmp.lt.s32.totalorder %s19, 1
        %s3209 = scalar_select %p3208, %s19, 1
        %s3210 = smul.addr %s3209, 4
        %s3211 = scalar_lea.vmem %s6, %s3210
      $region60: #{unet_up.7} parent=51 // pred_fallthru
        _
    $region52: #{unet_up.7} parent=5 // pred_fallthru
      _
  $region6: #{unet_up.7} parent=0 // loop_footer
    %s17 = sadd.s32 1, %s13
  $region7: #{unet_up.7} parent=0 // loop_footer_branch
    %12 = sbr.rel target = $region3
  $region8: #{unet_up.7} parent=0 // loop_exit
    _

</llo_original>
